<compile_context>
chip_gen: v7x
topology: tpu7x:2x2x1
jax: 0.10.0
libtpu: 0.0.40
codegen_flags: <defaults>
</compile_context>

<pallas_src>
import jax
import jax.numpy as jnp
from jax.experimental import pallas as pl
from jax.experimental.pallas import tpu as pltpu


# ------------------------------ Pallas kernels --------------------------------

def _conv_relu_pool_kernel(a_ref, w_ref, b_ref, o_ref):
    """One image of: relu(maxpool2x2(conv3x3_s2(x) + b)).

    a_ref : (1, 4, K, M)   im2col patches; axis 1 = the 4 conv pixels of each 2x2
                           pool window, K = 9*Cin taps, M = Hp*Wp pooled pixels (bf16)
    w_ref : (Cout, K)      conv weight as a matmul LHS (bf16)
    b_ref : (Cout, 1)      bias (f32)
    o_ref : (1, Cout, M)   pooled + relu'd output (bf16), lane-dense over pixels
    """
    w = w_ref[...]
    acc = jnp.dot(w, a_ref[0, 0], preferred_element_type=jnp.float32)
    for q in range(1, 4):                                   # max over the 2x2 window
        acc = jnp.maximum(
            acc, jnp.dot(w, a_ref[0, q], preferred_element_type=jnp.float32))
    acc = jnp.maximum(acc + b_ref[...], 0.0)                # bias + ReLU in f32
    o_ref[0] = acc.astype(o_ref.dtype)


def _mlp_head_kernel(x_ref, w1_ref, b1_ref, w2_ref, b2_ref, o_ref):
    """sigmoid(relu(x @ w1 + b1) @ w2 + b2) — both FC layers in one kernel."""
    h = jnp.dot(x_ref[...], w1_ref[...], preferred_element_type=jnp.float32)
    h = jnp.maximum(h + b1_ref[...], 0.0)
    y = jnp.dot(h, w2_ref[...], preferred_element_type=jnp.float32) + b2_ref[...]
    o_ref[...] = jax.nn.sigmoid(y).astype(o_ref.dtype)


# ------------------------------ wrappers ---------------------------------------

def _pool_window_patches(x, Hp, Wp):
    """im2col for conv(k=3, s=2, p=0) fused with the following 2x2 max-pool.

    x: (N, Cin, H, W) NCHW.  Returns (N, 4, 9*Cin, Hp*Wp); axis 1 indexes the four
    conv-output pixels (dy, dx) of each pool window, rows are (ki, kj, cin)-major
    taps, lanes are the (ph, pw)-major pooled pixels.
    """
    # TODO(synk): patch extraction is still XLA slice/concat glue feeding the fused
    # kernel; a fully in-kernel gather would need strided sublane slicing in Mosaic.
    N, Cin, H, W = x.shape
    quads = []
    for dy in range(2):
        for dx in range(2):
            taps = []
            for ki in range(3):
                for kj in range(3):
                    r0 = 2 * dy + ki
                    c0 = 2 * dx + kj
                    taps.append(
                        x[:, :, r0:r0 + 4 * Hp - 3:4, c0:c0 + 4 * Wp - 3:4])
            quad = jnp.concatenate(taps, axis=1)             # (N, 9*Cin, Hp, Wp)
            quads.append(quad.reshape(N, 9 * Cin, Hp * Wp))
    return jnp.stack(quads, axis=1)                          # (N, 4, 9*Cin, Hp*Wp)


def conv3x3s2_relu_pool(x, w, b):
    """relu(maxpool2(conv2d(x, w, b, k=3, s=2, p=0))) as one fused pallas_call.

    x: (N, Cin, H, W) NCHW bf16; w: (Cout, Cin, 3, 3) (PyTorch layout); b: (Cout,).
    Returns (N, Cout, Hp, Wp) NCHW bf16.
    """
    N, Cin, H, W = x.shape
    Cout = w.shape[0]
    Ho, Wo = (H - 3) // 2 + 1, (W - 3) // 2 + 1
    Hp, Wp = Ho // 2, Wo // 2                 # floor mode, matches nn.MaxPool2d(2)
    M, K = Hp * Wp, 9 * Cin

    patches = _pool_window_patches(x, Hp, Wp)                # (N, 4, K, M) bf16
    # (Cout, Cin, KH, KW) -> (Cout, KH, KW, Cin) -> (Cout, 9*Cin): matches tap order
    w_lhs = jnp.transpose(w, (0, 2, 3, 1)).reshape(Cout, K).astype(x.dtype)
    b2 = b.reshape(Cout, 1).astype(jnp.float32)

    out = pl.pallas_call(
        _conv_relu_pool_kernel,
        out_shape=jax.ShapeDtypeStruct((N, Cout, M), x.dtype),
        grid=(N,),
        in_specs=[
            pl.BlockSpec((1, 4, K, M), lambda n: (n, 0, 0, 0)),  # one image's patches
            pl.BlockSpec((Cout, K), lambda n: (0, 0)),           # full weight
            pl.BlockSpec((Cout, 1), lambda n: (0, 0)),           # bias
        ],
        out_specs=pl.BlockSpec((1, Cout, M), lambda n: (n, 0, 0)),
        compiler_params=pltpu.CompilerParams(dimension_semantics=("parallel",)),
    )(patches, w_lhs, b2)
    return out.reshape(N, Cout, Hp, Wp)


def mlp_head(feats, w1, b1, w2, b2):
    """sigmoid(relu(feats @ w1 + b1) @ w2 + b2) as a single Pallas kernel."""
    N = feats.shape[0]
    return pl.pallas_call(
        _mlp_head_kernel,
        out_shape=jax.ShapeDtypeStruct((N, 1), jnp.float32),
    )(feats.astype(jnp.float32),
      w1.astype(jnp.float32), b1.reshape(1, -1).astype(jnp.float32),
      w2.astype(jnp.float32), b2.reshape(1, -1).astype(jnp.float32))


# ------------------------------ the model --------------------------------------

def init_params(key):
    ks = jax.random.split(key, 10)
    s = 0.05
    return {
        "w1": jax.random.normal(ks[0], (16, 3, 3, 3), jnp.float32) * s,
        "b1": jax.random.normal(ks[1], (16,), jnp.float32) * s,
        "w2": jax.random.normal(ks[2], (32, 16, 3, 3), jnp.float32) * s,
        "b2": jax.random.normal(ks[3], (32,), jnp.float32) * s,
        "w3": jax.random.normal(ks[4], (64, 32, 3, 3), jnp.float32) * s,
        "b3": jax.random.normal(ks[5], (64,), jnp.float32) * s,
        # stored as (in, out); equivalent to PyTorch's (out, in) transposed.  Row
        # order is PyTorch's channel-major Flatten() order (c*9 + spatial).
        "w_fc1": jax.random.normal(ks[6], (576, 10), jnp.float32) * s,
        "b_fc1": jax.random.normal(ks[7], (10,), jnp.float32) * s,
        "w_fc2": jax.random.normal(ks[8], (10, 1), jnp.float32) * s,
        "b_fc2": jax.random.normal(ks[9], (1,), jnp.float32) * s,
    }


def cnn_forward(x_nchw, params):
    # Stay in NCHW end-to-end; bf16 activations, f32 accumulation inside kernels.
    x = x_nchw.astype(jnp.bfloat16)
    x = conv3x3s2_relu_pool(x, params["w1"], params["b1"])   # (N, 16, 55, 55)
    x = conv3x3s2_relu_pool(x, params["w2"], params["b2"])   # (N, 32, 13, 13)
    x = conv3x3s2_relu_pool(x, params["w3"], params["b3"])   # (N, 64, 3, 3)
    n = x.shape[0]
    feats = x.reshape(n, 576)            # NCHW flatten == torch.nn.Flatten() order
    return mlp_head(feats, params["w_fc1"], params["b_fc1"],
                    params["w_fc2"], params["b_fc2"])        # (N, 1) f32


if __name__ == "__main__":
    params = init_params(jax.random.PRNGKey(1))
    # Input spatial size 224 is implied by fc_1 (in_features = 576 = 64*3*3).
    x = jax.random.normal(jax.random.PRNGKey(0), (2, 3, 224, 224), jnp.float32)
    out = jax.jit(lambda inp: cnn_forward(inp, params))(x)
    out = jax.block_until_ready(out)
    assert out.shape == (2, 1) and out.dtype == jnp.float32
    assert bool(jnp.all((out >= 0.0) & (out <= 1.0)))
    print("KERNEL_OK")
</pallas_src>

<mosaic_0001>
module attributes {stable_mosaic.version = 11 : i64} {
  func.func @_conv_relu_pool_kernel(%arg0: i32, %arg1: memref<1x4x27x3025xbf16, #tpu.memory_space<vmem>>, %arg2: memref<16x27xbf16, #tpu.memory_space<vmem>>, %arg3: memref<16x1xf32, #tpu.memory_space<vmem>>, %arg4: memref<1x16x3025xbf16, #tpu.memory_space<vmem>>) attributes {dimension_semantics = [#tpu.dimension_semantics<parallel>], iteration_bounds = array<i64: 2>, scalar_prefetch = 0 : i64, scratch_operands = 0 : i64, tpu.core_type = #tpu.core_type<tc>, window_params = [{transform_indices = @transform_0, window_bounds = array<i64: 1, 4, 27, 3025>}, {pipeline_mode = #tpu.pipeline_mode<synchronous>, transform_indices = @transform_1, window_bounds = array<i64: 16, 27>}, {pipeline_mode = #tpu.pipeline_mode<synchronous>, transform_indices = @transform_2, window_bounds = array<i64: 16, 1>}, {transform_indices = @transform_3, window_bounds = array<i64: 1, 16, 3025>}]} {
    %c0 = arith.constant 0 : index
    %c0_0 = arith.constant 0 : index
    %0 = vector.load %arg2[%c0, %c0_0] : memref<16x27xbf16, #tpu.memory_space<vmem>>, vector<16x27xbf16>
    %c0_1 = arith.constant 0 : index
    %c0_2 = arith.constant 0 : index
    %c0_3 = arith.constant 0 : index
    %c0_4 = arith.constant 0 : index
    %1 = vector.load %arg1[%c0_1, %c0_2, %c0_3, %c0_4] : memref<1x4x27x3025xbf16, #tpu.memory_space<vmem>>, vector<1x1x27x3025xbf16>
    %2 = vector.shape_cast %1 : vector<1x1x27x3025xbf16> to vector<27x3025xbf16>
    %cst = arith.constant dense<0.000000e+00> : vector<16x3025xf32>
    %3 = tpu.matmul %0, %2, %cst {dimension_numbers = #tpu.dot_dimension_numbers<[1], [0], [0], [1], [0, 0, 1, 1], [], []>} : vector<16x27xbf16>, vector<27x3025xbf16>, vector<16x3025xf32> -> vector<16x3025xf32>
    %c0_5 = arith.constant 0 : index
    %c1 = arith.constant 1 : index
    %c0_6 = arith.constant 0 : index
    %c0_7 = arith.constant 0 : index
    %4 = vector.load %arg1[%c0_5, %c1, %c0_6, %c0_7] : memref<1x4x27x3025xbf16, #tpu.memory_space<vmem>>, vector<1x1x27x3025xbf16>
    %5 = vector.shape_cast %4 : vector<1x1x27x3025xbf16> to vector<27x3025xbf16>
    %cst_8 = arith.constant dense<0.000000e+00> : vector<16x3025xf32>
    %6 = tpu.matmul %0, %5, %cst_8 {dimension_numbers = #tpu.dot_dimension_numbers<[1], [0], [0], [1], [0, 0, 1, 1], [], []>} : vector<16x27xbf16>, vector<27x3025xbf16>, vector<16x3025xf32> -> vector<16x3025xf32>
    %7 = arith.maximumf %3, %6 : vector<16x3025xf32>
    %c0_9 = arith.constant 0 : index
    %c2 = arith.constant 2 : index
    %c0_10 = arith.constant 0 : index
    %c0_11 = arith.constant 0 : index
    %8 = vector.load %arg1[%c0_9, %c2, %c0_10, %c0_11] : memref<1x4x27x3025xbf16, #tpu.memory_space<vmem>>, vector<1x1x27x3025xbf16>
    %9 = vector.shape_cast %8 : vector<1x1x27x3025xbf16> to vector<27x3025xbf16>
    %cst_12 = arith.constant dense<0.000000e+00> : vector<16x3025xf32>
    %10 = tpu.matmul %0, %9, %cst_12 {dimension_numbers = #tpu.dot_dimension_numbers<[1], [0], [0], [1], [0, 0, 1, 1], [], []>} : vector<16x27xbf16>, vector<27x3025xbf16>, vector<16x3025xf32> -> vector<16x3025xf32>
    %11 = arith.maximumf %7, %10 : vector<16x3025xf32>
    %c0_13 = arith.constant 0 : index
    %c3 = arith.constant 3 : index
    %c0_14 = arith.constant 0 : index
    %c0_15 = arith.constant 0 : index
    %12 = vector.load %arg1[%c0_13, %c3, %c0_14, %c0_15] : memref<1x4x27x3025xbf16, #tpu.memory_space<vmem>>, vector<1x1x27x3025xbf16>
    %13 = vector.shape_cast %12 : vector<1x1x27x3025xbf16> to vector<27x3025xbf16>
    %cst_16 = arith.constant dense<0.000000e+00> : vector<16x3025xf32>
    %14 = tpu.matmul %0, %13, %cst_16 {dimension_numbers = #tpu.dot_dimension_numbers<[1], [0], [0], [1], [0, 0, 1, 1], [], []>} : vector<16x27xbf16>, vector<27x3025xbf16>, vector<16x3025xf32> -> vector<16x3025xf32>
    %15 = arith.maximumf %11, %14 : vector<16x3025xf32>
    %c0_17 = arith.constant 0 : index
    %c0_18 = arith.constant 0 : index
    %16 = vector.load %arg3[%c0_17, %c0_18] : memref<16x1xf32, #tpu.memory_space<vmem>>, vector<16x1xf32>
    %17 = vector.broadcast %16 : vector<16x1xf32> to vector<16x3025xf32>
    %18 = arith.addf %15, %17 : vector<16x3025xf32>
    %cst_19 = arith.constant 0.000000e+00 : f32
    %19 = vector.broadcast %cst_19 : f32 to vector<16x3025xf32>
    %20 = arith.maximumf %18, %19 : vector<16x3025xf32>
    %21 = arith.truncf %20 : vector<16x3025xf32> to vector<16x3025xbf16>
    %c0_20 = arith.constant 0 : index
    %c0_21 = arith.constant 0 : index
    %c0_22 = arith.constant 0 : index
    %22 = vector.load %arg4[%c0_20, %c0_21, %c0_22] : memref<1x16x3025xbf16, #tpu.memory_space<vmem>>, vector<1x16x3025xbf16>
    %23 = vector.shape_cast %22 : vector<1x16x3025xbf16> to vector<16x3025xbf16>
    %24 = vector.shape_cast %21 : vector<16x3025xbf16> to vector<1x16x3025xbf16>
    tpu.vector_store %arg4[%c0_20, %c0_21, %c0_22], %24 {strides = array<i32>} : memref<1x16x3025xbf16, #tpu.memory_space<vmem>>, vector<1x16x3025xbf16>,
    return
  }
  func.func @transform_0(%arg0: i32) -> (i32, i32, i32, i32) {
    %c0_i32 = arith.constant 0 : i32
    %c0_i32_0 = arith.constant 0 : i32
    %c0_i32_1 = arith.constant 0 : i32
    %c0_i32_2 = arith.constant 0 : i32
    return %arg0, %c0_i32, %c0_i32_0, %c0_i32_1 : i32, i32, i32, i32
  }
  func.func @transform_1(%arg0: i32) -> (i32, i32) {
    %c0_i32 = arith.constant 0 : i32
    %c0_i32_0 = arith.constant 0 : i32
    %c0_i32_1 = arith.constant 0 : i32
    return %c0_i32, %c0_i32_0 : i32, i32
  }
  func.func @transform_2(%arg0: i32) -> (i32, i32) {
    %c0_i32 = arith.constant 0 : i32
    %c0_i32_0 = arith.constant 0 : i32
    %c0_i32_1 = arith.constant 0 : i32
    return %c0_i32, %c0_i32_0 : i32, i32
  }
  func.func @transform_3(%arg0: i32) -> (i32, i32, i32) {
    %c0_i32 = arith.constant 0 : i32
    %c0_i32_0 = arith.constant 0 : i32
    %c0_i32_1 = arith.constant 0 : i32
    return %arg0, %c0_i32, %c0_i32_0 : i32, i32, i32
  }
}

module attributes {stable_mosaic.version = 11 : i64} {
  func.func @_conv_relu_pool_kernel(%arg0: i32, %arg1: memref<1x4x144x169xbf16, #tpu.memory_space<vmem>>, %arg2: memref<32x144xbf16, #tpu.memory_space<vmem>>, %arg3: memref<32x1xf32, #tpu.memory_space<vmem>>, %arg4: memref<1x32x169xbf16, #tpu.memory_space<vmem>>) attributes {dimension_semantics = [#tpu.dimension_semantics<parallel>], iteration_bounds = array<i64: 2>, scalar_prefetch = 0 : i64, scratch_operands = 0 : i64, tpu.core_type = #tpu.core_type<tc>, window_params = [{transform_indices = @transform_0, window_bounds = array<i64: 1, 4, 144, 169>}, {pipeline_mode = #tpu.pipeline_mode<synchronous>, transform_indices = @transform_1, window_bounds = array<i64: 32, 144>}, {pipeline_mode = #tpu.pipeline_mode<synchronous>, transform_indices = @transform_2, window_bounds = array<i64: 32, 1>}, {transform_indices = @transform_3, window_bounds = array<i64: 1, 32, 169>}]} {
    %c0 = arith.constant 0 : index
    %c0_0 = arith.constant 0 : index
    %0 = vector.load %arg2[%c0, %c0_0] : memref<32x144xbf16, #tpu.memory_space<vmem>>, vector<32x144xbf16>
    %c0_1 = arith.constant 0 : index
    %c0_2 = arith.constant 0 : index
    %c0_3 = arith.constant 0 : index
    %c0_4 = arith.constant 0 : index
    %1 = vector.load %arg1[%c0_1, %c0_2, %c0_3, %c0_4] : memref<1x4x144x169xbf16, #tpu.memory_space<vmem>>, vector<1x1x144x169xbf16>
    %2 = vector.shape_cast %1 : vector<1x1x144x169xbf16> to vector<144x169xbf16>
    %cst = arith.constant dense<0.000000e+00> : vector<32x169xf32>
    %3 = tpu.matmul %0, %2, %cst {dimension_numbers = #tpu.dot_dimension_numbers<[1], [0], [0], [1], [0, 0, 1, 1], [], []>} : vector<32x144xbf16>, vector<144x169xbf16>, vector<32x169xf32> -> vector<32x169xf32>
    %c0_5 = arith.constant 0 : index
    %c1 = arith.constant 1 : index
    %c0_6 = arith.constant 0 : index
    %c0_7 = arith.constant 0 : index
    %4 = vector.load %arg1[%c0_5, %c1, %c0_6, %c0_7] : memref<1x4x144x169xbf16, #tpu.memory_space<vmem>>, vector<1x1x144x169xbf16>
    %5 = vector.shape_cast %4 : vector<1x1x144x169xbf16> to vector<144x169xbf16>
    %cst_8 = arith.constant dense<0.000000e+00> : vector<32x169xf32>
    %6 = tpu.matmul %0, %5, %cst_8 {dimension_numbers = #tpu.dot_dimension_numbers<[1], [0], [0], [1], [0, 0, 1, 1], [], []>} : vector<32x144xbf16>, vector<144x169xbf16>, vector<32x169xf32> -> vector<32x169xf32>
    %7 = arith.maximumf %3, %6 : vector<32x169xf32>
    %c0_9 = arith.constant 0 : index
    %c2 = arith.constant 2 : index
    %c0_10 = arith.constant 0 : index
    %c0_11 = arith.constant 0 : index
    %8 = vector.load %arg1[%c0_9, %c2, %c0_10, %c0_11] : memref<1x4x144x169xbf16, #tpu.memory_space<vmem>>, vector<1x1x144x169xbf16>
    %9 = vector.shape_cast %8 : vector<1x1x144x169xbf16> to vector<144x169xbf16>
    %cst_12 = arith.constant dense<0.000000e+00> : vector<32x169xf32>
    %10 = tpu.matmul %0, %9, %cst_12 {dimension_numbers = #tpu.dot_dimension_numbers<[1], [0], [0], [1], [0, 0, 1, 1], [], []>} : vector<32x144xbf16>, vector<144x169xbf16>, vector<32x169xf32> -> vector<32x169xf32>
    %11 = arith.maximumf %7, %10 : vector<32x169xf32>
    %c0_13 = arith.constant 0 : index
    %c3 = arith.constant 3 : index
    %c0_14 = arith.constant 0 : index
    %c0_15 = arith.constant 0 : index
    %12 = vector.load %arg1[%c0_13, %c3, %c0_14, %c0_15] : memref<1x4x144x169xbf16, #tpu.memory_space<vmem>>, vector<1x1x144x169xbf16>
    %13 = vector.shape_cast %12 : vector<1x1x144x169xbf16> to vector<144x169xbf16>
    %cst_16 = arith.constant dense<0.000000e+00> : vector<32x169xf32>
    %14 = tpu.matmul %0, %13, %cst_16 {dimension_numbers = #tpu.dot_dimension_numbers<[1], [0], [0], [1], [0, 0, 1, 1], [], []>} : vector<32x144xbf16>, vector<144x169xbf16>, vector<32x169xf32> -> vector<32x169xf32>
    %15 = arith.maximumf %11, %14 : vector<32x169xf32>
    %c0_17 = arith.constant 0 : index
    %c0_18 = arith.constant 0 : index
    %16 = vector.load %arg3[%c0_17, %c0_18] : memref<32x1xf32, #tpu.memory_space<vmem>>, vector<32x1xf32>
    %17 = vector.broadcast %16 : vector<32x1xf32> to vector<32x169xf32>
    %18 = arith.addf %15, %17 : vector<32x169xf32>
    %cst_19 = arith.constant 0.000000e+00 : f32
    %19 = vector.broadcast %cst_19 : f32 to vector<32x169xf32>
    %20 = arith.maximumf %18, %19 : vector<32x169xf32>
    %21 = arith.truncf %20 : vector<32x169xf32> to vector<32x169xbf16>
    %c0_20 = arith.constant 0 : index
    %c0_21 = arith.constant 0 : index
    %c0_22 = arith.constant 0 : index
    %22 = vector.load %arg4[%c0_20, %c0_21, %c0_22] : memref<1x32x169xbf16, #tpu.memory_space<vmem>>, vector<1x32x169xbf16>
    %23 = vector.shape_cast %22 : vector<1x32x169xbf16> to vector<32x169xbf16>
    %24 = vector.shape_cast %21 : vector<32x169xbf16> to vector<1x32x169xbf16>
    tpu.vector_store %arg4[%c0_20, %c0_21, %c0_22], %24 {strides = array<i32>} : memref<1x32x169xbf16, #tpu.memory_space<vmem>>, vector<1x32x169xbf16>,
    return
  }
  func.func @transform_0(%arg0: i32) -> (i32, i32, i32, i32) {
    %c0_i32 = arith.constant 0 : i32
    %c0_i32_0 = arith.constant 0 : i32
    %c0_i32_1 = arith.constant 0 : i32
    %c0_i32_2 = arith.constant 0 : i32
    return %arg0, %c0_i32, %c0_i32_0, %c0_i32_1 : i32, i32, i32, i32
  }
  func.func @transform_1(%arg0: i32) -> (i32, i32) {
    %c0_i32 = arith.constant 0 : i32
    %c0_i32_0 = arith.constant 0 : i32
    %c0_i32_1 = arith.constant 0 : i32
    return %c0_i32, %c0_i32_0 : i32, i32
  }
  func.func @transform_2(%arg0: i32) -> (i32, i32) {
    %c0_i32 = arith.constant 0 : i32
    %c0_i32_0 = arith.constant 0 : i32
    %c0_i32_1 = arith.constant 0 : i32
    return %c0_i32, %c0_i32_0 : i32, i32
  }
  func.func @transform_3(%arg0: i32) -> (i32, i32, i32) {
    %c0_i32 = arith.constant 0 : i32
    %c0_i32_0 = arith.constant 0 : i32
    %c0_i32_1 = arith.constant 0 : i32
    return %arg0, %c0_i32, %c0_i32_0 : i32, i32, i32
  }
}

module attributes {stable_mosaic.version = 11 : i64} {
  func.func @_conv_relu_pool_kernel(%arg0: i32, %arg1: memref<1x4x288x9xbf16, #tpu.memory_space<vmem>>, %arg2: memref<64x288xbf16, #tpu.memory_space<vmem>>, %arg3: memref<64x1xf32, #tpu.memory_space<vmem>>, %arg4: memref<1x64x9xbf16, #tpu.memory_space<vmem>>) attributes {dimension_semantics = [#tpu.dimension_semantics<parallel>], iteration_bounds = array<i64: 2>, scalar_prefetch = 0 : i64, scratch_operands = 0 : i64, tpu.core_type = #tpu.core_type<tc>, window_params = [{transform_indices = @transform_0, window_bounds = array<i64: 1, 4, 288, 9>}, {pipeline_mode = #tpu.pipeline_mode<synchronous>, transform_indices = @transform_1, window_bounds = array<i64: 64, 288>}, {pipeline_mode = #tpu.pipeline_mode<synchronous>, transform_indices = @transform_2, window_bounds = array<i64: 64, 1>}, {transform_indices = @transform_3, window_bounds = array<i64: 1, 64, 9>}]} {
    %c0 = arith.constant 0 : index
    %c0_0 = arith.constant 0 : index
    %0 = vector.load %arg2[%c0, %c0_0] : memref<64x288xbf16, #tpu.memory_space<vmem>>, vector<64x288xbf16>
    %c0_1 = arith.constant 0 : index
    %c0_2 = arith.constant 0 : index
    %c0_3 = arith.constant 0 : index
    %c0_4 = arith.constant 0 : index
    %1 = vector.load %arg1[%c0_1, %c0_2, %c0_3, %c0_4] : memref<1x4x288x9xbf16, #tpu.memory_space<vmem>>, vector<1x1x288x9xbf16>
    %2 = vector.shape_cast %1 : vector<1x1x288x9xbf16> to vector<288x9xbf16>
    %cst = arith.constant dense<0.000000e+00> : vector<64x9xf32>
    %3 = tpu.matmul %0, %2, %cst {dimension_numbers = #tpu.dot_dimension_numbers<[1], [0], [0], [1], [0, 0, 1, 1], [], []>} : vector<64x288xbf16>, vector<288x9xbf16>, vector<64x9xf32> -> vector<64x9xf32>
    %c0_5 = arith.constant 0 : index
    %c1 = arith.constant 1 : index
    %c0_6 = arith.constant 0 : index
    %c0_7 = arith.constant 0 : index
    %4 = vector.load %arg1[%c0_5, %c1, %c0_6, %c0_7] : memref<1x4x288x9xbf16, #tpu.memory_space<vmem>>, vector<1x1x288x9xbf16>
    %5 = vector.shape_cast %4 : vector<1x1x288x9xbf16> to vector<288x9xbf16>
    %cst_8 = arith.constant dense<0.000000e+00> : vector<64x9xf32>
    %6 = tpu.matmul %0, %5, %cst_8 {dimension_numbers = #tpu.dot_dimension_numbers<[1], [0], [0], [1], [0, 0, 1, 1], [], []>} : vector<64x288xbf16>, vector<288x9xbf16>, vector<64x9xf32> -> vector<64x9xf32>
    %7 = arith.maximumf %3, %6 : vector<64x9xf32>
    %c0_9 = arith.constant 0 : index
    %c2 = arith.constant 2 : index
    %c0_10 = arith.constant 0 : index
    %c0_11 = arith.constant 0 : index
    %8 = vector.load %arg1[%c0_9, %c2, %c0_10, %c0_11] : memref<1x4x288x9xbf16, #tpu.memory_space<vmem>>, vector<1x1x288x9xbf16>
    %9 = vector.shape_cast %8 : vector<1x1x288x9xbf16> to vector<288x9xbf16>
    %cst_12 = arith.constant dense<0.000000e+00> : vector<64x9xf32>
    %10 = tpu.matmul %0, %9, %cst_12 {dimension_numbers = #tpu.dot_dimension_numbers<[1], [0], [0], [1], [0, 0, 1, 1], [], []>} : vector<64x288xbf16>, vector<288x9xbf16>, vector<64x9xf32> -> vector<64x9xf32>
    %11 = arith.maximumf %7, %10 : vector<64x9xf32>
    %c0_13 = arith.constant 0 : index
    %c3 = arith.constant 3 : index
    %c0_14 = arith.constant 0 : index
    %c0_15 = arith.constant 0 : index
    %12 = vector.load %arg1[%c0_13, %c3, %c0_14, %c0_15] : memref<1x4x288x9xbf16, #tpu.memory_space<vmem>>, vector<1x1x288x9xbf16>
    %13 = vector.shape_cast %12 : vector<1x1x288x9xbf16> to vector<288x9xbf16>
    %cst_16 = arith.constant dense<0.000000e+00> : vector<64x9xf32>
    %14 = tpu.matmul %0, %13, %cst_16 {dimension_numbers = #tpu.dot_dimension_numbers<[1], [0], [0], [1], [0, 0, 1, 1], [], []>} : vector<64x288xbf16>, vector<288x9xbf16>, vector<64x9xf32> -> vector<64x9xf32>
    %15 = arith.maximumf %11, %14 : vector<64x9xf32>
    %c0_17 = arith.constant 0 : index
    %c0_18 = arith.constant 0 : index
    %16 = vector.load %arg3[%c0_17, %c0_18] : memref<64x1xf32, #tpu.memory_space<vmem>>, vector<64x1xf32>
    %17 = vector.broadcast %16 : vector<64x1xf32> to vector<64x9xf32>
    %18 = arith.addf %15, %17 : vector<64x9xf32>
    %cst_19 = arith.constant 0.000000e+00 : f32
    %19 = vector.broadcast %cst_19 : f32 to vector<64x9xf32>
    %20 = arith.maximumf %18, %19 : vector<64x9xf32>
    %21 = arith.truncf %20 : vector<64x9xf32> to vector<64x9xbf16>
    %c0_20 = arith.constant 0 : index
    %c0_21 = arith.constant 0 : index
    %c0_22 = arith.constant 0 : index
    %22 = vector.load %arg4[%c0_20, %c0_21, %c0_22] : memref<1x64x9xbf16, #tpu.memory_space<vmem>>, vector<1x64x9xbf16>
    %23 = vector.shape_cast %22 : vector<1x64x9xbf16> to vector<64x9xbf16>
    %24 = vector.shape_cast %21 : vector<64x9xbf16> to vector<1x64x9xbf16>
    tpu.vector_store %arg4[%c0_20, %c0_21, %c0_22], %24 {strides = array<i32>} : memref<1x64x9xbf16, #tpu.memory_space<vmem>>, vector<1x64x9xbf16>,
    return
  }
  func.func @transform_0(%arg0: i32) -> (i32, i32, i32, i32) {
    %c0_i32 = arith.constant 0 : i32
    %c0_i32_0 = arith.constant 0 : i32
    %c0_i32_1 = arith.constant 0 : i32
    %c0_i32_2 = arith.constant 0 : i32
    return %arg0, %c0_i32, %c0_i32_0, %c0_i32_1 : i32, i32, i32, i32
  }
  func.func @transform_1(%arg0: i32) -> (i32, i32) {
    %c0_i32 = arith.constant 0 : i32
    %c0_i32_0 = arith.constant 0 : i32
    %c0_i32_1 = arith.constant 0 : i32
    return %c0_i32, %c0_i32_0 : i32, i32
  }
  func.func @transform_2(%arg0: i32) -> (i32, i32) {
    %c0_i32 = arith.constant 0 : i32
    %c0_i32_0 = arith.constant 0 : i32
    %c0_i32_1 = arith.constant 0 : i32
    return %c0_i32, %c0_i32_0 : i32, i32
  }
  func.func @transform_3(%arg0: i32) -> (i32, i32, i32) {
    %c0_i32 = arith.constant 0 : i32
    %c0_i32_0 = arith.constant 0 : i32
    %c0_i32_1 = arith.constant 0 : i32
    return %arg0, %c0_i32, %c0_i32_0 : i32, i32, i32
  }
}

module attributes {stable_mosaic.version = 11 : i64} {
  func.func @_mlp_head_kernel(%arg0: memref<2x576xf32, #tpu.memory_space<vmem>>, %arg1: memref<576x10xf32, #tpu.memory_space<vmem>>, %arg2: memref<1x10xf32, #tpu.memory_space<vmem>>, %arg3: memref<10x1xf32, #tpu.memory_space<vmem>>, %arg4: memref<1x1xf32, #tpu.memory_space<vmem>>, %arg5: memref<2x1xf32, #tpu.memory_space<vmem>>) attributes {dimension_semantics = [], scalar_prefetch = 0 : i64, scratch_operands = 0 : i64, tpu.core_type = #tpu.core_type<tc>} {
    %c0 = arith.constant 0 : index
    %c0_0 = arith.constant 0 : index
    %0 = vector.load %arg0[%c0, %c0_0] : memref<2x576xf32, #tpu.memory_space<vmem>>, vector<2x576xf32>
    %c0_1 = arith.constant 0 : index
    %c0_2 = arith.constant 0 : index
    %1 = vector.load %arg1[%c0_1, %c0_2] : memref<576x10xf32, #tpu.memory_space<vmem>>, vector<576x10xf32>
    %cst = arith.constant dense<0.000000e+00> : vector<2x10xf32>
    %2 = tpu.matmul %0, %1, %cst {dimension_numbers = #tpu.dot_dimension_numbers<[1], [0], [0], [1], [0, 0, 1, 1], [], []>} : vector<2x576xf32>, vector<576x10xf32>, vector<2x10xf32> -> vector<2x10xf32>
    %c0_3 = arith.constant 0 : index
    %c0_4 = arith.constant 0 : index
    %3 = vector.load %arg2[%c0_3, %c0_4] : memref<1x10xf32, #tpu.memory_space<vmem>>, vector<1x10xf32>
    %4 = vector.broadcast %3 : vector<1x10xf32> to vector<2x10xf32>
    %5 = arith.addf %2, %4 : vector<2x10xf32>
    %cst_5 = arith.constant 0.000000e+00 : f32
    %6 = vector.broadcast %cst_5 : f32 to vector<2x10xf32>
    %7 = arith.maximumf %5, %6 : vector<2x10xf32>
    %c0_6 = arith.constant 0 : index
    %c0_7 = arith.constant 0 : index
    %8 = vector.load %arg3[%c0_6, %c0_7] : memref<10x1xf32, #tpu.memory_space<vmem>>, vector<10x1xf32>
    %cst_8 = arith.constant dense<0.000000e+00> : vector<2x1xf32>
    %9 = tpu.matmul %7, %8, %cst_8 {dimension_numbers = #tpu.dot_dimension_numbers<[1], [0], [0], [1], [0, 0, 1, 1], [], []>} : vector<2x10xf32>, vector<10x1xf32>, vector<2x1xf32> -> vector<2x1xf32>
    %c0_9 = arith.constant 0 : index
    %c0_10 = arith.constant 0 : index
    %10 = vector.load %arg4[%c0_9, %c0_10] : memref<1x1xf32, #tpu.memory_space<vmem>>, vector<1x1xf32>
    %11 = vector.broadcast %10 : vector<1x1xf32> to vector<2x1xf32>
    %12 = arith.addf %9, %11 : vector<2x1xf32>
    %13 = arith.negf %12 : vector<2x1xf32>
    %14 = math.exp %13 : vector<2x1xf32>
    %cst_11 = arith.constant 1.000000e+00 : f32
    %15 = vector.broadcast %cst_11 : f32 to vector<2x1xf32>
    %16 = arith.addf %15, %14 : vector<2x1xf32>
    %17 = arith.divf %15, %16 : vector<2x1xf32>
    %c0_12 = arith.constant 0 : index
    %c0_13 = arith.constant 0 : index
    %18 = vector.load %arg5[%c0_12, %c0_13] : memref<2x1xf32, #tpu.memory_space<vmem>>, vector<2x1xf32>
    tpu.vector_store %arg5[%c0_12, %c0_13], %17 {strides = array<i32>} : memref<2x1xf32, #tpu.memory_space<vmem>>, vector<2x1xf32>,
    return
  }
}

</mosaic_0001>

<llo_original>
// kernel: _lambda_.4
$region0: #{_lambda_.4}
  #allocation0 [shape = 'u32[]', space=smem, size = 0x4, offset = 0x4, fixed_abs, tag = 'smem constant byte address 0x4 - core index']
  #allocation1 [shape = 'u32[144,128]{1,0:T(1,128)}', space=vmem, size = 0x12000, scoped, tag = 'internal scratch']
  %s0 = inlined_call_operand.vmem [shape: bf16[2,4,27,3025], index: 0, kind: input, shape index: {}]
  %s1 = inlined_call_operand.vmem [shape: bf16[16,27], index: 1, kind: input, shape index: {}]
  %s2 = inlined_call_operand.vmem [shape: f32[16,1], index: 2, kind: input, shape index: {}]
  %s3 = inlined_call_operand.vmem [shape: bf16[2,16,3025], index: 3, kind: output, shape index: {}]
  %s4 = sld [smem:[#allocation0]]
  $region45: #{_lambda_.4} parent=0
    _
  %s6 = ssub.s32 1, %s4
  %s7 = scalar_select 0, %s6, %s4
  loop: start=0, step=1, limit=4
  $region2: #{_lambda_.4} parent=0 // loop_pre_header
    _
  $region3: #{_lambda_.4} parent=0 // loop_header
    %s9 = sphi 0, %s13
    %p10 = scmp.ge.s32.totalorder %s9, 4
    %s19 = sphi 0, %s21
    %s22 = sphi 0, %s19
    %s23 = sphi 0, %s22
    %s39 = sphi 0, %s23
    %s43 = sphi 0, %s43
    %s45 = sphi 0, %s43
    %s46 = sphi 0, %s45
    %s60 = sphi 0, %s46
    %s64 = sphi 0, %s64
    %s66 = sphi 0, %s64
    %s67 = sphi 0, %s66
    %s81 = sphi 0, %s67
    %s87 = sphi 0, %s89
    %s90 = sphi 0, %s87
    %s91 = sphi 0, %s90
    %s107 = sphi 0, %s91
  $region4: #{_lambda_.4} parent=0 // loop_header_branch
    %12 = sbr.rel (%p10) target = $region8
  $region5: #{_lambda_.4} parent=0 // loop_body
    %s14 = ssub.s32 %s9, 1
    %s15 = ssub.s32 %s9, 2
    %s16 = sadd.s32 %s9, 1
    %s17 = ssub.s32 %s9, %s16
    %p18 = scmp.eq.s32.totalorder %s17, 0
    %s20 = sadd.s32 %s19, 1
    %s21 = scalar_select %p18, %s19, %s20
    %p24 = pneg %p18
    %p25 = scmp.eq.s32.totalorder %s9, 1
    %p26 = por %p24, %p25
    %p27 = scmp.ne.s32.totalorder %s19, %s22
    %p28 = scmp.eq.s32.totalorder %s9, 0
    %p29 = por %p27, %p28
    %p30 = scmp.ne.s32.totalorder %s19, %s22
    %p31 = scmp.eq.s32.totalorder %s14, 1
    %p32 = por %p30, %p31
    %p33 = scmp.ne.s32.totalorder %s22, %s23
    %p34 = scmp.eq.s32.totalorder %s14, 0
    %p35 = por %p33, %p34
    %p36 = scmp.ne.s32.totalorder %s22, %s23
    %p37 = scmp.eq.s32.totalorder %s15, 1
    %p38 = por %p36, %p37
    %p40 = scmp.ne.s32.totalorder %s23, %s39
    %p41 = scmp.eq.s32.totalorder %s15, 0
    %p42 = por %p40, %p41
    %s44 = sadd.s32 %s43, 1
    %p47 = scmp.eq.s32.totalorder %s9, 1
    %p48 = scmp.ne.s32.totalorder %s43, %s45
    %p49 = scmp.eq.s32.totalorder %s9, 0
    %p50 = por %p48, %p49
    %p51 = scmp.ne.s32.totalorder %s43, %s45
    %p52 = scmp.eq.s32.totalorder %s14, 1
    %p53 = por %p51, %p52
    %p54 = scmp.ne.s32.totalorder %s45, %s46
    %p55 = scmp.eq.s32.totalorder %s14, 0
    %p56 = por %p54, %p55
    %p57 = scmp.ne.s32.totalorder %s45, %s46
    %p58 = scmp.eq.s32.totalorder %s15, 1
    %p59 = por %p57, %p58
    %p61 = scmp.ne.s32.totalorder %s46, %s60
    %p62 = scmp.eq.s32.totalorder %s15, 0
    %p63 = por %p61, %p62
    %s65 = sadd.s32 %s64, 1
    %p68 = scmp.eq.s32.totalorder %s9, 1
    %p69 = scmp.ne.s32.totalorder %s64, %s66
    %p70 = scmp.eq.s32.totalorder %s9, 0
    %p71 = por %p69, %p70
    %p72 = scmp.ne.s32.totalorder %s64, %s66
    %p73 = scmp.eq.s32.totalorder %s14, 1
    %p74 = por %p72, %p73
    %p75 = scmp.ne.s32.totalorder %s66, %s67
    %p76 = scmp.eq.s32.totalorder %s14, 0
    %p77 = por %p75, %p76
    %p78 = scmp.ne.s32.totalorder %s66, %s67
    %p79 = scmp.eq.s32.totalorder %s15, 1
    %p80 = por %p78, %p79
    %p82 = scmp.ne.s32.totalorder %s67, %s81
    %p83 = scmp.eq.s32.totalorder %s15, 0
    %p84 = por %p82, %p83
    %s85 = ssub.s32 %s9, %s16
    %p86 = scmp.eq.s32.totalorder %s85, 0
    %s88 = sadd.s32 %s87, 1
    %s89 = scalar_select %p86, %s87, %s88
    %p92 = pneg %p86
    %p93 = scmp.eq.s32.totalorder %s9, 1
    %p94 = por %p92, %p93
    %p95 = scmp.ne.s32.totalorder %s87, %s90
    %p96 = scmp.eq.s32.totalorder %s9, 0
    %p97 = por %p95, %p96
    %p98 = scmp.ne.s32.totalorder %s87, %s90
    %p99 = scmp.eq.s32.totalorder %s14, 1
    %p100 = por %p98, %p99
    %p101 = scmp.ne.s32.totalorder %s90, %s91
    %p102 = scmp.eq.s32.totalorder %s14, 0
    %p103 = por %p101, %p102
    %p104 = scmp.ne.s32.totalorder %s90, %s91
    %p105 = scmp.eq.s32.totalorder %s15, 1
    %p106 = por %p104, %p105
    %p108 = scmp.ne.s32.totalorder %s91, %s107
    %p109 = scmp.eq.s32.totalorder %s15, 0
    %p110 = por %p108, %p109
    %p111 = scmp.le.s32.totalorder 1, %s9
    %p112 = scmp.lt.s32.totalorder %s9, 3
    %p113 = pnand %p111, %p112
    %p114 = pneg %p113
    // Predicated region
    $region9: #{_lambda_.4} parent=5 // pred_check
      _
    $region10: #{_lambda_.4} parent=5 // pred_check_branch
      %116 = sbr.rel (%p113) target = $region12
    $region11: #{_lambda_.4} parent=5 // pred_region
      %s117 = ssub.s32 %s9, 1
      // Predicated region
      $region13: #{_lambda_.4} parent=11 // pred_check
        %p118 = pneg %p56
      $region14: #{_lambda_.4} parent=11 // pred_check_branch
        %120 = sbr.rel (%p118) target = $region16
      $region15: #{_lambda_.4} parent=11 // pred_region
        _
      $region16: #{_lambda_.4} parent=11 // pred_fallthru
        _
      // Predicated region
      $region17: #{_lambda_.4} parent=11 // pred_check
        %p121 = pneg %p77
      $region18: #{_lambda_.4} parent=11 // pred_check_branch
        %123 = sbr.rel (%p121) target = $region20
      $region19: #{_lambda_.4} parent=11 // pred_region
        _
      $region20: #{_lambda_.4} parent=11 // pred_fallthru
        _
    $region12: #{_lambda_.4} parent=5 // pred_fallthru
      _
    %p124 = scmp.lt.s32.totalorder %s9, 2
    // Predicated region
    $region21: #{_lambda_.4} parent=5 // pred_check
      %p125 = pneg %p124
    $region22: #{_lambda_.4} parent=5 // pred_check_branch
      %127 = sbr.rel (%p125) target = $region24
    $region23: #{_lambda_.4} parent=5 // pred_region
      // Predicated region
      $region25: #{_lambda_.4} parent=23 // pred_check
        %p128 = pneg %p29
      $region26: #{_lambda_.4} parent=23 // pred_check_branch
        %130 = sbr.rel (%p128) target = $region28
      $region27: #{_lambda_.4} parent=23 // pred_region
        %p131 = scmp.lt.s32.totalorder %s9, 1
        %s132 = scalar_select %p131, %s9, 1
        %s133 = smul.addr %s132, 384
        %s134 = smul.addr %s133, 4
        %s135 = scalar_lea.vmem %s0, %s134
      $region28: #{_lambda_.4} parent=23 // pred_fallthru
        _
    $region24: #{_lambda_.4} parent=5 // pred_fallthru
      _
    %p136 = scmp.le.s32.totalorder 1, %s9
    %p137 = scmp.lt.s32.totalorder %s9, 3
    %p138 = pnand %p136, %p137
    %p139 = pneg %p138
    // Predicated region
    $region29: #{_lambda_.4} parent=5 // pred_check
      _
    $region30: #{_lambda_.4} parent=5 // pred_check_branch
      %141 = sbr.rel (%p138) target = $region32
    $region31: #{_lambda_.4} parent=5 // pred_region
      %s142 = ssub.s32 %s9, 1
      %p143 = scmp.lt.s32.totalorder %s14, 1
      %s144 = scalar_select %p143, %s14, 1
      %s145 = smul.addr %s144, 384
      %s146 = smul.addr %s145, 4
      %s147 = scalar_lea.vmem %s0, %s146
      %p148 = pneg %p35
      %p149 = pneg %p32
      %p150 = pneg %p56
      %p151 = pneg %p53
      %p152 = pneg %p77
      %p153 = pneg %p74
      %p154 = pneg %p103
      %p155 = pneg %p100
      %p156 = scmp.lt.s32.totalorder %s14, 1
      %s157 = scalar_select %p156, %s14, 1
      %s158 = smul.addr %s157, 48
      %s159 = smul.addr %s158, 4
      %s160 = scalar_lea.vmem %s3, %s159
      %p161 = scmp.lt.s32.totalorder %s14, 1
      %s162 = scalar_select %p161, %s14, 1
      %s163 = smul.addr %s162, 384
      %s164 = smul.addr %s163, 4
      %s165 = scalar_lea.vmem %s0, %s164
      %p166 = scmp.lt.s32.totalorder %s14, 1
      %s167 = scalar_select %p166, %s14, 1
      %s168 = smul.addr %s167, 48
      %s169 = smul.addr %s168, 4
      %s170 = scalar_lea.vmem %s3, %s169
      %v172 = vld [vmem:[%s1] sm:$0xf]
      %v173 = vld [vmem:[%s1 + $0x4] sm:$0xf]
      %v174 = vld [vmem:[%s165] sm:$0xff]
      %v175 = vld [vmem:[%s165 + $0x8] sm:$0xff]
      %v176 = vld [vmem:[%s165 + $0x10] sm:$0xff]
      %v177 = vld [vmem:[%s165 + $0x18] sm:$0xff]
      %v178 = vld [vmem:[%s165 + $0x20] sm:$0xff]
      %v179 = vld [vmem:[%s165 + $0x28] sm:$0xff]
      %v180 = vld [vmem:[%s165 + $0x30] sm:$0xff]
      %v181 = vld [vmem:[%s165 + $0x38] sm:$0xff]
      %v182 = vld [vmem:[%s165 + $0x40] sm:$0xff]
      %v183 = vld [vmem:[%s165 + $0x48] sm:$0xff]
      %v184 = vld [vmem:[%s165 + $0x50] sm:$0xff]
      %v185 = vld [vmem:[%s165 + $0x58] sm:$0xff]
      %v186 = vld [vmem:[%s165 + $0x60] sm:$0xff]
      %v187 = vld [vmem:[%s165 + $0x68] sm:$0xff]
      %v188 = vld [vmem:[%s165 + $0x70] sm:$0xff]
      %v189 = vld [vmem:[%s165 + $0x78] sm:$0xff]
      %v190 = vld [vmem:[%s165 + $0x80] sm:$0xff]
      %v191 = vld [vmem:[%s165 + $0x88] sm:$0xff]
      %v192 = vld [vmem:[%s165 + $0x90] sm:$0xff]
      %v193 = vld [vmem:[%s165 + $0x98] sm:$0xff]
      %v194 = vld [vmem:[%s165 + $0xa0] sm:$0xff]
      %v195 = vld [vmem:[%s165 + $0xa8] sm:$0xff]
      %v196 = vld [vmem:[%s165 + $0xb0] sm:$0xff]
      %v197 = vld [vmem:[%s165 + $0xb8] sm:$0xff]
      %v198 = vld [vmem:[%s165 + $0xc0] sm:$0xff]
      %v199 = vld [vmem:[%s165 + $0xc8] sm:$0xff]
      %v200 = vld [vmem:[%s165 + $0xd0] sm:$0xff]
      %v201 = vld [vmem:[%s165 + $0xd8] sm:$0xff]
      %v202 = vld [vmem:[%s165 + $0xe0] sm:$0xff]
      %v203 = vld [vmem:[%s165 + $0xe8] sm:$0xff]
      %v204 = vld [vmem:[%s165 + $0xf0] sm:$0xff]
      %v205 = vld [vmem:[%s165 + $0xf8] sm:$0xff]
      %v206 = vld [vmem:[%s165 + $0x100] sm:$0xff]
      %v207 = vld [vmem:[%s165 + $0x108] sm:$0xff]
      %v208 = vld [vmem:[%s165 + $0x110] sm:$0xff]
      %v209 = vld [vmem:[%s165 + $0x118] sm:$0xff]
      %v210 = vld [vmem:[%s165 + $0x120] sm:$0x33]
      %v211 = vld [vmem:[%s165 + $0x128] sm:$0x33]
      %v212 = vld [vmem:[%s165 + $0x130] sm:$0x33]
      %v213 = vld [vmem:[%s165 + $0x138] sm:$0x33]
      %v214 = vld [vmem:[%s165 + $0x140] sm:$0x33]
      %v215 = vld [vmem:[%s165 + $0x148] sm:$0x33]
      %v216 = vld [vmem:[%s165 + $0x150] sm:$0x33]
      %v217 = vld [vmem:[%s165 + $0x158] sm:$0x33]
      %v218 = vld [vmem:[%s165 + $0x160] sm:$0x33]
      %v219 = vld [vmem:[%s165 + $0x168] sm:$0x33]
      %v220 = vld [vmem:[%s165 + $0x170] sm:$0x33]
      %v221 = vld [vmem:[%s165 + $0x178] sm:$0x33]
      %v224 = vunpack.c.l.b16 %v172
      %v225 = vunpack.c.l.b16 %v173
      %v226 = vpack.c.b16 %v225, %v224
      %v275 = vunpack.c.l.b16 %v174
      %v276 = vunpack.c.h.b16 %v174
      %v277 = vunpack.c.l.b16 %v175
      %v278 = vunpack.c.h.b16 %v175
      %v279 = vunpack.c.l.b16 %v176
      %v280 = vunpack.c.h.b16 %v176
      %v281 = vunpack.c.l.b16 %v177
      %v282 = vunpack.c.h.b16 %v177
      %v283 = vunpack.c.l.b16 %v178
      %v284 = vunpack.c.h.b16 %v178
      %v285 = vunpack.c.l.b16 %v179
      %v286 = vunpack.c.h.b16 %v179
      %v287 = vunpack.c.l.b16 %v180
      %v288 = vunpack.c.h.b16 %v180
      %v289 = vunpack.c.l.b16 %v181
      %v290 = vunpack.c.h.b16 %v181
      %v291 = vunpack.c.l.b16 %v182
      %v292 = vunpack.c.h.b16 %v182
      %v293 = vunpack.c.l.b16 %v183
      %v294 = vunpack.c.h.b16 %v183
      %v295 = vunpack.c.l.b16 %v184
      %v296 = vunpack.c.h.b16 %v184
      %v297 = vunpack.c.l.b16 %v185
      %v298 = vunpack.c.h.b16 %v185
      %v299 = vunpack.c.l.b16 %v186
      %v300 = vunpack.c.h.b16 %v186
      %v301 = vunpack.c.l.b16 %v187
      %v302 = vunpack.c.h.b16 %v187
      %v303 = vunpack.c.l.b16 %v188
      %v304 = vunpack.c.h.b16 %v188
      %v305 = vunpack.c.l.b16 %v189
      %v306 = vunpack.c.h.b16 %v189
      %v307 = vunpack.c.l.b16 %v190
      %v308 = vunpack.c.h.b16 %v190
      %v309 = vunpack.c.l.b16 %v191
      %v310 = vunpack.c.h.b16 %v191
      %v311 = vunpack.c.l.b16 %v192
      %v312 = vunpack.c.h.b16 %v192
      %v313 = vunpack.c.l.b16 %v193
      %v314 = vunpack.c.h.b16 %v193
      %v315 = vunpack.c.l.b16 %v194
      %v316 = vunpack.c.h.b16 %v194
      %v317 = vunpack.c.l.b16 %v195
      %v318 = vunpack.c.h.b16 %v195
      %v319 = vunpack.c.l.b16 %v196
      %v320 = vunpack.c.h.b16 %v196
      %v321 = vunpack.c.l.b16 %v197
      %v322 = vunpack.c.h.b16 %v197
      %v323 = vunpack.c.l.b16 %v198
      %v324 = vunpack.c.h.b16 %v198
      %v325 = vunpack.c.l.b16 %v199
      %v326 = vunpack.c.h.b16 %v199
      %v327 = vunpack.c.l.b16 %v200
      %v328 = vunpack.c.h.b16 %v200
      %v329 = vunpack.c.l.b16 %v201
      %v330 = vunpack.c.h.b16 %v201
      %v331 = vunpack.c.l.b16 %v202
      %v332 = vunpack.c.h.b16 %v202
      %v333 = vunpack.c.l.b16 %v203
      %v334 = vunpack.c.h.b16 %v203
      %v335 = vunpack.c.l.b16 %v204
      %v336 = vunpack.c.h.b16 %v204
      %v337 = vunpack.c.l.b16 %v205
      %v338 = vunpack.c.h.b16 %v205
      %v339 = vunpack.c.l.b16 %v206
      %v340 = vunpack.c.h.b16 %v206
      %v341 = vunpack.c.l.b16 %v207
      %v342 = vunpack.c.h.b16 %v207
      %v343 = vunpack.c.l.b16 %v208
      %v344 = vunpack.c.h.b16 %v208
      %v345 = vunpack.c.l.b16 %v209
      %v346 = vunpack.c.h.b16 %v209
      %v347 = vunpack.c.l.b16 %v210
      %v348 = vunpack.c.h.b16 %v210
      %v349 = vunpack.c.l.b16 %v211
      %v350 = vunpack.c.h.b16 %v211
      %v351 = vunpack.c.l.b16 %v212
      %v352 = vunpack.c.h.b16 %v212
      %v353 = vunpack.c.l.b16 %v213
      %v354 = vunpack.c.h.b16 %v213
      %v355 = vunpack.c.l.b16 %v214
      %v356 = vunpack.c.h.b16 %v214
      %v357 = vunpack.c.l.b16 %v215
      %v358 = vunpack.c.h.b16 %v215
      %v359 = vunpack.c.l.b16 %v216
      %v360 = vunpack.c.h.b16 %v216
      %v361 = vunpack.c.l.b16 %v217
      %v362 = vunpack.c.h.b16 %v217
      %v363 = vunpack.c.l.b16 %v218
      %v364 = vunpack.c.h.b16 %v218
      %v365 = vunpack.c.l.b16 %v219
      %v366 = vunpack.c.h.b16 %v219
      %v367 = vunpack.c.l.b16 %v220
      %v368 = vunpack.c.h.b16 %v220
      %v369 = vunpack.c.l.b16 %v221
      %v370 = vunpack.c.h.b16 %v221
      %v371 = vpack.c.b16 %v299, %v275
      %v372 = vpack.c.b16 %v300, %v276
      %v373 = vpack.c.b16 %v301, %v277
      %v374 = vpack.c.b16 %v302, %v278
      %v375 = vpack.c.b16 %v303, %v279
      %v376 = vpack.c.b16 %v304, %v280
      %v377 = vpack.c.b16 %v305, %v281
      %v378 = vpack.c.b16 %v306, %v282
      %v379 = vpack.c.b16 %v307, %v283
      %v380 = vpack.c.b16 %v308, %v284
      %v381 = vpack.c.b16 %v309, %v285
      %v382 = vpack.c.b16 %v310, %v286
      %v383 = vpack.c.b16 %v311, %v287
      %v384 = vpack.c.b16 %v312, %v288
      %v385 = vpack.c.b16 %v313, %v289
      %v386 = vpack.c.b16 %v314, %v290
      %v387 = vpack.c.b16 %v315, %v291
      %v388 = vpack.c.b16 %v316, %v292
      %v389 = vpack.c.b16 %v317, %v293
      %v390 = vpack.c.b16 %v318, %v294
      %v391 = vpack.c.b16 %v319, %v295
      %v392 = vpack.c.b16 %v320, %v296
      %v393 = vpack.c.b16 %v321, %v297
      %v394 = vpack.c.b16 %v322, %v298
      %v395 = vpack.c.b16 %v347, %v323
      %v396 = vpack.c.b16 %v348, %v324
      %v397 = vpack.c.b16 %v349, %v325
      %v398 = vpack.c.b16 %v350, %v326
      %v399 = vpack.c.b16 %v351, %v327
      %v400 = vpack.c.b16 %v352, %v328
      %v401 = vpack.c.b16 %v353, %v329
      %v402 = vpack.c.b16 %v354, %v330
      %v403 = vpack.c.b16 %v355, %v331
      %v404 = vpack.c.b16 %v356, %v332
      %v405 = vpack.c.b16 %v357, %v333
      %v406 = vpack.c.b16 %v358, %v334
      %v407 = vpack.c.b16 %v359, %v335
      %v408 = vpack.c.b16 %v360, %v336
      %v409 = vpack.c.b16 %v361, %v337
      %v410 = vpack.c.b16 %v362, %v338
      %v411 = vpack.c.b16 %v363, %v339
      %v412 = vpack.c.b16 %v364, %v340
      %v413 = vpack.c.b16 %v365, %v341
      %v414 = vpack.c.b16 %v366, %v342
      %v415 = vpack.c.b16 %v367, %v343
      %v416 = vpack.c.b16 %v368, %v344
      %v417 = vpack.c.b16 %v369, %v345
      %v418 = vpack.c.b16 %v370, %v346
      %vm443 = vcmask 220160
      %v445 = vsel %vm443, %v226, 0
      %vm447 = vcmask 1044480
      %vm448 = vcmask 1045504
      %v449 = vsel %vm447, 4294967295, 65535
      %v450 = vsel %vm448, %v449, 0
      %v452 = vand.u32 %v395, %v450
      %v455 = vand.u32 %v396, %v450
      %v458 = vand.u32 %v397, %v450
      %v461 = vand.u32 %v398, %v450
      %v464 = vand.u32 %v399, %v450
      %v467 = vand.u32 %v400, %v450
      %v470 = vand.u32 %v401, %v450
      %v473 = vand.u32 %v402, %v450
      %v476 = vand.u32 %v403, %v450
      %v479 = vand.u32 %v404, %v450
      %v482 = vand.u32 %v405, %v450
      %v485 = vand.u32 %v406, %v450
      %v488 = vand.u32 %v407, %v450
      %v491 = vand.u32 %v408, %v450
      %v494 = vand.u32 %v409, %v450
      %v497 = vand.u32 %v410, %v450
      %v500 = vand.u32 %v411, %v450
      %v503 = vand.u32 %v412, %v450
      %v506 = vand.u32 %v413, %v450
      %v509 = vand.u32 %v414, %v450
      %v512 = vand.u32 %v415, %v450
      %v515 = vand.u32 %v416, %v450
      %v518 = vand.u32 %v417, %v450
      %v521 = vand.u32 %v418, %v450
      %523 = vmatprep.subr.bf16.mxu0 %v372
      %524 = vmatpush1.bf16.msra.mxu0 %v371
      %525 = vmatprep.subr.bf16.mxu0 %v455
      %526 = vmatpush1.bf16.msra.mxu0 %v452
      %527 = vmatprep.subr.bf16.mxu0 0
      %528 = vmatpush1.bf16.msra.mxu0 0
      %529 = vmatprep.subr.bf16.mxu0 0
      %530 = vmatpush1.bf16.msra.mxu0 0
      %531 = vmatprep.subr.bf16.mxu0 0
      %532 = vmatpush1.bf16.msra.mxu0 0
      %533 = vmatprep.subr.bf16.mxu0 0
      %534 = vmatpush1.bf16.msra.mxu0 0
      %535 = vmatprep.subr.bf16.mxu0 0
      %536 = vmatpush1.bf16.msra.mxu0 0
      %537 = vmatprep.subr.bf16.mxu0 0
      %538 = vmatpush1.bf16.msra.mxu0 0
      %539 = vmatprep.subr.bf16.mxu0 0
      %540 = vmatpush1.bf16.msra.mxu0 0
      %541 = vmatprep.subr.bf16.mxu0 0
      %542 = vmatpush1.bf16.msra.mxu0 0
      %543 = vmatprep.subr.bf16.mxu0 0
      %544 = vmatpush1.bf16.msra.mxu0 0
      %545 = vmatprep.subr.bf16.mxu0 0
      %546 = vmatpush1.bf16.msra.mxu0 0
      %547 = vmatprep.subr.bf16.mxu0 0
      %548 = vmatpush1.bf16.msra.mxu0 0
      %549 = vmatprep.subr.bf16.mxu0 0
      %550 = vmatpush1.bf16.msra.mxu0 0
      %551 = vmatprep.subr.bf16.mxu0 0
      %552 = vmatpush1.bf16.msra.mxu0 0
      %553 = vmatprep.subr.bf16.mxu0 0
      %554 = vmatpush1.bf16.msra.mxu0 0
      %555 = vmatprep.mubr.bf16.mxu0 0
      %556 = vmatmul.mubr.bf16.gmra.mrb[0].mxu0 %v445
      %v557 = vpop.f32.mrb[0].mxu0
      %v558 = vadd.f32 0.0, %v557
      %v559 = vpop.f32.mrb[0].mxu0
      %v560 = vadd.f32 0.0, %v559
      %v561 = vpop.f32.mrb[0].mxu0
      %v562 = vadd.f32 0.0, %v561
      %v563 = vpop.f32.mrb[0].mxu0
      %v564 = vadd.f32 0.0, %v563
      %565 = vdwg.mxu0
      %566 = vmatprep.subr.bf16.mxu0 %v374
      %567 = vmatpush1.bf16.msra.mxu0 %v373
      %568 = vmatprep.subr.bf16.mxu0 %v461
      %569 = vmatpush1.bf16.msra.mxu0 %v458
      %570 = vmatprep.subr.bf16.mxu0 0
      %571 = vmatpush1.bf16.msra.mxu0 0
      %572 = vmatprep.subr.bf16.mxu0 0
      %573 = vmatpush1.bf16.msra.mxu0 0
      %574 = vmatprep.subr.bf16.mxu0 0
      %575 = vmatpush1.bf16.msra.mxu0 0
      %576 = vmatprep.subr.bf16.mxu0 0
      %577 = vmatpush1.bf16.msra.mxu0 0
      %578 = vmatprep.subr.bf16.mxu0 0
      %579 = vmatpush1.bf16.msra.mxu0 0
      %580 = vmatprep.subr.bf16.mxu0 0
      %581 = vmatpush1.bf16.msra.mxu0 0
      %582 = vmatprep.subr.bf16.mxu0 0
      %583 = vmatpush1.bf16.msra.mxu0 0
      %584 = vmatprep.subr.bf16.mxu0 0
      %585 = vmatpush1.bf16.msra.mxu0 0
      %586 = vmatprep.subr.bf16.mxu0 0
      %587 = vmatpush1.bf16.msra.mxu0 0
      %588 = vmatprep.subr.bf16.mxu0 0
      %589 = vmatpush1.bf16.msra.mxu0 0
      %590 = vmatprep.subr.bf16.mxu0 0
      %591 = vmatpush1.bf16.msra.mxu0 0
      %592 = vmatprep.subr.bf16.mxu0 0
      %593 = vmatpush1.bf16.msra.mxu0 0
      %594 = vmatprep.subr.bf16.mxu0 0
      %595 = vmatpush1.bf16.msra.mxu0 0
      %596 = vmatprep.subr.bf16.mxu0 0
      %597 = vmatpush1.bf16.msra.mxu0 0
      %598 = vmatprep.mubr.bf16.mxu0 0
      %599 = vmatmul.mubr.bf16.gmra.mrb[0].mxu0 %v445
      %v600 = vpop.f32.mrb[0].mxu0
      %v601 = vadd.f32 0.0, %v600
      %v602 = vpop.f32.mrb[0].mxu0
      %v603 = vadd.f32 0.0, %v602
      %v604 = vpop.f32.mrb[0].mxu0
      %v605 = vadd.f32 0.0, %v604
      %v606 = vpop.f32.mrb[0].mxu0
      %v607 = vadd.f32 0.0, %v606
      %608 = vdwg.mxu0
      %609 = vmatprep.subr.bf16.mxu0 %v376
      %610 = vmatpush1.bf16.msra.mxu0 %v375
      %611 = vmatprep.subr.bf16.mxu0 %v467
      %612 = vmatpush1.bf16.msra.mxu0 %v464
      %613 = vmatprep.subr.bf16.mxu0 0
      %614 = vmatpush1.bf16.msra.mxu0 0
      %615 = vmatprep.subr.bf16.mxu0 0
      %616 = vmatpush1.bf16.msra.mxu0 0
      %617 = vmatprep.subr.bf16.mxu0 0
      %618 = vmatpush1.bf16.msra.mxu0 0
      %619 = vmatprep.subr.bf16.mxu0 0
      %620 = vmatpush1.bf16.msra.mxu0 0
      %621 = vmatprep.subr.bf16.mxu0 0
      %622 = vmatpush1.bf16.msra.mxu0 0
      %623 = vmatprep.subr.bf16.mxu0 0
      %624 = vmatpush1.bf16.msra.mxu0 0
      %625 = vmatprep.subr.bf16.mxu0 0
      %626 = vmatpush1.bf16.msra.mxu0 0
      %627 = vmatprep.subr.bf16.mxu0 0
      %628 = vmatpush1.bf16.msra.mxu0 0
      %629 = vmatprep.subr.bf16.mxu0 0
      %630 = vmatpush1.bf16.msra.mxu0 0
      %631 = vmatprep.subr.bf16.mxu0 0
      %632 = vmatpush1.bf16.msra.mxu0 0
      %633 = vmatprep.subr.bf16.mxu0 0
      %634 = vmatpush1.bf16.msra.mxu0 0
      %635 = vmatprep.subr.bf16.mxu0 0
      %636 = vmatpush1.bf16.msra.mxu0 0
      %637 = vmatprep.subr.bf16.mxu0 0
      %638 = vmatpush1.bf16.msra.mxu0 0
      %639 = vmatprep.subr.bf16.mxu0 0
      %640 = vmatpush1.bf16.msra.mxu0 0
      %641 = vmatprep.mubr.bf16.mxu0 0
      %642 = vmatmul.mubr.bf16.gmra.mrb[0].mxu0 %v445
      %v643 = vpop.f32.mrb[0].mxu0
      %v644 = vadd.f32 0.0, %v643
      %v645 = vpop.f32.mrb[0].mxu0
      %v646 = vadd.f32 0.0, %v645
      %v647 = vpop.f32.mrb[0].mxu0
      %v648 = vadd.f32 0.0, %v647
      %v649 = vpop.f32.mrb[0].mxu0
      %v650 = vadd.f32 0.0, %v649
      %651 = vdwg.mxu0
      %652 = vmatprep.subr.bf16.mxu0 %v378
      %653 = vmatpush1.bf16.msra.mxu0 %v377
      %654 = vmatprep.subr.bf16.mxu0 %v473
      %655 = vmatpush1.bf16.msra.mxu0 %v470
      %656 = vmatprep.subr.bf16.mxu0 0
      %657 = vmatpush1.bf16.msra.mxu0 0
      %658 = vmatprep.subr.bf16.mxu0 0
      %659 = vmatpush1.bf16.msra.mxu0 0
      %660 = vmatprep.subr.bf16.mxu0 0
      %661 = vmatpush1.bf16.msra.mxu0 0
      %662 = vmatprep.subr.bf16.mxu0 0
      %663 = vmatpush1.bf16.msra.mxu0 0
      %664 = vmatprep.subr.bf16.mxu0 0
      %665 = vmatpush1.bf16.msra.mxu0 0
      %666 = vmatprep.subr.bf16.mxu0 0
      %667 = vmatpush1.bf16.msra.mxu0 0
      %668 = vmatprep.subr.bf16.mxu0 0
      %669 = vmatpush1.bf16.msra.mxu0 0
      %670 = vmatprep.subr.bf16.mxu0 0
      %671 = vmatpush1.bf16.msra.mxu0 0
      %672 = vmatprep.subr.bf16.mxu0 0
      %673 = vmatpush1.bf16.msra.mxu0 0
      %674 = vmatprep.subr.bf16.mxu0 0
      %675 = vmatpush1.bf16.msra.mxu0 0
      %676 = vmatprep.subr.bf16.mxu0 0
      %677 = vmatpush1.bf16.msra.mxu0 0
      %678 = vmatprep.subr.bf16.mxu0 0
      %679 = vmatpush1.bf16.msra.mxu0 0
      %680 = vmatprep.subr.bf16.mxu0 0
      %681 = vmatpush1.bf16.msra.mxu0 0
      %682 = vmatprep.subr.bf16.mxu0 0
      %683 = vmatpush1.bf16.msra.mxu0 0
      %684 = vmatprep.mubr.bf16.mxu0 0
      %685 = vmatmul.mubr.bf16.gmra.mrb[0].mxu0 %v445
      %v686 = vpop.f32.mrb[0].mxu0
      %v687 = vadd.f32 0.0, %v686
      %v688 = vpop.f32.mrb[0].mxu0
      %v689 = vadd.f32 0.0, %v688
      %v690 = vpop.f32.mrb[0].mxu0
      %v691 = vadd.f32 0.0, %v690
      %v692 = vpop.f32.mrb[0].mxu0
      %v693 = vadd.f32 0.0, %v692
      %694 = vdwg.mxu0
      %695 = vmatprep.subr.bf16.mxu0 %v380
      %696 = vmatpush1.bf16.msra.mxu0 %v379
      %697 = vmatprep.subr.bf16.mxu0 %v479
      %698 = vmatpush1.bf16.msra.mxu0 %v476
      %699 = vmatprep.subr.bf16.mxu0 0
      %700 = vmatpush1.bf16.msra.mxu0 0
      %701 = vmatprep.subr.bf16.mxu0 0
      %702 = vmatpush1.bf16.msra.mxu0 0
      %703 = vmatprep.subr.bf16.mxu0 0
      %704 = vmatpush1.bf16.msra.mxu0 0
      %705 = vmatprep.subr.bf16.mxu0 0
      %706 = vmatpush1.bf16.msra.mxu0 0
      %707 = vmatprep.subr.bf16.mxu0 0
      %708 = vmatpush1.bf16.msra.mxu0 0
      %709 = vmatprep.subr.bf16.mxu0 0
      %710 = vmatpush1.bf16.msra.mxu0 0
      %711 = vmatprep.subr.bf16.mxu0 0
      %712 = vmatpush1.bf16.msra.mxu0 0
      %713 = vmatprep.subr.bf16.mxu0 0
      %714 = vmatpush1.bf16.msra.mxu0 0
      %715 = vmatprep.subr.bf16.mxu0 0
      %716 = vmatpush1.bf16.msra.mxu0 0
      %717 = vmatprep.subr.bf16.mxu0 0
      %718 = vmatpush1.bf16.msra.mxu0 0
      %719 = vmatprep.subr.bf16.mxu0 0
      %720 = vmatpush1.bf16.msra.mxu0 0
      %721 = vmatprep.subr.bf16.mxu0 0
      %722 = vmatpush1.bf16.msra.mxu0 0
      %723 = vmatprep.subr.bf16.mxu0 0
      %724 = vmatpush1.bf16.msra.mxu0 0
      %725 = vmatprep.subr.bf16.mxu0 0
      %726 = vmatpush1.bf16.msra.mxu0 0
      %727 = vmatprep.mubr.bf16.mxu0 0
      %728 = vmatmul.mubr.bf16.gmra.mrb[0].mxu0 %v445
      %v729 = vpop.f32.mrb[0].mxu0
      %v730 = vadd.f32 0.0, %v729
      %v731 = vpop.f32.mrb[0].mxu0
      %v732 = vadd.f32 0.0, %v731
      %v733 = vpop.f32.mrb[0].mxu0
      %v734 = vadd.f32 0.0, %v733
      %v735 = vpop.f32.mrb[0].mxu0
      %v736 = vadd.f32 0.0, %v735
      %737 = vdwg.mxu0
      %738 = vmatprep.subr.bf16.mxu0 %v382
      %739 = vmatpush1.bf16.msra.mxu0 %v381
      %740 = vmatprep.subr.bf16.mxu0 %v485
      %741 = vmatpush1.bf16.msra.mxu0 %v482
      %742 = vmatprep.subr.bf16.mxu0 0
      %743 = vmatpush1.bf16.msra.mxu0 0
      %744 = vmatprep.subr.bf16.mxu0 0
      %745 = vmatpush1.bf16.msra.mxu0 0
      %746 = vmatprep.subr.bf16.mxu0 0
      %747 = vmatpush1.bf16.msra.mxu0 0
      %748 = vmatprep.subr.bf16.mxu0 0
      %749 = vmatpush1.bf16.msra.mxu0 0
      %750 = vmatprep.subr.bf16.mxu0 0
      %751 = vmatpush1.bf16.msra.mxu0 0
      %752 = vmatprep.subr.bf16.mxu0 0
      %753 = vmatpush1.bf16.msra.mxu0 0
      %754 = vmatprep.subr.bf16.mxu0 0
      %755 = vmatpush1.bf16.msra.mxu0 0
      %756 = vmatprep.subr.bf16.mxu0 0
      %757 = vmatpush1.bf16.msra.mxu0 0
      %758 = vmatprep.subr.bf16.mxu0 0
      %759 = vmatpush1.bf16.msra.mxu0 0
      %760 = vmatprep.subr.bf16.mxu0 0
      %761 = vmatpush1.bf16.msra.mxu0 0
      %762 = vmatprep.subr.bf16.mxu0 0
      %763 = vmatpush1.bf16.msra.mxu0 0
      %764 = vmatprep.subr.bf16.mxu0 0
      %765 = vmatpush1.bf16.msra.mxu0 0
      %766 = vmatprep.subr.bf16.mxu0 0
      %767 = vmatpush1.bf16.msra.mxu0 0
      %768 = vmatprep.subr.bf16.mxu0 0
      %769 = vmatpush1.bf16.msra.mxu0 0
      %770 = vmatprep.mubr.bf16.mxu0 0
      %771 = vmatmul.mubr.bf16.gmra.mrb[0].mxu0 %v445
      %v772 = vpop.f32.mrb[0].mxu0
      %v773 = vadd.f32 0.0, %v772
      %v774 = vpop.f32.mrb[0].mxu0
      %v775 = vadd.f32 0.0, %v774
      %v776 = vpop.f32.mrb[0].mxu0
      %v777 = vadd.f32 0.0, %v776
      %v778 = vpop.f32.mrb[0].mxu0
      %v779 = vadd.f32 0.0, %v778
      %780 = vdwg.mxu0
      %781 = vmatprep.subr.bf16.mxu0 %v384
      %782 = vmatpush1.bf16.msra.mxu0 %v383
      %783 = vmatprep.subr.bf16.mxu0 %v491
      %784 = vmatpush1.bf16.msra.mxu0 %v488
      %785 = vmatprep.subr.bf16.mxu0 0
      %786 = vmatpush1.bf16.msra.mxu0 0
      %787 = vmatprep.subr.bf16.mxu0 0
      %788 = vmatpush1.bf16.msra.mxu0 0
      %789 = vmatprep.subr.bf16.mxu0 0
      %790 = vmatpush1.bf16.msra.mxu0 0
      %791 = vmatprep.subr.bf16.mxu0 0
      %792 = vmatpush1.bf16.msra.mxu0 0
      %793 = vmatprep.subr.bf16.mxu0 0
      %794 = vmatpush1.bf16.msra.mxu0 0
      %795 = vmatprep.subr.bf16.mxu0 0
      %796 = vmatpush1.bf16.msra.mxu0 0
      %797 = vmatprep.subr.bf16.mxu0 0
      %798 = vmatpush1.bf16.msra.mxu0 0
      %799 = vmatprep.subr.bf16.mxu0 0
      %800 = vmatpush1.bf16.msra.mxu0 0
      %801 = vmatprep.subr.bf16.mxu0 0
      %802 = vmatpush1.bf16.msra.mxu0 0
      %803 = vmatprep.subr.bf16.mxu0 0
      %804 = vmatpush1.bf16.msra.mxu0 0
      %805 = vmatprep.subr.bf16.mxu0 0
      %806 = vmatpush1.bf16.msra.mxu0 0
      %807 = vmatprep.subr.bf16.mxu0 0
      %808 = vmatpush1.bf16.msra.mxu0 0
      %809 = vmatprep.subr.bf16.mxu0 0
      %810 = vmatpush1.bf16.msra.mxu0 0
      %811 = vmatprep.subr.bf16.mxu0 0
      %812 = vmatpush1.bf16.msra.mxu0 0
      %813 = vmatprep.mubr.bf16.mxu0 0
      %814 = vmatmul.mubr.bf16.gmra.mrb[0].mxu0 %v445
      %v815 = vpop.f32.mrb[0].mxu0
      %v816 = vadd.f32 0.0, %v815
      %v817 = vpop.f32.mrb[0].mxu0
      %v818 = vadd.f32 0.0, %v817
      %v819 = vpop.f32.mrb[0].mxu0
      %v820 = vadd.f32 0.0, %v819
      %v821 = vpop.f32.mrb[0].mxu0
      %v822 = vadd.f32 0.0, %v821
      %823 = vdwg.mxu0
      %824 = vmatprep.subr.bf16.mxu0 %v386
      %825 = vmatpush1.bf16.msra.mxu0 %v385
      %826 = vmatprep.subr.bf16.mxu0 %v497
      %827 = vmatpush1.bf16.msra.mxu0 %v494
      %828 = vmatprep.subr.bf16.mxu0 0
      %829 = vmatpush1.bf16.msra.mxu0 0
      %830 = vmatprep.subr.bf16.mxu0 0
      %831 = vmatpush1.bf16.msra.mxu0 0
      %832 = vmatprep.subr.bf16.mxu0 0
      %833 = vmatpush1.bf16.msra.mxu0 0
      %834 = vmatprep.subr.bf16.mxu0 0
      %835 = vmatpush1.bf16.msra.mxu0 0
      %836 = vmatprep.subr.bf16.mxu0 0
      %837 = vmatpush1.bf16.msra.mxu0 0
      %838 = vmatprep.subr.bf16.mxu0 0
      %839 = vmatpush1.bf16.msra.mxu0 0
      %840 = vmatprep.subr.bf16.mxu0 0
      %841 = vmatpush1.bf16.msra.mxu0 0
      %842 = vmatprep.subr.bf16.mxu0 0
      %843 = vmatpush1.bf16.msra.mxu0 0
      %844 = vmatprep.subr.bf16.mxu0 0
      %845 = vmatpush1.bf16.msra.mxu0 0
      %846 = vmatprep.subr.bf16.mxu0 0
      %847 = vmatpush1.bf16.msra.mxu0 0
      %848 = vmatprep.subr.bf16.mxu0 0
      %849 = vmatpush1.bf16.msra.mxu0 0
      %850 = vmatprep.subr.bf16.mxu0 0
      %851 = vmatpush1.bf16.msra.mxu0 0
      %852 = vmatprep.subr.bf16.mxu0 0
      %853 = vmatpush1.bf16.msra.mxu0 0
      %854 = vmatprep.subr.bf16.mxu0 0
      %855 = vmatpush1.bf16.msra.mxu0 0
      %856 = vmatprep.mubr.bf16.mxu0 0
      %857 = vmatmul.mubr.bf16.gmra.mrb[0].mxu0 %v445
      %v858 = vpop.f32.mrb[0].mxu0
      %v859 = vadd.f32 0.0, %v858
      %v860 = vpop.f32.mrb[0].mxu0
      %v861 = vadd.f32 0.0, %v860
      %v862 = vpop.f32.mrb[0].mxu0
      %v863 = vadd.f32 0.0, %v862
      %v864 = vpop.f32.mrb[0].mxu0
      %v865 = vadd.f32 0.0, %v864
      %866 = vdwg.mxu0
      %867 = vmatprep.subr.bf16.mxu0 %v388
      %868 = vmatpush1.bf16.msra.mxu0 %v387
      %869 = vmatprep.subr.bf16.mxu0 %v503
      %870 = vmatpush1.bf16.msra.mxu0 %v500
      %871 = vmatprep.subr.bf16.mxu0 0
      %872 = vmatpush1.bf16.msra.mxu0 0
      %873 = vmatprep.subr.bf16.mxu0 0
      %874 = vmatpush1.bf16.msra.mxu0 0
      %875 = vmatprep.subr.bf16.mxu0 0
      %876 = vmatpush1.bf16.msra.mxu0 0
      %877 = vmatprep.subr.bf16.mxu0 0
      %878 = vmatpush1.bf16.msra.mxu0 0
      %879 = vmatprep.subr.bf16.mxu0 0
      %880 = vmatpush1.bf16.msra.mxu0 0
      %881 = vmatprep.subr.bf16.mxu0 0
      %882 = vmatpush1.bf16.msra.mxu0 0
      %883 = vmatprep.subr.bf16.mxu0 0
      %884 = vmatpush1.bf16.msra.mxu0 0
      %885 = vmatprep.subr.bf16.mxu0 0
      %886 = vmatpush1.bf16.msra.mxu0 0
      %887 = vmatprep.subr.bf16.mxu0 0
      %888 = vmatpush1.bf16.msra.mxu0 0
      %889 = vmatprep.subr.bf16.mxu0 0
      %890 = vmatpush1.bf16.msra.mxu0 0
      %891 = vmatprep.subr.bf16.mxu0 0
      %892 = vmatpush1.bf16.msra.mxu0 0
      %893 = vmatprep.subr.bf16.mxu0 0
      %894 = vmatpush1.bf16.msra.mxu0 0
      %895 = vmatprep.subr.bf16.mxu0 0
      %896 = vmatpush1.bf16.msra.mxu0 0
      %897 = vmatprep.subr.bf16.mxu0 0
      %898 = vmatpush1.bf16.msra.mxu0 0
      %899 = vmatprep.mubr.bf16.mxu0 0
      %900 = vmatmul.mubr.bf16.gmra.mrb[0].mxu0 %v445
      %v901 = vpop.f32.mrb[0].mxu0
      %v902 = vadd.f32 0.0, %v901
      %v903 = vpop.f32.mrb[0].mxu0
      %v904 = vadd.f32 0.0, %v903
      %v905 = vpop.f32.mrb[0].mxu0
      %v906 = vadd.f32 0.0, %v905
      %v907 = vpop.f32.mrb[0].mxu0
      %v908 = vadd.f32 0.0, %v907
      %909 = vdwg.mxu0
      %910 = vmatprep.subr.bf16.mxu0 %v390
      %911 = vmatpush1.bf16.msra.mxu0 %v389
      %912 = vmatprep.subr.bf16.mxu0 %v509
      %913 = vmatpush1.bf16.msra.mxu0 %v506
      %914 = vmatprep.subr.bf16.mxu0 0
      %915 = vmatpush1.bf16.msra.mxu0 0
      %916 = vmatprep.subr.bf16.mxu0 0
      %917 = vmatpush1.bf16.msra.mxu0 0
      %918 = vmatprep.subr.bf16.mxu0 0
      %919 = vmatpush1.bf16.msra.mxu0 0
      %920 = vmatprep.subr.bf16.mxu0 0
      %921 = vmatpush1.bf16.msra.mxu0 0
      %922 = vmatprep.subr.bf16.mxu0 0
      %923 = vmatpush1.bf16.msra.mxu0 0
      %924 = vmatprep.subr.bf16.mxu0 0
      %925 = vmatpush1.bf16.msra.mxu0 0
      %926 = vmatprep.subr.bf16.mxu0 0
      %927 = vmatpush1.bf16.msra.mxu0 0
      %928 = vmatprep.subr.bf16.mxu0 0
      %929 = vmatpush1.bf16.msra.mxu0 0
      %930 = vmatprep.subr.bf16.mxu0 0
      %931 = vmatpush1.bf16.msra.mxu0 0
      %932 = vmatprep.subr.bf16.mxu0 0
      %933 = vmatpush1.bf16.msra.mxu0 0
      %934 = vmatprep.subr.bf16.mxu0 0
      %935 = vmatpush1.bf16.msra.mxu0 0
      %936 = vmatprep.subr.bf16.mxu0 0
      %937 = vmatpush1.bf16.msra.mxu0 0
      %938 = vmatprep.subr.bf16.mxu0 0
      %939 = vmatpush1.bf16.msra.mxu0 0
      %940 = vmatprep.subr.bf16.mxu0 0
      %941 = vmatpush1.bf16.msra.mxu0 0
      %942 = vmatprep.mubr.bf16.mxu0 0
      %943 = vmatmul.mubr.bf16.gmra.mrb[0].mxu0 %v445
      %v944 = vpop.f32.mrb[0].mxu0
      %v945 = vadd.f32 0.0, %v944
      %v946 = vpop.f32.mrb[0].mxu0
      %v947 = vadd.f32 0.0, %v946
      %v948 = vpop.f32.mrb[0].mxu0
      %v949 = vadd.f32 0.0, %v948
      %v950 = vpop.f32.mrb[0].mxu0
      %v951 = vadd.f32 0.0, %v950
      %952 = vdwg.mxu0
      %953 = vmatprep.subr.bf16.mxu0 %v392
      %954 = vmatpush1.bf16.msra.mxu0 %v391
      %955 = vmatprep.subr.bf16.mxu0 %v515
      %956 = vmatpush1.bf16.msra.mxu0 %v512
      %957 = vmatprep.subr.bf16.mxu0 0
      %958 = vmatpush1.bf16.msra.mxu0 0
      %959 = vmatprep.subr.bf16.mxu0 0
      %960 = vmatpush1.bf16.msra.mxu0 0
      %961 = vmatprep.subr.bf16.mxu0 0
      %962 = vmatpush1.bf16.msra.mxu0 0
      %963 = vmatprep.subr.bf16.mxu0 0
      %964 = vmatpush1.bf16.msra.mxu0 0
      %965 = vmatprep.subr.bf16.mxu0 0
      %966 = vmatpush1.bf16.msra.mxu0 0
      %967 = vmatprep.subr.bf16.mxu0 0
      %968 = vmatpush1.bf16.msra.mxu0 0
      %969 = vmatprep.subr.bf16.mxu0 0
      %970 = vmatpush1.bf16.msra.mxu0 0
      %971 = vmatprep.subr.bf16.mxu0 0
      %972 = vmatpush1.bf16.msra.mxu0 0
      %973 = vmatprep.subr.bf16.mxu0 0
      %974 = vmatpush1.bf16.msra.mxu0 0
      %975 = vmatprep.subr.bf16.mxu0 0
      %976 = vmatpush1.bf16.msra.mxu0 0
      %977 = vmatprep.subr.bf16.mxu0 0
      %978 = vmatpush1.bf16.msra.mxu0 0
      %979 = vmatprep.subr.bf16.mxu0 0
      %980 = vmatpush1.bf16.msra.mxu0 0
      %981 = vmatprep.subr.bf16.mxu0 0
      %982 = vmatpush1.bf16.msra.mxu0 0
      %983 = vmatprep.subr.bf16.mxu0 0
      %984 = vmatpush1.bf16.msra.mxu0 0
      %985 = vmatprep.mubr.bf16.mxu0 0
      %986 = vmatmul.mubr.bf16.gmra.mrb[0].mxu0 %v445
      %v987 = vpop.f32.mrb[0].mxu0
      %v988 = vadd.f32 0.0, %v987
      %v989 = vpop.f32.mrb[0].mxu0
      %v990 = vadd.f32 0.0, %v989
      %v991 = vpop.f32.mrb[0].mxu0
      %v992 = vadd.f32 0.0, %v991
      %v993 = vpop.f32.mrb[0].mxu0
      %v994 = vadd.f32 0.0, %v993
      %995 = vdwg.mxu0
      %996 = vmatprep.subr.bf16.mxu0 %v394
      %997 = vmatpush1.bf16.msra.mxu0 %v393
      %998 = vmatprep.subr.bf16.mxu0 %v521
      %999 = vmatpush1.bf16.msra.mxu0 %v518
      %1000 = vmatprep.subr.bf16.mxu0 0
      %1001 = vmatpush1.bf16.msra.mxu0 0
      %1002 = vmatprep.subr.bf16.mxu0 0
      %1003 = vmatpush1.bf16.msra.mxu0 0
      %1004 = vmatprep.subr.bf16.mxu0 0
      %1005 = vmatpush1.bf16.msra.mxu0 0
      %1006 = vmatprep.subr.bf16.mxu0 0
      %1007 = vmatpush1.bf16.msra.mxu0 0
      %1008 = vmatprep.subr.bf16.mxu0 0
      %1009 = vmatpush1.bf16.msra.mxu0 0
      %1010 = vmatprep.subr.bf16.mxu0 0
      %1011 = vmatpush1.bf16.msra.mxu0 0
      %1012 = vmatprep.subr.bf16.mxu0 0
      %1013 = vmatpush1.bf16.msra.mxu0 0
      %1014 = vmatprep.subr.bf16.mxu0 0
      %1015 = vmatpush1.bf16.msra.mxu0 0
      %1016 = vmatprep.subr.bf16.mxu0 0
      %1017 = vmatpush1.bf16.msra.mxu0 0
      %1018 = vmatprep.subr.bf16.mxu0 0
      %1019 = vmatpush1.bf16.msra.mxu0 0
      %1020 = vmatprep.subr.bf16.mxu0 0
      %1021 = vmatpush1.bf16.msra.mxu0 0
      %1022 = vmatprep.subr.bf16.mxu0 0
      %1023 = vmatpush1.bf16.msra.mxu0 0
      %1024 = vmatprep.subr.bf16.mxu0 0
      %1025 = vmatpush1.bf16.msra.mxu0 0
      %1026 = vmatprep.subr.bf16.mxu0 0
      %1027 = vmatpush1.bf16.msra.mxu0 0
      %1028 = vmatprep.mubr.bf16.mxu0 0
      %1029 = vmatmul.mubr.bf16.gmra.mrb[0].mxu0 %v445
      %v1030 = vpop.f32.mrb[0].mxu0
      %v1031 = vadd.f32 0.0, %v1030
      %v1032 = vpop.f32.mrb[0].mxu0
      %v1033 = vadd.f32 0.0, %v1032
      %v1034 = vpop.f32.mrb[0].mxu0
      %v1035 = vadd.f32 0.0, %v1034
      %v1036 = vpop.f32.mrb[0].mxu0
      %v1037 = vadd.f32 0.0, %v1036
      %1038 = vdwg.mxu0
      %s1039 = scalar_lea.vmem %s165, 384
      %v1040 = vld [vmem:[%s1039] sm:$0xff]
      %v1041 = vld [vmem:[%s1039 + $0x8] sm:$0xff]
      %v1042 = vld [vmem:[%s1039 + $0x10] sm:$0xff]
      %v1043 = vld [vmem:[%s1039 + $0x18] sm:$0xff]
      %v1044 = vld [vmem:[%s1039 + $0x20] sm:$0xff]
      %v1045 = vld [vmem:[%s1039 + $0x28] sm:$0xff]
      %v1046 = vld [vmem:[%s1039 + $0x30] sm:$0xff]
      %v1047 = vld [vmem:[%s1039 + $0x38] sm:$0xff]
      %v1048 = vld [vmem:[%s1039 + $0x40] sm:$0xff]
      %v1049 = vld [vmem:[%s1039 + $0x48] sm:$0xff]
      %v1050 = vld [vmem:[%s1039 + $0x50] sm:$0xff]
      %v1051 = vld [vmem:[%s1039 + $0x58] sm:$0xff]
      %v1052 = vld [vmem:[%s1039 + $0x60] sm:$0xff]
      %v1053 = vld [vmem:[%s1039 + $0x68] sm:$0xff]
      %v1054 = vld [vmem:[%s1039 + $0x70] sm:$0xff]
      %v1055 = vld [vmem:[%s1039 + $0x78] sm:$0xff]
      %v1056 = vld [vmem:[%s1039 + $0x80] sm:$0xff]
      %v1057 = vld [vmem:[%s1039 + $0x88] sm:$0xff]
      %v1058 = vld [vmem:[%s1039 + $0x90] sm:$0xff]
      %v1059 = vld [vmem:[%s1039 + $0x98] sm:$0xff]
      %v1060 = vld [vmem:[%s1039 + $0xa0] sm:$0xff]
      %v1061 = vld [vmem:[%s1039 + $0xa8] sm:$0xff]
      %v1062 = vld [vmem:[%s1039 + $0xb0] sm:$0xff]
      %v1063 = vld [vmem:[%s1039 + $0xb8] sm:$0xff]
      %v1064 = vld [vmem:[%s1039 + $0xc0] sm:$0xff]
      %v1065 = vld [vmem:[%s1039 + $0xc8] sm:$0xff]
      %v1066 = vld [vmem:[%s1039 + $0xd0] sm:$0xff]
      %v1067 = vld [vmem:[%s1039 + $0xd8] sm:$0xff]
      %v1068 = vld [vmem:[%s1039 + $0xe0] sm:$0xff]
      %v1069 = vld [vmem:[%s1039 + $0xe8] sm:$0xff]
      %v1070 = vld [vmem:[%s1039 + $0xf0] sm:$0xff]
      %v1071 = vld [vmem:[%s1039 + $0xf8] sm:$0xff]
      %v1072 = vld [vmem:[%s1039 + $0x100] sm:$0xff]
      %v1073 = vld [vmem:[%s1039 + $0x108] sm:$0xff]
      %v1074 = vld [vmem:[%s1039 + $0x110] sm:$0xff]
      %v1075 = vld [vmem:[%s1039 + $0x118] sm:$0xff]
      %v1076 = vld [vmem:[%s1039 + $0x120] sm:$0x33]
      %v1077 = vld [vmem:[%s1039 + $0x128] sm:$0x33]
      %v1078 = vld [vmem:[%s1039 + $0x130] sm:$0x33]
      %v1079 = vld [vmem:[%s1039 + $0x138] sm:$0x33]
      %v1080 = vld [vmem:[%s1039 + $0x140] sm:$0x33]
      %v1081 = vld [vmem:[%s1039 + $0x148] sm:$0x33]
      %v1082 = vld [vmem:[%s1039 + $0x150] sm:$0x33]
      %v1083 = vld [vmem:[%s1039 + $0x158] sm:$0x33]
      %v1084 = vld [vmem:[%s1039 + $0x160] sm:$0x33]
      %v1085 = vld [vmem:[%s1039 + $0x168] sm:$0x33]
      %v1086 = vld [vmem:[%s1039 + $0x170] sm:$0x33]
      %v1087 = vld [vmem:[%s1039 + $0x178] sm:$0x33]
      %v1136 = vunpack.c.l.b16 %v1040
      %v1137 = vunpack.c.h.b16 %v1040
      %v1138 = vunpack.c.l.b16 %v1041
      %v1139 = vunpack.c.h.b16 %v1041
      %v1140 = vunpack.c.l.b16 %v1042
      %v1141 = vunpack.c.h.b16 %v1042
      %v1142 = vunpack.c.l.b16 %v1043
      %v1143 = vunpack.c.h.b16 %v1043
      %v1144 = vunpack.c.l.b16 %v1044
      %v1145 = vunpack.c.h.b16 %v1044
      %v1146 = vunpack.c.l.b16 %v1045
      %v1147 = vunpack.c.h.b16 %v1045
      %v1148 = vunpack.c.l.b16 %v1046
      %v1149 = vunpack.c.h.b16 %v1046
      %v1150 = vunpack.c.l.b16 %v1047
      %v1151 = vunpack.c.h.b16 %v1047
      %v1152 = vunpack.c.l.b16 %v1048
      %v1153 = vunpack.c.h.b16 %v1048
      %v1154 = vunpack.c.l.b16 %v1049
      %v1155 = vunpack.c.h.b16 %v1049
      %v1156 = vunpack.c.l.b16 %v1050
      %v1157 = vunpack.c.h.b16 %v1050
      %v1158 = vunpack.c.l.b16 %v1051
      %v1159 = vunpack.c.h.b16 %v1051
      %v1160 = vunpack.c.l.b16 %v1052
      %v1161 = vunpack.c.h.b16 %v1052
      %v1162 = vunpack.c.l.b16 %v1053
      %v1163 = vunpack.c.h.b16 %v1053
      %v1164 = vunpack.c.l.b16 %v1054
      %v1165 = vunpack.c.h.b16 %v1054
      %v1166 = vunpack.c.l.b16 %v1055
      %v1167 = vunpack.c.h.b16 %v1055
      %v1168 = vunpack.c.l.b16 %v1056
      %v1169 = vunpack.c.h.b16 %v1056
      %v1170 = vunpack.c.l.b16 %v1057
      %v1171 = vunpack.c.h.b16 %v1057
      %v1172 = vunpack.c.l.b16 %v1058
      %v1173 = vunpack.c.h.b16 %v1058
      %v1174 = vunpack.c.l.b16 %v1059
      %v1175 = vunpack.c.h.b16 %v1059
      %v1176 = vunpack.c.l.b16 %v1060
      %v1177 = vunpack.c.h.b16 %v1060
      %v1178 = vunpack.c.l.b16 %v1061
      %v1179 = vunpack.c.h.b16 %v1061
      %v1180 = vunpack.c.l.b16 %v1062
      %v1181 = vunpack.c.h.b16 %v1062
      %v1182 = vunpack.c.l.b16 %v1063
      %v1183 = vunpack.c.h.b16 %v1063
      %v1184 = vunpack.c.l.b16 %v1064
      %v1185 = vunpack.c.h.b16 %v1064
      %v1186 = vunpack.c.l.b16 %v1065
      %v1187 = vunpack.c.h.b16 %v1065
      %v1188 = vunpack.c.l.b16 %v1066
      %v1189 = vunpack.c.h.b16 %v1066
      %v1190 = vunpack.c.l.b16 %v1067
      %v1191 = vunpack.c.h.b16 %v1067
      %v1192 = vunpack.c.l.b16 %v1068
      %v1193 = vunpack.c.h.b16 %v1068
      %v1194 = vunpack.c.l.b16 %v1069
      %v1195 = vunpack.c.h.b16 %v1069
      %v1196 = vunpack.c.l.b16 %v1070
      %v1197 = vunpack.c.h.b16 %v1070
      %v1198 = vunpack.c.l.b16 %v1071
      %v1199 = vunpack.c.h.b16 %v1071
      %v1200 = vunpack.c.l.b16 %v1072
      %v1201 = vunpack.c.h.b16 %v1072
      %v1202 = vunpack.c.l.b16 %v1073
      %v1203 = vunpack.c.h.b16 %v1073
      %v1204 = vunpack.c.l.b16 %v1074
      %v1205 = vunpack.c.h.b16 %v1074
      %v1206 = vunpack.c.l.b16 %v1075
      %v1207 = vunpack.c.h.b16 %v1075
      %v1208 = vunpack.c.l.b16 %v1076
      %v1209 = vunpack.c.h.b16 %v1076
      %v1210 = vunpack.c.l.b16 %v1077
      %v1211 = vunpack.c.h.b16 %v1077
      %v1212 = vunpack.c.l.b16 %v1078
      %v1213 = vunpack.c.h.b16 %v1078
      %v1214 = vunpack.c.l.b16 %v1079
      %v1215 = vunpack.c.h.b16 %v1079
      %v1216 = vunpack.c.l.b16 %v1080
      %v1217 = vunpack.c.h.b16 %v1080
      %v1218 = vunpack.c.l.b16 %v1081
      %v1219 = vunpack.c.h.b16 %v1081
      %v1220 = vunpack.c.l.b16 %v1082
      %v1221 = vunpack.c.h.b16 %v1082
      %v1222 = vunpack.c.l.b16 %v1083
      %v1223 = vunpack.c.h.b16 %v1083
      %v1224 = vunpack.c.l.b16 %v1084
      %v1225 = vunpack.c.h.b16 %v1084
      %v1226 = vunpack.c.l.b16 %v1085
      %v1227 = vunpack.c.h.b16 %v1085
      %v1228 = vunpack.c.l.b16 %v1086
      %v1229 = vunpack.c.h.b16 %v1086
      %v1230 = vunpack.c.l.b16 %v1087
      %v1231 = vunpack.c.h.b16 %v1087
      %v1232 = vpack.c.b16 %v1160, %v1136
      %v1233 = vpack.c.b16 %v1161, %v1137
      %v1234 = vpack.c.b16 %v1162, %v1138
      %v1235 = vpack.c.b16 %v1163, %v1139
      %v1236 = vpack.c.b16 %v1164, %v1140
      %v1237 = vpack.c.b16 %v1165, %v1141
      %v1238 = vpack.c.b16 %v1166, %v1142
      %v1239 = vpack.c.b16 %v1167, %v1143
      %v1240 = vpack.c.b16 %v1168, %v1144
      %v1241 = vpack.c.b16 %v1169, %v1145
      %v1242 = vpack.c.b16 %v1170, %v1146
      %v1243 = vpack.c.b16 %v1171, %v1147
      %v1244 = vpack.c.b16 %v1172, %v1148
      %v1245 = vpack.c.b16 %v1173, %v1149
      %v1246 = vpack.c.b16 %v1174, %v1150
      %v1247 = vpack.c.b16 %v1175, %v1151
      %v1248 = vpack.c.b16 %v1176, %v1152
      %v1249 = vpack.c.b16 %v1177, %v1153
      %v1250 = vpack.c.b16 %v1178, %v1154
      %v1251 = vpack.c.b16 %v1179, %v1155
      %v1252 = vpack.c.b16 %v1180, %v1156
      %v1253 = vpack.c.b16 %v1181, %v1157
      %v1254 = vpack.c.b16 %v1182, %v1158
      %v1255 = vpack.c.b16 %v1183, %v1159
      %v1256 = vpack.c.b16 %v1208, %v1184
      %v1257 = vpack.c.b16 %v1209, %v1185
      %v1258 = vpack.c.b16 %v1210, %v1186
      %v1259 = vpack.c.b16 %v1211, %v1187
      %v1260 = vpack.c.b16 %v1212, %v1188
      %v1261 = vpack.c.b16 %v1213, %v1189
      %v1262 = vpack.c.b16 %v1214, %v1190
      %v1263 = vpack.c.b16 %v1215, %v1191
      %v1264 = vpack.c.b16 %v1216, %v1192
      %v1265 = vpack.c.b16 %v1217, %v1193
      %v1266 = vpack.c.b16 %v1218, %v1194
      %v1267 = vpack.c.b16 %v1219, %v1195
      %v1268 = vpack.c.b16 %v1220, %v1196
      %v1269 = vpack.c.b16 %v1221, %v1197
      %v1270 = vpack.c.b16 %v1222, %v1198
      %v1271 = vpack.c.b16 %v1223, %v1199
      %v1272 = vpack.c.b16 %v1224, %v1200
      %v1273 = vpack.c.b16 %v1225, %v1201
      %v1274 = vpack.c.b16 %v1226, %v1202
      %v1275 = vpack.c.b16 %v1227, %v1203
      %v1276 = vpack.c.b16 %v1228, %v1204
      %v1277 = vpack.c.b16 %v1229, %v1205
      %v1278 = vpack.c.b16 %v1230, %v1206
      %v1279 = vpack.c.b16 %v1231, %v1207
      %v1305 = vand.u32 %v1256, %v450
      %v1308 = vand.u32 %v1257, %v450
      %v1311 = vand.u32 %v1258, %v450
      %v1314 = vand.u32 %v1259, %v450
      %v1317 = vand.u32 %v1260, %v450
      %v1320 = vand.u32 %v1261, %v450
      %v1323 = vand.u32 %v1262, %v450
      %v1326 = vand.u32 %v1263, %v450
      %v1329 = vand.u32 %v1264, %v450
      %v1332 = vand.u32 %v1265, %v450
      %v1335 = vand.u32 %v1266, %v450
      %v1338 = vand.u32 %v1267, %v450
      %v1341 = vand.u32 %v1268, %v450
      %v1344 = vand.u32 %v1269, %v450
      %v1347 = vand.u32 %v1270, %v450
      %v1350 = vand.u32 %v1271, %v450
      %v1353 = vand.u32 %v1272, %v450
      %v1356 = vand.u32 %v1273, %v450
      %v1359 = vand.u32 %v1274, %v450
      %v1362 = vand.u32 %v1275, %v450
      %v1365 = vand.u32 %v1276, %v450
      %v1368 = vand.u32 %v1277, %v450
      %v1371 = vand.u32 %v1278, %v450
      %v1374 = vand.u32 %v1279, %v450
      %1376 = vmatprep.subr.bf16.mxu0 %v1233
      %1377 = vmatpush1.bf16.msra.mxu0 %v1232
      %1378 = vmatprep.subr.bf16.mxu0 %v1308
      %1379 = vmatpush1.bf16.msra.mxu0 %v1305
      %1380 = vmatprep.subr.bf16.mxu0 0
      %1381 = vmatpush1.bf16.msra.mxu0 0
      %1382 = vmatprep.subr.bf16.mxu0 0
      %1383 = vmatpush1.bf16.msra.mxu0 0
      %1384 = vmatprep.subr.bf16.mxu0 0
      %1385 = vmatpush1.bf16.msra.mxu0 0
      %1386 = vmatprep.subr.bf16.mxu0 0
      %1387 = vmatpush1.bf16.msra.mxu0 0
      %1388 = vmatprep.subr.bf16.mxu0 0
      %1389 = vmatpush1.bf16.msra.mxu0 0
      %1390 = vmatprep.subr.bf16.mxu0 0
      %1391 = vmatpush1.bf16.msra.mxu0 0
      %1392 = vmatprep.subr.bf16.mxu0 0
      %1393 = vmatpush1.bf16.msra.mxu0 0
      %1394 = vmatprep.subr.bf16.mxu0 0
      %1395 = vmatpush1.bf16.msra.mxu0 0
      %1396 = vmatprep.subr.bf16.mxu0 0
      %1397 = vmatpush1.bf16.msra.mxu0 0
      %1398 = vmatprep.subr.bf16.mxu0 0
      %1399 = vmatpush1.bf16.msra.mxu0 0
      %1400 = vmatprep.subr.bf16.mxu0 0
      %1401 = vmatpush1.bf16.msra.mxu0 0
      %1402 = vmatprep.subr.bf16.mxu0 0
      %1403 = vmatpush1.bf16.msra.mxu0 0
      %1404 = vmatprep.subr.bf16.mxu0 0
      %1405 = vmatpush1.bf16.msra.mxu0 0
      %1406 = vmatprep.subr.bf16.mxu0 0
      %1407 = vmatpush1.bf16.msra.mxu0 0
      %1408 = vmatprep.mubr.bf16.mxu0 0
      %1409 = vmatmul.mubr.bf16.gmra.mrb[0].mxu0 %v445
      %v1410 = vpop.f32.mrb[0].mxu0
      %v1411 = vadd.f32 0.0, %v1410
      %v1412 = vpop.f32.mrb[0].mxu0
      %v1413 = vadd.f32 0.0, %v1412
      %v1414 = vpop.f32.mrb[0].mxu0
      %v1415 = vadd.f32 0.0, %v1414
      %v1416 = vpop.f32.mrb[0].mxu0
      %v1417 = vadd.f32 0.0, %v1416
      %1418 = vdwg.mxu0
      %1419 = vmatprep.subr.bf16.mxu0 %v1235
      %1420 = vmatpush1.bf16.msra.mxu0 %v1234
      %1421 = vmatprep.subr.bf16.mxu0 %v1314
      %1422 = vmatpush1.bf16.msra.mxu0 %v1311
      %1423 = vmatprep.subr.bf16.mxu0 0
      %1424 = vmatpush1.bf16.msra.mxu0 0
      %1425 = vmatprep.subr.bf16.mxu0 0
      %1426 = vmatpush1.bf16.msra.mxu0 0
      %1427 = vmatprep.subr.bf16.mxu0 0
      %1428 = vmatpush1.bf16.msra.mxu0 0
      %1429 = vmatprep.subr.bf16.mxu0 0
      %1430 = vmatpush1.bf16.msra.mxu0 0
      %1431 = vmatprep.subr.bf16.mxu0 0
      %1432 = vmatpush1.bf16.msra.mxu0 0
      %1433 = vmatprep.subr.bf16.mxu0 0
      %1434 = vmatpush1.bf16.msra.mxu0 0
      %1435 = vmatprep.subr.bf16.mxu0 0
      %1436 = vmatpush1.bf16.msra.mxu0 0
      %1437 = vmatprep.subr.bf16.mxu0 0
      %1438 = vmatpush1.bf16.msra.mxu0 0
      %1439 = vmatprep.subr.bf16.mxu0 0
      %1440 = vmatpush1.bf16.msra.mxu0 0
      %1441 = vmatprep.subr.bf16.mxu0 0
      %1442 = vmatpush1.bf16.msra.mxu0 0
      %1443 = vmatprep.subr.bf16.mxu0 0
      %1444 = vmatpush1.bf16.msra.mxu0 0
      %1445 = vmatprep.subr.bf16.mxu0 0
      %1446 = vmatpush1.bf16.msra.mxu0 0
      %1447 = vmatprep.subr.bf16.mxu0 0
      %1448 = vmatpush1.bf16.msra.mxu0 0
      %1449 = vmatprep.subr.bf16.mxu0 0
      %1450 = vmatpush1.bf16.msra.mxu0 0
      %1451 = vmatprep.mubr.bf16.mxu0 0
      %1452 = vmatmul.mubr.bf16.gmra.mrb[0].mxu0 %v445
      %v1453 = vpop.f32.mrb[0].mxu0
      %v1454 = vadd.f32 0.0, %v1453
      %v1455 = vpop.f32.mrb[0].mxu0
      %v1456 = vadd.f32 0.0, %v1455
      %v1457 = vpop.f32.mrb[0].mxu0
      %v1458 = vadd.f32 0.0, %v1457
      %v1459 = vpop.f32.mrb[0].mxu0
      %v1460 = vadd.f32 0.0, %v1459
      %1461 = vdwg.mxu0
      %1462 = vmatprep.subr.bf16.mxu0 %v1237
      %1463 = vmatpush1.bf16.msra.mxu0 %v1236
      %1464 = vmatprep.subr.bf16.mxu0 %v1320
      %1465 = vmatpush1.bf16.msra.mxu0 %v1317
      %1466 = vmatprep.subr.bf16.mxu0 0
      %1467 = vmatpush1.bf16.msra.mxu0 0
      %1468 = vmatprep.subr.bf16.mxu0 0
      %1469 = vmatpush1.bf16.msra.mxu0 0
      %1470 = vmatprep.subr.bf16.mxu0 0
      %1471 = vmatpush1.bf16.msra.mxu0 0
      %1472 = vmatprep.subr.bf16.mxu0 0
      %1473 = vmatpush1.bf16.msra.mxu0 0
      %1474 = vmatprep.subr.bf16.mxu0 0
      %1475 = vmatpush1.bf16.msra.mxu0 0
      %1476 = vmatprep.subr.bf16.mxu0 0
      %1477 = vmatpush1.bf16.msra.mxu0 0
      %1478 = vmatprep.subr.bf16.mxu0 0
      %1479 = vmatpush1.bf16.msra.mxu0 0
      %1480 = vmatprep.subr.bf16.mxu0 0
      %1481 = vmatpush1.bf16.msra.mxu0 0
      %1482 = vmatprep.subr.bf16.mxu0 0
      %1483 = vmatpush1.bf16.msra.mxu0 0
      %1484 = vmatprep.subr.bf16.mxu0 0
      %1485 = vmatpush1.bf16.msra.mxu0 0
      %1486 = vmatprep.subr.bf16.mxu0 0
      %1487 = vmatpush1.bf16.msra.mxu0 0
      %1488 = vmatprep.subr.bf16.mxu0 0
      %1489 = vmatpush1.bf16.msra.mxu0 0
      %1490 = vmatprep.subr.bf16.mxu0 0
      %1491 = vmatpush1.bf16.msra.mxu0 0
      %1492 = vmatprep.subr.bf16.mxu0 0
      %1493 = vmatpush1.bf16.msra.mxu0 0
      %1494 = vmatprep.mubr.bf16.mxu0 0
      %1495 = vmatmul.mubr.bf16.gmra.mrb[0].mxu0 %v445
      %v1496 = vpop.f32.mrb[0].mxu0
      %v1497 = vadd.f32 0.0, %v1496
      %v1498 = vpop.f32.mrb[0].mxu0
      %v1499 = vadd.f32 0.0, %v1498
      %v1500 = vpop.f32.mrb[0].mxu0
      %v1501 = vadd.f32 0.0, %v1500
      %v1502 = vpop.f32.mrb[0].mxu0
      %v1503 = vadd.f32 0.0, %v1502
      %1504 = vdwg.mxu0
      %1505 = vmatprep.subr.bf16.mxu0 %v1239
      %1506 = vmatpush1.bf16.msra.mxu0 %v1238
      %1507 = vmatprep.subr.bf16.mxu0 %v1326
      %1508 = vmatpush1.bf16.msra.mxu0 %v1323
      %1509 = vmatprep.subr.bf16.mxu0 0
      %1510 = vmatpush1.bf16.msra.mxu0 0
      %1511 = vmatprep.subr.bf16.mxu0 0
      %1512 = vmatpush1.bf16.msra.mxu0 0
      %1513 = vmatprep.subr.bf16.mxu0 0
      %1514 = vmatpush1.bf16.msra.mxu0 0
      %1515 = vmatprep.subr.bf16.mxu0 0
      %1516 = vmatpush1.bf16.msra.mxu0 0
      %1517 = vmatprep.subr.bf16.mxu0 0
      %1518 = vmatpush1.bf16.msra.mxu0 0
      %1519 = vmatprep.subr.bf16.mxu0 0
      %1520 = vmatpush1.bf16.msra.mxu0 0
      %1521 = vmatprep.subr.bf16.mxu0 0
      %1522 = vmatpush1.bf16.msra.mxu0 0
      %1523 = vmatprep.subr.bf16.mxu0 0
      %1524 = vmatpush1.bf16.msra.mxu0 0
      %1525 = vmatprep.subr.bf16.mxu0 0
      %1526 = vmatpush1.bf16.msra.mxu0 0
      %1527 = vmatprep.subr.bf16.mxu0 0
      %1528 = vmatpush1.bf16.msra.mxu0 0
      %1529 = vmatprep.subr.bf16.mxu0 0
      %1530 = vmatpush1.bf16.msra.mxu0 0
      %1531 = vmatprep.subr.bf16.mxu0 0
      %1532 = vmatpush1.bf16.msra.mxu0 0
      %1533 = vmatprep.subr.bf16.mxu0 0
      %1534 = vmatpush1.bf16.msra.mxu0 0
      %1535 = vmatprep.subr.bf16.mxu0 0
      %1536 = vmatpush1.bf16.msra.mxu0 0
      %1537 = vmatprep.mubr.bf16.mxu0 0
      %1538 = vmatmul.mubr.bf16.gmra.mrb[0].mxu0 %v445
      %v1539 = vpop.f32.mrb[0].mxu0
      %v1540 = vadd.f32 0.0, %v1539
      %v1541 = vpop.f32.mrb[0].mxu0
      %v1542 = vadd.f32 0.0, %v1541
      %v1543 = vpop.f32.mrb[0].mxu0
      %v1544 = vadd.f32 0.0, %v1543
      %v1545 = vpop.f32.mrb[0].mxu0
      %v1546 = vadd.f32 0.0, %v1545
      %1547 = vdwg.mxu0
      %1548 = vmatprep.subr.bf16.mxu0 %v1241
      %1549 = vmatpush1.bf16.msra.mxu0 %v1240
      %1550 = vmatprep.subr.bf16.mxu0 %v1332
      %1551 = vmatpush1.bf16.msra.mxu0 %v1329
      %1552 = vmatprep.subr.bf16.mxu0 0
      %1553 = vmatpush1.bf16.msra.mxu0 0
      %1554 = vmatprep.subr.bf16.mxu0 0
      %1555 = vmatpush1.bf16.msra.mxu0 0
      %1556 = vmatprep.subr.bf16.mxu0 0
      %1557 = vmatpush1.bf16.msra.mxu0 0
      %1558 = vmatprep.subr.bf16.mxu0 0
      %1559 = vmatpush1.bf16.msra.mxu0 0
      %1560 = vmatprep.subr.bf16.mxu0 0
      %1561 = vmatpush1.bf16.msra.mxu0 0
      %1562 = vmatprep.subr.bf16.mxu0 0
      %1563 = vmatpush1.bf16.msra.mxu0 0
      %1564 = vmatprep.subr.bf16.mxu0 0
      %1565 = vmatpush1.bf16.msra.mxu0 0
      %1566 = vmatprep.subr.bf16.mxu0 0
      %1567 = vmatpush1.bf16.msra.mxu0 0
      %1568 = vmatprep.subr.bf16.mxu0 0
      %1569 = vmatpush1.bf16.msra.mxu0 0
      %1570 = vmatprep.subr.bf16.mxu0 0
      %1571 = vmatpush1.bf16.msra.mxu0 0
      %1572 = vmatprep.subr.bf16.mxu0 0
      %1573 = vmatpush1.bf16.msra.mxu0 0
      %1574 = vmatprep.subr.bf16.mxu0 0
      %1575 = vmatpush1.bf16.msra.mxu0 0
      %1576 = vmatprep.subr.bf16.mxu0 0
      %1577 = vmatpush1.bf16.msra.mxu0 0
      %1578 = vmatprep.subr.bf16.mxu0 0
      %1579 = vmatpush1.bf16.msra.mxu0 0
      %1580 = vmatprep.mubr.bf16.mxu0 0
      %1581 = vmatmul.mubr.bf16.gmra.mrb[0].mxu0 %v445
      %v1582 = vpop.f32.mrb[0].mxu0
      %v1583 = vadd.f32 0.0, %v1582
      %v1584 = vpop.f32.mrb[0].mxu0
      %v1585 = vadd.f32 0.0, %v1584
      %v1586 = vpop.f32.mrb[0].mxu0
      %v1587 = vadd.f32 0.0, %v1586
      %v1588 = vpop.f32.mrb[0].mxu0
      %v1589 = vadd.f32 0.0, %v1588
      %1590 = vdwg.mxu0
      %1591 = vmatprep.subr.bf16.mxu0 %v1243
      %1592 = vmatpush1.bf16.msra.mxu0 %v1242
      %1593 = vmatprep.subr.bf16.mxu0 %v1338
      %1594 = vmatpush1.bf16.msra.mxu0 %v1335
      %1595 = vmatprep.subr.bf16.mxu0 0
      %1596 = vmatpush1.bf16.msra.mxu0 0
      %1597 = vmatprep.subr.bf16.mxu0 0
      %1598 = vmatpush1.bf16.msra.mxu0 0
      %1599 = vmatprep.subr.bf16.mxu0 0
      %1600 = vmatpush1.bf16.msra.mxu0 0
      %1601 = vmatprep.subr.bf16.mxu0 0
      %1602 = vmatpush1.bf16.msra.mxu0 0
      %1603 = vmatprep.subr.bf16.mxu0 0
      %1604 = vmatpush1.bf16.msra.mxu0 0
      %1605 = vmatprep.subr.bf16.mxu0 0
      %1606 = vmatpush1.bf16.msra.mxu0 0
      %1607 = vmatprep.subr.bf16.mxu0 0
      %1608 = vmatpush1.bf16.msra.mxu0 0
      %1609 = vmatprep.subr.bf16.mxu0 0
      %1610 = vmatpush1.bf16.msra.mxu0 0
      %1611 = vmatprep.subr.bf16.mxu0 0
      %1612 = vmatpush1.bf16.msra.mxu0 0
      %1613 = vmatprep.subr.bf16.mxu0 0
      %1614 = vmatpush1.bf16.msra.mxu0 0
      %1615 = vmatprep.subr.bf16.mxu0 0
      %1616 = vmatpush1.bf16.msra.mxu0 0
      %1617 = vmatprep.subr.bf16.mxu0 0
      %1618 = vmatpush1.bf16.msra.mxu0 0
      %1619 = vmatprep.subr.bf16.mxu0 0
      %1620 = vmatpush1.bf16.msra.mxu0 0
      %1621 = vmatprep.subr.bf16.mxu0 0
      %1622 = vmatpush1.bf16.msra.mxu0 0
      %1623 = vmatprep.mubr.bf16.mxu0 0
      %1624 = vmatmul.mubr.bf16.gmra.mrb[0].mxu0 %v445
      %v1625 = vpop.f32.mrb[0].mxu0
      %v1626 = vadd.f32 0.0, %v1625
      %v1627 = vpop.f32.mrb[0].mxu0
      %v1628 = vadd.f32 0.0, %v1627
      %v1629 = vpop.f32.mrb[0].mxu0
      %v1630 = vadd.f32 0.0, %v1629
      %v1631 = vpop.f32.mrb[0].mxu0
      %v1632 = vadd.f32 0.0, %v1631
      %1633 = vdwg.mxu0
      %1634 = vmatprep.subr.bf16.mxu0 %v1245
      %1635 = vmatpush1.bf16.msra.mxu0 %v1244
      %1636 = vmatprep.subr.bf16.mxu0 %v1344
      %1637 = vmatpush1.bf16.msra.mxu0 %v1341
      %1638 = vmatprep.subr.bf16.mxu0 0
      %1639 = vmatpush1.bf16.msra.mxu0 0
      %1640 = vmatprep.subr.bf16.mxu0 0
      %1641 = vmatpush1.bf16.msra.mxu0 0
      %1642 = vmatprep.subr.bf16.mxu0 0
      %1643 = vmatpush1.bf16.msra.mxu0 0
      %1644 = vmatprep.subr.bf16.mxu0 0
      %1645 = vmatpush1.bf16.msra.mxu0 0
      %1646 = vmatprep.subr.bf16.mxu0 0
      %1647 = vmatpush1.bf16.msra.mxu0 0
      %1648 = vmatprep.subr.bf16.mxu0 0
      %1649 = vmatpush1.bf16.msra.mxu0 0
      %1650 = vmatprep.subr.bf16.mxu0 0
      %1651 = vmatpush1.bf16.msra.mxu0 0
      %1652 = vmatprep.subr.bf16.mxu0 0
      %1653 = vmatpush1.bf16.msra.mxu0 0
      %1654 = vmatprep.subr.bf16.mxu0 0
      %1655 = vmatpush1.bf16.msra.mxu0 0
      %1656 = vmatprep.subr.bf16.mxu0 0
      %1657 = vmatpush1.bf16.msra.mxu0 0
      %1658 = vmatprep.subr.bf16.mxu0 0
      %1659 = vmatpush1.bf16.msra.mxu0 0
      %1660 = vmatprep.subr.bf16.mxu0 0
      %1661 = vmatpush1.bf16.msra.mxu0 0
      %1662 = vmatprep.subr.bf16.mxu0 0
      %1663 = vmatpush1.bf16.msra.mxu0 0
      %1664 = vmatprep.subr.bf16.mxu0 0
      %1665 = vmatpush1.bf16.msra.mxu0 0
      %1666 = vmatprep.mubr.bf16.mxu0 0
      %1667 = vmatmul.mubr.bf16.gmra.mrb[0].mxu0 %v445
      %v1668 = vpop.f32.mrb[0].mxu0
      %v1669 = vadd.f32 0.0, %v1668
      %v1670 = vpop.f32.mrb[0].mxu0
      %v1671 = vadd.f32 0.0, %v1670
      %v1672 = vpop.f32.mrb[0].mxu0
      %v1673 = vadd.f32 0.0, %v1672
      %v1674 = vpop.f32.mrb[0].mxu0
      %v1675 = vadd.f32 0.0, %v1674
      %1676 = vdwg.mxu0
      %1677 = vmatprep.subr.bf16.mxu0 %v1247
      %1678 = vmatpush1.bf16.msra.mxu0 %v1246
      %1679 = vmatprep.subr.bf16.mxu0 %v1350
      %1680 = vmatpush1.bf16.msra.mxu0 %v1347
      %1681 = vmatprep.subr.bf16.mxu0 0
      %1682 = vmatpush1.bf16.msra.mxu0 0
      %1683 = vmatprep.subr.bf16.mxu0 0
      %1684 = vmatpush1.bf16.msra.mxu0 0
      %1685 = vmatprep.subr.bf16.mxu0 0
      %1686 = vmatpush1.bf16.msra.mxu0 0
      %1687 = vmatprep.subr.bf16.mxu0 0
      %1688 = vmatpush1.bf16.msra.mxu0 0
      %1689 = vmatprep.subr.bf16.mxu0 0
      %1690 = vmatpush1.bf16.msra.mxu0 0
      %1691 = vmatprep.subr.bf16.mxu0 0
      %1692 = vmatpush1.bf16.msra.mxu0 0
      %1693 = vmatprep.subr.bf16.mxu0 0
      %1694 = vmatpush1.bf16.msra.mxu0 0
      %1695 = vmatprep.subr.bf16.mxu0 0
      %1696 = vmatpush1.bf16.msra.mxu0 0
      %1697 = vmatprep.subr.bf16.mxu0 0
      %1698 = vmatpush1.bf16.msra.mxu0 0
      %1699 = vmatprep.subr.bf16.mxu0 0
      %1700 = vmatpush1.bf16.msra.mxu0 0
      %1701 = vmatprep.subr.bf16.mxu0 0
      %1702 = vmatpush1.bf16.msra.mxu0 0
      %1703 = vmatprep.subr.bf16.mxu0 0
      %1704 = vmatpush1.bf16.msra.mxu0 0
      %1705 = vmatprep.subr.bf16.mxu0 0
      %1706 = vmatpush1.bf16.msra.mxu0 0
      %1707 = vmatprep.subr.bf16.mxu0 0
      %1708 = vmatpush1.bf16.msra.mxu0 0
      %1709 = vmatprep.mubr.bf16.mxu0 0
      %1710 = vmatmul.mubr.bf16.gmra.mrb[0].mxu0 %v445
      %v1711 = vpop.f32.mrb[0].mxu0
      %v1712 = vadd.f32 0.0, %v1711
      %v1713 = vpop.f32.mrb[0].mxu0
      %v1714 = vadd.f32 0.0, %v1713
      %v1715 = vpop.f32.mrb[0].mxu0
      %v1716 = vadd.f32 0.0, %v1715
      %v1717 = vpop.f32.mrb[0].mxu0
      %v1718 = vadd.f32 0.0, %v1717
      %1719 = vdwg.mxu0
      %1720 = vmatprep.subr.bf16.mxu0 %v1249
      %1721 = vmatpush1.bf16.msra.mxu0 %v1248
      %1722 = vmatprep.subr.bf16.mxu0 %v1356
      %1723 = vmatpush1.bf16.msra.mxu0 %v1353
      %1724 = vmatprep.subr.bf16.mxu0 0
      %1725 = vmatpush1.bf16.msra.mxu0 0
      %1726 = vmatprep.subr.bf16.mxu0 0
      %1727 = vmatpush1.bf16.msra.mxu0 0
      %1728 = vmatprep.subr.bf16.mxu0 0
      %1729 = vmatpush1.bf16.msra.mxu0 0
      %1730 = vmatprep.subr.bf16.mxu0 0
      %1731 = vmatpush1.bf16.msra.mxu0 0
      %1732 = vmatprep.subr.bf16.mxu0 0
      %1733 = vmatpush1.bf16.msra.mxu0 0
      %1734 = vmatprep.subr.bf16.mxu0 0
      %1735 = vmatpush1.bf16.msra.mxu0 0
      %1736 = vmatprep.subr.bf16.mxu0 0
      %1737 = vmatpush1.bf16.msra.mxu0 0
      %1738 = vmatprep.subr.bf16.mxu0 0
      %1739 = vmatpush1.bf16.msra.mxu0 0
      %1740 = vmatprep.subr.bf16.mxu0 0
      %1741 = vmatpush1.bf16.msra.mxu0 0
      %1742 = vmatprep.subr.bf16.mxu0 0
      %1743 = vmatpush1.bf16.msra.mxu0 0
      %1744 = vmatprep.subr.bf16.mxu0 0
      %1745 = vmatpush1.bf16.msra.mxu0 0
      %1746 = vmatprep.subr.bf16.mxu0 0
      %1747 = vmatpush1.bf16.msra.mxu0 0
      %1748 = vmatprep.subr.bf16.mxu0 0
      %1749 = vmatpush1.bf16.msra.mxu0 0
      %1750 = vmatprep.subr.bf16.mxu0 0
      %1751 = vmatpush1.bf16.msra.mxu0 0
      %1752 = vmatprep.mubr.bf16.mxu0 0
      %1753 = vmatmul.mubr.bf16.gmra.mrb[0].mxu0 %v445
      %v1754 = vpop.f32.mrb[0].mxu0
      %v1755 = vadd.f32 0.0, %v1754
      %v1756 = vpop.f32.mrb[0].mxu0
      %v1757 = vadd.f32 0.0, %v1756
      %v1758 = vpop.f32.mrb[0].mxu0
      %v1759 = vadd.f32 0.0, %v1758
      %v1760 = vpop.f32.mrb[0].mxu0
      %v1761 = vadd.f32 0.0, %v1760
      %1762 = vdwg.mxu0
      %1763 = vmatprep.subr.bf16.mxu0 %v1251
      %1764 = vmatpush1.bf16.msra.mxu0 %v1250
      %1765 = vmatprep.subr.bf16.mxu0 %v1362
      %1766 = vmatpush1.bf16.msra.mxu0 %v1359
      %1767 = vmatprep.subr.bf16.mxu0 0
      %1768 = vmatpush1.bf16.msra.mxu0 0
      %1769 = vmatprep.subr.bf16.mxu0 0
      %1770 = vmatpush1.bf16.msra.mxu0 0
      %1771 = vmatprep.subr.bf16.mxu0 0
      %1772 = vmatpush1.bf16.msra.mxu0 0
      %1773 = vmatprep.subr.bf16.mxu0 0
      %1774 = vmatpush1.bf16.msra.mxu0 0
      %1775 = vmatprep.subr.bf16.mxu0 0
      %1776 = vmatpush1.bf16.msra.mxu0 0
      %1777 = vmatprep.subr.bf16.mxu0 0
      %1778 = vmatpush1.bf16.msra.mxu0 0
      %1779 = vmatprep.subr.bf16.mxu0 0
      %1780 = vmatpush1.bf16.msra.mxu0 0
      %1781 = vmatprep.subr.bf16.mxu0 0
      %1782 = vmatpush1.bf16.msra.mxu0 0
      %1783 = vmatprep.subr.bf16.mxu0 0
      %1784 = vmatpush1.bf16.msra.mxu0 0
      %1785 = vmatprep.subr.bf16.mxu0 0
      %1786 = vmatpush1.bf16.msra.mxu0 0
      %1787 = vmatprep.subr.bf16.mxu0 0
      %1788 = vmatpush1.bf16.msra.mxu0 0
      %1789 = vmatprep.subr.bf16.mxu0 0
      %1790 = vmatpush1.bf16.msra.mxu0 0
      %1791 = vmatprep.subr.bf16.mxu0 0
      %1792 = vmatpush1.bf16.msra.mxu0 0
      %1793 = vmatprep.subr.bf16.mxu0 0
      %1794 = vmatpush1.bf16.msra.mxu0 0
      %1795 = vmatprep.mubr.bf16.mxu0 0
      %1796 = vmatmul.mubr.bf16.gmra.mrb[0].mxu0 %v445
      %v1797 = vpop.f32.mrb[0].mxu0
      %v1798 = vadd.f32 0.0, %v1797
      %v1799 = vpop.f32.mrb[0].mxu0
      %v1800 = vadd.f32 0.0, %v1799
      %v1801 = vpop.f32.mrb[0].mxu0
      %v1802 = vadd.f32 0.0, %v1801
      %v1803 = vpop.f32.mrb[0].mxu0
      %v1804 = vadd.f32 0.0, %v1803
      %1805 = vdwg.mxu0
      %1806 = vmatprep.subr.bf16.mxu0 %v1253
      %1807 = vmatpush1.bf16.msra.mxu0 %v1252
      %1808 = vmatprep.subr.bf16.mxu0 %v1368
      %1809 = vmatpush1.bf16.msra.mxu0 %v1365
      %1810 = vmatprep.subr.bf16.mxu0 0
      %1811 = vmatpush1.bf16.msra.mxu0 0
      %1812 = vmatprep.subr.bf16.mxu0 0
      %1813 = vmatpush1.bf16.msra.mxu0 0
      %1814 = vmatprep.subr.bf16.mxu0 0
      %1815 = vmatpush1.bf16.msra.mxu0 0
      %1816 = vmatprep.subr.bf16.mxu0 0
      %1817 = vmatpush1.bf16.msra.mxu0 0
      %1818 = vmatprep.subr.bf16.mxu0 0
      %1819 = vmatpush1.bf16.msra.mxu0 0
      %1820 = vmatprep.subr.bf16.mxu0 0
      %1821 = vmatpush1.bf16.msra.mxu0 0
      %1822 = vmatprep.subr.bf16.mxu0 0
      %1823 = vmatpush1.bf16.msra.mxu0 0
      %1824 = vmatprep.subr.bf16.mxu0 0
      %1825 = vmatpush1.bf16.msra.mxu0 0
      %1826 = vmatprep.subr.bf16.mxu0 0
      %1827 = vmatpush1.bf16.msra.mxu0 0
      %1828 = vmatprep.subr.bf16.mxu0 0
      %1829 = vmatpush1.bf16.msra.mxu0 0
      %1830 = vmatprep.subr.bf16.mxu0 0
      %1831 = vmatpush1.bf16.msra.mxu0 0
      %1832 = vmatprep.subr.bf16.mxu0 0
      %1833 = vmatpush1.bf16.msra.mxu0 0
      %1834 = vmatprep.subr.bf16.mxu0 0
      %1835 = vmatpush1.bf16.msra.mxu0 0
      %1836 = vmatprep.subr.bf16.mxu0 0
      %1837 = vmatpush1.bf16.msra.mxu0 0
      %1838 = vmatprep.mubr.bf16.mxu0 0
      %1839 = vmatmul.mubr.bf16.gmra.mrb[0].mxu0 %v445
      %v1840 = vpop.f32.mrb[0].mxu0
      %v1841 = vadd.f32 0.0, %v1840
      %v1842 = vpop.f32.mrb[0].mxu0
      %v1843 = vadd.f32 0.0, %v1842
      %v1844 = vpop.f32.mrb[0].mxu0
      %v1845 = vadd.f32 0.0, %v1844
      %v1846 = vpop.f32.mrb[0].mxu0
      %v1847 = vadd.f32 0.0, %v1846
      %1848 = vdwg.mxu0
      %1849 = vmatprep.subr.bf16.mxu0 %v1255
      %1850 = vmatpush1.bf16.msra.mxu0 %v1254
      %1851 = vmatprep.subr.bf16.mxu0 %v1374
      %1852 = vmatpush1.bf16.msra.mxu0 %v1371
      %1853 = vmatprep.subr.bf16.mxu0 0
      %1854 = vmatpush1.bf16.msra.mxu0 0
      %1855 = vmatprep.subr.bf16.mxu0 0
      %1856 = vmatpush1.bf16.msra.mxu0 0
      %1857 = vmatprep.subr.bf16.mxu0 0
      %1858 = vmatpush1.bf16.msra.mxu0 0
      %1859 = vmatprep.subr.bf16.mxu0 0
      %1860 = vmatpush1.bf16.msra.mxu0 0
      %1861 = vmatprep.subr.bf16.mxu0 0
      %1862 = vmatpush1.bf16.msra.mxu0 0
      %1863 = vmatprep.subr.bf16.mxu0 0
      %1864 = vmatpush1.bf16.msra.mxu0 0
      %1865 = vmatprep.subr.bf16.mxu0 0
      %1866 = vmatpush1.bf16.msra.mxu0 0
      %1867 = vmatprep.subr.bf16.mxu0 0
      %1868 = vmatpush1.bf16.msra.mxu0 0
      %1869 = vmatprep.subr.bf16.mxu0 0
      %1870 = vmatpush1.bf16.msra.mxu0 0
      %1871 = vmatprep.subr.bf16.mxu0 0
      %1872 = vmatpush1.bf16.msra.mxu0 0
      %1873 = vmatprep.subr.bf16.mxu0 0
      %1874 = vmatpush1.bf16.msra.mxu0 0
      %1875 = vmatprep.subr.bf16.mxu0 0
      %1876 = vmatpush1.bf16.msra.mxu0 0
      %1877 = vmatprep.subr.bf16.mxu0 0
      %1878 = vmatpush1.bf16.msra.mxu0 0
      %1879 = vmatprep.subr.bf16.mxu0 0
      %1880 = vmatpush1.bf16.msra.mxu0 0
      %1881 = vmatprep.mubr.bf16.mxu0 0
      %1882 = vmatmul.mubr.bf16.gmra.mrb[0].mxu0 %v445
      %v1883 = vpop.f32.mrb[0].mxu0
      %v1884 = vadd.f32 0.0, %v1883
      %v1885 = vpop.f32.mrb[0].mxu0
      %v1886 = vadd.f32 0.0, %v1885
      %v1887 = vpop.f32.mrb[0].mxu0
      %v1888 = vadd.f32 0.0, %v1887
      %v1889 = vpop.f32.mrb[0].mxu0
      %v1890 = vadd.f32 0.0, %v1889
      %1891 = vdwg.mxu0
      %v1892 = vmax.f32 %v558, %v1411
      %v1893 = vmax.f32 %v560, %v1413
      %v1894 = vmax.f32 %v601, %v1454
      %v1895 = vmax.f32 %v603, %v1456
      %v1896 = vmax.f32 %v644, %v1497
      %v1897 = vmax.f32 %v646, %v1499
      %v1898 = vmax.f32 %v687, %v1540
      %v1899 = vmax.f32 %v689, %v1542
      %v1900 = vmax.f32 %v730, %v1583
      %v1901 = vmax.f32 %v732, %v1585
      %v1902 = vmax.f32 %v773, %v1626
      %v1903 = vmax.f32 %v775, %v1628
      %v1904 = vmax.f32 %v816, %v1669
      %v1905 = vmax.f32 %v818, %v1671
      %v1906 = vmax.f32 %v859, %v1712
      %v1907 = vmax.f32 %v861, %v1714
      %v1908 = vmax.f32 %v902, %v1755
      %v1909 = vmax.f32 %v904, %v1757
      %v1910 = vmax.f32 %v945, %v1798
      %v1911 = vmax.f32 %v947, %v1800
      %v1912 = vmax.f32 %v988, %v1841
      %v1913 = vmax.f32 %v990, %v1843
      %v1914 = vmax.f32 %v1031, %v1884
      %v1915 = vmax.f32 %v1033, %v1886
      %v1916 = vmax.f32 %v562, %v1415
      %v1917 = vmax.f32 %v564, %v1417
      %v1918 = vmax.f32 %v605, %v1458
      %v1919 = vmax.f32 %v607, %v1460
      %v1920 = vmax.f32 %v648, %v1501
      %v1921 = vmax.f32 %v650, %v1503
      %v1922 = vmax.f32 %v691, %v1544
      %v1923 = vmax.f32 %v693, %v1546
      %v1924 = vmax.f32 %v734, %v1587
      %v1925 = vmax.f32 %v736, %v1589
      %v1926 = vmax.f32 %v777, %v1630
      %v1927 = vmax.f32 %v779, %v1632
      %v1928 = vmax.f32 %v820, %v1673
      %v1929 = vmax.f32 %v822, %v1675
      %v1930 = vmax.f32 %v863, %v1716
      %v1931 = vmax.f32 %v865, %v1718
      %v1932 = vmax.f32 %v906, %v1759
      %v1933 = vmax.f32 %v908, %v1761
      %v1934 = vmax.f32 %v949, %v1802
      %v1935 = vmax.f32 %v951, %v1804
      %v1936 = vmax.f32 %v992, %v1845
      %v1937 = vmax.f32 %v994, %v1847
      %v1938 = vmax.f32 %v1035, %v1888
      %v1939 = vmax.f32 %v1037, %v1890
      %s1940 = scalar_lea.vmem %s165, 768
      %v1941 = vld [vmem:[%s1940] sm:$0xff]
      %v1942 = vld [vmem:[%s1940 + $0x8] sm:$0xff]
      %v1943 = vld [vmem:[%s1940 + $0x10] sm:$0xff]
      %v1944 = vld [vmem:[%s1940 + $0x18] sm:$0xff]
      %v1945 = vld [vmem:[%s1940 + $0x20] sm:$0xff]
      %v1946 = vld [vmem:[%s1940 + $0x28] sm:$0xff]
      %v1947 = vld [vmem:[%s1940 + $0x30] sm:$0xff]
      %v1948 = vld [vmem:[%s1940 + $0x38] sm:$0xff]
      %v1949 = vld [vmem:[%s1940 + $0x40] sm:$0xff]
      %v1950 = vld [vmem:[%s1940 + $0x48] sm:$0xff]
      %v1951 = vld [vmem:[%s1940 + $0x50] sm:$0xff]
      %v1952 = vld [vmem:[%s1940 + $0x58] sm:$0xff]
      %v1953 = vld [vmem:[%s1940 + $0x60] sm:$0xff]
      %v1954 = vld [vmem:[%s1940 + $0x68] sm:$0xff]
      %v1955 = vld [vmem:[%s1940 + $0x70] sm:$0xff]
      %v1956 = vld [vmem:[%s1940 + $0x78] sm:$0xff]
      %v1957 = vld [vmem:[%s1940 + $0x80] sm:$0xff]
      %v1958 = vld [vmem:[%s1940 + $0x88] sm:$0xff]
      %v1959 = vld [vmem:[%s1940 + $0x90] sm:$0xff]
      %v1960 = vld [vmem:[%s1940 + $0x98] sm:$0xff]
      %v1961 = vld [vmem:[%s1940 + $0xa0] sm:$0xff]
      %v1962 = vld [vmem:[%s1940 + $0xa8] sm:$0xff]
      %v1963 = vld [vmem:[%s1940 + $0xb0] sm:$0xff]
      %v1964 = vld [vmem:[%s1940 + $0xb8] sm:$0xff]
      %v1965 = vld [vmem:[%s1940 + $0xc0] sm:$0xff]
      %v1966 = vld [vmem:[%s1940 + $0xc8] sm:$0xff]
      %v1967 = vld [vmem:[%s1940 + $0xd0] sm:$0xff]
      %v1968 = vld [vmem:[%s1940 + $0xd8] sm:$0xff]
      %v1969 = vld [vmem:[%s1940 + $0xe0] sm:$0xff]
      %v1970 = vld [vmem:[%s1940 + $0xe8] sm:$0xff]
      %v1971 = vld [vmem:[%s1940 + $0xf0] sm:$0xff]
      %v1972 = vld [vmem:[%s1940 + $0xf8] sm:$0xff]
      %v1973 = vld [vmem:[%s1940 + $0x100] sm:$0xff]
      %v1974 = vld [vmem:[%s1940 + $0x108] sm:$0xff]
      %v1975 = vld [vmem:[%s1940 + $0x110] sm:$0xff]
      %v1976 = vld [vmem:[%s1940 + $0x118] sm:$0xff]
      %v1977 = vld [vmem:[%s1940 + $0x120] sm:$0x33]
      %v1978 = vld [vmem:[%s1940 + $0x128] sm:$0x33]
      %v1979 = vld [vmem:[%s1940 + $0x130] sm:$0x33]
      %v1980 = vld [vmem:[%s1940 + $0x138] sm:$0x33]
      %v1981 = vld [vmem:[%s1940 + $0x140] sm:$0x33]
      %v1982 = vld [vmem:[%s1940 + $0x148] sm:$0x33]
      %v1983 = vld [vmem:[%s1940 + $0x150] sm:$0x33]
      %v1984 = vld [vmem:[%s1940 + $0x158] sm:$0x33]
      %v1985 = vld [vmem:[%s1940 + $0x160] sm:$0x33]
      %v1986 = vld [vmem:[%s1940 + $0x168] sm:$0x33]
      %v1987 = vld [vmem:[%s1940 + $0x170] sm:$0x33]
      %v1988 = vld [vmem:[%s1940 + $0x178] sm:$0x33]
      %v2037 = vunpack.c.l.b16 %v1941
      %v2038 = vunpack.c.h.b16 %v1941
      %v2039 = vunpack.c.l.b16 %v1942
      %v2040 = vunpack.c.h.b16 %v1942
      %v2041 = vunpack.c.l.b16 %v1943
      %v2042 = vunpack.c.h.b16 %v1943
      %v2043 = vunpack.c.l.b16 %v1944
      %v2044 = vunpack.c.h.b16 %v1944
      %v2045 = vunpack.c.l.b16 %v1945
      %v2046 = vunpack.c.h.b16 %v1945
      %v2047 = vunpack.c.l.b16 %v1946
      %v2048 = vunpack.c.h.b16 %v1946
      %v2049 = vunpack.c.l.b16 %v1947
      %v2050 = vunpack.c.h.b16 %v1947
      %v2051 = vunpack.c.l.b16 %v1948
      %v2052 = vunpack.c.h.b16 %v1948
      %v2053 = vunpack.c.l.b16 %v1949
      %v2054 = vunpack.c.h.b16 %v1949
      %v2055 = vunpack.c.l.b16 %v1950
      %v2056 = vunpack.c.h.b16 %v1950
      %v2057 = vunpack.c.l.b16 %v1951
      %v2058 = vunpack.c.h.b16 %v1951
      %v2059 = vunpack.c.l.b16 %v1952
      %v2060 = vunpack.c.h.b16 %v1952
      %v2061 = vunpack.c.l.b16 %v1953
      %v2062 = vunpack.c.h.b16 %v1953
      %v2063 = vunpack.c.l.b16 %v1954
      %v2064 = vunpack.c.h.b16 %v1954
      %v2065 = vunpack.c.l.b16 %v1955
      %v2066 = vunpack.c.h.b16 %v1955
      %v2067 = vunpack.c.l.b16 %v1956
      %v2068 = vunpack.c.h.b16 %v1956
      %v2069 = vunpack.c.l.b16 %v1957
      %v2070 = vunpack.c.h.b16 %v1957
      %v2071 = vunpack.c.l.b16 %v1958
      %v2072 = vunpack.c.h.b16 %v1958
      %v2073 = vunpack.c.l.b16 %v1959
      %v2074 = vunpack.c.h.b16 %v1959
      %v2075 = vunpack.c.l.b16 %v1960
      %v2076 = vunpack.c.h.b16 %v1960
      %v2077 = vunpack.c.l.b16 %v1961
      %v2078 = vunpack.c.h.b16 %v1961
      %v2079 = vunpack.c.l.b16 %v1962
      %v2080 = vunpack.c.h.b16 %v1962
      %v2081 = vunpack.c.l.b16 %v1963
      %v2082 = vunpack.c.h.b16 %v1963
      %v2083 = vunpack.c.l.b16 %v1964
      %v2084 = vunpack.c.h.b16 %v1964
      %v2085 = vunpack.c.l.b16 %v1965
      %v2086 = vunpack.c.h.b16 %v1965
      %v2087 = vunpack.c.l.b16 %v1966
      %v2088 = vunpack.c.h.b16 %v1966
      %v2089 = vunpack.c.l.b16 %v1967
      %v2090 = vunpack.c.h.b16 %v1967
      %v2091 = vunpack.c.l.b16 %v1968
      %v2092 = vunpack.c.h.b16 %v1968
      %v2093 = vunpack.c.l.b16 %v1969
      %v2094 = vunpack.c.h.b16 %v1969
      %v2095 = vunpack.c.l.b16 %v1970
      %v2096 = vunpack.c.h.b16 %v1970
      %v2097 = vunpack.c.l.b16 %v1971
      %v2098 = vunpack.c.h.b16 %v1971
      %v2099 = vunpack.c.l.b16 %v1972
      %v2100 = vunpack.c.h.b16 %v1972
      %v2101 = vunpack.c.l.b16 %v1973
      %v2102 = vunpack.c.h.b16 %v1973
      %v2103 = vunpack.c.l.b16 %v1974
      %v2104 = vunpack.c.h.b16 %v1974
      %v2105 = vunpack.c.l.b16 %v1975
      %v2106 = vunpack.c.h.b16 %v1975
      %v2107 = vunpack.c.l.b16 %v1976
      %v2108 = vunpack.c.h.b16 %v1976
      %v2109 = vunpack.c.l.b16 %v1977
      %v2110 = vunpack.c.h.b16 %v1977
      %v2111 = vunpack.c.l.b16 %v1978
      %v2112 = vunpack.c.h.b16 %v1978
      %v2113 = vunpack.c.l.b16 %v1979
      %v2114 = vunpack.c.h.b16 %v1979
      %v2115 = vunpack.c.l.b16 %v1980
      %v2116 = vunpack.c.h.b16 %v1980
      %v2117 = vunpack.c.l.b16 %v1981
      %v2118 = vunpack.c.h.b16 %v1981
      %v2119 = vunpack.c.l.b16 %v1982
      %v2120 = vunpack.c.h.b16 %v1982
      %v2121 = vunpack.c.l.b16 %v1983
      %v2122 = vunpack.c.h.b16 %v1983
      %v2123 = vunpack.c.l.b16 %v1984
      %v2124 = vunpack.c.h.b16 %v1984
      %v2125 = vunpack.c.l.b16 %v1985
      %v2126 = vunpack.c.h.b16 %v1985
      %v2127 = vunpack.c.l.b16 %v1986
      %v2128 = vunpack.c.h.b16 %v1986
      %v2129 = vunpack.c.l.b16 %v1987
      %v2130 = vunpack.c.h.b16 %v1987
      %v2131 = vunpack.c.l.b16 %v1988
      %v2132 = vunpack.c.h.b16 %v1988
      %v2133 = vpack.c.b16 %v2061, %v2037
      %v2134 = vpack.c.b16 %v2062, %v2038
      %v2135 = vpack.c.b16 %v2063, %v2039
      %v2136 = vpack.c.b16 %v2064, %v2040
      %v2137 = vpack.c.b16 %v2065, %v2041
      %v2138 = vpack.c.b16 %v2066, %v2042
      %v2139 = vpack.c.b16 %v2067, %v2043
      %v2140 = vpack.c.b16 %v2068, %v2044
      %v2141 = vpack.c.b16 %v2069, %v2045
      %v2142 = vpack.c.b16 %v2070, %v2046
      %v2143 = vpack.c.b16 %v2071, %v2047
      %v2144 = vpack.c.b16 %v2072, %v2048
      %v2145 = vpack.c.b16 %v2073, %v2049
      %v2146 = vpack.c.b16 %v2074, %v2050
      %v2147 = vpack.c.b16 %v2075, %v2051
      %v2148 = vpack.c.b16 %v2076, %v2052
      %v2149 = vpack.c.b16 %v2077, %v2053
      %v2150 = vpack.c.b16 %v2078, %v2054
      %v2151 = vpack.c.b16 %v2079, %v2055
      %v2152 = vpack.c.b16 %v2080, %v2056
      %v2153 = vpack.c.b16 %v2081, %v2057
      %v2154 = vpack.c.b16 %v2082, %v2058
      %v2155 = vpack.c.b16 %v2083, %v2059
      %v2156 = vpack.c.b16 %v2084, %v2060
      %v2157 = vpack.c.b16 %v2109, %v2085
      %v2158 = vpack.c.b16 %v2110, %v2086
      %v2159 = vpack.c.b16 %v2111, %v2087
      %v2160 = vpack.c.b16 %v2112, %v2088
      %v2161 = vpack.c.b16 %v2113, %v2089
      %v2162 = vpack.c.b16 %v2114, %v2090
      %v2163 = vpack.c.b16 %v2115, %v2091
      %v2164 = vpack.c.b16 %v2116, %v2092
      %v2165 = vpack.c.b16 %v2117, %v2093
      %v2166 = vpack.c.b16 %v2118, %v2094
      %v2167 = vpack.c.b16 %v2119, %v2095
      %v2168 = vpack.c.b16 %v2120, %v2096
      %v2169 = vpack.c.b16 %v2121, %v2097
      %v2170 = vpack.c.b16 %v2122, %v2098
      %v2171 = vpack.c.b16 %v2123, %v2099
      %v2172 = vpack.c.b16 %v2124, %v2100
      %v2173 = vpack.c.b16 %v2125, %v2101
      %v2174 = vpack.c.b16 %v2126, %v2102
      %v2175 = vpack.c.b16 %v2127, %v2103
      %v2176 = vpack.c.b16 %v2128, %v2104
      %v2177 = vpack.c.b16 %v2129, %v2105
      %v2178 = vpack.c.b16 %v2130, %v2106
      %v2179 = vpack.c.b16 %v2131, %v2107
      %v2180 = vpack.c.b16 %v2132, %v2108
      %v2206 = vand.u32 %v2157, %v450
      %v2209 = vand.u32 %v2158, %v450
      %v2212 = vand.u32 %v2159, %v450
      %v2215 = vand.u32 %v2160, %v450
      %v2218 = vand.u32 %v2161, %v450
      %v2221 = vand.u32 %v2162, %v450
      %v2224 = vand.u32 %v2163, %v450
      %v2227 = vand.u32 %v2164, %v450
      %v2230 = vand.u32 %v2165, %v450
      %v2233 = vand.u32 %v2166, %v450
      %v2236 = vand.u32 %v2167, %v450
      %v2239 = vand.u32 %v2168, %v450
      %v2242 = vand.u32 %v2169, %v450
      %v2245 = vand.u32 %v2170, %v450
      %v2248 = vand.u32 %v2171, %v450
      %v2251 = vand.u32 %v2172, %v450
      %v2254 = vand.u32 %v2173, %v450
      %v2257 = vand.u32 %v2174, %v450
      %v2260 = vand.u32 %v2175, %v450
      %v2263 = vand.u32 %v2176, %v450
      %v2266 = vand.u32 %v2177, %v450
      %v2269 = vand.u32 %v2178, %v450
      %v2272 = vand.u32 %v2179, %v450
      %v2275 = vand.u32 %v2180, %v450
      %2277 = vmatprep.subr.bf16.mxu0 %v2134
      %2278 = vmatpush1.bf16.msra.mxu0 %v2133
      %2279 = vmatprep.subr.bf16.mxu0 %v2209
      %2280 = vmatpush1.bf16.msra.mxu0 %v2206
      %2281 = vmatprep.subr.bf16.mxu0 0
      %2282 = vmatpush1.bf16.msra.mxu0 0
      %2283 = vmatprep.subr.bf16.mxu0 0
      %2284 = vmatpush1.bf16.msra.mxu0 0
      %2285 = vmatprep.subr.bf16.mxu0 0
      %2286 = vmatpush1.bf16.msra.mxu0 0
      %2287 = vmatprep.subr.bf16.mxu0 0
      %2288 = vmatpush1.bf16.msra.mxu0 0
      %2289 = vmatprep.subr.bf16.mxu0 0
      %2290 = vmatpush1.bf16.msra.mxu0 0
      %2291 = vmatprep.subr.bf16.mxu0 0
      %2292 = vmatpush1.bf16.msra.mxu0 0
      %2293 = vmatprep.subr.bf16.mxu0 0
      %2294 = vmatpush1.bf16.msra.mxu0 0
      %2295 = vmatprep.subr.bf16.mxu0 0
      %2296 = vmatpush1.bf16.msra.mxu0 0
      %2297 = vmatprep.subr.bf16.mxu0 0
      %2298 = vmatpush1.bf16.msra.mxu0 0
      %2299 = vmatprep.subr.bf16.mxu0 0
      %2300 = vmatpush1.bf16.msra.mxu0 0
      %2301 = vmatprep.subr.bf16.mxu0 0
      %2302 = vmatpush1.bf16.msra.mxu0 0
      %2303 = vmatprep.subr.bf16.mxu0 0
      %2304 = vmatpush1.bf16.msra.mxu0 0
      %2305 = vmatprep.subr.bf16.mxu0 0
      %2306 = vmatpush1.bf16.msra.mxu0 0
      %2307 = vmatprep.subr.bf16.mxu0 0
      %2308 = vmatpush1.bf16.msra.mxu0 0
      %2309 = vmatprep.mubr.bf16.mxu0 0
      %2310 = vmatmul.mubr.bf16.gmra.mrb[0].mxu0 %v445
      %v2311 = vpop.f32.mrb[0].mxu0
      %v2312 = vadd.f32 0.0, %v2311
      %v2313 = vpop.f32.mrb[0].mxu0
      %v2314 = vadd.f32 0.0, %v2313
      %v2315 = vpop.f32.mrb[0].mxu0
      %v2316 = vadd.f32 0.0, %v2315
      %v2317 = vpop.f32.mrb[0].mxu0
      %v2318 = vadd.f32 0.0, %v2317
      %2319 = vdwg.mxu0
      %2320 = vmatprep.subr.bf16.mxu0 %v2136
      %2321 = vmatpush1.bf16.msra.mxu0 %v2135
      %2322 = vmatprep.subr.bf16.mxu0 %v2215
      %2323 = vmatpush1.bf16.msra.mxu0 %v2212
      %2324 = vmatprep.subr.bf16.mxu0 0
      %2325 = vmatpush1.bf16.msra.mxu0 0
      %2326 = vmatprep.subr.bf16.mxu0 0
      %2327 = vmatpush1.bf16.msra.mxu0 0
      %2328 = vmatprep.subr.bf16.mxu0 0
      %2329 = vmatpush1.bf16.msra.mxu0 0
      %2330 = vmatprep.subr.bf16.mxu0 0
      %2331 = vmatpush1.bf16.msra.mxu0 0
      %2332 = vmatprep.subr.bf16.mxu0 0
      %2333 = vmatpush1.bf16.msra.mxu0 0
      %2334 = vmatprep.subr.bf16.mxu0 0
      %2335 = vmatpush1.bf16.msra.mxu0 0
      %2336 = vmatprep.subr.bf16.mxu0 0
      %2337 = vmatpush1.bf16.msra.mxu0 0
      %2338 = vmatprep.subr.bf16.mxu0 0
      %2339 = vmatpush1.bf16.msra.mxu0 0
      %2340 = vmatprep.subr.bf16.mxu0 0
      %2341 = vmatpush1.bf16.msra.mxu0 0
      %2342 = vmatprep.subr.bf16.mxu0 0
      %2343 = vmatpush1.bf16.msra.mxu0 0
      %2344 = vmatprep.subr.bf16.mxu0 0
      %2345 = vmatpush1.bf16.msra.mxu0 0
      %2346 = vmatprep.subr.bf16.mxu0 0
      %2347 = vmatpush1.bf16.msra.mxu0 0
      %2348 = vmatprep.subr.bf16.mxu0 0
      %2349 = vmatpush1.bf16.msra.mxu0 0
      %2350 = vmatprep.subr.bf16.mxu0 0
      %2351 = vmatpush1.bf16.msra.mxu0 0
      %2352 = vmatprep.mubr.bf16.mxu0 0
      %2353 = vmatmul.mubr.bf16.gmra.mrb[0].mxu0 %v445
      %v2354 = vpop.f32.mrb[0].mxu0
      %v2355 = vadd.f32 0.0, %v2354
      %v2356 = vpop.f32.mrb[0].mxu0
      %v2357 = vadd.f32 0.0, %v2356
      %v2358 = vpop.f32.mrb[0].mxu0
      %v2359 = vadd.f32 0.0, %v2358
      %v2360 = vpop.f32.mrb[0].mxu0
      %v2361 = vadd.f32 0.0, %v2360
      %2362 = vdwg.mxu0
      %2363 = vmatprep.subr.bf16.mxu0 %v2138
      %2364 = vmatpush1.bf16.msra.mxu0 %v2137
      %2365 = vmatprep.subr.bf16.mxu0 %v2221
      %2366 = vmatpush1.bf16.msra.mxu0 %v2218
      %2367 = vmatprep.subr.bf16.mxu0 0
      %2368 = vmatpush1.bf16.msra.mxu0 0
      %2369 = vmatprep.subr.bf16.mxu0 0
      %2370 = vmatpush1.bf16.msra.mxu0 0
      %2371 = vmatprep.subr.bf16.mxu0 0
      %2372 = vmatpush1.bf16.msra.mxu0 0
      %2373 = vmatprep.subr.bf16.mxu0 0
      %2374 = vmatpush1.bf16.msra.mxu0 0
      %2375 = vmatprep.subr.bf16.mxu0 0
      %2376 = vmatpush1.bf16.msra.mxu0 0
      %2377 = vmatprep.subr.bf16.mxu0 0
      %2378 = vmatpush1.bf16.msra.mxu0 0
      %2379 = vmatprep.subr.bf16.mxu0 0
      %2380 = vmatpush1.bf16.msra.mxu0 0
      %2381 = vmatprep.subr.bf16.mxu0 0
      %2382 = vmatpush1.bf16.msra.mxu0 0
      %2383 = vmatprep.subr.bf16.mxu0 0
      %2384 = vmatpush1.bf16.msra.mxu0 0
      %2385 = vmatprep.subr.bf16.mxu0 0
      %2386 = vmatpush1.bf16.msra.mxu0 0
      %2387 = vmatprep.subr.bf16.mxu0 0
      %2388 = vmatpush1.bf16.msra.mxu0 0
      %2389 = vmatprep.subr.bf16.mxu0 0
      %2390 = vmatpush1.bf16.msra.mxu0 0
      %2391 = vmatprep.subr.bf16.mxu0 0
      %2392 = vmatpush1.bf16.msra.mxu0 0
      %2393 = vmatprep.subr.bf16.mxu0 0
      %2394 = vmatpush1.bf16.msra.mxu0 0
      %2395 = vmatprep.mubr.bf16.mxu0 0
      %2396 = vmatmul.mubr.bf16.gmra.mrb[0].mxu0 %v445
      %v2397 = vpop.f32.mrb[0].mxu0
      %v2398 = vadd.f32 0.0, %v2397
      %v2399 = vpop.f32.mrb[0].mxu0
      %v2400 = vadd.f32 0.0, %v2399
      %v2401 = vpop.f32.mrb[0].mxu0
      %v2402 = vadd.f32 0.0, %v2401
      %v2403 = vpop.f32.mrb[0].mxu0
      %v2404 = vadd.f32 0.0, %v2403
      %2405 = vdwg.mxu0
      %2406 = vmatprep.subr.bf16.mxu0 %v2140
      %2407 = vmatpush1.bf16.msra.mxu0 %v2139
      %2408 = vmatprep.subr.bf16.mxu0 %v2227
      %2409 = vmatpush1.bf16.msra.mxu0 %v2224
      %2410 = vmatprep.subr.bf16.mxu0 0
      %2411 = vmatpush1.bf16.msra.mxu0 0
      %2412 = vmatprep.subr.bf16.mxu0 0
      %2413 = vmatpush1.bf16.msra.mxu0 0
      %2414 = vmatprep.subr.bf16.mxu0 0
      %2415 = vmatpush1.bf16.msra.mxu0 0
      %2416 = vmatprep.subr.bf16.mxu0 0
      %2417 = vmatpush1.bf16.msra.mxu0 0
      %2418 = vmatprep.subr.bf16.mxu0 0
      %2419 = vmatpush1.bf16.msra.mxu0 0
      %2420 = vmatprep.subr.bf16.mxu0 0
      %2421 = vmatpush1.bf16.msra.mxu0 0
      %2422 = vmatprep.subr.bf16.mxu0 0
      %2423 = vmatpush1.bf16.msra.mxu0 0
      %2424 = vmatprep.subr.bf16.mxu0 0
      %2425 = vmatpush1.bf16.msra.mxu0 0
      %2426 = vmatprep.subr.bf16.mxu0 0
      %2427 = vmatpush1.bf16.msra.mxu0 0
      %2428 = vmatprep.subr.bf16.mxu0 0
      %2429 = vmatpush1.bf16.msra.mxu0 0
      %2430 = vmatprep.subr.bf16.mxu0 0
      %2431 = vmatpush1.bf16.msra.mxu0 0
      %2432 = vmatprep.subr.bf16.mxu0 0
      %2433 = vmatpush1.bf16.msra.mxu0 0
      %2434 = vmatprep.subr.bf16.mxu0 0
      %2435 = vmatpush1.bf16.msra.mxu0 0
      %2436 = vmatprep.subr.bf16.mxu0 0
      %2437 = vmatpush1.bf16.msra.mxu0 0
      %2438 = vmatprep.mubr.bf16.mxu0 0
      %2439 = vmatmul.mubr.bf16.gmra.mrb[0].mxu0 %v445
      %v2440 = vpop.f32.mrb[0].mxu0
      %v2441 = vadd.f32 0.0, %v2440
      %v2442 = vpop.f32.mrb[0].mxu0
      %v2443 = vadd.f32 0.0, %v2442
      %v2444 = vpop.f32.mrb[0].mxu0
      %v2445 = vadd.f32 0.0, %v2444
      %v2446 = vpop.f32.mrb[0].mxu0
      %v2447 = vadd.f32 0.0, %v2446
      %2448 = vdwg.mxu0
      %2449 = vmatprep.subr.bf16.mxu0 %v2142
      %2450 = vmatpush1.bf16.msra.mxu0 %v2141
      %2451 = vmatprep.subr.bf16.mxu0 %v2233
      %2452 = vmatpush1.bf16.msra.mxu0 %v2230
      %2453 = vmatprep.subr.bf16.mxu0 0
      %2454 = vmatpush1.bf16.msra.mxu0 0
      %2455 = vmatprep.subr.bf16.mxu0 0
      %2456 = vmatpush1.bf16.msra.mxu0 0
      %2457 = vmatprep.subr.bf16.mxu0 0
      %2458 = vmatpush1.bf16.msra.mxu0 0
      %2459 = vmatprep.subr.bf16.mxu0 0
      %2460 = vmatpush1.bf16.msra.mxu0 0
      %2461 = vmatprep.subr.bf16.mxu0 0
      %2462 = vmatpush1.bf16.msra.mxu0 0
      %2463 = vmatprep.subr.bf16.mxu0 0
      %2464 = vmatpush1.bf16.msra.mxu0 0
      %2465 = vmatprep.subr.bf16.mxu0 0
      %2466 = vmatpush1.bf16.msra.mxu0 0
      %2467 = vmatprep.subr.bf16.mxu0 0
      %2468 = vmatpush1.bf16.msra.mxu0 0
      %2469 = vmatprep.subr.bf16.mxu0 0
      %2470 = vmatpush1.bf16.msra.mxu0 0
      %2471 = vmatprep.subr.bf16.mxu0 0
      %2472 = vmatpush1.bf16.msra.mxu0 0
      %2473 = vmatprep.subr.bf16.mxu0 0
      %2474 = vmatpush1.bf16.msra.mxu0 0
      %2475 = vmatprep.subr.bf16.mxu0 0
      %2476 = vmatpush1.bf16.msra.mxu0 0
      %2477 = vmatprep.subr.bf16.mxu0 0
      %2478 = vmatpush1.bf16.msra.mxu0 0
      %2479 = vmatprep.subr.bf16.mxu0 0
      %2480 = vmatpush1.bf16.msra.mxu0 0
      %2481 = vmatprep.mubr.bf16.mxu0 0
      %2482 = vmatmul.mubr.bf16.gmra.mrb[0].mxu0 %v445
      %v2483 = vpop.f32.mrb[0].mxu0
      %v2484 = vadd.f32 0.0, %v2483
      %v2485 = vpop.f32.mrb[0].mxu0
      %v2486 = vadd.f32 0.0, %v2485
      %v2487 = vpop.f32.mrb[0].mxu0
      %v2488 = vadd.f32 0.0, %v2487
      %v2489 = vpop.f32.mrb[0].mxu0
      %v2490 = vadd.f32 0.0, %v2489
      %2491 = vdwg.mxu0
      %2492 = vmatprep.subr.bf16.mxu0 %v2144
      %2493 = vmatpush1.bf16.msra.mxu0 %v2143
      %2494 = vmatprep.subr.bf16.mxu0 %v2239
      %2495 = vmatpush1.bf16.msra.mxu0 %v2236
      %2496 = vmatprep.subr.bf16.mxu0 0
      %2497 = vmatpush1.bf16.msra.mxu0 0
      %2498 = vmatprep.subr.bf16.mxu0 0
      %2499 = vmatpush1.bf16.msra.mxu0 0
      %2500 = vmatprep.subr.bf16.mxu0 0
      %2501 = vmatpush1.bf16.msra.mxu0 0
      %2502 = vmatprep.subr.bf16.mxu0 0
      %2503 = vmatpush1.bf16.msra.mxu0 0
      %2504 = vmatprep.subr.bf16.mxu0 0
      %2505 = vmatpush1.bf16.msra.mxu0 0
      %2506 = vmatprep.subr.bf16.mxu0 0
      %2507 = vmatpush1.bf16.msra.mxu0 0
      %2508 = vmatprep.subr.bf16.mxu0 0
      %2509 = vmatpush1.bf16.msra.mxu0 0
      %2510 = vmatprep.subr.bf16.mxu0 0
      %2511 = vmatpush1.bf16.msra.mxu0 0
      %2512 = vmatprep.subr.bf16.mxu0 0
      %2513 = vmatpush1.bf16.msra.mxu0 0
      %2514 = vmatprep.subr.bf16.mxu0 0
      %2515 = vmatpush1.bf16.msra.mxu0 0
      %2516 = vmatprep.subr.bf16.mxu0 0
      %2517 = vmatpush1.bf16.msra.mxu0 0
      %2518 = vmatprep.subr.bf16.mxu0 0
      %2519 = vmatpush1.bf16.msra.mxu0 0
      %2520 = vmatprep.subr.bf16.mxu0 0
      %2521 = vmatpush1.bf16.msra.mxu0 0
      %2522 = vmatprep.subr.bf16.mxu0 0
      %2523 = vmatpush1.bf16.msra.mxu0 0
      %2524 = vmatprep.mubr.bf16.mxu0 0
      %2525 = vmatmul.mubr.bf16.gmra.mrb[0].mxu0 %v445
      %v2526 = vpop.f32.mrb[0].mxu0
      %v2527 = vadd.f32 0.0, %v2526
      %v2528 = vpop.f32.mrb[0].mxu0
      %v2529 = vadd.f32 0.0, %v2528
      %v2530 = vpop.f32.mrb[0].mxu0
      %v2531 = vadd.f32 0.0, %v2530
      %v2532 = vpop.f32.mrb[0].mxu0
      %v2533 = vadd.f32 0.0, %v2532
      %2534 = vdwg.mxu0
      %2535 = vmatprep.subr.bf16.mxu0 %v2146
      %2536 = vmatpush1.bf16.msra.mxu0 %v2145
      %2537 = vmatprep.subr.bf16.mxu0 %v2245
      %2538 = vmatpush1.bf16.msra.mxu0 %v2242
      %2539 = vmatprep.subr.bf16.mxu0 0
      %2540 = vmatpush1.bf16.msra.mxu0 0
      %2541 = vmatprep.subr.bf16.mxu0 0
      %2542 = vmatpush1.bf16.msra.mxu0 0
      %2543 = vmatprep.subr.bf16.mxu0 0
      %2544 = vmatpush1.bf16.msra.mxu0 0
      %2545 = vmatprep.subr.bf16.mxu0 0
      %2546 = vmatpush1.bf16.msra.mxu0 0
      %2547 = vmatprep.subr.bf16.mxu0 0
      %2548 = vmatpush1.bf16.msra.mxu0 0
      %2549 = vmatprep.subr.bf16.mxu0 0
      %2550 = vmatpush1.bf16.msra.mxu0 0
      %2551 = vmatprep.subr.bf16.mxu0 0
      %2552 = vmatpush1.bf16.msra.mxu0 0
      %2553 = vmatprep.subr.bf16.mxu0 0
      %2554 = vmatpush1.bf16.msra.mxu0 0
      %2555 = vmatprep.subr.bf16.mxu0 0
      %2556 = vmatpush1.bf16.msra.mxu0 0
      %2557 = vmatprep.subr.bf16.mxu0 0
      %2558 = vmatpush1.bf16.msra.mxu0 0
      %2559 = vmatprep.subr.bf16.mxu0 0
      %2560 = vmatpush1.bf16.msra.mxu0 0
      %2561 = vmatprep.subr.bf16.mxu0 0
      %2562 = vmatpush1.bf16.msra.mxu0 0
      %2563 = vmatprep.subr.bf16.mxu0 0
      %2564 = vmatpush1.bf16.msra.mxu0 0
      %2565 = vmatprep.subr.bf16.mxu0 0
      %2566 = vmatpush1.bf16.msra.mxu0 0
      %2567 = vmatprep.mubr.bf16.mxu0 0
      %2568 = vmatmul.mubr.bf16.gmra.mrb[0].mxu0 %v445
      %v2569 = vpop.f32.mrb[0].mxu0
      %v2570 = vadd.f32 0.0, %v2569
      %v2571 = vpop.f32.mrb[0].mxu0
      %v2572 = vadd.f32 0.0, %v2571
      %v2573 = vpop.f32.mrb[0].mxu0
      %v2574 = vadd.f32 0.0, %v2573
      %v2575 = vpop.f32.mrb[0].mxu0
      %v2576 = vadd.f32 0.0, %v2575
      %2577 = vdwg.mxu0
      %2578 = vmatprep.subr.bf16.mxu0 %v2148
      %2579 = vmatpush1.bf16.msra.mxu0 %v2147
      %2580 = vmatprep.subr.bf16.mxu0 %v2251
      %2581 = vmatpush1.bf16.msra.mxu0 %v2248
      %2582 = vmatprep.subr.bf16.mxu0 0
      %2583 = vmatpush1.bf16.msra.mxu0 0
      %2584 = vmatprep.subr.bf16.mxu0 0
      %2585 = vmatpush1.bf16.msra.mxu0 0
      %2586 = vmatprep.subr.bf16.mxu0 0
      %2587 = vmatpush1.bf16.msra.mxu0 0
      %2588 = vmatprep.subr.bf16.mxu0 0
      %2589 = vmatpush1.bf16.msra.mxu0 0
      %2590 = vmatprep.subr.bf16.mxu0 0
      %2591 = vmatpush1.bf16.msra.mxu0 0
      %2592 = vmatprep.subr.bf16.mxu0 0
      %2593 = vmatpush1.bf16.msra.mxu0 0
      %2594 = vmatprep.subr.bf16.mxu0 0
      %2595 = vmatpush1.bf16.msra.mxu0 0
      %2596 = vmatprep.subr.bf16.mxu0 0
      %2597 = vmatpush1.bf16.msra.mxu0 0
      %2598 = vmatprep.subr.bf16.mxu0 0
      %2599 = vmatpush1.bf16.msra.mxu0 0
      %2600 = vmatprep.subr.bf16.mxu0 0
      %2601 = vmatpush1.bf16.msra.mxu0 0
      %2602 = vmatprep.subr.bf16.mxu0 0
      %2603 = vmatpush1.bf16.msra.mxu0 0
      %2604 = vmatprep.subr.bf16.mxu0 0
      %2605 = vmatpush1.bf16.msra.mxu0 0
      %2606 = vmatprep.subr.bf16.mxu0 0
      %2607 = vmatpush1.bf16.msra.mxu0 0
      %2608 = vmatprep.subr.bf16.mxu0 0
      %2609 = vmatpush1.bf16.msra.mxu0 0
      %2610 = vmatprep.mubr.bf16.mxu0 0
      %2611 = vmatmul.mubr.bf16.gmra.mrb[0].mxu0 %v445
      %v2612 = vpop.f32.mrb[0].mxu0
      %v2613 = vadd.f32 0.0, %v2612
      %v2614 = vpop.f32.mrb[0].mxu0
      %v2615 = vadd.f32 0.0, %v2614
      %v2616 = vpop.f32.mrb[0].mxu0
      %v2617 = vadd.f32 0.0, %v2616
      %v2618 = vpop.f32.mrb[0].mxu0
      %v2619 = vadd.f32 0.0, %v2618
      %2620 = vdwg.mxu0
      %2621 = vmatprep.subr.bf16.mxu0 %v2150
      %2622 = vmatpush1.bf16.msra.mxu0 %v2149
      %2623 = vmatprep.subr.bf16.mxu0 %v2257
      %2624 = vmatpush1.bf16.msra.mxu0 %v2254
      %2625 = vmatprep.subr.bf16.mxu0 0
      %2626 = vmatpush1.bf16.msra.mxu0 0
      %2627 = vmatprep.subr.bf16.mxu0 0
      %2628 = vmatpush1.bf16.msra.mxu0 0
      %2629 = vmatprep.subr.bf16.mxu0 0
      %2630 = vmatpush1.bf16.msra.mxu0 0
      %2631 = vmatprep.subr.bf16.mxu0 0
      %2632 = vmatpush1.bf16.msra.mxu0 0
      %2633 = vmatprep.subr.bf16.mxu0 0
      %2634 = vmatpush1.bf16.msra.mxu0 0
      %2635 = vmatprep.subr.bf16.mxu0 0
      %2636 = vmatpush1.bf16.msra.mxu0 0
      %2637 = vmatprep.subr.bf16.mxu0 0
      %2638 = vmatpush1.bf16.msra.mxu0 0
      %2639 = vmatprep.subr.bf16.mxu0 0
      %2640 = vmatpush1.bf16.msra.mxu0 0
      %2641 = vmatprep.subr.bf16.mxu0 0
      %2642 = vmatpush1.bf16.msra.mxu0 0
      %2643 = vmatprep.subr.bf16.mxu0 0
      %2644 = vmatpush1.bf16.msra.mxu0 0
      %2645 = vmatprep.subr.bf16.mxu0 0
      %2646 = vmatpush1.bf16.msra.mxu0 0
      %2647 = vmatprep.subr.bf16.mxu0 0
      %2648 = vmatpush1.bf16.msra.mxu0 0
      %2649 = vmatprep.subr.bf16.mxu0 0
      %2650 = vmatpush1.bf16.msra.mxu0 0
      %2651 = vmatprep.subr.bf16.mxu0 0
      %2652 = vmatpush1.bf16.msra.mxu0 0
      %2653 = vmatprep.mubr.bf16.mxu0 0
      %2654 = vmatmul.mubr.bf16.gmra.mrb[0].mxu0 %v445
      %v2655 = vpop.f32.mrb[0].mxu0
      %v2656 = vadd.f32 0.0, %v2655
      %v2657 = vpop.f32.mrb[0].mxu0
      %v2658 = vadd.f32 0.0, %v2657
      %v2659 = vpop.f32.mrb[0].mxu0
      %v2660 = vadd.f32 0.0, %v2659
      %v2661 = vpop.f32.mrb[0].mxu0
      %v2662 = vadd.f32 0.0, %v2661
      %2663 = vdwg.mxu0
      %2664 = vmatprep.subr.bf16.mxu0 %v2152
      %2665 = vmatpush1.bf16.msra.mxu0 %v2151
      %2666 = vmatprep.subr.bf16.mxu0 %v2263
      %2667 = vmatpush1.bf16.msra.mxu0 %v2260
      %2668 = vmatprep.subr.bf16.mxu0 0
      %2669 = vmatpush1.bf16.msra.mxu0 0
      %2670 = vmatprep.subr.bf16.mxu0 0
      %2671 = vmatpush1.bf16.msra.mxu0 0
      %2672 = vmatprep.subr.bf16.mxu0 0
      %2673 = vmatpush1.bf16.msra.mxu0 0
      %2674 = vmatprep.subr.bf16.mxu0 0
      %2675 = vmatpush1.bf16.msra.mxu0 0
      %2676 = vmatprep.subr.bf16.mxu0 0
      %2677 = vmatpush1.bf16.msra.mxu0 0
      %2678 = vmatprep.subr.bf16.mxu0 0
      %2679 = vmatpush1.bf16.msra.mxu0 0
      %2680 = vmatprep.subr.bf16.mxu0 0
      %2681 = vmatpush1.bf16.msra.mxu0 0
      %2682 = vmatprep.subr.bf16.mxu0 0
      %2683 = vmatpush1.bf16.msra.mxu0 0
      %2684 = vmatprep.subr.bf16.mxu0 0
      %2685 = vmatpush1.bf16.msra.mxu0 0
      %2686 = vmatprep.subr.bf16.mxu0 0
      %2687 = vmatpush1.bf16.msra.mxu0 0
      %2688 = vmatprep.subr.bf16.mxu0 0
      %2689 = vmatpush1.bf16.msra.mxu0 0
      %2690 = vmatprep.subr.bf16.mxu0 0
      %2691 = vmatpush1.bf16.msra.mxu0 0
      %2692 = vmatprep.subr.bf16.mxu0 0
      %2693 = vmatpush1.bf16.msra.mxu0 0
      %2694 = vmatprep.subr.bf16.mxu0 0
      %2695 = vmatpush1.bf16.msra.mxu0 0
      %2696 = vmatprep.mubr.bf16.mxu0 0
      %2697 = vmatmul.mubr.bf16.gmra.mrb[0].mxu0 %v445
      %v2698 = vpop.f32.mrb[0].mxu0
      %v2699 = vadd.f32 0.0, %v2698
      %v2700 = vpop.f32.mrb[0].mxu0
      %v2701 = vadd.f32 0.0, %v2700
      %v2702 = vpop.f32.mrb[0].mxu0
      %v2703 = vadd.f32 0.0, %v2702
      %v2704 = vpop.f32.mrb[0].mxu0
      %v2705 = vadd.f32 0.0, %v2704
      %2706 = vdwg.mxu0
      %2707 = vmatprep.subr.bf16.mxu0 %v2154
      %2708 = vmatpush1.bf16.msra.mxu0 %v2153
      %2709 = vmatprep.subr.bf16.mxu0 %v2269
      %2710 = vmatpush1.bf16.msra.mxu0 %v2266
      %2711 = vmatprep.subr.bf16.mxu0 0
      %2712 = vmatpush1.bf16.msra.mxu0 0
      %2713 = vmatprep.subr.bf16.mxu0 0
      %2714 = vmatpush1.bf16.msra.mxu0 0
      %2715 = vmatprep.subr.bf16.mxu0 0
      %2716 = vmatpush1.bf16.msra.mxu0 0
      %2717 = vmatprep.subr.bf16.mxu0 0
      %2718 = vmatpush1.bf16.msra.mxu0 0
      %2719 = vmatprep.subr.bf16.mxu0 0
      %2720 = vmatpush1.bf16.msra.mxu0 0
      %2721 = vmatprep.subr.bf16.mxu0 0
      %2722 = vmatpush1.bf16.msra.mxu0 0
      %2723 = vmatprep.subr.bf16.mxu0 0
      %2724 = vmatpush1.bf16.msra.mxu0 0
      %2725 = vmatprep.subr.bf16.mxu0 0
      %2726 = vmatpush1.bf16.msra.mxu0 0
      %2727 = vmatprep.subr.bf16.mxu0 0
      %2728 = vmatpush1.bf16.msra.mxu0 0
      %2729 = vmatprep.subr.bf16.mxu0 0
      %2730 = vmatpush1.bf16.msra.mxu0 0
      %2731 = vmatprep.subr.bf16.mxu0 0
      %2732 = vmatpush1.bf16.msra.mxu0 0
      %2733 = vmatprep.subr.bf16.mxu0 0
      %2734 = vmatpush1.bf16.msra.mxu0 0
      %2735 = vmatprep.subr.bf16.mxu0 0
      %2736 = vmatpush1.bf16.msra.mxu0 0
      %2737 = vmatprep.subr.bf16.mxu0 0
      %2738 = vmatpush1.bf16.msra.mxu0 0
      %2739 = vmatprep.mubr.bf16.mxu0 0
      %2740 = vmatmul.mubr.bf16.gmra.mrb[0].mxu0 %v445
      %v2741 = vpop.f32.mrb[0].mxu0
      %v2742 = vadd.f32 0.0, %v2741
      %v2743 = vpop.f32.mrb[0].mxu0
      %v2744 = vadd.f32 0.0, %v2743
      %v2745 = vpop.f32.mrb[0].mxu0
      %v2746 = vadd.f32 0.0, %v2745
      %v2747 = vpop.f32.mrb[0].mxu0
      %v2748 = vadd.f32 0.0, %v2747
      %2749 = vdwg.mxu0
      %2750 = vmatprep.subr.bf16.mxu0 %v2156
      %2751 = vmatpush1.bf16.msra.mxu0 %v2155
      %2752 = vmatprep.subr.bf16.mxu0 %v2275
      %2753 = vmatpush1.bf16.msra.mxu0 %v2272
      %2754 = vmatprep.subr.bf16.mxu0 0
      %2755 = vmatpush1.bf16.msra.mxu0 0
      %2756 = vmatprep.subr.bf16.mxu0 0
      %2757 = vmatpush1.bf16.msra.mxu0 0
      %2758 = vmatprep.subr.bf16.mxu0 0
      %2759 = vmatpush1.bf16.msra.mxu0 0
      %2760 = vmatprep.subr.bf16.mxu0 0
      %2761 = vmatpush1.bf16.msra.mxu0 0
      %2762 = vmatprep.subr.bf16.mxu0 0
      %2763 = vmatpush1.bf16.msra.mxu0 0
      %2764 = vmatprep.subr.bf16.mxu0 0
      %2765 = vmatpush1.bf16.msra.mxu0 0
      %2766 = vmatprep.subr.bf16.mxu0 0
      %2767 = vmatpush1.bf16.msra.mxu0 0
      %2768 = vmatprep.subr.bf16.mxu0 0
      %2769 = vmatpush1.bf16.msra.mxu0 0
      %2770 = vmatprep.subr.bf16.mxu0 0
      %2771 = vmatpush1.bf16.msra.mxu0 0
      %2772 = vmatprep.subr.bf16.mxu0 0
      %2773 = vmatpush1.bf16.msra.mxu0 0
      %2774 = vmatprep.subr.bf16.mxu0 0
      %2775 = vmatpush1.bf16.msra.mxu0 0
      %2776 = vmatprep.subr.bf16.mxu0 0
      %2777 = vmatpush1.bf16.msra.mxu0 0
      %2778 = vmatprep.subr.bf16.mxu0 0
      %2779 = vmatpush1.bf16.msra.mxu0 0
      %2780 = vmatprep.subr.bf16.mxu0 0
      %2781 = vmatpush1.bf16.msra.mxu0 0
      %2782 = vmatprep.mubr.bf16.mxu0 0
      %2783 = vmatmul.mubr.bf16.gmra.mrb[0].mxu0 %v445
      %v2784 = vpop.f32.mrb[0].mxu0
      %v2785 = vadd.f32 0.0, %v2784
      %v2786 = vpop.f32.mrb[0].mxu0
      %v2787 = vadd.f32 0.0, %v2786
      %v2788 = vpop.f32.mrb[0].mxu0
      %v2789 = vadd.f32 0.0, %v2788
      %v2790 = vpop.f32.mrb[0].mxu0
      %v2791 = vadd.f32 0.0, %v2790
      %2792 = vdwg.mxu0
      %v2793 = vmax.f32 %v1892, %v2312
      %v2794 = vmax.f32 %v1893, %v2314
      %v2795 = vmax.f32 %v1894, %v2355
      %v2796 = vmax.f32 %v1895, %v2357
      %v2797 = vmax.f32 %v1896, %v2398
      %v2798 = vmax.f32 %v1897, %v2400
      %v2799 = vmax.f32 %v1898, %v2441
      %v2800 = vmax.f32 %v1899, %v2443
      %v2801 = vmax.f32 %v1900, %v2484
      %v2802 = vmax.f32 %v1901, %v2486
      %v2803 = vmax.f32 %v1902, %v2527
      %v2804 = vmax.f32 %v1903, %v2529
      %v2805 = vmax.f32 %v1904, %v2570
      %v2806 = vmax.f32 %v1905, %v2572
      %v2807 = vmax.f32 %v1906, %v2613
      %v2808 = vmax.f32 %v1907, %v2615
      %v2809 = vmax.f32 %v1908, %v2656
      %v2810 = vmax.f32 %v1909, %v2658
      %v2811 = vmax.f32 %v1910, %v2699
      %v2812 = vmax.f32 %v1911, %v2701
      %v2813 = vmax.f32 %v1912, %v2742
      %v2814 = vmax.f32 %v1913, %v2744
      %v2815 = vmax.f32 %v1914, %v2785
      %v2816 = vmax.f32 %v1915, %v2787
      %v2817 = vmax.f32 %v1916, %v2316
      %v2818 = vmax.f32 %v1917, %v2318
      %v2819 = vmax.f32 %v1918, %v2359
      %v2820 = vmax.f32 %v1919, %v2361
      %v2821 = vmax.f32 %v1920, %v2402
      %v2822 = vmax.f32 %v1921, %v2404
      %v2823 = vmax.f32 %v1922, %v2445
      %v2824 = vmax.f32 %v1923, %v2447
      %v2825 = vmax.f32 %v1924, %v2488
      %v2826 = vmax.f32 %v1925, %v2490
      %v2827 = vmax.f32 %v1926, %v2531
      %v2828 = vmax.f32 %v1927, %v2533
      %v2829 = vmax.f32 %v1928, %v2574
      %v2830 = vmax.f32 %v1929, %v2576
      %v2831 = vmax.f32 %v1930, %v2617
      %v2832 = vmax.f32 %v1931, %v2619
      %v2833 = vmax.f32 %v1932, %v2660
      %v2834 = vmax.f32 %v1933, %v2662
      %v2835 = vmax.f32 %v1934, %v2703
      %v2836 = vmax.f32 %v1935, %v2705
      %v2837 = vmax.f32 %v1936, %v2746
      %v2838 = vmax.f32 %v1937, %v2748
      %v2839 = vmax.f32 %v1938, %v2789
      %v2840 = vmax.f32 %v1939, %v2791
      %s2841 = scalar_lea.vmem %s165, 1152
      %v2842 = vld [vmem:[%s2841] sm:$0xff]
      %v2843 = vld [vmem:[%s2841 + $0x8] sm:$0xff]
      %v2844 = vld [vmem:[%s2841 + $0x10] sm:$0xff]
      %v2845 = vld [vmem:[%s2841 + $0x18] sm:$0xff]
      %v2846 = vld [vmem:[%s2841 + $0x20] sm:$0xff]
      %v2847 = vld [vmem:[%s2841 + $0x28] sm:$0xff]
      %v2848 = vld [vmem:[%s2841 + $0x30] sm:$0xff]
      %v2849 = vld [vmem:[%s2841 + $0x38] sm:$0xff]
      %v2850 = vld [vmem:[%s2841 + $0x40] sm:$0xff]
      %v2851 = vld [vmem:[%s2841 + $0x48] sm:$0xff]
      %v2852 = vld [vmem:[%s2841 + $0x50] sm:$0xff]
      %v2853 = vld [vmem:[%s2841 + $0x58] sm:$0xff]
      %v2854 = vld [vmem:[%s2841 + $0x60] sm:$0xff]
      %v2855 = vld [vmem:[%s2841 + $0x68] sm:$0xff]
      %v2856 = vld [vmem:[%s2841 + $0x70] sm:$0xff]
      %v2857 = vld [vmem:[%s2841 + $0x78] sm:$0xff]
      %v2858 = vld [vmem:[%s2841 + $0x80] sm:$0xff]
      %v2859 = vld [vmem:[%s2841 + $0x88] sm:$0xff]
      %v2860 = vld [vmem:[%s2841 + $0x90] sm:$0xff]
      %v2861 = vld [vmem:[%s2841 + $0x98] sm:$0xff]
      %v2862 = vld [vmem:[%s2841 + $0xa0] sm:$0xff]
      %v2863 = vld [vmem:[%s2841 + $0xa8] sm:$0xff]
      %v2864 = vld [vmem:[%s2841 + $0xb0] sm:$0xff]
      %v2865 = vld [vmem:[%s2841 + $0xb8] sm:$0xff]
      %v2866 = vld [vmem:[%s2841 + $0xc0] sm:$0xff]
      %v2867 = vld [vmem:[%s2841 + $0xc8] sm:$0xff]
      %v2868 = vld [vmem:[%s2841 + $0xd0] sm:$0xff]
      %v2869 = vld [vmem:[%s2841 + $0xd8] sm:$0xff]
      %v2870 = vld [vmem:[%s2841 + $0xe0] sm:$0xff]
      %v2871 = vld [vmem:[%s2841 + $0xe8] sm:$0xff]
      %v2872 = vld [vmem:[%s2841 + $0xf0] sm:$0xff]
      %v2873 = vld [vmem:[%s2841 + $0xf8] sm:$0xff]
      %v2874 = vld [vmem:[%s2841 + $0x100] sm:$0xff]
      %v2875 = vld [vmem:[%s2841 + $0x108] sm:$0xff]
      %v2876 = vld [vmem:[%s2841 + $0x110] sm:$0xff]
      %v2877 = vld [vmem:[%s2841 + $0x118] sm:$0xff]
      %v2878 = vld [vmem:[%s2841 + $0x120] sm:$0x33]
      %v2879 = vld [vmem:[%s2841 + $0x128] sm:$0x33]
      %v2880 = vld [vmem:[%s2841 + $0x130] sm:$0x33]
      %v2881 = vld [vmem:[%s2841 + $0x138] sm:$0x33]
      %v2882 = vld [vmem:[%s2841 + $0x140] sm:$0x33]
      %v2883 = vld [vmem:[%s2841 + $0x148] sm:$0x33]
      %v2884 = vld [vmem:[%s2841 + $0x150] sm:$0x33]
      %v2885 = vld [vmem:[%s2841 + $0x158] sm:$0x33]
      %v2886 = vld [vmem:[%s2841 + $0x160] sm:$0x33]
      %v2887 = vld [vmem:[%s2841 + $0x168] sm:$0x33]
      %v2888 = vld [vmem:[%s2841 + $0x170] sm:$0x33]
      %v2889 = vld [vmem:[%s2841 + $0x178] sm:$0x33]
      %v2938 = vunpack.c.l.b16 %v2842
      %v2939 = vunpack.c.h.b16 %v2842
      %v2940 = vunpack.c.l.b16 %v2843
      %v2941 = vunpack.c.h.b16 %v2843
      %v2942 = vunpack.c.l.b16 %v2844
      %v2943 = vunpack.c.h.b16 %v2844
      %v2944 = vunpack.c.l.b16 %v2845
      %v2945 = vunpack.c.h.b16 %v2845
      %v2946 = vunpack.c.l.b16 %v2846
      %v2947 = vunpack.c.h.b16 %v2846
      %v2948 = vunpack.c.l.b16 %v2847
      %v2949 = vunpack.c.h.b16 %v2847
      %v2950 = vunpack.c.l.b16 %v2848
      %v2951 = vunpack.c.h.b16 %v2848
      %v2952 = vunpack.c.l.b16 %v2849
      %v2953 = vunpack.c.h.b16 %v2849
      %v2954 = vunpack.c.l.b16 %v2850
      %v2955 = vunpack.c.h.b16 %v2850
      %v2956 = vunpack.c.l.b16 %v2851
      %v2957 = vunpack.c.h.b16 %v2851
      %v2958 = vunpack.c.l.b16 %v2852
      %v2959 = vunpack.c.h.b16 %v2852
      %v2960 = vunpack.c.l.b16 %v2853
      %v2961 = vunpack.c.h.b16 %v2853
      %v2962 = vunpack.c.l.b16 %v2854
      %v2963 = vunpack.c.h.b16 %v2854
      %v2964 = vunpack.c.l.b16 %v2855
      %v2965 = vunpack.c.h.b16 %v2855
      %v2966 = vunpack.c.l.b16 %v2856
      %v2967 = vunpack.c.h.b16 %v2856
      %v2968 = vunpack.c.l.b16 %v2857
      %v2969 = vunpack.c.h.b16 %v2857
      %v2970 = vunpack.c.l.b16 %v2858
      %v2971 = vunpack.c.h.b16 %v2858
      %v2972 = vunpack.c.l.b16 %v2859
      %v2973 = vunpack.c.h.b16 %v2859
      %v2974 = vunpack.c.l.b16 %v2860
      %v2975 = vunpack.c.h.b16 %v2860
      %v2976 = vunpack.c.l.b16 %v2861
      %v2977 = vunpack.c.h.b16 %v2861
      %v2978 = vunpack.c.l.b16 %v2862
      %v2979 = vunpack.c.h.b16 %v2862
      %v2980 = vunpack.c.l.b16 %v2863
      %v2981 = vunpack.c.h.b16 %v2863
      %v2982 = vunpack.c.l.b16 %v2864
      %v2983 = vunpack.c.h.b16 %v2864
      %v2984 = vunpack.c.l.b16 %v2865
      %v2985 = vunpack.c.h.b16 %v2865
      %v2986 = vunpack.c.l.b16 %v2866
      %v2987 = vunpack.c.h.b16 %v2866
      %v2988 = vunpack.c.l.b16 %v2867
      %v2989 = vunpack.c.h.b16 %v2867
      %v2990 = vunpack.c.l.b16 %v2868
      %v2991 = vunpack.c.h.b16 %v2868
      %v2992 = vunpack.c.l.b16 %v2869
      %v2993 = vunpack.c.h.b16 %v2869
      %v2994 = vunpack.c.l.b16 %v2870
      %v2995 = vunpack.c.h.b16 %v2870
      %v2996 = vunpack.c.l.b16 %v2871
      %v2997 = vunpack.c.h.b16 %v2871
      %v2998 = vunpack.c.l.b16 %v2872
      %v2999 = vunpack.c.h.b16 %v2872
      %v3000 = vunpack.c.l.b16 %v2873
      %v3001 = vunpack.c.h.b16 %v2873
      %v3002 = vunpack.c.l.b16 %v2874
      %v3003 = vunpack.c.h.b16 %v2874
      %v3004 = vunpack.c.l.b16 %v2875
      %v3005 = vunpack.c.h.b16 %v2875
      %v3006 = vunpack.c.l.b16 %v2876
      %v3007 = vunpack.c.h.b16 %v2876
      %v3008 = vunpack.c.l.b16 %v2877
      %v3009 = vunpack.c.h.b16 %v2877
      %v3010 = vunpack.c.l.b16 %v2878
      %v3011 = vunpack.c.h.b16 %v2878
      %v3012 = vunpack.c.l.b16 %v2879
      %v3013 = vunpack.c.h.b16 %v2879
      %v3014 = vunpack.c.l.b16 %v2880
      %v3015 = vunpack.c.h.b16 %v2880
      %v3016 = vunpack.c.l.b16 %v2881
      %v3017 = vunpack.c.h.b16 %v2881
      %v3018 = vunpack.c.l.b16 %v2882
      %v3019 = vunpack.c.h.b16 %v2882
      %v3020 = vunpack.c.l.b16 %v2883
      %v3021 = vunpack.c.h.b16 %v2883
      %v3022 = vunpack.c.l.b16 %v2884
      %v3023 = vunpack.c.h.b16 %v2884
      %v3024 = vunpack.c.l.b16 %v2885
      %v3025 = vunpack.c.h.b16 %v2885
      %v3026 = vunpack.c.l.b16 %v2886
      %v3027 = vunpack.c.h.b16 %v2886
      %v3028 = vunpack.c.l.b16 %v2887
      %v3029 = vunpack.c.h.b16 %v2887
      %v3030 = vunpack.c.l.b16 %v2888
      %v3031 = vunpack.c.h.b16 %v2888
      %v3032 = vunpack.c.l.b16 %v2889
      %v3033 = vunpack.c.h.b16 %v2889
      %v3034 = vpack.c.b16 %v2962, %v2938
      %v3035 = vpack.c.b16 %v2963, %v2939
      %v3036 = vpack.c.b16 %v2964, %v2940
      %v3037 = vpack.c.b16 %v2965, %v2941
      %v3038 = vpack.c.b16 %v2966, %v2942
      %v3039 = vpack.c.b16 %v2967, %v2943
      %v3040 = vpack.c.b16 %v2968, %v2944
      %v3041 = vpack.c.b16 %v2969, %v2945
      %v3042 = vpack.c.b16 %v2970, %v2946
      %v3043 = vpack.c.b16 %v2971, %v2947
      %v3044 = vpack.c.b16 %v2972, %v2948
      %v3045 = vpack.c.b16 %v2973, %v2949
      %v3046 = vpack.c.b16 %v2974, %v2950
      %v3047 = vpack.c.b16 %v2975, %v2951
      %v3048 = vpack.c.b16 %v2976, %v2952
      %v3049 = vpack.c.b16 %v2977, %v2953
      %v3050 = vpack.c.b16 %v2978, %v2954
      %v3051 = vpack.c.b16 %v2979, %v2955
      %v3052 = vpack.c.b16 %v2980, %v2956
      %v3053 = vpack.c.b16 %v2981, %v2957
      %v3054 = vpack.c.b16 %v2982, %v2958
      %v3055 = vpack.c.b16 %v2983, %v2959
      %v3056 = vpack.c.b16 %v2984, %v2960
      %v3057 = vpack.c.b16 %v2985, %v2961
      %v3058 = vpack.c.b16 %v3010, %v2986
      %v3059 = vpack.c.b16 %v3011, %v2987
      %v3060 = vpack.c.b16 %v3012, %v2988
      %v3061 = vpack.c.b16 %v3013, %v2989
      %v3062 = vpack.c.b16 %v3014, %v2990
      %v3063 = vpack.c.b16 %v3015, %v2991
      %v3064 = vpack.c.b16 %v3016, %v2992
      %v3065 = vpack.c.b16 %v3017, %v2993
      %v3066 = vpack.c.b16 %v3018, %v2994
      %v3067 = vpack.c.b16 %v3019, %v2995
      %v3068 = vpack.c.b16 %v3020, %v2996
      %v3069 = vpack.c.b16 %v3021, %v2997
      %v3070 = vpack.c.b16 %v3022, %v2998
      %v3071 = vpack.c.b16 %v3023, %v2999
      %v3072 = vpack.c.b16 %v3024, %v3000
      %v3073 = vpack.c.b16 %v3025, %v3001
      %v3074 = vpack.c.b16 %v3026, %v3002
      %v3075 = vpack.c.b16 %v3027, %v3003
      %v3076 = vpack.c.b16 %v3028, %v3004
      %v3077 = vpack.c.b16 %v3029, %v3005
      %v3078 = vpack.c.b16 %v3030, %v3006
      %v3079 = vpack.c.b16 %v3031, %v3007
      %v3080 = vpack.c.b16 %v3032, %v3008
      %v3081 = vpack.c.b16 %v3033, %v3009
      %v3107 = vand.u32 %v3058, %v450
      %v3110 = vand.u32 %v3059, %v450
      %v3113 = vand.u32 %v3060, %v450
      %v3116 = vand.u32 %v3061, %v450
      %v3119 = vand.u32 %v3062, %v450
      %v3122 = vand.u32 %v3063, %v450
      %v3125 = vand.u32 %v3064, %v450
      %v3128 = vand.u32 %v3065, %v450
      %v3131 = vand.u32 %v3066, %v450
      %v3134 = vand.u32 %v3067, %v450
      %v3137 = vand.u32 %v3068, %v450
      %v3140 = vand.u32 %v3069, %v450
      %v3143 = vand.u32 %v3070, %v450
      %v3146 = vand.u32 %v3071, %v450
      %v3149 = vand.u32 %v3072, %v450
      %v3152 = vand.u32 %v3073, %v450
      %v3155 = vand.u32 %v3074, %v450
      %v3158 = vand.u32 %v3075, %v450
      %v3161 = vand.u32 %v3076, %v450
      %v3164 = vand.u32 %v3077, %v450
      %v3167 = vand.u32 %v3078, %v450
      %v3170 = vand.u32 %v3079, %v450
      %v3173 = vand.u32 %v3080, %v450
      %v3176 = vand.u32 %v3081, %v450
      %3178 = vmatprep.subr.bf16.mxu0 %v3035
      %3179 = vmatpush1.bf16.msra.mxu0 %v3034
      %3180 = vmatprep.subr.bf16.mxu0 %v3110
      %3181 = vmatpush1.bf16.msra.mxu0 %v3107
      %3182 = vmatprep.subr.bf16.mxu0 0
      %3183 = vmatpush1.bf16.msra.mxu0 0
      %3184 = vmatprep.subr.bf16.mxu0 0
      %3185 = vmatpush1.bf16.msra.mxu0 0
      %3186 = vmatprep.subr.bf16.mxu0 0
      %3187 = vmatpush1.bf16.msra.mxu0 0
      %3188 = vmatprep.subr.bf16.mxu0 0
      %3189 = vmatpush1.bf16.msra.mxu0 0
      %3190 = vmatprep.subr.bf16.mxu0 0
      %3191 = vmatpush1.bf16.msra.mxu0 0
      %3192 = vmatprep.subr.bf16.mxu0 0
      %3193 = vmatpush1.bf16.msra.mxu0 0
      %3194 = vmatprep.subr.bf16.mxu0 0
      %3195 = vmatpush1.bf16.msra.mxu0 0
      %3196 = vmatprep.subr.bf16.mxu0 0
      %3197 = vmatpush1.bf16.msra.mxu0 0
      %3198 = vmatprep.subr.bf16.mxu0 0
      %3199 = vmatpush1.bf16.msra.mxu0 0
      %3200 = vmatprep.subr.bf16.mxu0 0
      %3201 = vmatpush1.bf16.msra.mxu0 0
      %3202 = vmatprep.subr.bf16.mxu0 0
      %3203 = vmatpush1.bf16.msra.mxu0 0
      %3204 = vmatprep.subr.bf16.mxu0 0
      %3205 = vmatpush1.bf16.msra.mxu0 0
      %3206 = vmatprep.subr.bf16.mxu0 0
      %3207 = vmatpush1.bf16.msra.mxu0 0
      %3208 = vmatprep.subr.bf16.mxu0 0
      %3209 = vmatpush1.bf16.msra.mxu0 0
      %3210 = vmatprep.mubr.bf16.mxu0 0
      %3211 = vmatmul.mubr.bf16.gmra.mrb[0].mxu0 %v445
      %v3212 = vpop.f32.mrb[0].mxu0
      %v3213 = vadd.f32 0.0, %v3212
      %v3214 = vpop.f32.mrb[0].mxu0
      %v3215 = vadd.f32 0.0, %v3214
      %v3216 = vpop.f32.mrb[0].mxu0
      %v3217 = vadd.f32 0.0, %v3216
      %v3218 = vpop.f32.mrb[0].mxu0
      %v3219 = vadd.f32 0.0, %v3218
      %3220 = vdwg.mxu0
      %3221 = vmatprep.subr.bf16.mxu0 %v3037
      %3222 = vmatpush1.bf16.msra.mxu0 %v3036
      %3223 = vmatprep.subr.bf16.mxu0 %v3116
      %3224 = vmatpush1.bf16.msra.mxu0 %v3113
      %3225 = vmatprep.subr.bf16.mxu0 0
      %3226 = vmatpush1.bf16.msra.mxu0 0
      %3227 = vmatprep.subr.bf16.mxu0 0
      %3228 = vmatpush1.bf16.msra.mxu0 0
      %3229 = vmatprep.subr.bf16.mxu0 0
      %3230 = vmatpush1.bf16.msra.mxu0 0
      %3231 = vmatprep.subr.bf16.mxu0 0
      %3232 = vmatpush1.bf16.msra.mxu0 0
      %3233 = vmatprep.subr.bf16.mxu0 0
      %3234 = vmatpush1.bf16.msra.mxu0 0
      %3235 = vmatprep.subr.bf16.mxu0 0
      %3236 = vmatpush1.bf16.msra.mxu0 0
      %3237 = vmatprep.subr.bf16.mxu0 0
      %3238 = vmatpush1.bf16.msra.mxu0 0
      %3239 = vmatprep.subr.bf16.mxu0 0
      %3240 = vmatpush1.bf16.msra.mxu0 0
      %3241 = vmatprep.subr.bf16.mxu0 0
      %3242 = vmatpush1.bf16.msra.mxu0 0
      %3243 = vmatprep.subr.bf16.mxu0 0
      %3244 = vmatpush1.bf16.msra.mxu0 0
      %3245 = vmatprep.subr.bf16.mxu0 0
      %3246 = vmatpush1.bf16.msra.mxu0 0
      %3247 = vmatprep.subr.bf16.mxu0 0
      %3248 = vmatpush1.bf16.msra.mxu0 0
      %3249 = vmatprep.subr.bf16.mxu0 0
      %3250 = vmatpush1.bf16.msra.mxu0 0
      %3251 = vmatprep.subr.bf16.mxu0 0
      %3252 = vmatpush1.bf16.msra.mxu0 0
      %3253 = vmatprep.mubr.bf16.mxu0 0
      %3254 = vmatmul.mubr.bf16.gmra.mrb[0].mxu0 %v445
      %v3255 = vpop.f32.mrb[0].mxu0
      %v3256 = vadd.f32 0.0, %v3255
      %v3257 = vpop.f32.mrb[0].mxu0
      %v3258 = vadd.f32 0.0, %v3257
      %v3259 = vpop.f32.mrb[0].mxu0
      %v3260 = vadd.f32 0.0, %v3259
      %v3261 = vpop.f32.mrb[0].mxu0
      %v3262 = vadd.f32 0.0, %v3261
      %3263 = vdwg.mxu0
      %3264 = vmatprep.subr.bf16.mxu0 %v3039
      %3265 = vmatpush1.bf16.msra.mxu0 %v3038
      %3266 = vmatprep.subr.bf16.mxu0 %v3122
      %3267 = vmatpush1.bf16.msra.mxu0 %v3119
      %3268 = vmatprep.subr.bf16.mxu0 0
      %3269 = vmatpush1.bf16.msra.mxu0 0
      %3270 = vmatprep.subr.bf16.mxu0 0
      %3271 = vmatpush1.bf16.msra.mxu0 0
      %3272 = vmatprep.subr.bf16.mxu0 0
      %3273 = vmatpush1.bf16.msra.mxu0 0
      %3274 = vmatprep.subr.bf16.mxu0 0
      %3275 = vmatpush1.bf16.msra.mxu0 0
      %3276 = vmatprep.subr.bf16.mxu0 0
      %3277 = vmatpush1.bf16.msra.mxu0 0
      %3278 = vmatprep.subr.bf16.mxu0 0
      %3279 = vmatpush1.bf16.msra.mxu0 0
      %3280 = vmatprep.subr.bf16.mxu0 0
      %3281 = vmatpush1.bf16.msra.mxu0 0
      %3282 = vmatprep.subr.bf16.mxu0 0
      %3283 = vmatpush1.bf16.msra.mxu0 0
      %3284 = vmatprep.subr.bf16.mxu0 0
      %3285 = vmatpush1.bf16.msra.mxu0 0
      %3286 = vmatprep.subr.bf16.mxu0 0
      %3287 = vmatpush1.bf16.msra.mxu0 0
      %3288 = vmatprep.subr.bf16.mxu0 0
      %3289 = vmatpush1.bf16.msra.mxu0 0
      %3290 = vmatprep.subr.bf16.mxu0 0
      %3291 = vmatpush1.bf16.msra.mxu0 0
      %3292 = vmatprep.subr.bf16.mxu0 0
      %3293 = vmatpush1.bf16.msra.mxu0 0
      %3294 = vmatprep.subr.bf16.mxu0 0
      %3295 = vmatpush1.bf16.msra.mxu0 0
      %3296 = vmatprep.mubr.bf16.mxu0 0
      %3297 = vmatmul.mubr.bf16.gmra.mrb[0].mxu0 %v445
      %v3298 = vpop.f32.mrb[0].mxu0
      %v3299 = vadd.f32 0.0, %v3298
      %v3300 = vpop.f32.mrb[0].mxu0
      %v3301 = vadd.f32 0.0, %v3300
      %v3302 = vpop.f32.mrb[0].mxu0
      %v3303 = vadd.f32 0.0, %v3302
      %v3304 = vpop.f32.mrb[0].mxu0
      %v3305 = vadd.f32 0.0, %v3304
      %3306 = vdwg.mxu0
      %3307 = vmatprep.subr.bf16.mxu0 %v3041
      %3308 = vmatpush1.bf16.msra.mxu0 %v3040
      %3309 = vmatprep.subr.bf16.mxu0 %v3128
      %3310 = vmatpush1.bf16.msra.mxu0 %v3125
      %3311 = vmatprep.subr.bf16.mxu0 0
      %3312 = vmatpush1.bf16.msra.mxu0 0
      %3313 = vmatprep.subr.bf16.mxu0 0
      %3314 = vmatpush1.bf16.msra.mxu0 0
      %3315 = vmatprep.subr.bf16.mxu0 0
      %3316 = vmatpush1.bf16.msra.mxu0 0
      %3317 = vmatprep.subr.bf16.mxu0 0
      %3318 = vmatpush1.bf16.msra.mxu0 0
      %3319 = vmatprep.subr.bf16.mxu0 0
      %3320 = vmatpush1.bf16.msra.mxu0 0
      %3321 = vmatprep.subr.bf16.mxu0 0
      %3322 = vmatpush1.bf16.msra.mxu0 0
      %3323 = vmatprep.subr.bf16.mxu0 0
      %3324 = vmatpush1.bf16.msra.mxu0 0
      %3325 = vmatprep.subr.bf16.mxu0 0
      %3326 = vmatpush1.bf16.msra.mxu0 0
      %3327 = vmatprep.subr.bf16.mxu0 0
      %3328 = vmatpush1.bf16.msra.mxu0 0
      %3329 = vmatprep.subr.bf16.mxu0 0
      %3330 = vmatpush1.bf16.msra.mxu0 0
      %3331 = vmatprep.subr.bf16.mxu0 0
      %3332 = vmatpush1.bf16.msra.mxu0 0
      %3333 = vmatprep.subr.bf16.mxu0 0
      %3334 = vmatpush1.bf16.msra.mxu0 0
      %3335 = vmatprep.subr.bf16.mxu0 0
      %3336 = vmatpush1.bf16.msra.mxu0 0
      %3337 = vmatprep.subr.bf16.mxu0 0
      %3338 = vmatpush1.bf16.msra.mxu0 0
      %3339 = vmatprep.mubr.bf16.mxu0 0
      %3340 = vmatmul.mubr.bf16.gmra.mrb[0].mxu0 %v445
      %v3341 = vpop.f32.mrb[0].mxu0
      %v3342 = vadd.f32 0.0, %v3341
      %v3343 = vpop.f32.mrb[0].mxu0
      %v3344 = vadd.f32 0.0, %v3343
      %v3345 = vpop.f32.mrb[0].mxu0
      %v3346 = vadd.f32 0.0, %v3345
      %v3347 = vpop.f32.mrb[0].mxu0
      %v3348 = vadd.f32 0.0, %v3347
      %3349 = vdwg.mxu0
      %3350 = vmatprep.subr.bf16.mxu0 %v3043
      %3351 = vmatpush1.bf16.msra.mxu0 %v3042
      %3352 = vmatprep.subr.bf16.mxu0 %v3134
      %3353 = vmatpush1.bf16.msra.mxu0 %v3131
      %3354 = vmatprep.subr.bf16.mxu0 0
      %3355 = vmatpush1.bf16.msra.mxu0 0
      %3356 = vmatprep.subr.bf16.mxu0 0
      %3357 = vmatpush1.bf16.msra.mxu0 0
      %3358 = vmatprep.subr.bf16.mxu0 0
      %3359 = vmatpush1.bf16.msra.mxu0 0
      %3360 = vmatprep.subr.bf16.mxu0 0
      %3361 = vmatpush1.bf16.msra.mxu0 0
      %3362 = vmatprep.subr.bf16.mxu0 0
      %3363 = vmatpush1.bf16.msra.mxu0 0
      %3364 = vmatprep.subr.bf16.mxu0 0
      %3365 = vmatpush1.bf16.msra.mxu0 0
      %3366 = vmatprep.subr.bf16.mxu0 0
      %3367 = vmatpush1.bf16.msra.mxu0 0
      %3368 = vmatprep.subr.bf16.mxu0 0
      %3369 = vmatpush1.bf16.msra.mxu0 0
      %3370 = vmatprep.subr.bf16.mxu0 0
      %3371 = vmatpush1.bf16.msra.mxu0 0
      %3372 = vmatprep.subr.bf16.mxu0 0
      %3373 = vmatpush1.bf16.msra.mxu0 0
      %3374 = vmatprep.subr.bf16.mxu0 0
      %3375 = vmatpush1.bf16.msra.mxu0 0
      %3376 = vmatprep.subr.bf16.mxu0 0
      %3377 = vmatpush1.bf16.msra.mxu0 0
      %3378 = vmatprep.subr.bf16.mxu0 0
      %3379 = vmatpush1.bf16.msra.mxu0 0
      %3380 = vmatprep.subr.bf16.mxu0 0
      %3381 = vmatpush1.bf16.msra.mxu0 0
      %3382 = vmatprep.mubr.bf16.mxu0 0
      %3383 = vmatmul.mubr.bf16.gmra.mrb[0].mxu0 %v445
      %v3384 = vpop.f32.mrb[0].mxu0
      %v3385 = vadd.f32 0.0, %v3384
      %v3386 = vpop.f32.mrb[0].mxu0
      %v3387 = vadd.f32 0.0, %v3386
      %v3388 = vpop.f32.mrb[0].mxu0
      %v3389 = vadd.f32 0.0, %v3388
      %v3390 = vpop.f32.mrb[0].mxu0
      %v3391 = vadd.f32 0.0, %v3390
      %3392 = vdwg.mxu0
      %3393 = vmatprep.subr.bf16.mxu0 %v3045
      %3394 = vmatpush1.bf16.msra.mxu0 %v3044
      %3395 = vmatprep.subr.bf16.mxu0 %v3140
      %3396 = vmatpush1.bf16.msra.mxu0 %v3137
      %3397 = vmatprep.subr.bf16.mxu0 0
      %3398 = vmatpush1.bf16.msra.mxu0 0
      %3399 = vmatprep.subr.bf16.mxu0 0
      %3400 = vmatpush1.bf16.msra.mxu0 0
      %3401 = vmatprep.subr.bf16.mxu0 0
      %3402 = vmatpush1.bf16.msra.mxu0 0
      %3403 = vmatprep.subr.bf16.mxu0 0
      %3404 = vmatpush1.bf16.msra.mxu0 0
      %3405 = vmatprep.subr.bf16.mxu0 0
      %3406 = vmatpush1.bf16.msra.mxu0 0
      %3407 = vmatprep.subr.bf16.mxu0 0
      %3408 = vmatpush1.bf16.msra.mxu0 0
      %3409 = vmatprep.subr.bf16.mxu0 0
      %3410 = vmatpush1.bf16.msra.mxu0 0
      %3411 = vmatprep.subr.bf16.mxu0 0
      %3412 = vmatpush1.bf16.msra.mxu0 0
      %3413 = vmatprep.subr.bf16.mxu0 0
      %3414 = vmatpush1.bf16.msra.mxu0 0
      %3415 = vmatprep.subr.bf16.mxu0 0
      %3416 = vmatpush1.bf16.msra.mxu0 0
      %3417 = vmatprep.subr.bf16.mxu0 0
      %3418 = vmatpush1.bf16.msra.mxu0 0
      %3419 = vmatprep.subr.bf16.mxu0 0
      %3420 = vmatpush1.bf16.msra.mxu0 0
      %3421 = vmatprep.subr.bf16.mxu0 0
      %3422 = vmatpush1.bf16.msra.mxu0 0
      %3423 = vmatprep.subr.bf16.mxu0 0
      %3424 = vmatpush1.bf16.msra.mxu0 0
      %3425 = vmatprep.mubr.bf16.mxu0 0
      %3426 = vmatmul.mubr.bf16.gmra.mrb[0].mxu0 %v445
      %v3427 = vpop.f32.mrb[0].mxu0
      %v3428 = vadd.f32 0.0, %v3427
      %v3429 = vpop.f32.mrb[0].mxu0
      %v3430 = vadd.f32 0.0, %v3429
      %v3431 = vpop.f32.mrb[0].mxu0
      %v3432 = vadd.f32 0.0, %v3431
      %v3433 = vpop.f32.mrb[0].mxu0
      %v3434 = vadd.f32 0.0, %v3433
      %3435 = vdwg.mxu0
      %3436 = vmatprep.subr.bf16.mxu0 %v3047
      %3437 = vmatpush1.bf16.msra.mxu0 %v3046
      %3438 = vmatprep.subr.bf16.mxu0 %v3146
      %3439 = vmatpush1.bf16.msra.mxu0 %v3143
      %3440 = vmatprep.subr.bf16.mxu0 0
      %3441 = vmatpush1.bf16.msra.mxu0 0
      %3442 = vmatprep.subr.bf16.mxu0 0
      %3443 = vmatpush1.bf16.msra.mxu0 0
      %3444 = vmatprep.subr.bf16.mxu0 0
      %3445 = vmatpush1.bf16.msra.mxu0 0
      %3446 = vmatprep.subr.bf16.mxu0 0
      %3447 = vmatpush1.bf16.msra.mxu0 0
      %3448 = vmatprep.subr.bf16.mxu0 0
      %3449 = vmatpush1.bf16.msra.mxu0 0
      %3450 = vmatprep.subr.bf16.mxu0 0
      %3451 = vmatpush1.bf16.msra.mxu0 0
      %3452 = vmatprep.subr.bf16.mxu0 0
      %3453 = vmatpush1.bf16.msra.mxu0 0
      %3454 = vmatprep.subr.bf16.mxu0 0
      %3455 = vmatpush1.bf16.msra.mxu0 0
      %3456 = vmatprep.subr.bf16.mxu0 0
      %3457 = vmatpush1.bf16.msra.mxu0 0
      %3458 = vmatprep.subr.bf16.mxu0 0
      %3459 = vmatpush1.bf16.msra.mxu0 0
      %3460 = vmatprep.subr.bf16.mxu0 0
      %3461 = vmatpush1.bf16.msra.mxu0 0
      %3462 = vmatprep.subr.bf16.mxu0 0
      %3463 = vmatpush1.bf16.msra.mxu0 0
      %3464 = vmatprep.subr.bf16.mxu0 0
      %3465 = vmatpush1.bf16.msra.mxu0 0
      %3466 = vmatprep.subr.bf16.mxu0 0
      %3467 = vmatpush1.bf16.msra.mxu0 0
      %3468 = vmatprep.mubr.bf16.mxu0 0
      %3469 = vmatmul.mubr.bf16.gmra.mrb[0].mxu0 %v445
      %v3470 = vpop.f32.mrb[0].mxu0
      %v3471 = vadd.f32 0.0, %v3470
      %v3472 = vpop.f32.mrb[0].mxu0
      %v3473 = vadd.f32 0.0, %v3472
      %v3474 = vpop.f32.mrb[0].mxu0
      %v3475 = vadd.f32 0.0, %v3474
      %v3476 = vpop.f32.mrb[0].mxu0
      %v3477 = vadd.f32 0.0, %v3476
      %3478 = vdwg.mxu0
      %3479 = vmatprep.subr.bf16.mxu0 %v3049
      %3480 = vmatpush1.bf16.msra.mxu0 %v3048
      %3481 = vmatprep.subr.bf16.mxu0 %v3152
      %3482 = vmatpush1.bf16.msra.mxu0 %v3149
      %3483 = vmatprep.subr.bf16.mxu0 0
      %3484 = vmatpush1.bf16.msra.mxu0 0
      %3485 = vmatprep.subr.bf16.mxu0 0
      %3486 = vmatpush1.bf16.msra.mxu0 0
      %3487 = vmatprep.subr.bf16.mxu0 0
      %3488 = vmatpush1.bf16.msra.mxu0 0
      %3489 = vmatprep.subr.bf16.mxu0 0
      %3490 = vmatpush1.bf16.msra.mxu0 0
      %3491 = vmatprep.subr.bf16.mxu0 0
      %3492 = vmatpush1.bf16.msra.mxu0 0
      %3493 = vmatprep.subr.bf16.mxu0 0
      %3494 = vmatpush1.bf16.msra.mxu0 0
      %3495 = vmatprep.subr.bf16.mxu0 0
      %3496 = vmatpush1.bf16.msra.mxu0 0
      %3497 = vmatprep.subr.bf16.mxu0 0
      %3498 = vmatpush1.bf16.msra.mxu0 0
      %3499 = vmatprep.subr.bf16.mxu0 0
      %3500 = vmatpush1.bf16.msra.mxu0 0
      %3501 = vmatprep.subr.bf16.mxu0 0
      %3502 = vmatpush1.bf16.msra.mxu0 0
      %3503 = vmatprep.subr.bf16.mxu0 0
      %3504 = vmatpush1.bf16.msra.mxu0 0
      %3505 = vmatprep.subr.bf16.mxu0 0
      %3506 = vmatpush1.bf16.msra.mxu0 0
      %3507 = vmatprep.subr.bf16.mxu0 0
      %3508 = vmatpush1.bf16.msra.mxu0 0
      %3509 = vmatprep.subr.bf16.mxu0 0
      %3510 = vmatpush1.bf16.msra.mxu0 0
      %3511 = vmatprep.mubr.bf16.mxu0 0
      %3512 = vmatmul.mubr.bf16.gmra.mrb[0].mxu0 %v445
      %v3513 = vpop.f32.mrb[0].mxu0
      %v3514 = vadd.f32 0.0, %v3513
      %v3515 = vpop.f32.mrb[0].mxu0
      %v3516 = vadd.f32 0.0, %v3515
      %v3517 = vpop.f32.mrb[0].mxu0
      %v3518 = vadd.f32 0.0, %v3517
      %v3519 = vpop.f32.mrb[0].mxu0
      %v3520 = vadd.f32 0.0, %v3519
      %3521 = vdwg.mxu0
      %3522 = vmatprep.subr.bf16.mxu0 %v3051
      %3523 = vmatpush1.bf16.msra.mxu0 %v3050
      %3524 = vmatprep.subr.bf16.mxu0 %v3158
      %3525 = vmatpush1.bf16.msra.mxu0 %v3155
      %3526 = vmatprep.subr.bf16.mxu0 0
      %3527 = vmatpush1.bf16.msra.mxu0 0
      %3528 = vmatprep.subr.bf16.mxu0 0
      %3529 = vmatpush1.bf16.msra.mxu0 0
      %3530 = vmatprep.subr.bf16.mxu0 0
      %3531 = vmatpush1.bf16.msra.mxu0 0
      %3532 = vmatprep.subr.bf16.mxu0 0
      %3533 = vmatpush1.bf16.msra.mxu0 0
      %3534 = vmatprep.subr.bf16.mxu0 0
      %3535 = vmatpush1.bf16.msra.mxu0 0
      %3536 = vmatprep.subr.bf16.mxu0 0
      %3537 = vmatpush1.bf16.msra.mxu0 0
      %3538 = vmatprep.subr.bf16.mxu0 0
      %3539 = vmatpush1.bf16.msra.mxu0 0
      %3540 = vmatprep.subr.bf16.mxu0 0
      %3541 = vmatpush1.bf16.msra.mxu0 0
      %3542 = vmatprep.subr.bf16.mxu0 0
      %3543 = vmatpush1.bf16.msra.mxu0 0
      %3544 = vmatprep.subr.bf16.mxu0 0
      %3545 = vmatpush1.bf16.msra.mxu0 0
      %3546 = vmatprep.subr.bf16.mxu0 0
      %3547 = vmatpush1.bf16.msra.mxu0 0
      %3548 = vmatprep.subr.bf16.mxu0 0
      %3549 = vmatpush1.bf16.msra.mxu0 0
      %3550 = vmatprep.subr.bf16.mxu0 0
      %3551 = vmatpush1.bf16.msra.mxu0 0
      %3552 = vmatprep.subr.bf16.mxu0 0
      %3553 = vmatpush1.bf16.msra.mxu0 0
      %3554 = vmatprep.mubr.bf16.mxu0 0
      %3555 = vmatmul.mubr.bf16.gmra.mrb[0].mxu0 %v445
      %v3556 = vpop.f32.mrb[0].mxu0
      %v3557 = vadd.f32 0.0, %v3556
      %v3558 = vpop.f32.mrb[0].mxu0
      %v3559 = vadd.f32 0.0, %v3558
      %v3560 = vpop.f32.mrb[0].mxu0
      %v3561 = vadd.f32 0.0, %v3560
      %v3562 = vpop.f32.mrb[0].mxu0
      %v3563 = vadd.f32 0.0, %v3562
      %3564 = vdwg.mxu0
      %3565 = vmatprep.subr.bf16.mxu0 %v3053
      %3566 = vmatpush1.bf16.msra.mxu0 %v3052
      %3567 = vmatprep.subr.bf16.mxu0 %v3164
      %3568 = vmatpush1.bf16.msra.mxu0 %v3161
      %3569 = vmatprep.subr.bf16.mxu0 0
      %3570 = vmatpush1.bf16.msra.mxu0 0
      %3571 = vmatprep.subr.bf16.mxu0 0
      %3572 = vmatpush1.bf16.msra.mxu0 0
      %3573 = vmatprep.subr.bf16.mxu0 0
      %3574 = vmatpush1.bf16.msra.mxu0 0
      %3575 = vmatprep.subr.bf16.mxu0 0
      %3576 = vmatpush1.bf16.msra.mxu0 0
      %3577 = vmatprep.subr.bf16.mxu0 0
      %3578 = vmatpush1.bf16.msra.mxu0 0
      %3579 = vmatprep.subr.bf16.mxu0 0
      %3580 = vmatpush1.bf16.msra.mxu0 0
      %3581 = vmatprep.subr.bf16.mxu0 0
      %3582 = vmatpush1.bf16.msra.mxu0 0
      %3583 = vmatprep.subr.bf16.mxu0 0
      %3584 = vmatpush1.bf16.msra.mxu0 0
      %3585 = vmatprep.subr.bf16.mxu0 0
      %3586 = vmatpush1.bf16.msra.mxu0 0
      %3587 = vmatprep.subr.bf16.mxu0 0
      %3588 = vmatpush1.bf16.msra.mxu0 0
      %3589 = vmatprep.subr.bf16.mxu0 0
      %3590 = vmatpush1.bf16.msra.mxu0 0
      %3591 = vmatprep.subr.bf16.mxu0 0
      %3592 = vmatpush1.bf16.msra.mxu0 0
      %3593 = vmatprep.subr.bf16.mxu0 0
      %3594 = vmatpush1.bf16.msra.mxu0 0
      %3595 = vmatprep.subr.bf16.mxu0 0
      %3596 = vmatpush1.bf16.msra.mxu0 0
      %3597 = vmatprep.mubr.bf16.mxu0 0
      %3598 = vmatmul.mubr.bf16.gmra.mrb[0].mxu0 %v445
      %v3599 = vpop.f32.mrb[0].mxu0
      %v3600 = vadd.f32 0.0, %v3599
      %v3601 = vpop.f32.mrb[0].mxu0
      %v3602 = vadd.f32 0.0, %v3601
      %v3603 = vpop.f32.mrb[0].mxu0
      %v3604 = vadd.f32 0.0, %v3603
      %v3605 = vpop.f32.mrb[0].mxu0
      %v3606 = vadd.f32 0.0, %v3605
      %3607 = vdwg.mxu0
      %3608 = vmatprep.subr.bf16.mxu0 %v3055
      %3609 = vmatpush1.bf16.msra.mxu0 %v3054
      %3610 = vmatprep.subr.bf16.mxu0 %v3170
      %3611 = vmatpush1.bf16.msra.mxu0 %v3167
      %3612 = vmatprep.subr.bf16.mxu0 0
      %3613 = vmatpush1.bf16.msra.mxu0 0
      %3614 = vmatprep.subr.bf16.mxu0 0
      %3615 = vmatpush1.bf16.msra.mxu0 0
      %3616 = vmatprep.subr.bf16.mxu0 0
      %3617 = vmatpush1.bf16.msra.mxu0 0
      %3618 = vmatprep.subr.bf16.mxu0 0
      %3619 = vmatpush1.bf16.msra.mxu0 0
      %3620 = vmatprep.subr.bf16.mxu0 0
      %3621 = vmatpush1.bf16.msra.mxu0 0
      %3622 = vmatprep.subr.bf16.mxu0 0
      %3623 = vmatpush1.bf16.msra.mxu0 0
      %3624 = vmatprep.subr.bf16.mxu0 0
      %3625 = vmatpush1.bf16.msra.mxu0 0
      %3626 = vmatprep.subr.bf16.mxu0 0
      %3627 = vmatpush1.bf16.msra.mxu0 0
      %3628 = vmatprep.subr.bf16.mxu0 0
      %3629 = vmatpush1.bf16.msra.mxu0 0
      %3630 = vmatprep.subr.bf16.mxu0 0
      %3631 = vmatpush1.bf16.msra.mxu0 0
      %3632 = vmatprep.subr.bf16.mxu0 0
      %3633 = vmatpush1.bf16.msra.mxu0 0
      %3634 = vmatprep.subr.bf16.mxu0 0
      %3635 = vmatpush1.bf16.msra.mxu0 0
      %3636 = vmatprep.subr.bf16.mxu0 0
      %3637 = vmatpush1.bf16.msra.mxu0 0
      %3638 = vmatprep.subr.bf16.mxu0 0
      %3639 = vmatpush1.bf16.msra.mxu0 0
      %3640 = vmatprep.mubr.bf16.mxu0 0
      %3641 = vmatmul.mubr.bf16.gmra.mrb[0].mxu0 %v445
      %v3642 = vpop.f32.mrb[0].mxu0
      %v3643 = vadd.f32 0.0, %v3642
      %v3644 = vpop.f32.mrb[0].mxu0
      %v3645 = vadd.f32 0.0, %v3644
      %v3646 = vpop.f32.mrb[0].mxu0
      %v3647 = vadd.f32 0.0, %v3646
      %v3648 = vpop.f32.mrb[0].mxu0
      %v3649 = vadd.f32 0.0, %v3648
      %3650 = vdwg.mxu0
      %3651 = vmatprep.subr.bf16.mxu0 %v3057
      %3652 = vmatpush1.bf16.msra.mxu0 %v3056
      %3653 = vmatprep.subr.bf16.mxu0 %v3176
      %3654 = vmatpush1.bf16.msra.mxu0 %v3173
      %3655 = vmatprep.subr.bf16.mxu0 0
      %3656 = vmatpush1.bf16.msra.mxu0 0
      %3657 = vmatprep.subr.bf16.mxu0 0
      %3658 = vmatpush1.bf16.msra.mxu0 0
      %3659 = vmatprep.subr.bf16.mxu0 0
      %3660 = vmatpush1.bf16.msra.mxu0 0
      %3661 = vmatprep.subr.bf16.mxu0 0
      %3662 = vmatpush1.bf16.msra.mxu0 0
      %3663 = vmatprep.subr.bf16.mxu0 0
      %3664 = vmatpush1.bf16.msra.mxu0 0
      %3665 = vmatprep.subr.bf16.mxu0 0
      %3666 = vmatpush1.bf16.msra.mxu0 0
      %3667 = vmatprep.subr.bf16.mxu0 0
      %3668 = vmatpush1.bf16.msra.mxu0 0
      %3669 = vmatprep.subr.bf16.mxu0 0
      %3670 = vmatpush1.bf16.msra.mxu0 0
      %3671 = vmatprep.subr.bf16.mxu0 0
      %3672 = vmatpush1.bf16.msra.mxu0 0
      %3673 = vmatprep.subr.bf16.mxu0 0
      %3674 = vmatpush1.bf16.msra.mxu0 0
      %3675 = vmatprep.subr.bf16.mxu0 0
      %3676 = vmatpush1.bf16.msra.mxu0 0
      %3677 = vmatprep.subr.bf16.mxu0 0
      %3678 = vmatpush1.bf16.msra.mxu0 0
      %3679 = vmatprep.subr.bf16.mxu0 0
      %3680 = vmatpush1.bf16.msra.mxu0 0
      %3681 = vmatprep.subr.bf16.mxu0 0
      %3682 = vmatpush1.bf16.msra.mxu0 0
      %3683 = vmatprep.mubr.bf16.mxu0 0
      %3684 = vmatmul.mubr.bf16.gmra.mrb[0].mxu0 %v445
      %v3685 = vpop.f32.mrb[0].mxu0
      %v3686 = vadd.f32 0.0, %v3685
      %v3687 = vpop.f32.mrb[0].mxu0
      %v3688 = vadd.f32 0.0, %v3687
      %v3689 = vpop.f32.mrb[0].mxu0
      %v3690 = vadd.f32 0.0, %v3689
      %v3691 = vpop.f32.mrb[0].mxu0
      %v3692 = vadd.f32 0.0, %v3691
      %3693 = vdwg.mxu0
      %v3694 = vmax.f32 %v2793, %v3213
      %v3695 = vmax.f32 %v2794, %v3215
      %v3696 = vmax.f32 %v2795, %v3256
      %v3697 = vmax.f32 %v2796, %v3258
      %v3698 = vmax.f32 %v2797, %v3299
      %v3699 = vmax.f32 %v2798, %v3301
      %v3700 = vmax.f32 %v2799, %v3342
      %v3701 = vmax.f32 %v2800, %v3344
      %v3702 = vmax.f32 %v2801, %v3385
      %v3703 = vmax.f32 %v2802, %v3387
      %v3704 = vmax.f32 %v2803, %v3428
      %v3705 = vmax.f32 %v2804, %v3430
      %v3706 = vmax.f32 %v2805, %v3471
      %v3707 = vmax.f32 %v2806, %v3473
      %v3708 = vmax.f32 %v2807, %v3514
      %v3709 = vmax.f32 %v2808, %v3516
      %v3710 = vmax.f32 %v2809, %v3557
      %v3711 = vmax.f32 %v2810, %v3559
      %v3712 = vmax.f32 %v2811, %v3600
      %v3713 = vmax.f32 %v2812, %v3602
      %v3714 = vmax.f32 %v2813, %v3643
      %v3715 = vmax.f32 %v2814, %v3645
      %v3716 = vmax.f32 %v2815, %v3686
      %v3717 = vmax.f32 %v2816, %v3688
      %v3718 = vmax.f32 %v2817, %v3217
      %v3719 = vmax.f32 %v2818, %v3219
      %v3720 = vmax.f32 %v2819, %v3260
      %v3721 = vmax.f32 %v2820, %v3262
      %v3722 = vmax.f32 %v2821, %v3303
      %v3723 = vmax.f32 %v2822, %v3305
      %v3724 = vmax.f32 %v2823, %v3346
      %v3725 = vmax.f32 %v2824, %v3348
      %v3726 = vmax.f32 %v2825, %v3389
      %v3727 = vmax.f32 %v2826, %v3391
      %v3728 = vmax.f32 %v2827, %v3432
      %v3729 = vmax.f32 %v2828, %v3434
      %v3730 = vmax.f32 %v2829, %v3475
      %v3731 = vmax.f32 %v2830, %v3477
      %v3732 = vmax.f32 %v2831, %v3518
      %v3733 = vmax.f32 %v2832, %v3520
      %v3734 = vmax.f32 %v2833, %v3561
      %v3735 = vmax.f32 %v2834, %v3563
      %v3736 = vmax.f32 %v2835, %v3604
      %v3737 = vmax.f32 %v2836, %v3606
      %v3738 = vmax.f32 %v2837, %v3647
      %v3739 = vmax.f32 %v2838, %v3649
      %v3740 = vmax.f32 %v2839, %v3690
      %v3741 = vmax.f32 %v2840, %v3692
      %v3742 = vld [vmem:[%s2] sm:$0xff]
      %v3743 = vld [vmem:[%s2 + $0x8] sm:$0xff]
      %3745 = vset.pattern.permute.xlu0 0
      %3746 = vperm.xlu0 %3745, %v3742
      %v3747 = vpop.permute.xlu0 %3746
      %3750 = vset.pattern.permute.xlu0 0
      %3751 = vperm.xlu0 %3750, %v3743
      %v3752 = vpop.permute.xlu0 %3751
      %v3754 = vadd.f32 %v3694, %v3747
      %v3755 = vadd.f32 %v3695, %v3747
      %v3756 = vadd.f32 %v3696, %v3747
      %v3757 = vadd.f32 %v3697, %v3747
      %v3758 = vadd.f32 %v3698, %v3747
      %v3759 = vadd.f32 %v3699, %v3747
      %v3760 = vadd.f32 %v3700, %v3747
      %v3761 = vadd.f32 %v3701, %v3747
      %v3762 = vadd.f32 %v3702, %v3747
      %v3763 = vadd.f32 %v3703, %v3747
      %v3764 = vadd.f32 %v3704, %v3747
      %v3765 = vadd.f32 %v3705, %v3747
      %v3766 = vadd.f32 %v3706, %v3747
      %v3767 = vadd.f32 %v3707, %v3747
      %v3768 = vadd.f32 %v3708, %v3747
      %v3769 = vadd.f32 %v3709, %v3747
      %v3770 = vadd.f32 %v3710, %v3747
      %v3771 = vadd.f32 %v3711, %v3747
      %v3772 = vadd.f32 %v3712, %v3747
      %v3773 = vadd.f32 %v3713, %v3747
      %v3774 = vadd.f32 %v3714, %v3747
      %v3775 = vadd.f32 %v3715, %v3747
      %v3776 = vadd.f32 %v3716, %v3747
      %v3777 = vadd.f32 %v3717, %v3747
      %v3778 = vadd.f32 %v3718, %v3752
      %v3779 = vadd.f32 %v3719, %v3752
      %v3780 = vadd.f32 %v3720, %v3752
      %v3781 = vadd.f32 %v3721, %v3752
      %v3782 = vadd.f32 %v3722, %v3752
      %v3783 = vadd.f32 %v3723, %v3752
      %v3784 = vadd.f32 %v3724, %v3752
      %v3785 = vadd.f32 %v3725, %v3752
      %v3786 = vadd.f32 %v3726, %v3752
      %v3787 = vadd.f32 %v3727, %v3752
      %v3788 = vadd.f32 %v3728, %v3752
      %v3789 = vadd.f32 %v3729, %v3752
      %v3790 = vadd.f32 %v3730, %v3752
      %v3791 = vadd.f32 %v3731, %v3752
      %v3792 = vadd.f32 %v3732, %v3752
      %v3793 = vadd.f32 %v3733, %v3752
      %v3794 = vadd.f32 %v3734, %v3752
      %v3795 = vadd.f32 %v3735, %v3752
      %v3796 = vadd.f32 %v3736, %v3752
      %v3797 = vadd.f32 %v3737, %v3752
      %v3798 = vadd.f32 %v3738, %v3752
      %v3799 = vadd.f32 %v3739, %v3752
      %v3800 = vadd.f32 %v3740, %v3752
      %v3801 = vadd.f32 %v3741, %v3752
      %v3802 = vmax.f32 %v3754, 0.0
      %v3803 = vmax.f32 %v3755, 0.0
      %v3804 = vmax.f32 %v3756, 0.0
      %v3805 = vmax.f32 %v3757, 0.0
      %v3806 = vmax.f32 %v3758, 0.0
      %v3807 = vmax.f32 %v3759, 0.0
      %v3808 = vmax.f32 %v3760, 0.0
      %v3809 = vmax.f32 %v3761, 0.0
      %v3810 = vmax.f32 %v3762, 0.0
      %v3811 = vmax.f32 %v3763, 0.0
      %v3812 = vmax.f32 %v3764, 0.0
      %v3813 = vmax.f32 %v3765, 0.0
      %v3814 = vmax.f32 %v3766, 0.0
      %v3815 = vmax.f32 %v3767, 0.0
      %v3816 = vmax.f32 %v3768, 0.0
      %v3817 = vmax.f32 %v3769, 0.0
      %v3818 = vmax.f32 %v3770, 0.0
      %v3819 = vmax.f32 %v3771, 0.0
      %v3820 = vmax.f32 %v3772, 0.0
      %v3821 = vmax.f32 %v3773, 0.0
      %v3822 = vmax.f32 %v3774, 0.0
      %v3823 = vmax.f32 %v3775, 0.0
      %v3824 = vmax.f32 %v3776, 0.0
      %v3825 = vmax.f32 %v3777, 0.0
      %v3826 = vmax.f32 %v3778, 0.0
      %v3827 = vmax.f32 %v3779, 0.0
      %v3828 = vmax.f32 %v3780, 0.0
      %v3829 = vmax.f32 %v3781, 0.0
      %v3830 = vmax.f32 %v3782, 0.0
      %v3831 = vmax.f32 %v3783, 0.0
      %v3832 = vmax.f32 %v3784, 0.0
      %v3833 = vmax.f32 %v3785, 0.0
      %v3834 = vmax.f32 %v3786, 0.0
      %v3835 = vmax.f32 %v3787, 0.0
      %v3836 = vmax.f32 %v3788, 0.0
      %v3837 = vmax.f32 %v3789, 0.0
      %v3838 = vmax.f32 %v3790, 0.0
      %v3839 = vmax.f32 %v3791, 0.0
      %v3840 = vmax.f32 %v3792, 0.0
      %v3841 = vmax.f32 %v3793, 0.0
      %v3842 = vmax.f32 %v3794, 0.0
      %v3843 = vmax.f32 %v3795, 0.0
      %v3844 = vmax.f32 %v3796, 0.0
      %v3845 = vmax.f32 %v3797, 0.0
      %v3846 = vmax.f32 %v3798, 0.0
      %v3847 = vmax.f32 %v3799, 0.0
      %v3848 = vmax.f32 %v3800, 0.0
      %v3849 = vmax.f32 %v3801, 0.0
      %v3850 = vpack.c.bf16 %v3826, %v3802
      %v3851 = vpack.c.bf16 %v3827, %v3803
      %v3852 = vpack.c.bf16 %v3828, %v3804
      %v3853 = vpack.c.bf16 %v3829, %v3805
      %v3854 = vpack.c.bf16 %v3830, %v3806
      %v3855 = vpack.c.bf16 %v3831, %v3807
      %v3856 = vpack.c.bf16 %v3832, %v3808
      %v3857 = vpack.c.bf16 %v3833, %v3809
      %v3858 = vpack.c.bf16 %v3834, %v3810
      %v3859 = vpack.c.bf16 %v3835, %v3811
      %v3860 = vpack.c.bf16 %v3836, %v3812
      %v3861 = vpack.c.bf16 %v3837, %v3813
      %v3862 = vpack.c.bf16 %v3838, %v3814
      %v3863 = vpack.c.bf16 %v3839, %v3815
      %v3864 = vpack.c.bf16 %v3840, %v3816
      %v3865 = vpack.c.bf16 %v3841, %v3817
      %v3866 = vpack.c.bf16 %v3842, %v3818
      %v3867 = vpack.c.bf16 %v3843, %v3819
      %v3868 = vpack.c.bf16 %v3844, %v3820
      %v3869 = vpack.c.bf16 %v3845, %v3821
      %v3870 = vpack.c.bf16 %v3846, %v3822
      %v3871 = vpack.c.bf16 %v3847, %v3823
      %v3872 = vpack.c.bf16 %v3848, %v3824
      %v3873 = vpack.c.bf16 %v3849, %v3825
      %v3898 = vunpack.c.l.b16 %v3850
      %v3899 = vunpack.c.l.b16 %v3851
      %v3900 = vunpack.c.l.b16 %v3852
      %v3901 = vunpack.c.l.b16 %v3853
      %v3902 = vunpack.c.l.b16 %v3854
      %v3903 = vunpack.c.l.b16 %v3855
      %v3904 = vunpack.c.l.b16 %v3856
      %v3905 = vunpack.c.l.b16 %v3857
      %v3906 = vunpack.c.l.b16 %v3858
      %v3907 = vunpack.c.l.b16 %v3859
      %v3908 = vunpack.c.l.b16 %v3860
      %v3909 = vunpack.c.l.b16 %v3861
      %v3910 = vunpack.c.l.b16 %v3862
      %v3911 = vunpack.c.l.b16 %v3863
      %v3912 = vunpack.c.l.b16 %v3864
      %v3913 = vunpack.c.l.b16 %v3865
      %v3914 = vunpack.c.l.b16 %v3866
      %v3915 = vunpack.c.l.b16 %v3867
      %v3916 = vunpack.c.l.b16 %v3868
      %v3917 = vunpack.c.l.b16 %v3869
      %v3918 = vunpack.c.l.b16 %v3870
      %v3919 = vunpack.c.l.b16 %v3871
      %v3920 = vunpack.c.l.b16 %v3872
      %v3921 = vunpack.c.l.b16 %v3873
      %v3922 = vunpack.c.h.b16 %v3850
      %v3923 = vunpack.c.h.b16 %v3851
      %v3924 = vunpack.c.h.b16 %v3852
      %v3925 = vunpack.c.h.b16 %v3853
      %v3926 = vunpack.c.h.b16 %v3854
      %v3927 = vunpack.c.h.b16 %v3855
      %v3928 = vunpack.c.h.b16 %v3856
      %v3929 = vunpack.c.h.b16 %v3857
      %v3930 = vunpack.c.h.b16 %v3858
      %v3931 = vunpack.c.h.b16 %v3859
      %v3932 = vunpack.c.h.b16 %v3860
      %v3933 = vunpack.c.h.b16 %v3861
      %v3934 = vunpack.c.h.b16 %v3862
      %v3935 = vunpack.c.h.b16 %v3863
      %v3936 = vunpack.c.h.b16 %v3864
      %v3937 = vunpack.c.h.b16 %v3865
      %v3938 = vunpack.c.h.b16 %v3866
      %v3939 = vunpack.c.h.b16 %v3867
      %v3940 = vunpack.c.h.b16 %v3868
      %v3941 = vunpack.c.h.b16 %v3869
      %v3942 = vunpack.c.h.b16 %v3870
      %v3943 = vunpack.c.h.b16 %v3871
      %v3944 = vunpack.c.h.b16 %v3872
      %v3945 = vunpack.c.h.b16 %v3873
      %v3946 = vpack.c.b16 %v3899, %v3898
      %v3947 = vpack.c.b16 %v3901, %v3900
      %v3948 = vpack.c.b16 %v3903, %v3902
      %v3949 = vpack.c.b16 %v3905, %v3904
      %v3950 = vpack.c.b16 %v3907, %v3906
      %v3951 = vpack.c.b16 %v3909, %v3908
      %v3952 = vpack.c.b16 %v3911, %v3910
      %v3953 = vpack.c.b16 %v3913, %v3912
      %v3954 = vpack.c.b16 %v3915, %v3914
      %v3955 = vpack.c.b16 %v3917, %v3916
      %v3956 = vpack.c.b16 %v3919, %v3918
      %v3957 = vpack.c.b16 %v3921, %v3920
      %v3958 = vpack.c.b16 %v3923, %v3922
      %v3959 = vpack.c.b16 %v3925, %v3924
      %v3960 = vpack.c.b16 %v3927, %v3926
      %v3961 = vpack.c.b16 %v3929, %v3928
      %v3962 = vpack.c.b16 %v3931, %v3930
      %v3963 = vpack.c.b16 %v3933, %v3932
      %v3964 = vpack.c.b16 %v3935, %v3934
      %v3965 = vpack.c.b16 %v3937, %v3936
      %v3966 = vpack.c.b16 %v3939, %v3938
      %v3967 = vpack.c.b16 %v3941, %v3940
      %v3968 = vpack.c.b16 %v3943, %v3942
      %v3969 = vpack.c.b16 %v3945, %v3944
      %3994 = vst [vmem:[%s170] sm:$0xff] %v3946
      %3995 = vst [vmem:[%s170 + $0x8] sm:$0xff] %v3947
      %3996 = vst [vmem:[%s170 + $0x10] sm:$0xff] %v3948
      %3997 = vst [vmem:[%s170 + $0x18] sm:$0xff] %v3949
      %3998 = vst [vmem:[%s170 + $0x20] sm:$0xff] %v3950
      %3999 = vst [vmem:[%s170 + $0x28] sm:$0xff] %v3951
      %4000 = vst [vmem:[%s170 + $0x30] sm:$0xff] %v3952
      %4001 = vst [vmem:[%s170 + $0x38] sm:$0xff] %v3953
      %4002 = vst [vmem:[%s170 + $0x40] sm:$0xff] %v3954
      %4003 = vst [vmem:[%s170 + $0x48] sm:$0xff] %v3955
      %4004 = vst [vmem:[%s170 + $0x50] sm:$0xff] %v3956
      %vm4005 = vcmask 1043456
      %vm4006 = vcmask 662532
      %vm4007 = vmor %vm4006, %vm4005
      %4008 = vst.msk [vmem:[%s170 + $0x58] sm:$0xff] %vm4007, %v3957
      %4009 = vst [vmem:[%s170 + $0x60] sm:$0xff] %v3958
      %4010 = vst [vmem:[%s170 + $0x68] sm:$0xff] %v3959
      %4011 = vst [vmem:[%s170 + $0x70] sm:$0xff] %v3960
      %4012 = vst [vmem:[%s170 + $0x78] sm:$0xff] %v3961
      %4013 = vst [vmem:[%s170 + $0x80] sm:$0xff] %v3962
      %4014 = vst [vmem:[%s170 + $0x88] sm:$0xff] %v3963
      %4015 = vst [vmem:[%s170 + $0x90] sm:$0xff] %v3964
      %4016 = vst [vmem:[%s170 + $0x98] sm:$0xff] %v3965
      %4017 = vst [vmem:[%s170 + $0xa0] sm:$0xff] %v3966
      %4018 = vst [vmem:[%s170 + $0xa8] sm:$0xff] %v3967
      %4019 = vst [vmem:[%s170 + $0xb0] sm:$0xff] %v3968
      %4020 = vst.msk [vmem:[%s170 + $0xb8] sm:$0xff] %vm4007, %v3969
      %p4021 = scmp.lt.s32.totalorder %s14, 1
      %s4022 = scalar_select %p4021, %s14, 1
      %s4023 = smul.addr %s4022, 48
      %s4024 = smul.addr %s4023, 4
      %s4025 = scalar_lea.vmem %s3, %s4024
      // Predicated region
      $region33: #{_lambda_.4} parent=31 // pred_check
        %p4026 = pneg %p100
      $region34: #{_lambda_.4} parent=31 // pred_check_branch
        %4028 = sbr.rel (%p4026) target = $region36
      $region35: #{_lambda_.4} parent=31 // pred_region
        _
      $region36: #{_lambda_.4} parent=31 // pred_fallthru
        _
    $region32: #{_lambda_.4} parent=5 // pred_fallthru
      _
    %p4029 = scmp.le.s32.totalorder 2, %s9
    // Predicated region
    $region37: #{_lambda_.4} parent=5 // pred_check
      %p4030 = pneg %p4029
    $region38: #{_lambda_.4} parent=5 // pred_check_branch
      %4032 = sbr.rel (%p4030) target = $region40
    $region39: #{_lambda_.4} parent=5 // pred_region
      %s4033 = ssub.s32 %s9, 2
      // Predicated region
      $region41: #{_lambda_.4} parent=39 // pred_check
        %p4034 = pneg %p106
      $region42: #{_lambda_.4} parent=39 // pred_check_branch
        %4036 = sbr.rel (%p4034) target = $region44
      $region43: #{_lambda_.4} parent=39 // pred_region
        %p4037 = scmp.lt.s32.totalorder %s15, 1
        %s4038 = scalar_select %p4037, %s15, 1
        %s4039 = smul.addr %s4038, 48
        %s4040 = smul.addr %s4039, 4
        %s4041 = scalar_lea.vmem %s3, %s4040
      $region44: #{_lambda_.4} parent=39 // pred_fallthru
        _
    $region40: #{_lambda_.4} parent=5 // pred_fallthru
      _
  $region6: #{_lambda_.4} parent=0 // loop_footer
    %s13 = sadd.s32 1, %s9
  $region7: #{_lambda_.4} parent=0 // loop_footer_branch
    %8 = sbr.rel target = $region3
  $region8: #{_lambda_.4} parent=0 // loop_exit
    _

// kernel: _lambda_.5
$region0: #{_lambda_.5}
  #allocation0 [shape = 'u32[]', space=smem, size = 0x4, offset = 0x4, fixed_abs, tag = 'smem constant byte address 0x4 - core index']
  #allocation1 [shape = 'u32[144,128]{1,0:T(1,128)}', space=vmem, size = 0x12000, scoped, tag = 'internal scratch']
  %s0 = inlined_call_operand.vmem [shape: bf16[2,4,144,169], index: 0, kind: input, shape index: {}]
  %s1 = inlined_call_operand.vmem [shape: bf16[32,144], index: 1, kind: input, shape index: {}]
  %s2 = inlined_call_operand.vmem [shape: f32[32,1], index: 2, kind: input, shape index: {}]
  %s3 = inlined_call_operand.vmem [shape: bf16[2,32,169], index: 3, kind: output, shape index: {}]
  %s4 = sld [smem:[#allocation0]]
  $region45: #{_lambda_.5} parent=0
    _
  %s6 = ssub.s32 1, %s4
  %s7 = scalar_select 0, %s6, %s4
  loop: start=0, step=1, limit=4
  $region2: #{_lambda_.5} parent=0 // loop_pre_header
    _
  $region3: #{_lambda_.5} parent=0 // loop_header
    %s9 = sphi 0, %s13
    %p10 = scmp.ge.s32.totalorder %s9, 4
    %s19 = sphi 0, %s21
    %s22 = sphi 0, %s19
    %s23 = sphi 0, %s22
    %s39 = sphi 0, %s23
    %s43 = sphi 0, %s43
    %s45 = sphi 0, %s43
    %s46 = sphi 0, %s45
    %s60 = sphi 0, %s46
    %s64 = sphi 0, %s64
    %s66 = sphi 0, %s64
    %s67 = sphi 0, %s66
    %s81 = sphi 0, %s67
    %s87 = sphi 0, %s89
    %s90 = sphi 0, %s87
    %s91 = sphi 0, %s90
    %s107 = sphi 0, %s91
  $region4: #{_lambda_.5} parent=0 // loop_header_branch
    %12 = sbr.rel (%p10) target = $region8
  $region5: #{_lambda_.5} parent=0 // loop_body
    %s14 = ssub.s32 %s9, 1
    %s15 = ssub.s32 %s9, 2
    %s16 = sadd.s32 %s9, 1
    %s17 = ssub.s32 %s9, %s16
    %p18 = scmp.eq.s32.totalorder %s17, 0
    %s20 = sadd.s32 %s19, 1
    %s21 = scalar_select %p18, %s19, %s20
    %p24 = pneg %p18
    %p25 = scmp.eq.s32.totalorder %s9, 1
    %p26 = por %p24, %p25
    %p27 = scmp.ne.s32.totalorder %s19, %s22
    %p28 = scmp.eq.s32.totalorder %s9, 0
    %p29 = por %p27, %p28
    %p30 = scmp.ne.s32.totalorder %s19, %s22
    %p31 = scmp.eq.s32.totalorder %s14, 1
    %p32 = por %p30, %p31
    %p33 = scmp.ne.s32.totalorder %s22, %s23
    %p34 = scmp.eq.s32.totalorder %s14, 0
    %p35 = por %p33, %p34
    %p36 = scmp.ne.s32.totalorder %s22, %s23
    %p37 = scmp.eq.s32.totalorder %s15, 1
    %p38 = por %p36, %p37
    %p40 = scmp.ne.s32.totalorder %s23, %s39
    %p41 = scmp.eq.s32.totalorder %s15, 0
    %p42 = por %p40, %p41
    %s44 = sadd.s32 %s43, 1
    %p47 = scmp.eq.s32.totalorder %s9, 1
    %p48 = scmp.ne.s32.totalorder %s43, %s45
    %p49 = scmp.eq.s32.totalorder %s9, 0
    %p50 = por %p48, %p49
    %p51 = scmp.ne.s32.totalorder %s43, %s45
    %p52 = scmp.eq.s32.totalorder %s14, 1
    %p53 = por %p51, %p52
    %p54 = scmp.ne.s32.totalorder %s45, %s46
    %p55 = scmp.eq.s32.totalorder %s14, 0
    %p56 = por %p54, %p55
    %p57 = scmp.ne.s32.totalorder %s45, %s46
    %p58 = scmp.eq.s32.totalorder %s15, 1
    %p59 = por %p57, %p58
    %p61 = scmp.ne.s32.totalorder %s46, %s60
    %p62 = scmp.eq.s32.totalorder %s15, 0
    %p63 = por %p61, %p62
    %s65 = sadd.s32 %s64, 1
    %p68 = scmp.eq.s32.totalorder %s9, 1
    %p69 = scmp.ne.s32.totalorder %s64, %s66
    %p70 = scmp.eq.s32.totalorder %s9, 0
    %p71 = por %p69, %p70
    %p72 = scmp.ne.s32.totalorder %s64, %s66
    %p73 = scmp.eq.s32.totalorder %s14, 1
    %p74 = por %p72, %p73
    %p75 = scmp.ne.s32.totalorder %s66, %s67
    %p76 = scmp.eq.s32.totalorder %s14, 0
    %p77 = por %p75, %p76
    %p78 = scmp.ne.s32.totalorder %s66, %s67
    %p79 = scmp.eq.s32.totalorder %s15, 1
    %p80 = por %p78, %p79
    %p82 = scmp.ne.s32.totalorder %s67, %s81
    %p83 = scmp.eq.s32.totalorder %s15, 0
    %p84 = por %p82, %p83
    %s85 = ssub.s32 %s9, %s16
    %p86 = scmp.eq.s32.totalorder %s85, 0
    %s88 = sadd.s32 %s87, 1
    %s89 = scalar_select %p86, %s87, %s88
    %p92 = pneg %p86
    %p93 = scmp.eq.s32.totalorder %s9, 1
    %p94 = por %p92, %p93
    %p95 = scmp.ne.s32.totalorder %s87, %s90
    %p96 = scmp.eq.s32.totalorder %s9, 0
    %p97 = por %p95, %p96
    %p98 = scmp.ne.s32.totalorder %s87, %s90
    %p99 = scmp.eq.s32.totalorder %s14, 1
    %p100 = por %p98, %p99
    %p101 = scmp.ne.s32.totalorder %s90, %s91
    %p102 = scmp.eq.s32.totalorder %s14, 0
    %p103 = por %p101, %p102
    %p104 = scmp.ne.s32.totalorder %s90, %s91
    %p105 = scmp.eq.s32.totalorder %s15, 1
    %p106 = por %p104, %p105
    %p108 = scmp.ne.s32.totalorder %s91, %s107
    %p109 = scmp.eq.s32.totalorder %s15, 0
    %p110 = por %p108, %p109
    %p111 = scmp.le.s32.totalorder 1, %s9
    %p112 = scmp.lt.s32.totalorder %s9, 3
    %p113 = pnand %p111, %p112
    %p114 = pneg %p113
    // Predicated region
    $region9: #{_lambda_.5} parent=5 // pred_check
      _
    $region10: #{_lambda_.5} parent=5 // pred_check_branch
      %116 = sbr.rel (%p113) target = $region12
    $region11: #{_lambda_.5} parent=5 // pred_region
      %s117 = ssub.s32 %s9, 1
      // Predicated region
      $region13: #{_lambda_.5} parent=11 // pred_check
        %p118 = pneg %p56
      $region14: #{_lambda_.5} parent=11 // pred_check_branch
        %120 = sbr.rel (%p118) target = $region16
      $region15: #{_lambda_.5} parent=11 // pred_region
        _
      $region16: #{_lambda_.5} parent=11 // pred_fallthru
        _
      // Predicated region
      $region17: #{_lambda_.5} parent=11 // pred_check
        %p121 = pneg %p77
      $region18: #{_lambda_.5} parent=11 // pred_check_branch
        %123 = sbr.rel (%p121) target = $region20
      $region19: #{_lambda_.5} parent=11 // pred_region
        _
      $region20: #{_lambda_.5} parent=11 // pred_fallthru
        _
    $region12: #{_lambda_.5} parent=5 // pred_fallthru
      _
    %p124 = scmp.lt.s32.totalorder %s9, 2
    // Predicated region
    $region21: #{_lambda_.5} parent=5 // pred_check
      %p125 = pneg %p124
    $region22: #{_lambda_.5} parent=5 // pred_check_branch
      %127 = sbr.rel (%p125) target = $region24
    $region23: #{_lambda_.5} parent=5 // pred_region
      // Predicated region
      $region25: #{_lambda_.5} parent=23 // pred_check
        %p128 = pneg %p29
      $region26: #{_lambda_.5} parent=23 // pred_check_branch
        %130 = sbr.rel (%p128) target = $region28
      $region27: #{_lambda_.5} parent=23 // pred_region
        %p131 = scmp.lt.s32.totalorder %s9, 1
        %s132 = scalar_select %p131, %s9, 1
        %s133 = smul.addr %s132, 144
        %s134 = smul.addr %s133, 4
        %s135 = scalar_lea.vmem %s0, %s134
      $region28: #{_lambda_.5} parent=23 // pred_fallthru
        _
    $region24: #{_lambda_.5} parent=5 // pred_fallthru
      _
    %p136 = scmp.le.s32.totalorder 1, %s9
    %p137 = scmp.lt.s32.totalorder %s9, 3
    %p138 = pnand %p136, %p137
    %p139 = pneg %p138
    // Predicated region
    $region29: #{_lambda_.5} parent=5 // pred_check
      _
    $region30: #{_lambda_.5} parent=5 // pred_check_branch
      %141 = sbr.rel (%p138) target = $region32
    $region31: #{_lambda_.5} parent=5 // pred_region
      %s142 = ssub.s32 %s9, 1
      %p143 = scmp.lt.s32.totalorder %s14, 1
      %s144 = scalar_select %p143, %s14, 1
      %s145 = smul.addr %s144, 144
      %s146 = smul.addr %s145, 4
      %s147 = scalar_lea.vmem %s0, %s146
      %p148 = pneg %p35
      %p149 = pneg %p32
      %p150 = pneg %p56
      %p151 = pneg %p53
      %p152 = pneg %p77
      %p153 = pneg %p74
      %p154 = pneg %p103
      %p155 = pneg %p100
      %p156 = scmp.lt.s32.totalorder %s14, 1
      %s157 = scalar_select %p156, %s14, 1
      %s158 = smul.addr %s157, 8
      %s159 = smul.addr %s158, 4
      %s160 = scalar_lea.vmem %s3, %s159
      %p161 = scmp.lt.s32.totalorder %s14, 1
      %s162 = scalar_select %p161, %s14, 1
      %s163 = smul.addr %s162, 144
      %s164 = smul.addr %s163, 4
      %s165 = scalar_lea.vmem %s0, %s164
      %p166 = scmp.lt.s32.totalorder %s14, 1
      %s167 = scalar_select %p166, %s14, 1
      %s168 = smul.addr %s167, 8
      %s169 = smul.addr %s168, 4
      %s170 = scalar_lea.vmem %s3, %s169
      %v172 = vld [vmem:[%s1] sm:$0xff]
      %v173 = vld [vmem:[%s1 + $0x8] sm:$0xff]
      %v174 = vld [vmem:[%s1 + $0x10] sm:$0xff]
      %v175 = vld [vmem:[%s1 + $0x18] sm:$0xff]
      %v176 = vld [vmem:[%s165] sm:$0xff]
      %v177 = vld [vmem:[%s165 + $0x8] sm:$0xff]
      %v178 = vld [vmem:[%s165 + $0x10] sm:$0xff]
      %v179 = vld [vmem:[%s165 + $0x18] sm:$0xff]
      %v180 = vld [vmem:[%s165 + $0x20] sm:$0xff]
      %v181 = vld [vmem:[%s165 + $0x28] sm:$0xff]
      %v182 = vld [vmem:[%s165 + $0x30] sm:$0xff]
      %v183 = vld [vmem:[%s165 + $0x38] sm:$0xff]
      %v184 = vld [vmem:[%s165 + $0x40] sm:$0xff]
      %v185 = vld [vmem:[%s165 + $0x48] sm:$0xff]
      %v186 = vld [vmem:[%s165 + $0x50] sm:$0xff]
      %v187 = vld [vmem:[%s165 + $0x58] sm:$0xff]
      %v188 = vld [vmem:[%s165 + $0x60] sm:$0xff]
      %v189 = vld [vmem:[%s165 + $0x68] sm:$0xff]
      %v190 = vld [vmem:[%s165 + $0x70] sm:$0xff]
      %v191 = vld [vmem:[%s165 + $0x78] sm:$0xff]
      %v192 = vld [vmem:[%s165 + $0x80] sm:$0xff]
      %v193 = vld [vmem:[%s165 + $0x88] sm:$0xff]
      %v198 = vunpack.c.l.b16 %v172
      %v199 = vunpack.c.h.b16 %v172
      %v200 = vunpack.c.l.b16 %v173
      %v201 = vunpack.c.h.b16 %v173
      %v202 = vunpack.c.l.b16 %v174
      %v203 = vunpack.c.h.b16 %v174
      %v204 = vunpack.c.l.b16 %v175
      %v205 = vunpack.c.h.b16 %v175
      %v206 = vpack.c.b16 %v200, %v198
      %v207 = vpack.c.b16 %v201, %v199
      %v208 = vpack.c.b16 %v204, %v202
      %v209 = vpack.c.b16 %v205, %v203
      %v230 = vunpack.c.l.b16 %v176
      %v231 = vunpack.c.h.b16 %v176
      %v232 = vunpack.c.l.b16 %v177
      %v233 = vunpack.c.h.b16 %v177
      %v234 = vunpack.c.l.b16 %v178
      %v235 = vunpack.c.h.b16 %v178
      %v236 = vunpack.c.l.b16 %v179
      %v237 = vunpack.c.h.b16 %v179
      %v238 = vunpack.c.l.b16 %v180
      %v239 = vunpack.c.h.b16 %v180
      %v240 = vunpack.c.l.b16 %v181
      %v241 = vunpack.c.h.b16 %v181
      %v242 = vunpack.c.l.b16 %v182
      %v243 = vunpack.c.h.b16 %v182
      %v244 = vunpack.c.l.b16 %v183
      %v245 = vunpack.c.h.b16 %v183
      %v246 = vunpack.c.l.b16 %v184
      %v247 = vunpack.c.h.b16 %v184
      %v248 = vunpack.c.l.b16 %v185
      %v249 = vunpack.c.h.b16 %v185
      %v250 = vunpack.c.l.b16 %v186
      %v251 = vunpack.c.h.b16 %v186
      %v252 = vunpack.c.l.b16 %v187
      %v253 = vunpack.c.h.b16 %v187
      %v254 = vunpack.c.l.b16 %v188
      %v255 = vunpack.c.h.b16 %v188
      %v256 = vunpack.c.l.b16 %v189
      %v257 = vunpack.c.h.b16 %v189
      %v258 = vunpack.c.l.b16 %v190
      %v259 = vunpack.c.h.b16 %v190
      %v260 = vunpack.c.l.b16 %v191
      %v261 = vunpack.c.h.b16 %v191
      %v262 = vunpack.c.l.b16 %v192
      %v263 = vunpack.c.h.b16 %v192
      %v264 = vunpack.c.l.b16 %v193
      %v265 = vunpack.c.h.b16 %v193
      %v266 = vpack.c.b16 %v232, %v230
      %v267 = vpack.c.b16 %v233, %v231
      %v268 = vpack.c.b16 %v236, %v234
      %v269 = vpack.c.b16 %v237, %v235
      %v270 = vpack.c.b16 %v240, %v238
      %v271 = vpack.c.b16 %v241, %v239
      %v272 = vpack.c.b16 %v244, %v242
      %v273 = vpack.c.b16 %v245, %v243
      %v274 = vpack.c.b16 %v248, %v246
      %v275 = vpack.c.b16 %v249, %v247
      %v276 = vpack.c.b16 %v252, %v250
      %v277 = vpack.c.b16 %v253, %v251
      %v278 = vpack.c.b16 %v256, %v254
      %v279 = vpack.c.b16 %v257, %v255
      %v280 = vpack.c.b16 %v260, %v258
      %v281 = vpack.c.b16 %v261, %v259
      %v282 = vpack.c.b16 %v264, %v262
      %v283 = vpack.c.b16 %v265, %v263
      %vm302 = vcmask 130048
      %v304 = vsel %vm302, %v207, 0
      %v307 = vsel %vm302, %v209, 0
      %309 = vmatprep.subr.bf16.mxu0 %v267
      %310 = vmatpush1.bf16.msra.mxu0 %v266
      %311 = vmatprep.subr.bf16.mxu0 %v269
      %312 = vmatpush1.bf16.msra.mxu0 %v268
      %313 = vmatprep.subr.bf16.mxu0 %v271
      %314 = vmatpush1.bf16.msra.mxu0 %v270
      %315 = vmatprep.subr.bf16.mxu0 %v273
      %316 = vmatpush1.bf16.msra.mxu0 %v272
      %317 = vmatprep.subr.bf16.mxu0 %v275
      %318 = vmatpush1.bf16.msra.mxu0 %v274
      %319 = vmatprep.subr.bf16.mxu0 %v277
      %320 = vmatpush1.bf16.msra.mxu0 %v276
      %321 = vmatprep.subr.bf16.mxu0 %v279
      %322 = vmatpush1.bf16.msra.mxu0 %v278
      %323 = vmatprep.subr.bf16.mxu0 %v281
      %324 = vmatpush1.bf16.msra.mxu0 %v280
      %325 = vmatprep.subr.bf16.mxu0 %v283
      %326 = vmatpush1.bf16.msra.mxu0 %v282
      %327 = vmatprep.subr.bf16.mxu0 0
      %328 = vmatpush1.bf16.msra.mxu0 0
      %329 = vmatprep.subr.bf16.mxu0 0
      %330 = vmatpush1.bf16.msra.mxu0 0
      %331 = vmatprep.subr.bf16.mxu0 0
      %332 = vmatpush1.bf16.msra.mxu0 0
      %333 = vmatprep.subr.bf16.mxu0 0
      %334 = vmatpush1.bf16.msra.mxu0 0
      %335 = vmatprep.subr.bf16.mxu0 0
      %336 = vmatpush1.bf16.msra.mxu0 0
      %337 = vmatprep.subr.bf16.mxu0 0
      %338 = vmatpush1.bf16.msra.mxu0 0
      %339 = vmatprep.subr.bf16.mxu0 0
      %340 = vmatpush1.bf16.msra.mxu0 0
      %341 = vmatprep.mubr.bf16.mxu0 %v304
      %342 = vmatmul.mubr.bf16.gmra.mrb[0].mxu0 %v206
      %v343 = vpop.f32.mrb[0].mxu0
      %v344 = vadd.f32 0.0, %v343
      %v345 = vpop.f32.mrb[0].mxu0
      %v346 = vadd.f32 0.0, %v345
      %v347 = vpop.f32.mrb[0].mxu0
      %v348 = vadd.f32 0.0, %v347
      %v349 = vpop.f32.mrb[0].mxu0
      %v350 = vadd.f32 0.0, %v349
      %351 = vmatprep.mubr.bf16.mxu0 %v307
      %352 = vmatmul.mubr.bf16.gmra.mrb[0].mxu0 %v208
      %v353 = vpop.f32.mrb[0].mxu0
      %v354 = vadd.f32 0.0, %v353
      %v355 = vpop.f32.mrb[0].mxu0
      %v356 = vadd.f32 0.0, %v355
      %v357 = vpop.f32.mrb[0].mxu0
      %v358 = vadd.f32 0.0, %v357
      %v359 = vpop.f32.mrb[0].mxu0
      %v360 = vadd.f32 0.0, %v359
      %361 = vdwg.mxu0
      %s362 = scalar_lea.vmem %s165, 144
      %v363 = vld [vmem:[%s362] sm:$0xff]
      %v364 = vld [vmem:[%s362 + $0x8] sm:$0xff]
      %v365 = vld [vmem:[%s362 + $0x10] sm:$0xff]
      %v366 = vld [vmem:[%s362 + $0x18] sm:$0xff]
      %v367 = vld [vmem:[%s362 + $0x20] sm:$0xff]
      %v368 = vld [vmem:[%s362 + $0x28] sm:$0xff]
      %v369 = vld [vmem:[%s362 + $0x30] sm:$0xff]
      %v370 = vld [vmem:[%s362 + $0x38] sm:$0xff]
      %v371 = vld [vmem:[%s362 + $0x40] sm:$0xff]
      %v372 = vld [vmem:[%s362 + $0x48] sm:$0xff]
      %v373 = vld [vmem:[%s362 + $0x50] sm:$0xff]
      %v374 = vld [vmem:[%s362 + $0x58] sm:$0xff]
      %v375 = vld [vmem:[%s362 + $0x60] sm:$0xff]
      %v376 = vld [vmem:[%s362 + $0x68] sm:$0xff]
      %v377 = vld [vmem:[%s362 + $0x70] sm:$0xff]
      %v378 = vld [vmem:[%s362 + $0x78] sm:$0xff]
      %v379 = vld [vmem:[%s362 + $0x80] sm:$0xff]
      %v380 = vld [vmem:[%s362 + $0x88] sm:$0xff]
      %v399 = vunpack.c.l.b16 %v363
      %v400 = vunpack.c.h.b16 %v363
      %v401 = vunpack.c.l.b16 %v364
      %v402 = vunpack.c.h.b16 %v364
      %v403 = vunpack.c.l.b16 %v365
      %v404 = vunpack.c.h.b16 %v365
      %v405 = vunpack.c.l.b16 %v366
      %v406 = vunpack.c.h.b16 %v366
      %v407 = vunpack.c.l.b16 %v367
      %v408 = vunpack.c.h.b16 %v367
      %v409 = vunpack.c.l.b16 %v368
      %v410 = vunpack.c.h.b16 %v368
      %v411 = vunpack.c.l.b16 %v369
      %v412 = vunpack.c.h.b16 %v369
      %v413 = vunpack.c.l.b16 %v370
      %v414 = vunpack.c.h.b16 %v370
      %v415 = vunpack.c.l.b16 %v371
      %v416 = vunpack.c.h.b16 %v371
      %v417 = vunpack.c.l.b16 %v372
      %v418 = vunpack.c.h.b16 %v372
      %v419 = vunpack.c.l.b16 %v373
      %v420 = vunpack.c.h.b16 %v373
      %v421 = vunpack.c.l.b16 %v374
      %v422 = vunpack.c.h.b16 %v374
      %v423 = vunpack.c.l.b16 %v375
      %v424 = vunpack.c.h.b16 %v375
      %v425 = vunpack.c.l.b16 %v376
      %v426 = vunpack.c.h.b16 %v376
      %v427 = vunpack.c.l.b16 %v377
      %v428 = vunpack.c.h.b16 %v377
      %v429 = vunpack.c.l.b16 %v378
      %v430 = vunpack.c.h.b16 %v378
      %v431 = vunpack.c.l.b16 %v379
      %v432 = vunpack.c.h.b16 %v379
      %v433 = vunpack.c.l.b16 %v380
      %v434 = vunpack.c.h.b16 %v380
      %v435 = vpack.c.b16 %v401, %v399
      %v436 = vpack.c.b16 %v402, %v400
      %v437 = vpack.c.b16 %v405, %v403
      %v438 = vpack.c.b16 %v406, %v404
      %v439 = vpack.c.b16 %v409, %v407
      %v440 = vpack.c.b16 %v410, %v408
      %v441 = vpack.c.b16 %v413, %v411
      %v442 = vpack.c.b16 %v414, %v412
      %v443 = vpack.c.b16 %v417, %v415
      %v444 = vpack.c.b16 %v418, %v416
      %v445 = vpack.c.b16 %v421, %v419
      %v446 = vpack.c.b16 %v422, %v420
      %v447 = vpack.c.b16 %v425, %v423
      %v448 = vpack.c.b16 %v426, %v424
      %v449 = vpack.c.b16 %v429, %v427
      %v450 = vpack.c.b16 %v430, %v428
      %v451 = vpack.c.b16 %v433, %v431
      %v452 = vpack.c.b16 %v434, %v432
      %471 = vmatprep.subr.bf16.mxu0 %v436
      %472 = vmatpush1.bf16.msra.mxu0 %v435
      %473 = vmatprep.subr.bf16.mxu0 %v438
      %474 = vmatpush1.bf16.msra.mxu0 %v437
      %475 = vmatprep.subr.bf16.mxu0 %v440
      %476 = vmatpush1.bf16.msra.mxu0 %v439
      %477 = vmatprep.subr.bf16.mxu0 %v442
      %478 = vmatpush1.bf16.msra.mxu0 %v441
      %479 = vmatprep.subr.bf16.mxu0 %v444
      %480 = vmatpush1.bf16.msra.mxu0 %v443
      %481 = vmatprep.subr.bf16.mxu0 %v446
      %482 = vmatpush1.bf16.msra.mxu0 %v445
      %483 = vmatprep.subr.bf16.mxu0 %v448
      %484 = vmatpush1.bf16.msra.mxu0 %v447
      %485 = vmatprep.subr.bf16.mxu0 %v450
      %486 = vmatpush1.bf16.msra.mxu0 %v449
      %487 = vmatprep.subr.bf16.mxu0 %v452
      %488 = vmatpush1.bf16.msra.mxu0 %v451
      %489 = vmatprep.subr.bf16.mxu0 0
      %490 = vmatpush1.bf16.msra.mxu0 0
      %491 = vmatprep.subr.bf16.mxu0 0
      %492 = vmatpush1.bf16.msra.mxu0 0
      %493 = vmatprep.subr.bf16.mxu0 0
      %494 = vmatpush1.bf16.msra.mxu0 0
      %495 = vmatprep.subr.bf16.mxu0 0
      %496 = vmatpush1.bf16.msra.mxu0 0
      %497 = vmatprep.subr.bf16.mxu0 0
      %498 = vmatpush1.bf16.msra.mxu0 0
      %499 = vmatprep.subr.bf16.mxu0 0
      %500 = vmatpush1.bf16.msra.mxu0 0
      %501 = vmatprep.subr.bf16.mxu0 0
      %502 = vmatpush1.bf16.msra.mxu0 0
      %503 = vmatprep.mubr.bf16.mxu0 %v304
      %504 = vmatmul.mubr.bf16.gmra.mrb[0].mxu0 %v206
      %v505 = vpop.f32.mrb[0].mxu0
      %v506 = vadd.f32 0.0, %v505
      %v507 = vpop.f32.mrb[0].mxu0
      %v508 = vadd.f32 0.0, %v507
      %v509 = vpop.f32.mrb[0].mxu0
      %v510 = vadd.f32 0.0, %v509
      %v511 = vpop.f32.mrb[0].mxu0
      %v512 = vadd.f32 0.0, %v511
      %513 = vmatprep.mubr.bf16.mxu0 %v307
      %514 = vmatmul.mubr.bf16.gmra.mrb[0].mxu0 %v208
      %v515 = vpop.f32.mrb[0].mxu0
      %v516 = vadd.f32 0.0, %v515
      %v517 = vpop.f32.mrb[0].mxu0
      %v518 = vadd.f32 0.0, %v517
      %v519 = vpop.f32.mrb[0].mxu0
      %v520 = vadd.f32 0.0, %v519
      %v521 = vpop.f32.mrb[0].mxu0
      %v522 = vadd.f32 0.0, %v521
      %523 = vdwg.mxu0
      %v524 = vmax.f32 %v344, %v506
      %v525 = vmax.f32 %v346, %v508
      %v526 = vmax.f32 %v348, %v510
      %v527 = vmax.f32 %v350, %v512
      %v528 = vmax.f32 %v354, %v516
      %v529 = vmax.f32 %v356, %v518
      %v530 = vmax.f32 %v358, %v520
      %v531 = vmax.f32 %v360, %v522
      %s532 = scalar_lea.vmem %s165, 288
      %v533 = vld [vmem:[%s532] sm:$0xff]
      %v534 = vld [vmem:[%s532 + $0x8] sm:$0xff]
      %v535 = vld [vmem:[%s532 + $0x10] sm:$0xff]
      %v536 = vld [vmem:[%s532 + $0x18] sm:$0xff]
      %v537 = vld [vmem:[%s532 + $0x20] sm:$0xff]
      %v538 = vld [vmem:[%s532 + $0x28] sm:$0xff]
      %v539 = vld [vmem:[%s532 + $0x30] sm:$0xff]
      %v540 = vld [vmem:[%s532 + $0x38] sm:$0xff]
      %v541 = vld [vmem:[%s532 + $0x40] sm:$0xff]
      %v542 = vld [vmem:[%s532 + $0x48] sm:$0xff]
      %v543 = vld [vmem:[%s532 + $0x50] sm:$0xff]
      %v544 = vld [vmem:[%s532 + $0x58] sm:$0xff]
      %v545 = vld [vmem:[%s532 + $0x60] sm:$0xff]
      %v546 = vld [vmem:[%s532 + $0x68] sm:$0xff]
      %v547 = vld [vmem:[%s532 + $0x70] sm:$0xff]
      %v548 = vld [vmem:[%s532 + $0x78] sm:$0xff]
      %v549 = vld [vmem:[%s532 + $0x80] sm:$0xff]
      %v550 = vld [vmem:[%s532 + $0x88] sm:$0xff]
      %v569 = vunpack.c.l.b16 %v533
      %v570 = vunpack.c.h.b16 %v533
      %v571 = vunpack.c.l.b16 %v534
      %v572 = vunpack.c.h.b16 %v534
      %v573 = vunpack.c.l.b16 %v535
      %v574 = vunpack.c.h.b16 %v535
      %v575 = vunpack.c.l.b16 %v536
      %v576 = vunpack.c.h.b16 %v536
      %v577 = vunpack.c.l.b16 %v537
      %v578 = vunpack.c.h.b16 %v537
      %v579 = vunpack.c.l.b16 %v538
      %v580 = vunpack.c.h.b16 %v538
      %v581 = vunpack.c.l.b16 %v539
      %v582 = vunpack.c.h.b16 %v539
      %v583 = vunpack.c.l.b16 %v540
      %v584 = vunpack.c.h.b16 %v540
      %v585 = vunpack.c.l.b16 %v541
      %v586 = vunpack.c.h.b16 %v541
      %v587 = vunpack.c.l.b16 %v542
      %v588 = vunpack.c.h.b16 %v542
      %v589 = vunpack.c.l.b16 %v543
      %v590 = vunpack.c.h.b16 %v543
      %v591 = vunpack.c.l.b16 %v544
      %v592 = vunpack.c.h.b16 %v544
      %v593 = vunpack.c.l.b16 %v545
      %v594 = vunpack.c.h.b16 %v545
      %v595 = vunpack.c.l.b16 %v546
      %v596 = vunpack.c.h.b16 %v546
      %v597 = vunpack.c.l.b16 %v547
      %v598 = vunpack.c.h.b16 %v547
      %v599 = vunpack.c.l.b16 %v548
      %v600 = vunpack.c.h.b16 %v548
      %v601 = vunpack.c.l.b16 %v549
      %v602 = vunpack.c.h.b16 %v549
      %v603 = vunpack.c.l.b16 %v550
      %v604 = vunpack.c.h.b16 %v550
      %v605 = vpack.c.b16 %v571, %v569
      %v606 = vpack.c.b16 %v572, %v570
      %v607 = vpack.c.b16 %v575, %v573
      %v608 = vpack.c.b16 %v576, %v574
      %v609 = vpack.c.b16 %v579, %v577
      %v610 = vpack.c.b16 %v580, %v578
      %v611 = vpack.c.b16 %v583, %v581
      %v612 = vpack.c.b16 %v584, %v582
      %v613 = vpack.c.b16 %v587, %v585
      %v614 = vpack.c.b16 %v588, %v586
      %v615 = vpack.c.b16 %v591, %v589
      %v616 = vpack.c.b16 %v592, %v590
      %v617 = vpack.c.b16 %v595, %v593
      %v618 = vpack.c.b16 %v596, %v594
      %v619 = vpack.c.b16 %v599, %v597
      %v620 = vpack.c.b16 %v600, %v598
      %v621 = vpack.c.b16 %v603, %v601
      %v622 = vpack.c.b16 %v604, %v602
      %641 = vmatprep.subr.bf16.mxu0 %v606
      %642 = vmatpush1.bf16.msra.mxu0 %v605
      %643 = vmatprep.subr.bf16.mxu0 %v608
      %644 = vmatpush1.bf16.msra.mxu0 %v607
      %645 = vmatprep.subr.bf16.mxu0 %v610
      %646 = vmatpush1.bf16.msra.mxu0 %v609
      %647 = vmatprep.subr.bf16.mxu0 %v612
      %648 = vmatpush1.bf16.msra.mxu0 %v611
      %649 = vmatprep.subr.bf16.mxu0 %v614
      %650 = vmatpush1.bf16.msra.mxu0 %v613
      %651 = vmatprep.subr.bf16.mxu0 %v616
      %652 = vmatpush1.bf16.msra.mxu0 %v615
      %653 = vmatprep.subr.bf16.mxu0 %v618
      %654 = vmatpush1.bf16.msra.mxu0 %v617
      %655 = vmatprep.subr.bf16.mxu0 %v620
      %656 = vmatpush1.bf16.msra.mxu0 %v619
      %657 = vmatprep.subr.bf16.mxu0 %v622
      %658 = vmatpush1.bf16.msra.mxu0 %v621
      %659 = vmatprep.subr.bf16.mxu0 0
      %660 = vmatpush1.bf16.msra.mxu0 0
      %661 = vmatprep.subr.bf16.mxu0 0
      %662 = vmatpush1.bf16.msra.mxu0 0
      %663 = vmatprep.subr.bf16.mxu0 0
      %664 = vmatpush1.bf16.msra.mxu0 0
      %665 = vmatprep.subr.bf16.mxu0 0
      %666 = vmatpush1.bf16.msra.mxu0 0
      %667 = vmatprep.subr.bf16.mxu0 0
      %668 = vmatpush1.bf16.msra.mxu0 0
      %669 = vmatprep.subr.bf16.mxu0 0
      %670 = vmatpush1.bf16.msra.mxu0 0
      %671 = vmatprep.subr.bf16.mxu0 0
      %672 = vmatpush1.bf16.msra.mxu0 0
      %673 = vmatprep.mubr.bf16.mxu0 %v304
      %674 = vmatmul.mubr.bf16.gmra.mrb[0].mxu0 %v206
      %v675 = vpop.f32.mrb[0].mxu0
      %v676 = vadd.f32 0.0, %v675
      %v677 = vpop.f32.mrb[0].mxu0
      %v678 = vadd.f32 0.0, %v677
      %v679 = vpop.f32.mrb[0].mxu0
      %v680 = vadd.f32 0.0, %v679
      %v681 = vpop.f32.mrb[0].mxu0
      %v682 = vadd.f32 0.0, %v681
      %683 = vmatprep.mubr.bf16.mxu0 %v307
      %684 = vmatmul.mubr.bf16.gmra.mrb[0].mxu0 %v208
      %v685 = vpop.f32.mrb[0].mxu0
      %v686 = vadd.f32 0.0, %v685
      %v687 = vpop.f32.mrb[0].mxu0
      %v688 = vadd.f32 0.0, %v687
      %v689 = vpop.f32.mrb[0].mxu0
      %v690 = vadd.f32 0.0, %v689
      %v691 = vpop.f32.mrb[0].mxu0
      %v692 = vadd.f32 0.0, %v691
      %693 = vdwg.mxu0
      %v694 = vmax.f32 %v524, %v676
      %v695 = vmax.f32 %v525, %v678
      %v696 = vmax.f32 %v526, %v680
      %v697 = vmax.f32 %v527, %v682
      %v698 = vmax.f32 %v528, %v686
      %v699 = vmax.f32 %v529, %v688
      %v700 = vmax.f32 %v530, %v690
      %v701 = vmax.f32 %v531, %v692
      %s702 = scalar_lea.vmem %s165, 432
      %v703 = vld [vmem:[%s702] sm:$0xff]
      %v704 = vld [vmem:[%s702 + $0x8] sm:$0xff]
      %v705 = vld [vmem:[%s702 + $0x10] sm:$0xff]
      %v706 = vld [vmem:[%s702 + $0x18] sm:$0xff]
      %v707 = vld [vmem:[%s702 + $0x20] sm:$0xff]
      %v708 = vld [vmem:[%s702 + $0x28] sm:$0xff]
      %v709 = vld [vmem:[%s702 + $0x30] sm:$0xff]
      %v710 = vld [vmem:[%s702 + $0x38] sm:$0xff]
      %v711 = vld [vmem:[%s702 + $0x40] sm:$0xff]
      %v712 = vld [vmem:[%s702 + $0x48] sm:$0xff]
      %v713 = vld [vmem:[%s702 + $0x50] sm:$0xff]
      %v714 = vld [vmem:[%s702 + $0x58] sm:$0xff]
      %v715 = vld [vmem:[%s702 + $0x60] sm:$0xff]
      %v716 = vld [vmem:[%s702 + $0x68] sm:$0xff]
      %v717 = vld [vmem:[%s702 + $0x70] sm:$0xff]
      %v718 = vld [vmem:[%s702 + $0x78] sm:$0xff]
      %v719 = vld [vmem:[%s702 + $0x80] sm:$0xff]
      %v720 = vld [vmem:[%s702 + $0x88] sm:$0xff]
      %v739 = vunpack.c.l.b16 %v703
      %v740 = vunpack.c.h.b16 %v703
      %v741 = vunpack.c.l.b16 %v704
      %v742 = vunpack.c.h.b16 %v704
      %v743 = vunpack.c.l.b16 %v705
      %v744 = vunpack.c.h.b16 %v705
      %v745 = vunpack.c.l.b16 %v706
      %v746 = vunpack.c.h.b16 %v706
      %v747 = vunpack.c.l.b16 %v707
      %v748 = vunpack.c.h.b16 %v707
      %v749 = vunpack.c.l.b16 %v708
      %v750 = vunpack.c.h.b16 %v708
      %v751 = vunpack.c.l.b16 %v709
      %v752 = vunpack.c.h.b16 %v709
      %v753 = vunpack.c.l.b16 %v710
      %v754 = vunpack.c.h.b16 %v710
      %v755 = vunpack.c.l.b16 %v711
      %v756 = vunpack.c.h.b16 %v711
      %v757 = vunpack.c.l.b16 %v712
      %v758 = vunpack.c.h.b16 %v712
      %v759 = vunpack.c.l.b16 %v713
      %v760 = vunpack.c.h.b16 %v713
      %v761 = vunpack.c.l.b16 %v714
      %v762 = vunpack.c.h.b16 %v714
      %v763 = vunpack.c.l.b16 %v715
      %v764 = vunpack.c.h.b16 %v715
      %v765 = vunpack.c.l.b16 %v716
      %v766 = vunpack.c.h.b16 %v716
      %v767 = vunpack.c.l.b16 %v717
      %v768 = vunpack.c.h.b16 %v717
      %v769 = vunpack.c.l.b16 %v718
      %v770 = vunpack.c.h.b16 %v718
      %v771 = vunpack.c.l.b16 %v719
      %v772 = vunpack.c.h.b16 %v719
      %v773 = vunpack.c.l.b16 %v720
      %v774 = vunpack.c.h.b16 %v720
      %v775 = vpack.c.b16 %v741, %v739
      %v776 = vpack.c.b16 %v742, %v740
      %v777 = vpack.c.b16 %v745, %v743
      %v778 = vpack.c.b16 %v746, %v744
      %v779 = vpack.c.b16 %v749, %v747
      %v780 = vpack.c.b16 %v750, %v748
      %v781 = vpack.c.b16 %v753, %v751
      %v782 = vpack.c.b16 %v754, %v752
      %v783 = vpack.c.b16 %v757, %v755
      %v784 = vpack.c.b16 %v758, %v756
      %v785 = vpack.c.b16 %v761, %v759
      %v786 = vpack.c.b16 %v762, %v760
      %v787 = vpack.c.b16 %v765, %v763
      %v788 = vpack.c.b16 %v766, %v764
      %v789 = vpack.c.b16 %v769, %v767
      %v790 = vpack.c.b16 %v770, %v768
      %v791 = vpack.c.b16 %v773, %v771
      %v792 = vpack.c.b16 %v774, %v772
      %811 = vmatprep.subr.bf16.mxu0 %v776
      %812 = vmatpush1.bf16.msra.mxu0 %v775
      %813 = vmatprep.subr.bf16.mxu0 %v778
      %814 = vmatpush1.bf16.msra.mxu0 %v777
      %815 = vmatprep.subr.bf16.mxu0 %v780
      %816 = vmatpush1.bf16.msra.mxu0 %v779
      %817 = vmatprep.subr.bf16.mxu0 %v782
      %818 = vmatpush1.bf16.msra.mxu0 %v781
      %819 = vmatprep.subr.bf16.mxu0 %v784
      %820 = vmatpush1.bf16.msra.mxu0 %v783
      %821 = vmatprep.subr.bf16.mxu0 %v786
      %822 = vmatpush1.bf16.msra.mxu0 %v785
      %823 = vmatprep.subr.bf16.mxu0 %v788
      %824 = vmatpush1.bf16.msra.mxu0 %v787
      %825 = vmatprep.subr.bf16.mxu0 %v790
      %826 = vmatpush1.bf16.msra.mxu0 %v789
      %827 = vmatprep.subr.bf16.mxu0 %v792
      %828 = vmatpush1.bf16.msra.mxu0 %v791
      %829 = vmatprep.subr.bf16.mxu0 0
      %830 = vmatpush1.bf16.msra.mxu0 0
      %831 = vmatprep.subr.bf16.mxu0 0
      %832 = vmatpush1.bf16.msra.mxu0 0
      %833 = vmatprep.subr.bf16.mxu0 0
      %834 = vmatpush1.bf16.msra.mxu0 0
      %835 = vmatprep.subr.bf16.mxu0 0
      %836 = vmatpush1.bf16.msra.mxu0 0
      %837 = vmatprep.subr.bf16.mxu0 0
      %838 = vmatpush1.bf16.msra.mxu0 0
      %839 = vmatprep.subr.bf16.mxu0 0
      %840 = vmatpush1.bf16.msra.mxu0 0
      %841 = vmatprep.subr.bf16.mxu0 0
      %842 = vmatpush1.bf16.msra.mxu0 0
      %843 = vmatprep.mubr.bf16.mxu0 %v304
      %844 = vmatmul.mubr.bf16.gmra.mrb[0].mxu0 %v206
      %v845 = vpop.f32.mrb[0].mxu0
      %v846 = vadd.f32 0.0, %v845
      %v847 = vpop.f32.mrb[0].mxu0
      %v848 = vadd.f32 0.0, %v847
      %v849 = vpop.f32.mrb[0].mxu0
      %v850 = vadd.f32 0.0, %v849
      %v851 = vpop.f32.mrb[0].mxu0
      %v852 = vadd.f32 0.0, %v851
      %853 = vmatprep.mubr.bf16.mxu0 %v307
      %854 = vmatmul.mubr.bf16.gmra.mrb[0].mxu0 %v208
      %v855 = vpop.f32.mrb[0].mxu0
      %v856 = vadd.f32 0.0, %v855
      %v857 = vpop.f32.mrb[0].mxu0
      %v858 = vadd.f32 0.0, %v857
      %v859 = vpop.f32.mrb[0].mxu0
      %v860 = vadd.f32 0.0, %v859
      %v861 = vpop.f32.mrb[0].mxu0
      %v862 = vadd.f32 0.0, %v861
      %863 = vdwg.mxu0
      %v864 = vmax.f32 %v694, %v846
      %v865 = vmax.f32 %v695, %v848
      %v866 = vmax.f32 %v696, %v850
      %v867 = vmax.f32 %v697, %v852
      %v868 = vmax.f32 %v698, %v856
      %v869 = vmax.f32 %v699, %v858
      %v870 = vmax.f32 %v700, %v860
      %v871 = vmax.f32 %v701, %v862
      %v872 = vld [vmem:[%s2] sm:$0xff]
      %v873 = vld [vmem:[%s2 + $0x8] sm:$0xff]
      %v874 = vld [vmem:[%s2 + $0x10] sm:$0xff]
      %v875 = vld [vmem:[%s2 + $0x18] sm:$0xff]
      %877 = vset.pattern.permute.xlu0 0
      %878 = vperm.xlu0 %877, %v872
      %v879 = vpop.permute.xlu0 %878
      %882 = vset.pattern.permute.xlu0 0
      %883 = vperm.xlu0 %882, %v873
      %v884 = vpop.permute.xlu0 %883
      %887 = vset.pattern.permute.xlu0 0
      %888 = vperm.xlu0 %887, %v874
      %v889 = vpop.permute.xlu0 %888
      %892 = vset.pattern.permute.xlu0 0
      %893 = vperm.xlu0 %892, %v875
      %v894 = vpop.permute.xlu0 %893
      %v896 = vadd.f32 %v864, %v879
      %v897 = vadd.f32 %v865, %v879
      %v898 = vadd.f32 %v866, %v884
      %v899 = vadd.f32 %v867, %v884
      %v900 = vadd.f32 %v868, %v889
      %v901 = vadd.f32 %v869, %v889
      %v902 = vadd.f32 %v870, %v894
      %v903 = vadd.f32 %v871, %v894
      %v904 = vmax.f32 %v896, 0.0
      %v905 = vmax.f32 %v897, 0.0
      %v906 = vmax.f32 %v898, 0.0
      %v907 = vmax.f32 %v899, 0.0
      %v908 = vmax.f32 %v900, 0.0
      %v909 = vmax.f32 %v901, 0.0
      %v910 = vmax.f32 %v902, 0.0
      %v911 = vmax.f32 %v903, 0.0
      %v912 = vpack.c.bf16 %v906, %v904
      %v913 = vpack.c.bf16 %v907, %v905
      %v914 = vpack.c.bf16 %v910, %v908
      %v915 = vpack.c.bf16 %v911, %v909
      %v920 = vunpack.c.l.b16 %v912
      %v921 = vunpack.c.l.b16 %v913
      %v922 = vunpack.c.h.b16 %v912
      %v923 = vunpack.c.h.b16 %v913
      %v924 = vunpack.c.l.b16 %v914
      %v925 = vunpack.c.l.b16 %v915
      %v926 = vunpack.c.h.b16 %v914
      %v927 = vunpack.c.h.b16 %v915
      %v928 = vpack.c.b16 %v921, %v920
      %v929 = vpack.c.b16 %v923, %v922
      %v930 = vpack.c.b16 %v925, %v924
      %v931 = vpack.c.b16 %v927, %v926
      %vm936 = vcmask 1043456
      %vm937 = vcmask 334852
      %vm938 = vmor %vm937, %vm936
      %939 = vst.msk [vmem:[%s170] sm:$0xff] %vm938, %v928
      %940 = vst.msk [vmem:[%s170 + $0x8] sm:$0xff] %vm938, %v929
      %941 = vst.msk [vmem:[%s170 + $0x10] sm:$0xff] %vm938, %v930
      %942 = vst.msk [vmem:[%s170 + $0x18] sm:$0xff] %vm938, %v931
      %p943 = scmp.lt.s32.totalorder %s14, 1
      %s944 = scalar_select %p943, %s14, 1
      %s945 = smul.addr %s944, 8
      %s946 = smul.addr %s945, 4
      %s947 = scalar_lea.vmem %s3, %s946
      // Predicated region
      $region33: #{_lambda_.5} parent=31 // pred_check
        %p948 = pneg %p100
      $region34: #{_lambda_.5} parent=31 // pred_check_branch
        %950 = sbr.rel (%p948) target = $region36
      $region35: #{_lambda_.5} parent=31 // pred_region
        _
      $region36: #{_lambda_.5} parent=31 // pred_fallthru
        _
    $region32: #{_lambda_.5} parent=5 // pred_fallthru
      _
    %p951 = scmp.le.s32.totalorder 2, %s9
    // Predicated region
    $region37: #{_lambda_.5} parent=5 // pred_check
      %p952 = pneg %p951
    $region38: #{_lambda_.5} parent=5 // pred_check_branch
      %954 = sbr.rel (%p952) target = $region40
    $region39: #{_lambda_.5} parent=5 // pred_region
      %s955 = ssub.s32 %s9, 2
      // Predicated region
      $region41: #{_lambda_.5} parent=39 // pred_check
        %p956 = pneg %p106
      $region42: #{_lambda_.5} parent=39 // pred_check_branch
        %958 = sbr.rel (%p956) target = $region44
      $region43: #{_lambda_.5} parent=39 // pred_region
        %p959 = scmp.lt.s32.totalorder %s15, 1
        %s960 = scalar_select %p959, %s15, 1
        %s961 = smul.addr %s960, 8
        %s962 = smul.addr %s961, 4
        %s963 = scalar_lea.vmem %s3, %s962
      $region44: #{_lambda_.5} parent=39 // pred_fallthru
        _
    $region40: #{_lambda_.5} parent=5 // pred_fallthru
      _
  $region6: #{_lambda_.5} parent=0 // loop_footer
    %s13 = sadd.s32 1, %s9
  $region7: #{_lambda_.5} parent=0 // loop_footer_branch
    %8 = sbr.rel target = $region3
  $region8: #{_lambda_.5} parent=0 // loop_exit
    _

// kernel: _lambda_.7
$region0: #{_lambda_.7}
  #allocation0 [shape = 'u32[]', space=smem, size = 0x4, offset = 0x4, fixed_abs, tag = 'smem constant byte address 0x4 - core index']
  #allocation1 [shape = 'u32[144,128]{1,0:T(1,128)}', space=vmem, size = 0x12000, scoped, tag = 'internal scratch']
  #allocation2 [shape = 'f32[1,1]{1,0:T(1,128)S(1)}', space=vmem, size = 0x200, scoped, tag = 'scoped memory for _lambda_.7']
  %s0 = inlined_call_operand.vmem [shape: f32[2,576], index: 0, kind: input, shape index: {}]
  %s1 = inlined_call_operand.vmem [shape: f32[576,10], index: 1, kind: input, shape index: {}]
  %s2 = inlined_call_operand.vmem [shape: f32[1,10], index: 2, kind: input, shape index: {}]
  %s3 = inlined_call_operand.vmem [shape: f32[10,1], index: 3, kind: input, shape index: {}]
  %s4 = inlined_call_operand.<no memory space> [shape: f32[1,1], index: 4, kind: input, shape index: {}]
  %s5 = inlined_call_operand.vmem [shape: f32[2,1], index: 5, kind: output, shape index: {}]
  %s6 = sld [smem:[#allocation0]]
  $region30: #{_lambda_.7} parent=0
    _
  %s8 = ssub.s32 1, %s6
  %s9 = scalar_select 0, %s8, %s6
  %v10 = vstv %s4
  %11 = vst [vmem:[#allocation2] sm:$0x1] %v10
  // Predicated region
  $region2: #{_lambda_.7} parent=0 // pred_check
    _
  $region3: #{_lambda_.7} parent=0 // pred_check_branch
    %13 = sbr.rel (0) target = $region5
  $region4: #{_lambda_.7} parent=0 // pred_region
    _
  $region5: #{_lambda_.7} parent=0 // pred_fallthru
    _
  // Predicated region
  $region6: #{_lambda_.7} parent=0 // pred_check
    _
  $region7: #{_lambda_.7} parent=0 // pred_check_branch
    %15 = sbr.rel (0) target = $region9
  $region8: #{_lambda_.7} parent=0 // pred_region
    _
  $region9: #{_lambda_.7} parent=0 // pred_fallthru
    _
  // Predicated region
  $region10: #{_lambda_.7} parent=0 // pred_check
    _
  $region11: #{_lambda_.7} parent=0 // pred_check_branch
    %17 = sbr.rel (0) target = $region13
  $region12: #{_lambda_.7} parent=0 // pred_region
    _
  $region13: #{_lambda_.7} parent=0 // pred_fallthru
    _
  // Predicated region
  $region14: #{_lambda_.7} parent=0 // pred_check
    _
  $region15: #{_lambda_.7} parent=0 // pred_check_branch
    %19 = sbr.rel (0) target = $region17
  $region16: #{_lambda_.7} parent=0 // pred_region
    _
  $region17: #{_lambda_.7} parent=0 // pred_fallthru
    _
  // Predicated region
  $region18: #{_lambda_.7} parent=0 // pred_check
    _
  $region19: #{_lambda_.7} parent=0 // pred_check_branch
    %21 = sbr.rel (0) target = $region21
  $region20: #{_lambda_.7} parent=0 // pred_region
    _
  $region21: #{_lambda_.7} parent=0 // pred_fallthru
    _
  %v22 = vld [vmem:[%s0] sm:$0xff]
  %v23 = vld [vmem:[%s0 + $0x8] sm:$0x3]
  %v24 = vld [vmem:[%s1] sm:$0xff]
  %v25 = vld [vmem:[%s1 + $0x8] sm:$0xff]
  %v26 = vld [vmem:[%s1 + $0x10] sm:$0xff]
  %v27 = vld [vmem:[%s1 + $0x18] sm:$0xff]
  %v28 = vld [vmem:[%s1 + $0x20] sm:$0xff]
  %v29 = vld [vmem:[%s1 + $0x28] sm:$0xff]
  %v30 = vld [vmem:[%s1 + $0x30] sm:$0xff]
  %v31 = vld [vmem:[%s1 + $0x38] sm:$0xff]
  %v32 = vld [vmem:[%s1 + $0x40] sm:$0xff]
  %v33 = vld [vmem:[%s1 + $0x48] sm:$0xff]
  %v34 = vld [vmem:[%s1 + $0x50] sm:$0xff]
  %v35 = vld [vmem:[%s1 + $0x58] sm:$0xff]
  %v36 = vld [vmem:[%s1 + $0x60] sm:$0xff]
  %v37 = vld [vmem:[%s1 + $0x68] sm:$0xff]
  %v38 = vld [vmem:[%s1 + $0x70] sm:$0xff]
  %v39 = vld [vmem:[%s1 + $0x78] sm:$0xff]
  %v40 = vld [vmem:[%s1 + $0x80] sm:$0xff]
  %v41 = vld [vmem:[%s1 + $0x88] sm:$0xff]
  %v42 = vld [vmem:[%s1 + $0x90] sm:$0xff]
  %v43 = vld [vmem:[%s1 + $0x98] sm:$0xff]
  %v44 = vld [vmem:[%s1 + $0xa0] sm:$0xff]
  %v45 = vld [vmem:[%s1 + $0xa8] sm:$0xff]
  %v46 = vld [vmem:[%s1 + $0xb0] sm:$0xff]
  %v47 = vld [vmem:[%s1 + $0xb8] sm:$0xff]
  %v48 = vld [vmem:[%s1 + $0xc0] sm:$0xff]
  %v49 = vld [vmem:[%s1 + $0xc8] sm:$0xff]
  %v50 = vld [vmem:[%s1 + $0xd0] sm:$0xff]
  %v51 = vld [vmem:[%s1 + $0xd8] sm:$0xff]
  %v52 = vld [vmem:[%s1 + $0xe0] sm:$0xff]
  %v53 = vld [vmem:[%s1 + $0xe8] sm:$0xff]
  %v54 = vld [vmem:[%s1 + $0xf0] sm:$0xff]
  %v55 = vld [vmem:[%s1 + $0xf8] sm:$0xff]
  %v56 = vld [vmem:[%s1 + $0x100] sm:$0xff]
  %v57 = vld [vmem:[%s1 + $0x108] sm:$0xff]
  %v58 = vld [vmem:[%s1 + $0x110] sm:$0xff]
  %v59 = vld [vmem:[%s1 + $0x118] sm:$0xff]
  %v60 = vld [vmem:[%s1 + $0x120] sm:$0xff]
  %v61 = vld [vmem:[%s1 + $0x128] sm:$0xff]
  %v62 = vld [vmem:[%s1 + $0x130] sm:$0xff]
  %v63 = vld [vmem:[%s1 + $0x138] sm:$0xff]
  %v64 = vld [vmem:[%s1 + $0x140] sm:$0xff]
  %v65 = vld [vmem:[%s1 + $0x148] sm:$0xff]
  %v66 = vld [vmem:[%s1 + $0x150] sm:$0xff]
  %v67 = vld [vmem:[%s1 + $0x158] sm:$0xff]
  %v68 = vld [vmem:[%s1 + $0x160] sm:$0xff]
  %v69 = vld [vmem:[%s1 + $0x168] sm:$0xff]
  %v70 = vld [vmem:[%s1 + $0x170] sm:$0xff]
  %v71 = vld [vmem:[%s1 + $0x178] sm:$0xff]
  %v72 = vld [vmem:[%s1 + $0x180] sm:$0xff]
  %v73 = vld [vmem:[%s1 + $0x188] sm:$0xff]
  %v74 = vld [vmem:[%s1 + $0x190] sm:$0xff]
  %v75 = vld [vmem:[%s1 + $0x198] sm:$0xff]
  %v76 = vld [vmem:[%s1 + $0x1a0] sm:$0xff]
  %v77 = vld [vmem:[%s1 + $0x1a8] sm:$0xff]
  %v78 = vld [vmem:[%s1 + $0x1b0] sm:$0xff]
  %v79 = vld [vmem:[%s1 + $0x1b8] sm:$0xff]
  %v80 = vld [vmem:[%s1 + $0x1c0] sm:$0xff]
  %v81 = vld [vmem:[%s1 + $0x1c8] sm:$0xff]
  %v82 = vld [vmem:[%s1 + $0x1d0] sm:$0xff]
  %v83 = vld [vmem:[%s1 + $0x1d8] sm:$0xff]
  %v84 = vld [vmem:[%s1 + $0x1e0] sm:$0xff]
  %v85 = vld [vmem:[%s1 + $0x1e8] sm:$0xff]
  %v86 = vld [vmem:[%s1 + $0x1f0] sm:$0xff]
  %v87 = vld [vmem:[%s1 + $0x1f8] sm:$0xff]
  %v88 = vld [vmem:[%s1 + $0x200] sm:$0xff]
  %v89 = vld [vmem:[%s1 + $0x208] sm:$0xff]
  %v90 = vld [vmem:[%s1 + $0x210] sm:$0xff]
  %v91 = vld [vmem:[%s1 + $0x218] sm:$0xff]
  %v92 = vld [vmem:[%s1 + $0x220] sm:$0xff]
  %v93 = vld [vmem:[%s1 + $0x228] sm:$0xff]
  %v94 = vld [vmem:[%s1 + $0x230] sm:$0xff]
  %v95 = vld [vmem:[%s1 + $0x238] sm:$0xff]
  %v96 = vld [vmem:[%s2] sm:$0x1]
  %v98 = vlaneseq
  %v99 = vshrl.u32 %v98, 7
  %v100 = vsub.s32 0, %v99
  %v101 = vrot.slane %v96, %v100
  %v105 = vcombine.high %v22, %v22
  %v107 = vunpack.c.l.s4 1983009808
  %v108 = vunpack.c.0.s8 %v107
  %v109 = vlaneseq
  %v110 = vshrl.u32 %v109, 7
  %v111 = vsub.s32 %v108, %v110
  %v112 = vrot.slane %v22, %v111
  %v114 = vunpack.c.l.s4 1983009808
  %v115 = vunpack.c.0.s8 %v114
  %v116 = vlaneseq
  %v117 = vshrl.u32 %v116, 7
  %v118 = vsub.s32 %v115, %v117
  %v119 = vrot.slane %v105, %v118
  %v120 = vcombine.high %v112, %v112
  %v121 = vcombine.high %v119, %v119
  %v123 = vunpack.c.l.s4 1983009808
  %v124 = vunpack.c.0.s8 %v123
  %v125 = vlaneseq
  %v126 = vshrl.u32 %v125, 7
  %v127 = vsub.s32 %v124, %v126
  %v128 = vrot.slane %v23, %v127
  %vm133 = vcmask 523264
  %v134 = vsel %vm133, %v128, 0
  %136 = vmatprep.subr.mxu0 0.0
  %137 = vmatpush1.msra.mxu0 %v24
  %138 = vmatprep.subr.mxu0 0.0
  %139 = vmatpush1.msra.mxu0 %v25
  %140 = vmatprep.subr.mxu0 0.0
  %141 = vmatpush1.msra.mxu0 %v26
  %142 = vmatprep.subr.mxu0 0.0
  %143 = vmatpush1.msra.mxu0 %v27
  %144 = vmatprep.subr.mxu0 0.0
  %145 = vmatpush1.msra.mxu0 %v28
  %146 = vmatprep.subr.mxu0 0.0
  %147 = vmatpush1.msra.mxu0 %v29
  %148 = vmatprep.subr.mxu0 0.0
  %149 = vmatpush1.msra.mxu0 %v30
  %150 = vmatprep.subr.mxu0 0.0
  %151 = vmatpush1.msra.mxu0 %v31
  %152 = vmatprep.subr.mxu0 0.0
  %153 = vmatpush1.msra.mxu0 %v32
  %154 = vmatprep.subr.mxu0 0.0
  %155 = vmatpush1.msra.mxu0 %v33
  %156 = vmatprep.subr.mxu0 0.0
  %157 = vmatpush1.msra.mxu0 %v34
  %158 = vmatprep.subr.mxu0 0.0
  %159 = vmatpush1.msra.mxu0 %v35
  %160 = vmatprep.subr.mxu0 0.0
  %161 = vmatpush1.msra.mxu0 %v36
  %162 = vmatprep.subr.mxu0 0.0
  %163 = vmatpush1.msra.mxu0 %v37
  %164 = vmatprep.subr.mxu0 0.0
  %165 = vmatpush1.msra.mxu0 %v38
  %166 = vmatprep.subr.mxu0 0.0
  %167 = vmatpush1.msra.mxu0 %v39
  %168 = vmatprep.subr.mxu0 0.0
  %169 = vmatpush1.msra.mxu0 %v40
  %170 = vmatprep.subr.mxu0 0.0
  %171 = vmatpush1.msra.mxu0 %v41
  %172 = vmatprep.subr.mxu0 0.0
  %173 = vmatpush1.msra.mxu0 %v42
  %174 = vmatprep.subr.mxu0 0.0
  %175 = vmatpush1.msra.mxu0 %v43
  %176 = vmatprep.subr.mxu0 0.0
  %177 = vmatpush1.msra.mxu0 %v44
  %178 = vmatprep.subr.mxu0 0.0
  %179 = vmatpush1.msra.mxu0 %v45
  %180 = vmatprep.subr.mxu0 0.0
  %181 = vmatpush1.msra.mxu0 %v46
  %182 = vmatprep.subr.mxu0 0.0
  %183 = vmatpush1.msra.mxu0 %v47
  %184 = vmatprep.subr.mxu0 0.0
  %185 = vmatpush1.msra.mxu0 %v48
  %186 = vmatprep.subr.mxu0 0.0
  %187 = vmatpush1.msra.mxu0 %v49
  %188 = vmatprep.subr.mxu0 0.0
  %189 = vmatpush1.msra.mxu0 %v50
  %190 = vmatprep.subr.mxu0 0.0
  %191 = vmatpush1.msra.mxu0 %v51
  %192 = vmatprep.subr.mxu0 0.0
  %193 = vmatpush1.msra.mxu0 %v52
  %194 = vmatprep.subr.mxu0 0.0
  %195 = vmatpush1.msra.mxu0 %v53
  %196 = vmatprep.subr.mxu0 0.0
  %197 = vmatpush1.msra.mxu0 %v54
  %198 = vmatprep.subr.mxu0 0.0
  %199 = vmatpush1.msra.mxu0 %v55
  %200 = vmatprep.mubr.f32.mxu0 %v120
  %201 = vmatmul.mubr.f32.gmra.mrb[0].mxu0 %v112
  %v202 = vpop.f32.mrb[0].mxu0
  %v203 = vadd.f32 %v101, %v202
  %v204 = vpop.f32.mrb[0].mxu0
  %205 = vdwg.mxu0
  %206 = vmatprep.subr.mxu0 0.0
  %207 = vmatpush1.msra.mxu0 %v56
  %208 = vmatprep.subr.mxu0 0.0
  %209 = vmatpush1.msra.mxu0 %v57
  %210 = vmatprep.subr.mxu0 0.0
  %211 = vmatpush1.msra.mxu0 %v58
  %212 = vmatprep.subr.mxu0 0.0
  %213 = vmatpush1.msra.mxu0 %v59
  %214 = vmatprep.subr.mxu0 0.0
  %215 = vmatpush1.msra.mxu0 %v60
  %216 = vmatprep.subr.mxu0 0.0
  %217 = vmatpush1.msra.mxu0 %v61
  %218 = vmatprep.subr.mxu0 0.0
  %219 = vmatpush1.msra.mxu0 %v62
  %220 = vmatprep.subr.mxu0 0.0
  %221 = vmatpush1.msra.mxu0 %v63
  %222 = vmatprep.subr.mxu0 0.0
  %223 = vmatpush1.msra.mxu0 %v64
  %224 = vmatprep.subr.mxu0 0.0
  %225 = vmatpush1.msra.mxu0 %v65
  %226 = vmatprep.subr.mxu0 0.0
  %227 = vmatpush1.msra.mxu0 %v66
  %228 = vmatprep.subr.mxu0 0.0
  %229 = vmatpush1.msra.mxu0 %v67
  %230 = vmatprep.subr.mxu0 0.0
  %231 = vmatpush1.msra.mxu0 %v68
  %232 = vmatprep.subr.mxu0 0.0
  %233 = vmatpush1.msra.mxu0 %v69
  %234 = vmatprep.subr.mxu0 0.0
  %235 = vmatpush1.msra.mxu0 %v70
  %236 = vmatprep.subr.mxu0 0.0
  %237 = vmatpush1.msra.mxu0 %v71
  %238 = vmatprep.subr.mxu0 0.0
  %239 = vmatpush1.msra.mxu0 %v72
  %240 = vmatprep.subr.mxu0 0.0
  %241 = vmatpush1.msra.mxu0 %v73
  %242 = vmatprep.subr.mxu0 0.0
  %243 = vmatpush1.msra.mxu0 %v74
  %244 = vmatprep.subr.mxu0 0.0
  %245 = vmatpush1.msra.mxu0 %v75
  %246 = vmatprep.subr.mxu0 0.0
  %247 = vmatpush1.msra.mxu0 %v76
  %248 = vmatprep.subr.mxu0 0.0
  %249 = vmatpush1.msra.mxu0 %v77
  %250 = vmatprep.subr.mxu0 0.0
  %251 = vmatpush1.msra.mxu0 %v78
  %252 = vmatprep.subr.mxu0 0.0
  %253 = vmatpush1.msra.mxu0 %v79
  %254 = vmatprep.subr.mxu0 0.0
  %255 = vmatpush1.msra.mxu0 %v80
  %256 = vmatprep.subr.mxu0 0.0
  %257 = vmatpush1.msra.mxu0 %v81
  %258 = vmatprep.subr.mxu0 0.0
  %259 = vmatpush1.msra.mxu0 %v82
  %260 = vmatprep.subr.mxu0 0.0
  %261 = vmatpush1.msra.mxu0 %v83
  %262 = vmatprep.subr.mxu0 0.0
  %263 = vmatpush1.msra.mxu0 %v84
  %264 = vmatprep.subr.mxu0 0.0
  %265 = vmatpush1.msra.mxu0 %v85
  %266 = vmatprep.subr.mxu0 0.0
  %267 = vmatpush1.msra.mxu0 %v86
  %268 = vmatprep.subr.mxu0 0.0
  %269 = vmatpush1.msra.mxu0 %v87
  %270 = vmatprep.mubr.f32.mxu0 %v121
  %271 = vmatmul.mubr.f32.gmra.mrb[0].mxu0 %v119
  %v272 = vpop.f32.mrb[0].mxu0
  %v273 = vadd.f32 %v203, %v272
  %v274 = vpop.f32.mrb[0].mxu0
  %275 = vdwg.mxu0
  %276 = vmatprep.subr.mxu0 0.0
  %277 = vmatpush1.msra.mxu0 %v88
  %278 = vmatprep.subr.mxu0 0.0
  %279 = vmatpush1.msra.mxu0 %v89
  %280 = vmatprep.subr.mxu0 0.0
  %281 = vmatpush1.msra.mxu0 %v90
  %282 = vmatprep.subr.mxu0 0.0
  %283 = vmatpush1.msra.mxu0 %v91
  %284 = vmatprep.subr.mxu0 0.0
  %285 = vmatpush1.msra.mxu0 %v92
  %286 = vmatprep.subr.mxu0 0.0
  %287 = vmatpush1.msra.mxu0 %v93
  %288 = vmatprep.subr.mxu0 0.0
  %289 = vmatpush1.msra.mxu0 %v94
  %290 = vmatprep.subr.mxu0 0.0
  %291 = vmatpush1.msra.mxu0 %v95
  %292 = vmatprep.subr.mxu0 0.0
  %293 = vmatpush1.msra.mxu0 0.0
  %294 = vmatprep.subr.mxu0 0.0
  %295 = vmatpush1.msra.mxu0 0.0
  %296 = vmatprep.subr.mxu0 0.0
  %297 = vmatpush1.msra.mxu0 0.0
  %298 = vmatprep.subr.mxu0 0.0
  %299 = vmatpush1.msra.mxu0 0.0
  %300 = vmatprep.subr.mxu0 0.0
  %301 = vmatpush1.msra.mxu0 0.0
  %302 = vmatprep.subr.mxu0 0.0
  %303 = vmatpush1.msra.mxu0 0.0
  %304 = vmatprep.subr.mxu0 0.0
  %305 = vmatpush1.msra.mxu0 0.0
  %306 = vmatprep.subr.mxu0 0.0
  %307 = vmatpush1.msra.mxu0 0.0
  %308 = vmatprep.subr.mxu0 0.0
  %309 = vmatpush1.msra.mxu0 0.0
  %310 = vmatprep.subr.mxu0 0.0
  %311 = vmatpush1.msra.mxu0 0.0
  %312 = vmatprep.subr.mxu0 0.0
  %313 = vmatpush1.msra.mxu0 0.0
  %314 = vmatprep.subr.mxu0 0.0
  %315 = vmatpush1.msra.mxu0 0.0
  %316 = vmatprep.subr.mxu0 0.0
  %317 = vmatpush1.msra.mxu0 0.0
  %318 = vmatprep.subr.mxu0 0.0
  %319 = vmatpush1.msra.mxu0 0.0
  %320 = vmatprep.subr.mxu0 0.0
  %321 = vmatpush1.msra.mxu0 0.0
  %322 = vmatprep.subr.mxu0 0.0
  %323 = vmatpush1.msra.mxu0 0.0
  %324 = vmatprep.subr.mxu0 0.0
  %325 = vmatpush1.msra.mxu0 0.0
  %326 = vmatprep.subr.mxu0 0.0
  %327 = vmatpush1.msra.mxu0 0.0
  %328 = vmatprep.subr.mxu0 0.0
  %329 = vmatpush1.msra.mxu0 0.0
  %330 = vmatprep.subr.mxu0 0.0
  %331 = vmatpush1.msra.mxu0 0.0
  %332 = vmatprep.subr.mxu0 0.0
  %333 = vmatpush1.msra.mxu0 0.0
  %334 = vmatprep.subr.mxu0 0.0
  %335 = vmatpush1.msra.mxu0 0.0
  %336 = vmatprep.subr.mxu0 0.0
  %337 = vmatpush1.msra.mxu0 0.0
  %338 = vmatprep.subr.mxu0 0.0
  %339 = vmatpush1.msra.mxu0 0.0
  %340 = vmatprep.mubr.f32.mxu0 0.0
  %341 = vmatmul.mubr.f32.gmra.mrb[0].mxu0 %v134
  %v342 = vpop.f32.mrb[0].mxu0
  %v343 = vadd.f32 %v273, %v342
  %v344 = vpop.f32.mrb[0].mxu0
  %345 = vdwg.mxu0
  %v346 = vmax.f32 %v343, 0.0
  %v347 = vld [vmem:[%s3] sm:$0xff]
  %v348 = vld [vmem:[%s3 + $0x8] sm:$0x3]
  %v349 = vld [vmem:[#allocation2] sm:$0x1]
  %v351 = vlaneseq
  %v352 = vshrl.u32 %v351, 7
  %v353 = vsub.s32 0, %v352
  %v354 = vrot.slane %v349, %v353
  %vm356 = vcmask 80896
  %v358 = vsel %vm356, %v346, 0
  %vm360 = vcmask 1041408
  %v362 = vsel %vm360, %v348, 0
  %364 = vmatprep.subr.mxu0 0.0
  %365 = vmatpush1.msra.mxu0 %v347
  %366 = vmatprep.subr.mxu0 0.0
  %367 = vmatpush1.msra.mxu0 %v362
  %368 = vmatprep.subr.mxu0 0.0
  %369 = vmatpush1.msra.mxu0 0.0
  %370 = vmatprep.subr.mxu0 0.0
  %371 = vmatpush1.msra.mxu0 0.0
  %372 = vmatprep.subr.mxu0 0.0
  %373 = vmatpush1.msra.mxu0 0.0
  %374 = vmatprep.subr.mxu0 0.0
  %375 = vmatpush1.msra.mxu0 0.0
  %376 = vmatprep.subr.mxu0 0.0
  %377 = vmatpush1.msra.mxu0 0.0
  %378 = vmatprep.subr.mxu0 0.0
  %379 = vmatpush1.msra.mxu0 0.0
  %380 = vmatprep.subr.mxu0 0.0
  %381 = vmatpush1.msra.mxu0 0.0
  %382 = vmatprep.subr.mxu0 0.0
  %383 = vmatpush1.msra.mxu0 0.0
  %384 = vmatprep.subr.mxu0 0.0
  %385 = vmatpush1.msra.mxu0 0.0
  %386 = vmatprep.subr.mxu0 0.0
  %387 = vmatpush1.msra.mxu0 0.0
  %388 = vmatprep.subr.mxu0 0.0
  %389 = vmatpush1.msra.mxu0 0.0
  %390 = vmatprep.subr.mxu0 0.0
  %391 = vmatpush1.msra.mxu0 0.0
  %392 = vmatprep.subr.mxu0 0.0
  %393 = vmatpush1.msra.mxu0 0.0
  %394 = vmatprep.subr.mxu0 0.0
  %395 = vmatpush1.msra.mxu0 0.0
  %396 = vmatprep.subr.mxu0 0.0
  %397 = vmatpush1.msra.mxu0 0.0
  %398 = vmatprep.subr.mxu0 0.0
  %399 = vmatpush1.msra.mxu0 0.0
  %400 = vmatprep.subr.mxu0 0.0
  %401 = vmatpush1.msra.mxu0 0.0
  %402 = vmatprep.subr.mxu0 0.0
  %403 = vmatpush1.msra.mxu0 0.0
  %404 = vmatprep.subr.mxu0 0.0
  %405 = vmatpush1.msra.mxu0 0.0
  %406 = vmatprep.subr.mxu0 0.0
  %407 = vmatpush1.msra.mxu0 0.0
  %408 = vmatprep.subr.mxu0 0.0
  %409 = vmatpush1.msra.mxu0 0.0
  %410 = vmatprep.subr.mxu0 0.0
  %411 = vmatpush1.msra.mxu0 0.0
  %412 = vmatprep.subr.mxu0 0.0
  %413 = vmatpush1.msra.mxu0 0.0
  %414 = vmatprep.subr.mxu0 0.0
  %415 = vmatpush1.msra.mxu0 0.0
  %416 = vmatprep.subr.mxu0 0.0
  %417 = vmatpush1.msra.mxu0 0.0
  %418 = vmatprep.subr.mxu0 0.0
  %419 = vmatpush1.msra.mxu0 0.0
  %420 = vmatprep.subr.mxu0 0.0
  %421 = vmatpush1.msra.mxu0 0.0
  %422 = vmatprep.subr.mxu0 0.0
  %423 = vmatpush1.msra.mxu0 0.0
  %424 = vmatprep.subr.mxu0 0.0
  %425 = vmatpush1.msra.mxu0 0.0
  %426 = vmatprep.subr.mxu0 0.0
  %427 = vmatpush1.msra.mxu0 0.0
  %428 = vmatprep.mubr.f32.mxu0 0.0
  %429 = vmatmul.mubr.f32.gmra.mrb[0].mxu0 %v358
  %v430 = vpop.f32.mrb[0].mxu0
  %v431 = vadd.f32 %v354, %v430
  %v432 = vpop.f32.mrb[0].mxu0
  %433 = vdwg.mxu0
  %v434 = vxor.u32 %v431, 2147483648
  %v435 = vmul.f32 %v434, 1.442695
  %v436 = vpow.pop %v435
  %v437 = vadd.f32 %v436, 1.0
  %v438 = vrcp.pop %v437
  %v439 = vmul.f32 1.0, %v438
  %vm440 = vcmask 1024
  %441 = vst.msk [vmem:[%s5] sm:$0x3] %vm440, %v439
  // Predicated region
  $region22: #{_lambda_.7} parent=0 // pred_check
    _
  $region23: #{_lambda_.7} parent=0 // pred_check_branch
    %443 = sbr.rel (0) target = $region25
  $region24: #{_lambda_.7} parent=0 // pred_region
    _
  $region25: #{_lambda_.7} parent=0 // pred_fallthru
    _
  // Predicated region
  $region26: #{_lambda_.7} parent=0 // pred_check
    _
  $region27: #{_lambda_.7} parent=0 // pred_check_branch
    %445 = sbr.rel (0) target = $region29
  $region28: #{_lambda_.7} parent=0 // pred_region
    _
  $region29: #{_lambda_.7} parent=0 // pred_fallthru
    _

// kernel: _lambda_.6
$region0: #{_lambda_.6}
  #allocation0 [shape = 'u32[]', space=smem, size = 0x4, offset = 0x4, fixed_abs, tag = 'smem constant byte address 0x4 - core index']
  #allocation1 [shape = 'u32[144,128]{1,0:T(1,128)}', space=vmem, size = 0x12000, scoped, tag = 'internal scratch']
  %s0 = inlined_call_operand.vmem [shape: bf16[2,4,288,9], index: 0, kind: input, shape index: {}]
  %s1 = inlined_call_operand.vmem [shape: bf16[64,288], index: 1, kind: input, shape index: {}]
  %s2 = inlined_call_operand.vmem [shape: f32[64,1], index: 2, kind: input, shape index: {}]
  %s3 = inlined_call_operand.vmem [shape: bf16[2,64,9], index: 3, kind: output, shape index: {}]
  %s4 = sld [smem:[#allocation0]]
  $region45: #{_lambda_.6} parent=0
    _
  %s6 = ssub.s32 1, %s4
  %s7 = scalar_select 0, %s6, %s4
  loop: start=0, step=1, limit=4
  $region2: #{_lambda_.6} parent=0 // loop_pre_header
    _
  $region3: #{_lambda_.6} parent=0 // loop_header
    %s9 = sphi 0, %s13
    %p10 = scmp.ge.s32.totalorder %s9, 4
    %s19 = sphi 0, %s21
    %s22 = sphi 0, %s19
    %s23 = sphi 0, %s22
    %s39 = sphi 0, %s23
    %s43 = sphi 0, %s43
    %s45 = sphi 0, %s43
    %s46 = sphi 0, %s45
    %s60 = sphi 0, %s46
    %s64 = sphi 0, %s64
    %s66 = sphi 0, %s64
    %s67 = sphi 0, %s66
    %s81 = sphi 0, %s67
    %s87 = sphi 0, %s89
    %s90 = sphi 0, %s87
    %s91 = sphi 0, %s90
    %s107 = sphi 0, %s91
  $region4: #{_lambda_.6} parent=0 // loop_header_branch
    %12 = sbr.rel (%p10) target = $region8
  $region5: #{_lambda_.6} parent=0 // loop_body
    %s14 = ssub.s32 %s9, 1
    %s15 = ssub.s32 %s9, 2
    %s16 = sadd.s32 %s9, 1
    %s17 = ssub.s32 %s9, %s16
    %p18 = scmp.eq.s32.totalorder %s17, 0
    %s20 = sadd.s32 %s19, 1
    %s21 = scalar_select %p18, %s19, %s20
    %p24 = pneg %p18
    %p25 = scmp.eq.s32.totalorder %s9, 1
    %p26 = por %p24, %p25
    %p27 = scmp.ne.s32.totalorder %s19, %s22
    %p28 = scmp.eq.s32.totalorder %s9, 0
    %p29 = por %p27, %p28
    %p30 = scmp.ne.s32.totalorder %s19, %s22
    %p31 = scmp.eq.s32.totalorder %s14, 1
    %p32 = por %p30, %p31
    %p33 = scmp.ne.s32.totalorder %s22, %s23
    %p34 = scmp.eq.s32.totalorder %s14, 0
    %p35 = por %p33, %p34
    %p36 = scmp.ne.s32.totalorder %s22, %s23
    %p37 = scmp.eq.s32.totalorder %s15, 1
    %p38 = por %p36, %p37
    %p40 = scmp.ne.s32.totalorder %s23, %s39
    %p41 = scmp.eq.s32.totalorder %s15, 0
    %p42 = por %p40, %p41
    %s44 = sadd.s32 %s43, 1
    %p47 = scmp.eq.s32.totalorder %s9, 1
    %p48 = scmp.ne.s32.totalorder %s43, %s45
    %p49 = scmp.eq.s32.totalorder %s9, 0
    %p50 = por %p48, %p49
    %p51 = scmp.ne.s32.totalorder %s43, %s45
    %p52 = scmp.eq.s32.totalorder %s14, 1
    %p53 = por %p51, %p52
    %p54 = scmp.ne.s32.totalorder %s45, %s46
    %p55 = scmp.eq.s32.totalorder %s14, 0
    %p56 = por %p54, %p55
    %p57 = scmp.ne.s32.totalorder %s45, %s46
    %p58 = scmp.eq.s32.totalorder %s15, 1
    %p59 = por %p57, %p58
    %p61 = scmp.ne.s32.totalorder %s46, %s60
    %p62 = scmp.eq.s32.totalorder %s15, 0
    %p63 = por %p61, %p62
    %s65 = sadd.s32 %s64, 1
    %p68 = scmp.eq.s32.totalorder %s9, 1
    %p69 = scmp.ne.s32.totalorder %s64, %s66
    %p70 = scmp.eq.s32.totalorder %s9, 0
    %p71 = por %p69, %p70
    %p72 = scmp.ne.s32.totalorder %s64, %s66
    %p73 = scmp.eq.s32.totalorder %s14, 1
    %p74 = por %p72, %p73
    %p75 = scmp.ne.s32.totalorder %s66, %s67
    %p76 = scmp.eq.s32.totalorder %s14, 0
    %p77 = por %p75, %p76
    %p78 = scmp.ne.s32.totalorder %s66, %s67
    %p79 = scmp.eq.s32.totalorder %s15, 1
    %p80 = por %p78, %p79
    %p82 = scmp.ne.s32.totalorder %s67, %s81
    %p83 = scmp.eq.s32.totalorder %s15, 0
    %p84 = por %p82, %p83
    %s85 = ssub.s32 %s9, %s16
    %p86 = scmp.eq.s32.totalorder %s85, 0
    %s88 = sadd.s32 %s87, 1
    %s89 = scalar_select %p86, %s87, %s88
    %p92 = pneg %p86
    %p93 = scmp.eq.s32.totalorder %s9, 1
    %p94 = por %p92, %p93
    %p95 = scmp.ne.s32.totalorder %s87, %s90
    %p96 = scmp.eq.s32.totalorder %s9, 0
    %p97 = por %p95, %p96
    %p98 = scmp.ne.s32.totalorder %s87, %s90
    %p99 = scmp.eq.s32.totalorder %s14, 1
    %p100 = por %p98, %p99
    %p101 = scmp.ne.s32.totalorder %s90, %s91
    %p102 = scmp.eq.s32.totalorder %s14, 0
    %p103 = por %p101, %p102
    %p104 = scmp.ne.s32.totalorder %s90, %s91
    %p105 = scmp.eq.s32.totalorder %s15, 1
    %p106 = por %p104, %p105
    %p108 = scmp.ne.s32.totalorder %s91, %s107
    %p109 = scmp.eq.s32.totalorder %s15, 0
    %p110 = por %p108, %p109
    %p111 = scmp.le.s32.totalorder 1, %s9
    %p112 = scmp.lt.s32.totalorder %s9, 3
    %p113 = pnand %p111, %p112
    %p114 = pneg %p113
    // Predicated region
    $region9: #{_lambda_.6} parent=5 // pred_check
      _
    $region10: #{_lambda_.6} parent=5 // pred_check_branch
      %116 = sbr.rel (%p113) target = $region12
    $region11: #{_lambda_.6} parent=5 // pred_region
      %s117 = ssub.s32 %s9, 1
      // Predicated region
      $region13: #{_lambda_.6} parent=11 // pred_check
        %p118 = pneg %p56
      $region14: #{_lambda_.6} parent=11 // pred_check_branch
        %120 = sbr.rel (%p118) target = $region16
      $region15: #{_lambda_.6} parent=11 // pred_region
        _
      $region16: #{_lambda_.6} parent=11 // pred_fallthru
        _
      // Predicated region
      $region17: #{_lambda_.6} parent=11 // pred_check
        %p121 = pneg %p77
      $region18: #{_lambda_.6} parent=11 // pred_check_branch
        %123 = sbr.rel (%p121) target = $region20
      $region19: #{_lambda_.6} parent=11 // pred_region
        _
      $region20: #{_lambda_.6} parent=11 // pred_fallthru
        _
    $region12: #{_lambda_.6} parent=5 // pred_fallthru
      _
    %p124 = scmp.lt.s32.totalorder %s9, 2
    // Predicated region
    $region21: #{_lambda_.6} parent=5 // pred_check
      %p125 = pneg %p124
    $region22: #{_lambda_.6} parent=5 // pred_check_branch
      %127 = sbr.rel (%p125) target = $region24
    $region23: #{_lambda_.6} parent=5 // pred_region
      // Predicated region
      $region25: #{_lambda_.6} parent=23 // pred_check
        %p128 = pneg %p29
      $region26: #{_lambda_.6} parent=23 // pred_check_branch
        %130 = sbr.rel (%p128) target = $region28
      $region27: #{_lambda_.6} parent=23 // pred_region
        %p131 = scmp.lt.s32.totalorder %s9, 1
        %s132 = scalar_select %p131, %s9, 1
        %s133 = smul.addr %s132, 144
        %s134 = smul.addr %s133, 4
        %s135 = scalar_lea.vmem %s0, %s134
      $region28: #{_lambda_.6} parent=23 // pred_fallthru
        _
    $region24: #{_lambda_.6} parent=5 // pred_fallthru
      _
    %p136 = scmp.le.s32.totalorder 1, %s9
    %p137 = scmp.lt.s32.totalorder %s9, 3
    %p138 = pnand %p136, %p137
    %p139 = pneg %p138
    // Predicated region
    $region29: #{_lambda_.6} parent=5 // pred_check
      _
    $region30: #{_lambda_.6} parent=5 // pred_check_branch
      %141 = sbr.rel (%p138) target = $region32
    $region31: #{_lambda_.6} parent=5 // pred_region
      %s142 = ssub.s32 %s9, 1
      %p143 = scmp.lt.s32.totalorder %s14, 1
      %s144 = scalar_select %p143, %s14, 1
      %s145 = smul.addr %s144, 144
      %s146 = smul.addr %s145, 4
      %s147 = scalar_lea.vmem %s0, %s146
      %p148 = pneg %p35
      %p149 = pneg %p32
      %p150 = pneg %p56
      %p151 = pneg %p53
      %p152 = pneg %p77
      %p153 = pneg %p74
      %p154 = pneg %p103
      %p155 = pneg %p100
      %p156 = scmp.lt.s32.totalorder %s14, 1
      %s157 = scalar_select %p156, %s14, 1
      %s158 = smul.addr %s157, 8
      %s159 = smul.addr %s158, 4
      %s160 = scalar_lea.vmem %s3, %s159
      %p161 = scmp.lt.s32.totalorder %s14, 1
      %s162 = scalar_select %p161, %s14, 1
      %s163 = smul.addr %s162, 144
      %s164 = smul.addr %s163, 4
      %s165 = scalar_lea.vmem %s0, %s164
      %p166 = scmp.lt.s32.totalorder %s14, 1
      %s167 = scalar_select %p166, %s14, 1
      %s168 = smul.addr %s167, 8
      %s169 = smul.addr %s168, 4
      %s170 = scalar_lea.vmem %s3, %s169
      %v172 = vld [vmem:[%s1] sm:$0xff]
      %v173 = vld [vmem:[%s1 + $0x8] sm:$0xf]
      %v174 = vld [vmem:[%s1 + $0xc] sm:$0xff]
      %v175 = vld [vmem:[%s1 + $0x14] sm:$0xf]
      %v176 = vld [vmem:[%s1 + $0x18] sm:$0xff]
      %v177 = vld [vmem:[%s1 + $0x20] sm:$0xf]
      %v178 = vld [vmem:[%s1 + $0x24] sm:$0xff]
      %v179 = vld [vmem:[%s1 + $0x2c] sm:$0xf]
      %v180 = vld [vmem:[%s1 + $0x30] sm:$0xff]
      %v181 = vld [vmem:[%s1 + $0x38] sm:$0xf]
      %v182 = vld [vmem:[%s1 + $0x3c] sm:$0xff]
      %v183 = vld [vmem:[%s1 + $0x44] sm:$0xf]
      %v184 = vld [vmem:[%s1 + $0x48] sm:$0xff]
      %v185 = vld [vmem:[%s1 + $0x50] sm:$0xf]
      %v186 = vld [vmem:[%s1 + $0x54] sm:$0xff]
      %v187 = vld [vmem:[%s1 + $0x5c] sm:$0xf]
      %v188 = vld [vmem:[%s165] sm:$0xf]
      %v189 = vld [vmem:[%s165 + $0x4] sm:$0xf]
      %v190 = vld [vmem:[%s165 + $0x8] sm:$0xf]
      %v191 = vld [vmem:[%s165 + $0xc] sm:$0xf]
      %v192 = vld [vmem:[%s165 + $0x10] sm:$0xf]
      %v193 = vld [vmem:[%s165 + $0x14] sm:$0xf]
      %v194 = vld [vmem:[%s165 + $0x18] sm:$0xf]
      %v195 = vld [vmem:[%s165 + $0x1c] sm:$0xf]
      %v196 = vld [vmem:[%s165 + $0x20] sm:$0xf]
      %v197 = vld [vmem:[%s165 + $0x24] sm:$0xf]
      %v198 = vld [vmem:[%s165 + $0x28] sm:$0xf]
      %v199 = vld [vmem:[%s165 + $0x2c] sm:$0xf]
      %v200 = vld [vmem:[%s165 + $0x30] sm:$0xf]
      %v201 = vld [vmem:[%s165 + $0x34] sm:$0xf]
      %v202 = vld [vmem:[%s165 + $0x38] sm:$0xf]
      %v203 = vld [vmem:[%s165 + $0x3c] sm:$0xf]
      %v204 = vld [vmem:[%s165 + $0x40] sm:$0xf]
      %v205 = vld [vmem:[%s165 + $0x44] sm:$0xf]
      %v206 = vld [vmem:[%s165 + $0x48] sm:$0xf]
      %v207 = vld [vmem:[%s165 + $0x4c] sm:$0xf]
      %v208 = vld [vmem:[%s165 + $0x50] sm:$0xf]
      %v209 = vld [vmem:[%s165 + $0x54] sm:$0xf]
      %v210 = vld [vmem:[%s165 + $0x58] sm:$0xf]
      %v211 = vld [vmem:[%s165 + $0x5c] sm:$0xf]
      %v212 = vld [vmem:[%s165 + $0x60] sm:$0xf]
      %v213 = vld [vmem:[%s165 + $0x64] sm:$0xf]
      %v214 = vld [vmem:[%s165 + $0x68] sm:$0xf]
      %v215 = vld [vmem:[%s165 + $0x6c] sm:$0xf]
      %v216 = vld [vmem:[%s165 + $0x70] sm:$0xf]
      %v217 = vld [vmem:[%s165 + $0x74] sm:$0xf]
      %v218 = vld [vmem:[%s165 + $0x78] sm:$0xf]
      %v219 = vld [vmem:[%s165 + $0x7c] sm:$0xf]
      %v220 = vld [vmem:[%s165 + $0x80] sm:$0xf]
      %v221 = vld [vmem:[%s165 + $0x84] sm:$0xf]
      %v222 = vld [vmem:[%s165 + $0x88] sm:$0xf]
      %v223 = vld [vmem:[%s165 + $0x8c] sm:$0xf]
      %v240 = vunpack.c.l.b16 %v172
      %v241 = vunpack.c.h.b16 %v172
      %v242 = vunpack.c.l.b16 %v173
      %v243 = vunpack.c.l.b16 %v174
      %v244 = vunpack.c.h.b16 %v174
      %v245 = vunpack.c.l.b16 %v175
      %v246 = vunpack.c.l.b16 %v176
      %v247 = vunpack.c.h.b16 %v176
      %v248 = vunpack.c.l.b16 %v177
      %v249 = vunpack.c.l.b16 %v178
      %v250 = vunpack.c.h.b16 %v178
      %v251 = vunpack.c.l.b16 %v179
      %v252 = vunpack.c.l.b16 %v180
      %v253 = vunpack.c.h.b16 %v180
      %v254 = vunpack.c.l.b16 %v181
      %v255 = vunpack.c.l.b16 %v182
      %v256 = vunpack.c.h.b16 %v182
      %v257 = vunpack.c.l.b16 %v183
      %v258 = vunpack.c.l.b16 %v184
      %v259 = vunpack.c.h.b16 %v184
      %v260 = vunpack.c.l.b16 %v185
      %v261 = vunpack.c.l.b16 %v186
      %v262 = vunpack.c.h.b16 %v186
      %v263 = vunpack.c.l.b16 %v187
      %v264 = vpack.c.b16 %v243, %v240
      %v265 = vpack.c.b16 %v244, %v241
      %v266 = vpack.c.b16 %v245, %v242
      %v267 = vpack.c.b16 %v249, %v246
      %v268 = vpack.c.b16 %v250, %v247
      %v269 = vpack.c.b16 %v251, %v248
      %v270 = vpack.c.b16 %v255, %v252
      %v271 = vpack.c.b16 %v256, %v253
      %v272 = vpack.c.b16 %v257, %v254
      %v273 = vpack.c.b16 %v261, %v258
      %v274 = vpack.c.b16 %v262, %v259
      %v275 = vpack.c.b16 %v263, %v260
      %v320 = vunpack.c.l.b16 %v188
      %v321 = vunpack.c.l.b16 %v189
      %v322 = vunpack.c.l.b16 %v190
      %v323 = vunpack.c.l.b16 %v191
      %v324 = vunpack.c.l.b16 %v192
      %v325 = vunpack.c.l.b16 %v193
      %v326 = vunpack.c.l.b16 %v194
      %v327 = vunpack.c.l.b16 %v195
      %v328 = vunpack.c.l.b16 %v196
      %v329 = vunpack.c.l.b16 %v197
      %v330 = vunpack.c.l.b16 %v198
      %v331 = vunpack.c.l.b16 %v199
      %v332 = vunpack.c.l.b16 %v200
      %v333 = vunpack.c.l.b16 %v201
      %v334 = vunpack.c.l.b16 %v202
      %v335 = vunpack.c.l.b16 %v203
      %v336 = vunpack.c.l.b16 %v204
      %v337 = vunpack.c.l.b16 %v205
      %v338 = vunpack.c.l.b16 %v206
      %v339 = vunpack.c.l.b16 %v207
      %v340 = vunpack.c.l.b16 %v208
      %v341 = vunpack.c.l.b16 %v209
      %v342 = vunpack.c.l.b16 %v210
      %v343 = vunpack.c.l.b16 %v211
      %v344 = vunpack.c.l.b16 %v212
      %v345 = vunpack.c.l.b16 %v213
      %v346 = vunpack.c.l.b16 %v214
      %v347 = vunpack.c.l.b16 %v215
      %v348 = vunpack.c.l.b16 %v216
      %v349 = vunpack.c.l.b16 %v217
      %v350 = vunpack.c.l.b16 %v218
      %v351 = vunpack.c.l.b16 %v219
      %v352 = vunpack.c.l.b16 %v220
      %v353 = vunpack.c.l.b16 %v221
      %v354 = vunpack.c.l.b16 %v222
      %v355 = vunpack.c.l.b16 %v223
      %v356 = vpack.c.b16 %v321, %v320
      %v357 = vpack.c.b16 %v323, %v322
      %v358 = vpack.c.b16 %v325, %v324
      %v359 = vpack.c.b16 %v327, %v326
      %v360 = vpack.c.b16 %v329, %v328
      %v361 = vpack.c.b16 %v331, %v330
      %v362 = vpack.c.b16 %v333, %v332
      %v363 = vpack.c.b16 %v335, %v334
      %v364 = vpack.c.b16 %v337, %v336
      %v365 = vpack.c.b16 %v339, %v338
      %v366 = vpack.c.b16 %v341, %v340
      %v367 = vpack.c.b16 %v343, %v342
      %v368 = vpack.c.b16 %v345, %v344
      %v369 = vpack.c.b16 %v347, %v346
      %v370 = vpack.c.b16 %v349, %v348
      %v371 = vpack.c.b16 %v351, %v350
      %v372 = vpack.c.b16 %v353, %v352
      %v373 = vpack.c.b16 %v355, %v354
      %vm392 = vcmask 261120
      %v394 = vsel %vm392, %v266, 0
      %v397 = vsel %vm392, %v269, 0
      %v400 = vsel %vm392, %v272, 0
      %v403 = vsel %vm392, %v275, 0
      %405 = vmatprep.subr.bf16.mxu0 0
      %406 = vmatpush1.bf16.msra.mxu0 %v356
      %407 = vmatprep.subr.bf16.mxu0 0
      %408 = vmatpush1.bf16.msra.mxu0 %v357
      %409 = vmatprep.subr.bf16.mxu0 0
      %410 = vmatpush1.bf16.msra.mxu0 %v358
      %411 = vmatprep.subr.bf16.mxu0 0
      %412 = vmatpush1.bf16.msra.mxu0 %v359
      %413 = vmatprep.subr.bf16.mxu0 0
      %414 = vmatpush1.bf16.msra.mxu0 %v360
      %415 = vmatprep.subr.bf16.mxu0 0
      %416 = vmatpush1.bf16.msra.mxu0 %v361
      %417 = vmatprep.subr.bf16.mxu0 0
      %418 = vmatpush1.bf16.msra.mxu0 %v362
      %419 = vmatprep.subr.bf16.mxu0 0
      %420 = vmatpush1.bf16.msra.mxu0 %v363
      %421 = vmatprep.subr.bf16.mxu0 0
      %422 = vmatpush1.bf16.msra.mxu0 %v364
      %423 = vmatprep.subr.bf16.mxu0 0
      %424 = vmatpush1.bf16.msra.mxu0 %v365
      %425 = vmatprep.subr.bf16.mxu0 0
      %426 = vmatpush1.bf16.msra.mxu0 %v366
      %427 = vmatprep.subr.bf16.mxu0 0
      %428 = vmatpush1.bf16.msra.mxu0 %v367
      %429 = vmatprep.subr.bf16.mxu0 0
      %430 = vmatpush1.bf16.msra.mxu0 %v368
      %431 = vmatprep.subr.bf16.mxu0 0
      %432 = vmatpush1.bf16.msra.mxu0 %v369
      %433 = vmatprep.subr.bf16.mxu0 0
      %434 = vmatpush1.bf16.msra.mxu0 %v370
      %435 = vmatprep.subr.bf16.mxu0 0
      %436 = vmatpush1.bf16.msra.mxu0 %v371
      %437 = vmatprep.mubr.bf16.mxu0 %v265
      %438 = vmatmul.mubr.bf16.gmra.mrb[0].mxu0 %v264
      %v439 = vpop.f32.mrb[0].mxu0
      %v440 = vadd.f32 0.0, %v439
      %v441 = vpop.f32.mrb[0].mxu0
      %v442 = vpop.f32.mrb[0].mxu0
      %v443 = vadd.f32 0.0, %v442
      %v444 = vpop.f32.mrb[0].mxu0
      %445 = vmatprep.mubr.bf16.mxu0 %v268
      %446 = vmatmul.mubr.bf16.gmra.mrb[0].mxu0 %v267
      %v447 = vpop.f32.mrb[0].mxu0
      %v448 = vadd.f32 0.0, %v447
      %v449 = vpop.f32.mrb[0].mxu0
      %v450 = vpop.f32.mrb[0].mxu0
      %v451 = vadd.f32 0.0, %v450
      %v452 = vpop.f32.mrb[0].mxu0
      %453 = vmatprep.mubr.bf16.mxu0 %v271
      %454 = vmatmul.mubr.bf16.gmra.mrb[0].mxu0 %v270
      %v455 = vpop.f32.mrb[0].mxu0
      %v456 = vadd.f32 0.0, %v455
      %v457 = vpop.f32.mrb[0].mxu0
      %v458 = vpop.f32.mrb[0].mxu0
      %v459 = vadd.f32 0.0, %v458
      %v460 = vpop.f32.mrb[0].mxu0
      %461 = vmatprep.mubr.bf16.mxu0 %v274
      %462 = vmatmul.mubr.bf16.gmra.mrb[0].mxu0 %v273
      %v463 = vpop.f32.mrb[0].mxu0
      %v464 = vadd.f32 0.0, %v463
      %v465 = vpop.f32.mrb[0].mxu0
      %v466 = vpop.f32.mrb[0].mxu0
      %v467 = vadd.f32 0.0, %v466
      %v468 = vpop.f32.mrb[0].mxu0
      %469 = vdwg.mxu0
      %470 = vmatprep.subr.bf16.mxu0 0
      %471 = vmatpush1.bf16.msra.mxu0 %v372
      %472 = vmatprep.subr.bf16.mxu0 0
      %473 = vmatpush1.bf16.msra.mxu0 %v373
      %474 = vmatprep.subr.bf16.mxu0 0
      %475 = vmatpush1.bf16.msra.mxu0 0
      %476 = vmatprep.subr.bf16.mxu0 0
      %477 = vmatpush1.bf16.msra.mxu0 0
      %478 = vmatprep.subr.bf16.mxu0 0
      %479 = vmatpush1.bf16.msra.mxu0 0
      %480 = vmatprep.subr.bf16.mxu0 0
      %481 = vmatpush1.bf16.msra.mxu0 0
      %482 = vmatprep.subr.bf16.mxu0 0
      %483 = vmatpush1.bf16.msra.mxu0 0
      %484 = vmatprep.subr.bf16.mxu0 0
      %485 = vmatpush1.bf16.msra.mxu0 0
      %486 = vmatprep.subr.bf16.mxu0 0
      %487 = vmatpush1.bf16.msra.mxu0 0
      %488 = vmatprep.subr.bf16.mxu0 0
      %489 = vmatpush1.bf16.msra.mxu0 0
      %490 = vmatprep.subr.bf16.mxu0 0
      %491 = vmatpush1.bf16.msra.mxu0 0
      %492 = vmatprep.subr.bf16.mxu0 0
      %493 = vmatpush1.bf16.msra.mxu0 0
      %494 = vmatprep.subr.bf16.mxu0 0
      %495 = vmatpush1.bf16.msra.mxu0 0
      %496 = vmatprep.subr.bf16.mxu0 0
      %497 = vmatpush1.bf16.msra.mxu0 0
      %498 = vmatprep.subr.bf16.mxu0 0
      %499 = vmatpush1.bf16.msra.mxu0 0
      %500 = vmatprep.subr.bf16.mxu0 0
      %501 = vmatpush1.bf16.msra.mxu0 0
      %502 = vmatprep.mubr.bf16.mxu0 0
      %503 = vmatmul.mubr.bf16.gmra.mrb[0].mxu0 %v394
      %v504 = vpop.f32.mrb[0].mxu0
      %v505 = vadd.f32 %v440, %v504
      %v506 = vpop.f32.mrb[0].mxu0
      %v507 = vpop.f32.mrb[0].mxu0
      %v508 = vadd.f32 %v443, %v507
      %v509 = vpop.f32.mrb[0].mxu0
      %510 = vmatprep.mubr.bf16.mxu0 0
      %511 = vmatmul.mubr.bf16.gmra.mrb[0].mxu0 %v397
      %v512 = vpop.f32.mrb[0].mxu0
      %v513 = vadd.f32 %v448, %v512
      %v514 = vpop.f32.mrb[0].mxu0
      %v515 = vpop.f32.mrb[0].mxu0
      %v516 = vadd.f32 %v451, %v515
      %v517 = vpop.f32.mrb[0].mxu0
      %518 = vmatprep.mubr.bf16.mxu0 0
      %519 = vmatmul.mubr.bf16.gmra.mrb[0].mxu0 %v400
      %v520 = vpop.f32.mrb[0].mxu0
      %v521 = vadd.f32 %v456, %v520
      %v522 = vpop.f32.mrb[0].mxu0
      %v523 = vpop.f32.mrb[0].mxu0
      %v524 = vadd.f32 %v459, %v523
      %v525 = vpop.f32.mrb[0].mxu0
      %526 = vmatprep.mubr.bf16.mxu0 0
      %527 = vmatmul.mubr.bf16.gmra.mrb[0].mxu0 %v403
      %v528 = vpop.f32.mrb[0].mxu0
      %v529 = vadd.f32 %v464, %v528
      %v530 = vpop.f32.mrb[0].mxu0
      %v531 = vpop.f32.mrb[0].mxu0
      %v532 = vadd.f32 %v467, %v531
      %v533 = vpop.f32.mrb[0].mxu0
      %534 = vdwg.mxu0
      %s535 = scalar_lea.vmem %s165, 144
      %v536 = vld [vmem:[%s535] sm:$0xf]
      %v537 = vld [vmem:[%s535 + $0x4] sm:$0xf]
      %v538 = vld [vmem:[%s535 + $0x8] sm:$0xf]
      %v539 = vld [vmem:[%s535 + $0xc] sm:$0xf]
      %v540 = vld [vmem:[%s535 + $0x10] sm:$0xf]
      %v541 = vld [vmem:[%s535 + $0x14] sm:$0xf]
      %v542 = vld [vmem:[%s535 + $0x18] sm:$0xf]
      %v543 = vld [vmem:[%s535 + $0x1c] sm:$0xf]
      %v544 = vld [vmem:[%s535 + $0x20] sm:$0xf]
      %v545 = vld [vmem:[%s535 + $0x24] sm:$0xf]
      %v546 = vld [vmem:[%s535 + $0x28] sm:$0xf]
      %v547 = vld [vmem:[%s535 + $0x2c] sm:$0xf]
      %v548 = vld [vmem:[%s535 + $0x30] sm:$0xf]
      %v549 = vld [vmem:[%s535 + $0x34] sm:$0xf]
      %v550 = vld [vmem:[%s535 + $0x38] sm:$0xf]
      %v551 = vld [vmem:[%s535 + $0x3c] sm:$0xf]
      %v552 = vld [vmem:[%s535 + $0x40] sm:$0xf]
      %v553 = vld [vmem:[%s535 + $0x44] sm:$0xf]
      %v554 = vld [vmem:[%s535 + $0x48] sm:$0xf]
      %v555 = vld [vmem:[%s535 + $0x4c] sm:$0xf]
      %v556 = vld [vmem:[%s535 + $0x50] sm:$0xf]
      %v557 = vld [vmem:[%s535 + $0x54] sm:$0xf]
      %v558 = vld [vmem:[%s535 + $0x58] sm:$0xf]
      %v559 = vld [vmem:[%s535 + $0x5c] sm:$0xf]
      %v560 = vld [vmem:[%s535 + $0x60] sm:$0xf]
      %v561 = vld [vmem:[%s535 + $0x64] sm:$0xf]
      %v562 = vld [vmem:[%s535 + $0x68] sm:$0xf]
      %v563 = vld [vmem:[%s535 + $0x6c] sm:$0xf]
      %v564 = vld [vmem:[%s535 + $0x70] sm:$0xf]
      %v565 = vld [vmem:[%s535 + $0x74] sm:$0xf]
      %v566 = vld [vmem:[%s535 + $0x78] sm:$0xf]
      %v567 = vld [vmem:[%s535 + $0x7c] sm:$0xf]
      %v568 = vld [vmem:[%s535 + $0x80] sm:$0xf]
      %v569 = vld [vmem:[%s535 + $0x84] sm:$0xf]
      %v570 = vld [vmem:[%s535 + $0x88] sm:$0xf]
      %v571 = vld [vmem:[%s535 + $0x8c] sm:$0xf]
      %v608 = vunpack.c.l.b16 %v536
      %v609 = vunpack.c.l.b16 %v537
      %v610 = vunpack.c.l.b16 %v538
      %v611 = vunpack.c.l.b16 %v539
      %v612 = vunpack.c.l.b16 %v540
      %v613 = vunpack.c.l.b16 %v541
      %v614 = vunpack.c.l.b16 %v542
      %v615 = vunpack.c.l.b16 %v543
      %v616 = vunpack.c.l.b16 %v544
      %v617 = vunpack.c.l.b16 %v545
      %v618 = vunpack.c.l.b16 %v546
      %v619 = vunpack.c.l.b16 %v547
      %v620 = vunpack.c.l.b16 %v548
      %v621 = vunpack.c.l.b16 %v549
      %v622 = vunpack.c.l.b16 %v550
      %v623 = vunpack.c.l.b16 %v551
      %v624 = vunpack.c.l.b16 %v552
      %v625 = vunpack.c.l.b16 %v553
      %v626 = vunpack.c.l.b16 %v554
      %v627 = vunpack.c.l.b16 %v555
      %v628 = vunpack.c.l.b16 %v556
      %v629 = vunpack.c.l.b16 %v557
      %v630 = vunpack.c.l.b16 %v558
      %v631 = vunpack.c.l.b16 %v559
      %v632 = vunpack.c.l.b16 %v560
      %v633 = vunpack.c.l.b16 %v561
      %v634 = vunpack.c.l.b16 %v562
      %v635 = vunpack.c.l.b16 %v563
      %v636 = vunpack.c.l.b16 %v564
      %v637 = vunpack.c.l.b16 %v565
      %v638 = vunpack.c.l.b16 %v566
      %v639 = vunpack.c.l.b16 %v567
      %v640 = vunpack.c.l.b16 %v568
      %v641 = vunpack.c.l.b16 %v569
      %v642 = vunpack.c.l.b16 %v570
      %v643 = vunpack.c.l.b16 %v571
      %v644 = vpack.c.b16 %v609, %v608
      %v645 = vpack.c.b16 %v611, %v610
      %v646 = vpack.c.b16 %v613, %v612
      %v647 = vpack.c.b16 %v615, %v614
      %v648 = vpack.c.b16 %v617, %v616
      %v649 = vpack.c.b16 %v619, %v618
      %v650 = vpack.c.b16 %v621, %v620
      %v651 = vpack.c.b16 %v623, %v622
      %v652 = vpack.c.b16 %v625, %v624
      %v653 = vpack.c.b16 %v627, %v626
      %v654 = vpack.c.b16 %v629, %v628
      %v655 = vpack.c.b16 %v631, %v630
      %v656 = vpack.c.b16 %v633, %v632
      %v657 = vpack.c.b16 %v635, %v634
      %v658 = vpack.c.b16 %v637, %v636
      %v659 = vpack.c.b16 %v639, %v638
      %v660 = vpack.c.b16 %v641, %v640
      %v661 = vpack.c.b16 %v643, %v642
      %680 = vmatprep.subr.bf16.mxu0 0
      %681 = vmatpush1.bf16.msra.mxu0 %v644
      %682 = vmatprep.subr.bf16.mxu0 0
      %683 = vmatpush1.bf16.msra.mxu0 %v645
      %684 = vmatprep.subr.bf16.mxu0 0
      %685 = vmatpush1.bf16.msra.mxu0 %v646
      %686 = vmatprep.subr.bf16.mxu0 0
      %687 = vmatpush1.bf16.msra.mxu0 %v647
      %688 = vmatprep.subr.bf16.mxu0 0
      %689 = vmatpush1.bf16.msra.mxu0 %v648
      %690 = vmatprep.subr.bf16.mxu0 0
      %691 = vmatpush1.bf16.msra.mxu0 %v649
      %692 = vmatprep.subr.bf16.mxu0 0
      %693 = vmatpush1.bf16.msra.mxu0 %v650
      %694 = vmatprep.subr.bf16.mxu0 0
      %695 = vmatpush1.bf16.msra.mxu0 %v651
      %696 = vmatprep.subr.bf16.mxu0 0
      %697 = vmatpush1.bf16.msra.mxu0 %v652
      %698 = vmatprep.subr.bf16.mxu0 0
      %699 = vmatpush1.bf16.msra.mxu0 %v653
      %700 = vmatprep.subr.bf16.mxu0 0
      %701 = vmatpush1.bf16.msra.mxu0 %v654
      %702 = vmatprep.subr.bf16.mxu0 0
      %703 = vmatpush1.bf16.msra.mxu0 %v655
      %704 = vmatprep.subr.bf16.mxu0 0
      %705 = vmatpush1.bf16.msra.mxu0 %v656
      %706 = vmatprep.subr.bf16.mxu0 0
      %707 = vmatpush1.bf16.msra.mxu0 %v657
      %708 = vmatprep.subr.bf16.mxu0 0
      %709 = vmatpush1.bf16.msra.mxu0 %v658
      %710 = vmatprep.subr.bf16.mxu0 0
      %711 = vmatpush1.bf16.msra.mxu0 %v659
      %712 = vmatprep.mubr.bf16.mxu0 %v265
      %713 = vmatmul.mubr.bf16.gmra.mrb[0].mxu0 %v264
      %v714 = vpop.f32.mrb[0].mxu0
      %v715 = vadd.f32 0.0, %v714
      %v716 = vpop.f32.mrb[0].mxu0
      %v717 = vpop.f32.mrb[0].mxu0
      %v718 = vadd.f32 0.0, %v717
      %v719 = vpop.f32.mrb[0].mxu0
      %720 = vmatprep.mubr.bf16.mxu0 %v268
      %721 = vmatmul.mubr.bf16.gmra.mrb[0].mxu0 %v267
      %v722 = vpop.f32.mrb[0].mxu0
      %v723 = vadd.f32 0.0, %v722
      %v724 = vpop.f32.mrb[0].mxu0
      %v725 = vpop.f32.mrb[0].mxu0
      %v726 = vadd.f32 0.0, %v725
      %v727 = vpop.f32.mrb[0].mxu0
      %728 = vmatprep.mubr.bf16.mxu0 %v271
      %729 = vmatmul.mubr.bf16.gmra.mrb[0].mxu0 %v270
      %v730 = vpop.f32.mrb[0].mxu0
      %v731 = vadd.f32 0.0, %v730
      %v732 = vpop.f32.mrb[0].mxu0
      %v733 = vpop.f32.mrb[0].mxu0
      %v734 = vadd.f32 0.0, %v733
      %v735 = vpop.f32.mrb[0].mxu0
      %736 = vmatprep.mubr.bf16.mxu0 %v274
      %737 = vmatmul.mubr.bf16.gmra.mrb[0].mxu0 %v273
      %v738 = vpop.f32.mrb[0].mxu0
      %v739 = vadd.f32 0.0, %v738
      %v740 = vpop.f32.mrb[0].mxu0
      %v741 = vpop.f32.mrb[0].mxu0
      %v742 = vadd.f32 0.0, %v741
      %v743 = vpop.f32.mrb[0].mxu0
      %744 = vdwg.mxu0
      %745 = vmatprep.subr.bf16.mxu0 0
      %746 = vmatpush1.bf16.msra.mxu0 %v660
      %747 = vmatprep.subr.bf16.mxu0 0
      %748 = vmatpush1.bf16.msra.mxu0 %v661
      %749 = vmatprep.subr.bf16.mxu0 0
      %750 = vmatpush1.bf16.msra.mxu0 0
      %751 = vmatprep.subr.bf16.mxu0 0
      %752 = vmatpush1.bf16.msra.mxu0 0
      %753 = vmatprep.subr.bf16.mxu0 0
      %754 = vmatpush1.bf16.msra.mxu0 0
      %755 = vmatprep.subr.bf16.mxu0 0
      %756 = vmatpush1.bf16.msra.mxu0 0
      %757 = vmatprep.subr.bf16.mxu0 0
      %758 = vmatpush1.bf16.msra.mxu0 0
      %759 = vmatprep.subr.bf16.mxu0 0
      %760 = vmatpush1.bf16.msra.mxu0 0
      %761 = vmatprep.subr.bf16.mxu0 0
      %762 = vmatpush1.bf16.msra.mxu0 0
      %763 = vmatprep.subr.bf16.mxu0 0
      %764 = vmatpush1.bf16.msra.mxu0 0
      %765 = vmatprep.subr.bf16.mxu0 0
      %766 = vmatpush1.bf16.msra.mxu0 0
      %767 = vmatprep.subr.bf16.mxu0 0
      %768 = vmatpush1.bf16.msra.mxu0 0
      %769 = vmatprep.subr.bf16.mxu0 0
      %770 = vmatpush1.bf16.msra.mxu0 0
      %771 = vmatprep.subr.bf16.mxu0 0
      %772 = vmatpush1.bf16.msra.mxu0 0
      %773 = vmatprep.subr.bf16.mxu0 0
      %774 = vmatpush1.bf16.msra.mxu0 0
      %775 = vmatprep.subr.bf16.mxu0 0
      %776 = vmatpush1.bf16.msra.mxu0 0
      %777 = vmatprep.mubr.bf16.mxu0 0
      %778 = vmatmul.mubr.bf16.gmra.mrb[0].mxu0 %v394
      %v779 = vpop.f32.mrb[0].mxu0
      %v780 = vadd.f32 %v715, %v779
      %v781 = vpop.f32.mrb[0].mxu0
      %v782 = vpop.f32.mrb[0].mxu0
      %v783 = vadd.f32 %v718, %v782
      %v784 = vpop.f32.mrb[0].mxu0
      %785 = vmatprep.mubr.bf16.mxu0 0
      %786 = vmatmul.mubr.bf16.gmra.mrb[0].mxu0 %v397
      %v787 = vpop.f32.mrb[0].mxu0
      %v788 = vadd.f32 %v723, %v787
      %v789 = vpop.f32.mrb[0].mxu0
      %v790 = vpop.f32.mrb[0].mxu0
      %v791 = vadd.f32 %v726, %v790
      %v792 = vpop.f32.mrb[0].mxu0
      %793 = vmatprep.mubr.bf16.mxu0 0
      %794 = vmatmul.mubr.bf16.gmra.mrb[0].mxu0 %v400
      %v795 = vpop.f32.mrb[0].mxu0
      %v796 = vadd.f32 %v731, %v795
      %v797 = vpop.f32.mrb[0].mxu0
      %v798 = vpop.f32.mrb[0].mxu0
      %v799 = vadd.f32 %v734, %v798
      %v800 = vpop.f32.mrb[0].mxu0
      %801 = vmatprep.mubr.bf16.mxu0 0
      %802 = vmatmul.mubr.bf16.gmra.mrb[0].mxu0 %v403
      %v803 = vpop.f32.mrb[0].mxu0
      %v804 = vadd.f32 %v739, %v803
      %v805 = vpop.f32.mrb[0].mxu0
      %v806 = vpop.f32.mrb[0].mxu0
      %v807 = vadd.f32 %v742, %v806
      %v808 = vpop.f32.mrb[0].mxu0
      %809 = vdwg.mxu0
      %v810 = vmax.f32 %v505, %v780
      %v811 = vmax.f32 %v508, %v783
      %v812 = vmax.f32 %v513, %v788
      %v813 = vmax.f32 %v516, %v791
      %v814 = vmax.f32 %v521, %v796
      %v815 = vmax.f32 %v524, %v799
      %v816 = vmax.f32 %v529, %v804
      %v817 = vmax.f32 %v532, %v807
      %s818 = scalar_lea.vmem %s165, 288
      %v819 = vld [vmem:[%s818] sm:$0xf]
      %v820 = vld [vmem:[%s818 + $0x4] sm:$0xf]
      %v821 = vld [vmem:[%s818 + $0x8] sm:$0xf]
      %v822 = vld [vmem:[%s818 + $0xc] sm:$0xf]
      %v823 = vld [vmem:[%s818 + $0x10] sm:$0xf]
      %v824 = vld [vmem:[%s818 + $0x14] sm:$0xf]
      %v825 = vld [vmem:[%s818 + $0x18] sm:$0xf]
      %v826 = vld [vmem:[%s818 + $0x1c] sm:$0xf]
      %v827 = vld [vmem:[%s818 + $0x20] sm:$0xf]
      %v828 = vld [vmem:[%s818 + $0x24] sm:$0xf]
      %v829 = vld [vmem:[%s818 + $0x28] sm:$0xf]
      %v830 = vld [vmem:[%s818 + $0x2c] sm:$0xf]
      %v831 = vld [vmem:[%s818 + $0x30] sm:$0xf]
      %v832 = vld [vmem:[%s818 + $0x34] sm:$0xf]
      %v833 = vld [vmem:[%s818 + $0x38] sm:$0xf]
      %v834 = vld [vmem:[%s818 + $0x3c] sm:$0xf]
      %v835 = vld [vmem:[%s818 + $0x40] sm:$0xf]
      %v836 = vld [vmem:[%s818 + $0x44] sm:$0xf]
      %v837 = vld [vmem:[%s818 + $0x48] sm:$0xf]
      %v838 = vld [vmem:[%s818 + $0x4c] sm:$0xf]
      %v839 = vld [vmem:[%s818 + $0x50] sm:$0xf]
      %v840 = vld [vmem:[%s818 + $0x54] sm:$0xf]
      %v841 = vld [vmem:[%s818 + $0x58] sm:$0xf]
      %v842 = vld [vmem:[%s818 + $0x5c] sm:$0xf]
      %v843 = vld [vmem:[%s818 + $0x60] sm:$0xf]
      %v844 = vld [vmem:[%s818 + $0x64] sm:$0xf]
      %v845 = vld [vmem:[%s818 + $0x68] sm:$0xf]
      %v846 = vld [vmem:[%s818 + $0x6c] sm:$0xf]
      %v847 = vld [vmem:[%s818 + $0x70] sm:$0xf]
      %v848 = vld [vmem:[%s818 + $0x74] sm:$0xf]
      %v849 = vld [vmem:[%s818 + $0x78] sm:$0xf]
      %v850 = vld [vmem:[%s818 + $0x7c] sm:$0xf]
      %v851 = vld [vmem:[%s818 + $0x80] sm:$0xf]
      %v852 = vld [vmem:[%s818 + $0x84] sm:$0xf]
      %v853 = vld [vmem:[%s818 + $0x88] sm:$0xf]
      %v854 = vld [vmem:[%s818 + $0x8c] sm:$0xf]
      %v891 = vunpack.c.l.b16 %v819
      %v892 = vunpack.c.l.b16 %v820
      %v893 = vunpack.c.l.b16 %v821
      %v894 = vunpack.c.l.b16 %v822
      %v895 = vunpack.c.l.b16 %v823
      %v896 = vunpack.c.l.b16 %v824
      %v897 = vunpack.c.l.b16 %v825
      %v898 = vunpack.c.l.b16 %v826
      %v899 = vunpack.c.l.b16 %v827
      %v900 = vunpack.c.l.b16 %v828
      %v901 = vunpack.c.l.b16 %v829
      %v902 = vunpack.c.l.b16 %v830
      %v903 = vunpack.c.l.b16 %v831
      %v904 = vunpack.c.l.b16 %v832
      %v905 = vunpack.c.l.b16 %v833
      %v906 = vunpack.c.l.b16 %v834
      %v907 = vunpack.c.l.b16 %v835
      %v908 = vunpack.c.l.b16 %v836
      %v909 = vunpack.c.l.b16 %v837
      %v910 = vunpack.c.l.b16 %v838
      %v911 = vunpack.c.l.b16 %v839
      %v912 = vunpack.c.l.b16 %v840
      %v913 = vunpack.c.l.b16 %v841
      %v914 = vunpack.c.l.b16 %v842
      %v915 = vunpack.c.l.b16 %v843
      %v916 = vunpack.c.l.b16 %v844
      %v917 = vunpack.c.l.b16 %v845
      %v918 = vunpack.c.l.b16 %v846
      %v919 = vunpack.c.l.b16 %v847
      %v920 = vunpack.c.l.b16 %v848
      %v921 = vunpack.c.l.b16 %v849
      %v922 = vunpack.c.l.b16 %v850
      %v923 = vunpack.c.l.b16 %v851
      %v924 = vunpack.c.l.b16 %v852
      %v925 = vunpack.c.l.b16 %v853
      %v926 = vunpack.c.l.b16 %v854
      %v927 = vpack.c.b16 %v892, %v891
      %v928 = vpack.c.b16 %v894, %v893
      %v929 = vpack.c.b16 %v896, %v895
      %v930 = vpack.c.b16 %v898, %v897
      %v931 = vpack.c.b16 %v900, %v899
      %v932 = vpack.c.b16 %v902, %v901
      %v933 = vpack.c.b16 %v904, %v903
      %v934 = vpack.c.b16 %v906, %v905
      %v935 = vpack.c.b16 %v908, %v907
      %v936 = vpack.c.b16 %v910, %v909
      %v937 = vpack.c.b16 %v912, %v911
      %v938 = vpack.c.b16 %v914, %v913
      %v939 = vpack.c.b16 %v916, %v915
      %v940 = vpack.c.b16 %v918, %v917
      %v941 = vpack.c.b16 %v920, %v919
      %v942 = vpack.c.b16 %v922, %v921
      %v943 = vpack.c.b16 %v924, %v923
      %v944 = vpack.c.b16 %v926, %v925
      %963 = vmatprep.subr.bf16.mxu0 0
      %964 = vmatpush1.bf16.msra.mxu0 %v927
      %965 = vmatprep.subr.bf16.mxu0 0
      %966 = vmatpush1.bf16.msra.mxu0 %v928
      %967 = vmatprep.subr.bf16.mxu0 0
      %968 = vmatpush1.bf16.msra.mxu0 %v929
      %969 = vmatprep.subr.bf16.mxu0 0
      %970 = vmatpush1.bf16.msra.mxu0 %v930
      %971 = vmatprep.subr.bf16.mxu0 0
      %972 = vmatpush1.bf16.msra.mxu0 %v931
      %973 = vmatprep.subr.bf16.mxu0 0
      %974 = vmatpush1.bf16.msra.mxu0 %v932
      %975 = vmatprep.subr.bf16.mxu0 0
      %976 = vmatpush1.bf16.msra.mxu0 %v933
      %977 = vmatprep.subr.bf16.mxu0 0
      %978 = vmatpush1.bf16.msra.mxu0 %v934
      %979 = vmatprep.subr.bf16.mxu0 0
      %980 = vmatpush1.bf16.msra.mxu0 %v935
      %981 = vmatprep.subr.bf16.mxu0 0
      %982 = vmatpush1.bf16.msra.mxu0 %v936
      %983 = vmatprep.subr.bf16.mxu0 0
      %984 = vmatpush1.bf16.msra.mxu0 %v937
      %985 = vmatprep.subr.bf16.mxu0 0
      %986 = vmatpush1.bf16.msra.mxu0 %v938
      %987 = vmatprep.subr.bf16.mxu0 0
      %988 = vmatpush1.bf16.msra.mxu0 %v939
      %989 = vmatprep.subr.bf16.mxu0 0
      %990 = vmatpush1.bf16.msra.mxu0 %v940
      %991 = vmatprep.subr.bf16.mxu0 0
      %992 = vmatpush1.bf16.msra.mxu0 %v941
      %993 = vmatprep.subr.bf16.mxu0 0
      %994 = vmatpush1.bf16.msra.mxu0 %v942
      %995 = vmatprep.mubr.bf16.mxu0 %v265
      %996 = vmatmul.mubr.bf16.gmra.mrb[0].mxu0 %v264
      %v997 = vpop.f32.mrb[0].mxu0
      %v998 = vadd.f32 0.0, %v997
      %v999 = vpop.f32.mrb[0].mxu0
      %v1000 = vpop.f32.mrb[0].mxu0
      %v1001 = vadd.f32 0.0, %v1000
      %v1002 = vpop.f32.mrb[0].mxu0
      %1003 = vmatprep.mubr.bf16.mxu0 %v268
      %1004 = vmatmul.mubr.bf16.gmra.mrb[0].mxu0 %v267
      %v1005 = vpop.f32.mrb[0].mxu0
      %v1006 = vadd.f32 0.0, %v1005
      %v1007 = vpop.f32.mrb[0].mxu0
      %v1008 = vpop.f32.mrb[0].mxu0
      %v1009 = vadd.f32 0.0, %v1008
      %v1010 = vpop.f32.mrb[0].mxu0
      %1011 = vmatprep.mubr.bf16.mxu0 %v271
      %1012 = vmatmul.mubr.bf16.gmra.mrb[0].mxu0 %v270
      %v1013 = vpop.f32.mrb[0].mxu0
      %v1014 = vadd.f32 0.0, %v1013
      %v1015 = vpop.f32.mrb[0].mxu0
      %v1016 = vpop.f32.mrb[0].mxu0
      %v1017 = vadd.f32 0.0, %v1016
      %v1018 = vpop.f32.mrb[0].mxu0
      %1019 = vmatprep.mubr.bf16.mxu0 %v274
      %1020 = vmatmul.mubr.bf16.gmra.mrb[0].mxu0 %v273
      %v1021 = vpop.f32.mrb[0].mxu0
      %v1022 = vadd.f32 0.0, %v1021
      %v1023 = vpop.f32.mrb[0].mxu0
      %v1024 = vpop.f32.mrb[0].mxu0
      %v1025 = vadd.f32 0.0, %v1024
      %v1026 = vpop.f32.mrb[0].mxu0
      %1027 = vdwg.mxu0
      %1028 = vmatprep.subr.bf16.mxu0 0
      %1029 = vmatpush1.bf16.msra.mxu0 %v943
      %1030 = vmatprep.subr.bf16.mxu0 0
      %1031 = vmatpush1.bf16.msra.mxu0 %v944
      %1032 = vmatprep.subr.bf16.mxu0 0
      %1033 = vmatpush1.bf16.msra.mxu0 0
      %1034 = vmatprep.subr.bf16.mxu0 0
      %1035 = vmatpush1.bf16.msra.mxu0 0
      %1036 = vmatprep.subr.bf16.mxu0 0
      %1037 = vmatpush1.bf16.msra.mxu0 0
      %1038 = vmatprep.subr.bf16.mxu0 0
      %1039 = vmatpush1.bf16.msra.mxu0 0
      %1040 = vmatprep.subr.bf16.mxu0 0
      %1041 = vmatpush1.bf16.msra.mxu0 0
      %1042 = vmatprep.subr.bf16.mxu0 0
      %1043 = vmatpush1.bf16.msra.mxu0 0
      %1044 = vmatprep.subr.bf16.mxu0 0
      %1045 = vmatpush1.bf16.msra.mxu0 0
      %1046 = vmatprep.subr.bf16.mxu0 0
      %1047 = vmatpush1.bf16.msra.mxu0 0
      %1048 = vmatprep.subr.bf16.mxu0 0
      %1049 = vmatpush1.bf16.msra.mxu0 0
      %1050 = vmatprep.subr.bf16.mxu0 0
      %1051 = vmatpush1.bf16.msra.mxu0 0
      %1052 = vmatprep.subr.bf16.mxu0 0
      %1053 = vmatpush1.bf16.msra.mxu0 0
      %1054 = vmatprep.subr.bf16.mxu0 0
      %1055 = vmatpush1.bf16.msra.mxu0 0
      %1056 = vmatprep.subr.bf16.mxu0 0
      %1057 = vmatpush1.bf16.msra.mxu0 0
      %1058 = vmatprep.subr.bf16.mxu0 0
      %1059 = vmatpush1.bf16.msra.mxu0 0
      %1060 = vmatprep.mubr.bf16.mxu0 0
      %1061 = vmatmul.mubr.bf16.gmra.mrb[0].mxu0 %v394
      %v1062 = vpop.f32.mrb[0].mxu0
      %v1063 = vadd.f32 %v998, %v1062
      %v1064 = vpop.f32.mrb[0].mxu0
      %v1065 = vpop.f32.mrb[0].mxu0
      %v1066 = vadd.f32 %v1001, %v1065
      %v1067 = vpop.f32.mrb[0].mxu0
      %1068 = vmatprep.mubr.bf16.mxu0 0
      %1069 = vmatmul.mubr.bf16.gmra.mrb[0].mxu0 %v397
      %v1070 = vpop.f32.mrb[0].mxu0
      %v1071 = vadd.f32 %v1006, %v1070
      %v1072 = vpop.f32.mrb[0].mxu0
      %v1073 = vpop.f32.mrb[0].mxu0
      %v1074 = vadd.f32 %v1009, %v1073
      %v1075 = vpop.f32.mrb[0].mxu0
      %1076 = vmatprep.mubr.bf16.mxu0 0
      %1077 = vmatmul.mubr.bf16.gmra.mrb[0].mxu0 %v400
      %v1078 = vpop.f32.mrb[0].mxu0
      %v1079 = vadd.f32 %v1014, %v1078
      %v1080 = vpop.f32.mrb[0].mxu0
      %v1081 = vpop.f32.mrb[0].mxu0
      %v1082 = vadd.f32 %v1017, %v1081
      %v1083 = vpop.f32.mrb[0].mxu0
      %1084 = vmatprep.mubr.bf16.mxu0 0
      %1085 = vmatmul.mubr.bf16.gmra.mrb[0].mxu0 %v403
      %v1086 = vpop.f32.mrb[0].mxu0
      %v1087 = vadd.f32 %v1022, %v1086
      %v1088 = vpop.f32.mrb[0].mxu0
      %v1089 = vpop.f32.mrb[0].mxu0
      %v1090 = vadd.f32 %v1025, %v1089
      %v1091 = vpop.f32.mrb[0].mxu0
      %1092 = vdwg.mxu0
      %v1093 = vmax.f32 %v810, %v1063
      %v1094 = vmax.f32 %v811, %v1066
      %v1095 = vmax.f32 %v812, %v1071
      %v1096 = vmax.f32 %v813, %v1074
      %v1097 = vmax.f32 %v814, %v1079
      %v1098 = vmax.f32 %v815, %v1082
      %v1099 = vmax.f32 %v816, %v1087
      %v1100 = vmax.f32 %v817, %v1090
      %s1101 = scalar_lea.vmem %s165, 432
      %v1102 = vld [vmem:[%s1101] sm:$0xf]
      %v1103 = vld [vmem:[%s1101 + $0x4] sm:$0xf]
      %v1104 = vld [vmem:[%s1101 + $0x8] sm:$0xf]
      %v1105 = vld [vmem:[%s1101 + $0xc] sm:$0xf]
      %v1106 = vld [vmem:[%s1101 + $0x10] sm:$0xf]
      %v1107 = vld [vmem:[%s1101 + $0x14] sm:$0xf]
      %v1108 = vld [vmem:[%s1101 + $0x18] sm:$0xf]
      %v1109 = vld [vmem:[%s1101 + $0x1c] sm:$0xf]
      %v1110 = vld [vmem:[%s1101 + $0x20] sm:$0xf]
      %v1111 = vld [vmem:[%s1101 + $0x24] sm:$0xf]
      %v1112 = vld [vmem:[%s1101 + $0x28] sm:$0xf]
      %v1113 = vld [vmem:[%s1101 + $0x2c] sm:$0xf]
      %v1114 = vld [vmem:[%s1101 + $0x30] sm:$0xf]
      %v1115 = vld [vmem:[%s1101 + $0x34] sm:$0xf]
      %v1116 = vld [vmem:[%s1101 + $0x38] sm:$0xf]
      %v1117 = vld [vmem:[%s1101 + $0x3c] sm:$0xf]
      %v1118 = vld [vmem:[%s1101 + $0x40] sm:$0xf]
      %v1119 = vld [vmem:[%s1101 + $0x44] sm:$0xf]
      %v1120 = vld [vmem:[%s1101 + $0x48] sm:$0xf]
      %v1121 = vld [vmem:[%s1101 + $0x4c] sm:$0xf]
      %v1122 = vld [vmem:[%s1101 + $0x50] sm:$0xf]
      %v1123 = vld [vmem:[%s1101 + $0x54] sm:$0xf]
      %v1124 = vld [vmem:[%s1101 + $0x58] sm:$0xf]
      %v1125 = vld [vmem:[%s1101 + $0x5c] sm:$0xf]
      %v1126 = vld [vmem:[%s1101 + $0x60] sm:$0xf]
      %v1127 = vld [vmem:[%s1101 + $0x64] sm:$0xf]
      %v1128 = vld [vmem:[%s1101 + $0x68] sm:$0xf]
      %v1129 = vld [vmem:[%s1101 + $0x6c] sm:$0xf]
      %v1130 = vld [vmem:[%s1101 + $0x70] sm:$0xf]
      %v1131 = vld [vmem:[%s1101 + $0x74] sm:$0xf]
      %v1132 = vld [vmem:[%s1101 + $0x78] sm:$0xf]
      %v1133 = vld [vmem:[%s1101 + $0x7c] sm:$0xf]
      %v1134 = vld [vmem:[%s1101 + $0x80] sm:$0xf]
      %v1135 = vld [vmem:[%s1101 + $0x84] sm:$0xf]
      %v1136 = vld [vmem:[%s1101 + $0x88] sm:$0xf]
      %v1137 = vld [vmem:[%s1101 + $0x8c] sm:$0xf]
      %v1174 = vunpack.c.l.b16 %v1102
      %v1175 = vunpack.c.l.b16 %v1103
      %v1176 = vunpack.c.l.b16 %v1104
      %v1177 = vunpack.c.l.b16 %v1105
      %v1178 = vunpack.c.l.b16 %v1106
      %v1179 = vunpack.c.l.b16 %v1107
      %v1180 = vunpack.c.l.b16 %v1108
      %v1181 = vunpack.c.l.b16 %v1109
      %v1182 = vunpack.c.l.b16 %v1110
      %v1183 = vunpack.c.l.b16 %v1111
      %v1184 = vunpack.c.l.b16 %v1112
      %v1185 = vunpack.c.l.b16 %v1113
      %v1186 = vunpack.c.l.b16 %v1114
      %v1187 = vunpack.c.l.b16 %v1115
      %v1188 = vunpack.c.l.b16 %v1116
      %v1189 = vunpack.c.l.b16 %v1117
      %v1190 = vunpack.c.l.b16 %v1118
      %v1191 = vunpack.c.l.b16 %v1119
      %v1192 = vunpack.c.l.b16 %v1120
      %v1193 = vunpack.c.l.b16 %v1121
      %v1194 = vunpack.c.l.b16 %v1122
      %v1195 = vunpack.c.l.b16 %v1123
      %v1196 = vunpack.c.l.b16 %v1124
      %v1197 = vunpack.c.l.b16 %v1125
      %v1198 = vunpack.c.l.b16 %v1126
      %v1199 = vunpack.c.l.b16 %v1127
      %v1200 = vunpack.c.l.b16 %v1128
      %v1201 = vunpack.c.l.b16 %v1129
      %v1202 = vunpack.c.l.b16 %v1130
      %v1203 = vunpack.c.l.b16 %v1131
      %v1204 = vunpack.c.l.b16 %v1132
      %v1205 = vunpack.c.l.b16 %v1133
      %v1206 = vunpack.c.l.b16 %v1134
      %v1207 = vunpack.c.l.b16 %v1135
      %v1208 = vunpack.c.l.b16 %v1136
      %v1209 = vunpack.c.l.b16 %v1137
      %v1210 = vpack.c.b16 %v1175, %v1174
      %v1211 = vpack.c.b16 %v1177, %v1176
      %v1212 = vpack.c.b16 %v1179, %v1178
      %v1213 = vpack.c.b16 %v1181, %v1180
      %v1214 = vpack.c.b16 %v1183, %v1182
      %v1215 = vpack.c.b16 %v1185, %v1184
      %v1216 = vpack.c.b16 %v1187, %v1186
      %v1217 = vpack.c.b16 %v1189, %v1188
      %v1218 = vpack.c.b16 %v1191, %v1190
      %v1219 = vpack.c.b16 %v1193, %v1192
      %v1220 = vpack.c.b16 %v1195, %v1194
      %v1221 = vpack.c.b16 %v1197, %v1196
      %v1222 = vpack.c.b16 %v1199, %v1198
      %v1223 = vpack.c.b16 %v1201, %v1200
      %v1224 = vpack.c.b16 %v1203, %v1202
      %v1225 = vpack.c.b16 %v1205, %v1204
      %v1226 = vpack.c.b16 %v1207, %v1206
      %v1227 = vpack.c.b16 %v1209, %v1208
      %1246 = vmatprep.subr.bf16.mxu0 0
      %1247 = vmatpush1.bf16.msra.mxu0 %v1210
      %1248 = vmatprep.subr.bf16.mxu0 0
      %1249 = vmatpush1.bf16.msra.mxu0 %v1211
      %1250 = vmatprep.subr.bf16.mxu0 0
      %1251 = vmatpush1.bf16.msra.mxu0 %v1212
      %1252 = vmatprep.subr.bf16.mxu0 0
      %1253 = vmatpush1.bf16.msra.mxu0 %v1213
      %1254 = vmatprep.subr.bf16.mxu0 0
      %1255 = vmatpush1.bf16.msra.mxu0 %v1214
      %1256 = vmatprep.subr.bf16.mxu0 0
      %1257 = vmatpush1.bf16.msra.mxu0 %v1215
      %1258 = vmatprep.subr.bf16.mxu0 0
      %1259 = vmatpush1.bf16.msra.mxu0 %v1216
      %1260 = vmatprep.subr.bf16.mxu0 0
      %1261 = vmatpush1.bf16.msra.mxu0 %v1217
      %1262 = vmatprep.subr.bf16.mxu0 0
      %1263 = vmatpush1.bf16.msra.mxu0 %v1218
      %1264 = vmatprep.subr.bf16.mxu0 0
      %1265 = vmatpush1.bf16.msra.mxu0 %v1219
      %1266 = vmatprep.subr.bf16.mxu0 0
      %1267 = vmatpush1.bf16.msra.mxu0 %v1220
      %1268 = vmatprep.subr.bf16.mxu0 0
      %1269 = vmatpush1.bf16.msra.mxu0 %v1221
      %1270 = vmatprep.subr.bf16.mxu0 0
      %1271 = vmatpush1.bf16.msra.mxu0 %v1222
      %1272 = vmatprep.subr.bf16.mxu0 0
      %1273 = vmatpush1.bf16.msra.mxu0 %v1223
      %1274 = vmatprep.subr.bf16.mxu0 0
      %1275 = vmatpush1.bf16.msra.mxu0 %v1224
      %1276 = vmatprep.subr.bf16.mxu0 0
      %1277 = vmatpush1.bf16.msra.mxu0 %v1225
      %1278 = vmatprep.mubr.bf16.mxu0 %v265
      %1279 = vmatmul.mubr.bf16.gmra.mrb[0].mxu0 %v264
      %v1280 = vpop.f32.mrb[0].mxu0
      %v1281 = vadd.f32 0.0, %v1280
      %v1282 = vpop.f32.mrb[0].mxu0
      %v1283 = vpop.f32.mrb[0].mxu0
      %v1284 = vadd.f32 0.0, %v1283
      %v1285 = vpop.f32.mrb[0].mxu0
      %1286 = vmatprep.mubr.bf16.mxu0 %v268
      %1287 = vmatmul.mubr.bf16.gmra.mrb[0].mxu0 %v267
      %v1288 = vpop.f32.mrb[0].mxu0
      %v1289 = vadd.f32 0.0, %v1288
      %v1290 = vpop.f32.mrb[0].mxu0
      %v1291 = vpop.f32.mrb[0].mxu0
      %v1292 = vadd.f32 0.0, %v1291
      %v1293 = vpop.f32.mrb[0].mxu0
      %1294 = vmatprep.mubr.bf16.mxu0 %v271
      %1295 = vmatmul.mubr.bf16.gmra.mrb[0].mxu0 %v270
      %v1296 = vpop.f32.mrb[0].mxu0
      %v1297 = vadd.f32 0.0, %v1296
      %v1298 = vpop.f32.mrb[0].mxu0
      %v1299 = vpop.f32.mrb[0].mxu0
      %v1300 = vadd.f32 0.0, %v1299
      %v1301 = vpop.f32.mrb[0].mxu0
      %1302 = vmatprep.mubr.bf16.mxu0 %v274
      %1303 = vmatmul.mubr.bf16.gmra.mrb[0].mxu0 %v273
      %v1304 = vpop.f32.mrb[0].mxu0
      %v1305 = vadd.f32 0.0, %v1304
      %v1306 = vpop.f32.mrb[0].mxu0
      %v1307 = vpop.f32.mrb[0].mxu0
      %v1308 = vadd.f32 0.0, %v1307
      %v1309 = vpop.f32.mrb[0].mxu0
      %1310 = vdwg.mxu0
      %1311 = vmatprep.subr.bf16.mxu0 0
      %1312 = vmatpush1.bf16.msra.mxu0 %v1226
      %1313 = vmatprep.subr.bf16.mxu0 0
      %1314 = vmatpush1.bf16.msra.mxu0 %v1227
      %1315 = vmatprep.subr.bf16.mxu0 0
      %1316 = vmatpush1.bf16.msra.mxu0 0
      %1317 = vmatprep.subr.bf16.mxu0 0
      %1318 = vmatpush1.bf16.msra.mxu0 0
      %1319 = vmatprep.subr.bf16.mxu0 0
      %1320 = vmatpush1.bf16.msra.mxu0 0
      %1321 = vmatprep.subr.bf16.mxu0 0
      %1322 = vmatpush1.bf16.msra.mxu0 0
      %1323 = vmatprep.subr.bf16.mxu0 0
      %1324 = vmatpush1.bf16.msra.mxu0 0
      %1325 = vmatprep.subr.bf16.mxu0 0
      %1326 = vmatpush1.bf16.msra.mxu0 0
      %1327 = vmatprep.subr.bf16.mxu0 0
      %1328 = vmatpush1.bf16.msra.mxu0 0
      %1329 = vmatprep.subr.bf16.mxu0 0
      %1330 = vmatpush1.bf16.msra.mxu0 0
      %1331 = vmatprep.subr.bf16.mxu0 0
      %1332 = vmatpush1.bf16.msra.mxu0 0
      %1333 = vmatprep.subr.bf16.mxu0 0
      %1334 = vmatpush1.bf16.msra.mxu0 0
      %1335 = vmatprep.subr.bf16.mxu0 0
      %1336 = vmatpush1.bf16.msra.mxu0 0
      %1337 = vmatprep.subr.bf16.mxu0 0
      %1338 = vmatpush1.bf16.msra.mxu0 0
      %1339 = vmatprep.subr.bf16.mxu0 0
      %1340 = vmatpush1.bf16.msra.mxu0 0
      %1341 = vmatprep.subr.bf16.mxu0 0
      %1342 = vmatpush1.bf16.msra.mxu0 0
      %1343 = vmatprep.mubr.bf16.mxu0 0
      %1344 = vmatmul.mubr.bf16.gmra.mrb[0].mxu0 %v394
      %v1345 = vpop.f32.mrb[0].mxu0
      %v1346 = vadd.f32 %v1281, %v1345
      %v1347 = vpop.f32.mrb[0].mxu0
      %v1348 = vpop.f32.mrb[0].mxu0
      %v1349 = vadd.f32 %v1284, %v1348
      %v1350 = vpop.f32.mrb[0].mxu0
      %1351 = vmatprep.mubr.bf16.mxu0 0
      %1352 = vmatmul.mubr.bf16.gmra.mrb[0].mxu0 %v397
      %v1353 = vpop.f32.mrb[0].mxu0
      %v1354 = vadd.f32 %v1289, %v1353
      %v1355 = vpop.f32.mrb[0].mxu0
      %v1356 = vpop.f32.mrb[0].mxu0
      %v1357 = vadd.f32 %v1292, %v1356
      %v1358 = vpop.f32.mrb[0].mxu0
      %1359 = vmatprep.mubr.bf16.mxu0 0
      %1360 = vmatmul.mubr.bf16.gmra.mrb[0].mxu0 %v400
      %v1361 = vpop.f32.mrb[0].mxu0
      %v1362 = vadd.f32 %v1297, %v1361
      %v1363 = vpop.f32.mrb[0].mxu0
      %v1364 = vpop.f32.mrb[0].mxu0
      %v1365 = vadd.f32 %v1300, %v1364
      %v1366 = vpop.f32.mrb[0].mxu0
      %1367 = vmatprep.mubr.bf16.mxu0 0
      %1368 = vmatmul.mubr.bf16.gmra.mrb[0].mxu0 %v403
      %v1369 = vpop.f32.mrb[0].mxu0
      %v1370 = vadd.f32 %v1305, %v1369
      %v1371 = vpop.f32.mrb[0].mxu0
      %v1372 = vpop.f32.mrb[0].mxu0
      %v1373 = vadd.f32 %v1308, %v1372
      %v1374 = vpop.f32.mrb[0].mxu0
      %1375 = vdwg.mxu0
      %v1376 = vmax.f32 %v1093, %v1346
      %v1377 = vmax.f32 %v1094, %v1349
      %v1378 = vmax.f32 %v1095, %v1354
      %v1379 = vmax.f32 %v1096, %v1357
      %v1380 = vmax.f32 %v1097, %v1362
      %v1381 = vmax.f32 %v1098, %v1365
      %v1382 = vmax.f32 %v1099, %v1370
      %v1383 = vmax.f32 %v1100, %v1373
      %v1384 = vld [vmem:[%s2] sm:$0xff]
      %v1385 = vld [vmem:[%s2 + $0x8] sm:$0xff]
      %v1386 = vld [vmem:[%s2 + $0x10] sm:$0xff]
      %v1387 = vld [vmem:[%s2 + $0x18] sm:$0xff]
      %v1388 = vld [vmem:[%s2 + $0x20] sm:$0xff]
      %v1389 = vld [vmem:[%s2 + $0x28] sm:$0xff]
      %v1390 = vld [vmem:[%s2 + $0x30] sm:$0xff]
      %v1391 = vld [vmem:[%s2 + $0x38] sm:$0xff]
      %1393 = vset.pattern.permute.xlu0 0
      %1394 = vperm.xlu0 %1393, %v1384
      %v1395 = vpop.permute.xlu0 %1394
      %1398 = vset.pattern.permute.xlu0 0
      %1399 = vperm.xlu0 %1398, %v1385
      %v1400 = vpop.permute.xlu0 %1399
      %1403 = vset.pattern.permute.xlu0 0
      %1404 = vperm.xlu0 %1403, %v1386
      %v1405 = vpop.permute.xlu0 %1404
      %1408 = vset.pattern.permute.xlu0 0
      %1409 = vperm.xlu0 %1408, %v1387
      %v1410 = vpop.permute.xlu0 %1409
      %1413 = vset.pattern.permute.xlu0 0
      %1414 = vperm.xlu0 %1413, %v1388
      %v1415 = vpop.permute.xlu0 %1414
      %1418 = vset.pattern.permute.xlu0 0
      %1419 = vperm.xlu0 %1418, %v1389
      %v1420 = vpop.permute.xlu0 %1419
      %1423 = vset.pattern.permute.xlu0 0
      %1424 = vperm.xlu0 %1423, %v1390
      %v1425 = vpop.permute.xlu0 %1424
      %1428 = vset.pattern.permute.xlu0 0
      %1429 = vperm.xlu0 %1428, %v1391
      %v1430 = vpop.permute.xlu0 %1429
      %v1432 = vadd.f32 %v1376, %v1395
      %v1433 = vadd.f32 %v1377, %v1400
      %v1434 = vadd.f32 %v1378, %v1405
      %v1435 = vadd.f32 %v1379, %v1410
      %v1436 = vadd.f32 %v1380, %v1415
      %v1437 = vadd.f32 %v1381, %v1420
      %v1438 = vadd.f32 %v1382, %v1425
      %v1439 = vadd.f32 %v1383, %v1430
      %v1440 = vmax.f32 %v1432, 0.0
      %v1441 = vmax.f32 %v1433, 0.0
      %v1442 = vmax.f32 %v1434, 0.0
      %v1443 = vmax.f32 %v1435, 0.0
      %v1444 = vmax.f32 %v1436, 0.0
      %v1445 = vmax.f32 %v1437, 0.0
      %v1446 = vmax.f32 %v1438, 0.0
      %v1447 = vmax.f32 %v1439, 0.0
      %v1448 = vpack.c.bf16 %v1441, %v1440
      %v1449 = vpack.c.bf16 %v1443, %v1442
      %v1450 = vpack.c.bf16 %v1445, %v1444
      %v1451 = vpack.c.bf16 %v1447, %v1446
      %v1456 = vunpack.c.l.b16 %v1448
      %v1457 = vunpack.c.h.b16 %v1448
      %v1458 = vunpack.c.l.b16 %v1449
      %v1459 = vunpack.c.h.b16 %v1449
      %v1460 = vunpack.c.l.b16 %v1450
      %v1461 = vunpack.c.h.b16 %v1450
      %v1462 = vunpack.c.l.b16 %v1451
      %v1463 = vunpack.c.h.b16 %v1451
      %v1464 = vpack.c.b16 %v1456, %v1456
      %v1465 = vpack.c.b16 %v1457, %v1457
      %v1466 = vpack.c.b16 %v1458, %v1458
      %v1467 = vpack.c.b16 %v1459, %v1459
      %v1468 = vpack.c.b16 %v1460, %v1460
      %v1469 = vpack.c.b16 %v1461, %v1461
      %v1470 = vpack.c.b16 %v1462, %v1462
      %v1471 = vpack.c.b16 %v1463, %v1463
      %vm1480 = vcmask 68608
      %1481 = vst.msk [vmem:[%s170] sm:$0xf] %vm1480, %v1464
      %1482 = vst.msk [vmem:[%s170 + $0x4] sm:$0xf] %vm1480, %v1465
      %1483 = vst.msk [vmem:[%s170 + $0x8] sm:$0xf] %vm1480, %v1466
      %1484 = vst.msk [vmem:[%s170 + $0xc] sm:$0xf] %vm1480, %v1467
      %1485 = vst.msk [vmem:[%s170 + $0x10] sm:$0xf] %vm1480, %v1468
      %1486 = vst.msk [vmem:[%s170 + $0x14] sm:$0xf] %vm1480, %v1469
      %1487 = vst.msk [vmem:[%s170 + $0x18] sm:$0xf] %vm1480, %v1470
      %1488 = vst.msk [vmem:[%s170 + $0x1c] sm:$0xf] %vm1480, %v1471
      %p1489 = scmp.lt.s32.totalorder %s14, 1
      %s1490 = scalar_select %p1489, %s14, 1
      %s1491 = smul.addr %s1490, 8
      %s1492 = smul.addr %s1491, 4
      %s1493 = scalar_lea.vmem %s3, %s1492
      // Predicated region
      $region33: #{_lambda_.6} parent=31 // pred_check
        %p1494 = pneg %p100
      $region34: #{_lambda_.6} parent=31 // pred_check_branch
        %1496 = sbr.rel (%p1494) target = $region36
      $region35: #{_lambda_.6} parent=31 // pred_region
        _
      $region36: #{_lambda_.6} parent=31 // pred_fallthru
        _
    $region32: #{_lambda_.6} parent=5 // pred_fallthru
      _
    %p1497 = scmp.le.s32.totalorder 2, %s9
    // Predicated region
    $region37: #{_lambda_.6} parent=5 // pred_check
      %p1498 = pneg %p1497
    $region38: #{_lambda_.6} parent=5 // pred_check_branch
      %1500 = sbr.rel (%p1498) target = $region40
    $region39: #{_lambda_.6} parent=5 // pred_region
      %s1501 = ssub.s32 %s9, 2
      // Predicated region
      $region41: #{_lambda_.6} parent=39 // pred_check
        %p1502 = pneg %p106
      $region42: #{_lambda_.6} parent=39 // pred_check_branch
        %1504 = sbr.rel (%p1502) target = $region44
      $region43: #{_lambda_.6} parent=39 // pred_region
        %p1505 = scmp.lt.s32.totalorder %s15, 1
        %s1506 = scalar_select %p1505, %s15, 1
        %s1507 = smul.addr %s1506, 8
        %s1508 = smul.addr %s1507, 4
        %s1509 = scalar_lea.vmem %s3, %s1508
      $region44: #{_lambda_.6} parent=39 // pred_fallthru
        _
    $region40: #{_lambda_.6} parent=5 // pred_fallthru
      _
  $region6: #{_lambda_.6} parent=0 // loop_footer
    %s13 = sadd.s32 1, %s9
  $region7: #{_lambda_.6} parent=0 // loop_footer_branch
    %8 = sbr.rel target = $region3
  $region8: #{_lambda_.6} parent=0 // loop_exit
    _

</llo_original>
